<compile_context>
chip_gen: v6e
topology: v6e:2x2x1
jax: 0.10.0
libtpu: 0.0.40
codegen_flags: <defaults>
</compile_context>

<pallas_src>
import functools

import jax
import jax.numpy as jnp
from jax.experimental import pallas as pl
from jax.experimental.pallas import tpu as pltpu

BN_EPS = 1e-5
LANES = 128


def _round_up(x, m):
    return ((x + m - 1) // m) * m


def _cdiv(a, b):
    return (a + b - 1) // b


def _pick_tm(M):
    """Pick an M-tile that minimizes padded rows (multiple of 16 for bf16 tiles)."""
    target = 1024 if M >= 8192 else 512
    nblocks = max(1, _cdiv(M, target))
    tm = _round_up(_cdiv(M, nblocks), 16)
    return tm, tm * nblocks


# ----------------------------------------------------------------------------
# Pallas kernels
# ----------------------------------------------------------------------------
def _conv_mm_stats_kernel(x_ref, w_ref, o_ref, stats_ref):
    """One M-tile of conv-as-matmul (bf16 @ bf16, f32 acc) + per-tile BN partial stats.

    Output is stored in bf16 (halves HBM traffic); stats stay f32."""
    acc = jnp.dot(x_ref[...], w_ref[...], preferred_element_type=jnp.float32)
    o_ref[...] = acc.astype(o_ref.dtype)
    # Two direct sub-ref stores (no concat/reshape round-trip).
    stats_ref[0:1, 0:1, :] = jnp.sum(acc, axis=0, keepdims=True).reshape(1, 1, LANES)
    stats_ref[0:1, 1:2, :] = jnp.sum(acc * acc, axis=0, keepdims=True).reshape(1, 1, LANES)


def conv_matmul_stats(patches, w, *, tm):
    """patches:(Mpad,K) bf16, w:(K,128) bf16 -> (y:(Mpad,128) bf16, stats:(G,2,128) f32)."""
    Mpad, K = patches.shape
    K2, n = w.shape
    assert K == K2 and n == LANES and Mpad % tm == 0
    grid = Mpad // tm
    return pl.pallas_call(
        _conv_mm_stats_kernel,
        out_shape=(
            jax.ShapeDtypeStruct((Mpad, LANES), jnp.bfloat16),
            jax.ShapeDtypeStruct((grid, 2, LANES), jnp.float32),
        ),
        grid_spec=pltpu.PrefetchScalarGridSpec(
            num_scalar_prefetch=0,
            grid=(grid,),
            in_specs=[
                pl.BlockSpec((tm, K), lambda i: (i, 0)),
                pl.BlockSpec((K, LANES), lambda i: (0, 0)),
            ],
            out_specs=(
                pl.BlockSpec((tm, LANES), lambda i: (i, 0)),
                pl.BlockSpec((1, 2, LANES), lambda i: (i, 0, 0)),
            ),
        ),
        compiler_params=pltpu.CompilerParams(dimension_semantics=("parallel",)),
    )(patches, w)


def _bn_relu_stats_kernel(y_ref, stats_ref, g_ref, b_ref, o_ref, *, inv_m):
    """Fused BatchNorm finalize (from partial sums) + affine + ReLU on one M-tile."""
    # TODO(synk): E[x^2]-E[x]^2 in f32 can lose precision for huge batches; a
    # Welford-style combine would be more robust (irrelevant at these sizes).
    st = jnp.sum(stats_ref[...], axis=0)            # (2, 128) f32, reduce over tiles
    mean = st[0:1, :] * inv_m
    var = jnp.maximum(st[1:2, :] * inv_m - mean * mean, 0.0)
    scale = g_ref[...] * jax.lax.rsqrt(var + BN_EPS)
    shift = b_ref[...] - mean * scale
    y = y_ref[...].astype(jnp.float32)
    o_ref[...] = jnp.maximum(y * scale + shift, 0.0).astype(o_ref.dtype)


def bn_relu_fused(y, stats, gamma_p, beta_p, *, tm, inv_m, out_dtype=jnp.bfloat16):
    """y:(Mpad,128) bf16, stats:(G,2,128) f32, gamma/beta:(1,128) f32 -> (Mpad,128) bf16."""
    Mpad, C = y.shape
    assert C == LANES and Mpad % tm == 0
    G = stats.shape[0]
    grid = Mpad // tm
    kernel = functools.partial(_bn_relu_stats_kernel, inv_m=inv_m)
    return pl.pallas_call(
        kernel,
        out_shape=jax.ShapeDtypeStruct((Mpad, C), out_dtype),
        grid_spec=pltpu.PrefetchScalarGridSpec(
            num_scalar_prefetch=0,
            grid=(grid,),
            in_specs=[
                pl.BlockSpec((tm, C), lambda i: (i, 0)),
                pl.BlockSpec((G, 2, C), lambda i: (0, 0, 0)),
                pl.BlockSpec((1, C), lambda i: (0, 0)),
                pl.BlockSpec((1, C), lambda i: (0, 0)),
            ],
            out_specs=pl.BlockSpec((tm, C), lambda i: (i, 0)),
        ),
        compiler_params=pltpu.CompilerParams(dimension_semantics=("parallel",)),
    )(y, stats, gamma_p, beta_p)


def _conv3_fc_fused_kernel(p3_ref, w3_ref, g3_ref, b3_ref,
                           wfc1_ref, bfc1_ref, wfc2_ref, bfc2_ref,
                           o_ref, *, inv_m):
    """conv3 (3x3 output) + BN(batch stats) + ReLU + fc1(1152->512) + ReLU + fc2(512->3).

    p3_ref: (9, n_pad, 1024) bf16 im2col patches, ordered (spatial position, frame).
    wfc1_ref: (9, 128, 512) bf16 -- fc1 weight split per spatial position so the
    flatten is a sum of 9 position-blocked matmuls (no lane-dim reshape needed)."""
    # conv3 matmuls per spatial position; accumulate BN partial sums (f32).
    accs = []
    ssum = jnp.zeros((1, LANES), jnp.float32)
    ssq = jnp.zeros((1, LANES), jnp.float32)
    for p in range(9):
        a = jnp.dot(p3_ref[p], w3_ref[...], preferred_element_type=jnp.float32)
        accs.append(a)
        ssum = ssum + jnp.sum(a, axis=0, keepdims=True)
        ssq = ssq + jnp.sum(a * a, axis=0, keepdims=True)
    # Zero-padded frames contribute 0 to the sums; divide by the true count.
    mean = ssum * inv_m
    var = jnp.maximum(ssq * inv_m - mean * mean, 0.0)
    scale = g3_ref[...] * jax.lax.rsqrt(var + BN_EPS)
    shift = b3_ref[...] - mean * scale
    # BN + ReLU + fc1 (position-blocked): h[n] = sum_p relu(bn(acc_p))[n] @ Wfc1[p]
    n_pad = p3_ref.shape[1]
    h = jnp.zeros((n_pad, 512), jnp.float32)
    for p in range(9):
        z = jnp.maximum(accs[p] * scale + shift, 0.0).astype(jnp.bfloat16)
        h = h + jnp.dot(z, wfc1_ref[p], preferred_element_type=jnp.float32)
    h = jnp.maximum(h + bfc1_ref[...], 0.0).astype(jnp.bfloat16)
    out = jnp.dot(h, wfc2_ref[...], preferred_element_type=jnp.float32)
    o_ref[...] = out + bfc2_ref[...]


def conv3_fc_fused(p3, params, *, n_true):
    """p3:(9, n_pad, 1024) bf16 -> (n_pad, 128) f32 (fc2 output, lanes >=3 are padding)."""
    n_pad = p3.shape[1]
    kernel = functools.partial(_conv3_fc_fused_kernel, inv_m=1.0 / float(9 * n_true))
    # Grid-less call: every operand fits VMEM comfortably (< 2 MiB total).
    return pl.pallas_call(
        kernel,
        out_shape=jax.ShapeDtypeStruct((n_pad, LANES), jnp.float32),
    )(p3, params["w3"], params["g3"], params["be3"],
      params["wfc1"], params["bfc1"], params["wfc2"], params["bfc2"])


def _fc_fused_kernel(x_ref, w1_ref, b1_ref, w2_ref, b2_ref, o_ref):
    """Fallback FC tail (large batch): h = relu(x @ w1 + b1); out = h @ w2 + b2."""
    h = jnp.dot(x_ref[...], w1_ref[...], preferred_element_type=jnp.float32)
    h = jnp.maximum(h + b1_ref[...], 0.0).astype(w2_ref.dtype)
    o_ref[...] = jnp.dot(h, w2_ref[...], preferred_element_type=jnp.float32) + b2_ref[...]


def fc_tail(x, w1, b1, w2, b2):
    """x:(M,1152) bf16 -> (Mpad,128) f32 (fc2 output lane-padded; caller slices)."""
    M, K = x.shape
    H = w1.shape[1]
    nblocks = max(1, _cdiv(M, 256))
    tm = _round_up(_cdiv(M, nblocks), 16)
    Mpad = tm * nblocks
    if Mpad != M:
        x = jnp.pad(x, ((0, Mpad - M), (0, 0)))
    return pl.pallas_call(
        _fc_fused_kernel,
        out_shape=jax.ShapeDtypeStruct((Mpad, LANES), jnp.float32),
        grid_spec=pltpu.PrefetchScalarGridSpec(
            num_scalar_prefetch=0,
            grid=(Mpad // tm,),
            in_specs=[
                pl.BlockSpec((tm, K), lambda i: (i, 0)),
                pl.BlockSpec((K, H), lambda i: (0, 0)),
                pl.BlockSpec((1, H), lambda i: (0, 0)),
                pl.BlockSpec((H, LANES), lambda i: (0, 0)),
                pl.BlockSpec((1, LANES), lambda i: (0, 0)),
            ],
            out_specs=pl.BlockSpec((tm, LANES), lambda i: (i, 0)),
        ),
        compiler_params=pltpu.CompilerParams(dimension_semantics=("parallel",)),
    )(x, w1, b1, w2, b2)


# ----------------------------------------------------------------------------
# Glue: im2col patch extraction (layout plumbing only, no FLOP-heavy compute)
# ----------------------------------------------------------------------------
def im2col(x, k, s):
    """NHWC x -> ((N*OH*OW, k*k*C) patches with (kh,kw,cin) feature order, (N,OH,OW))."""
    # TODO(synk): conv1's im2col is still materialized in HBM by XLA; an in-kernel
    # patch extraction (manual DMA of raw 84x84x4 row stripes) would cut conv1 HBM
    # reads ~3-4x at large batch but is left as XLA glue for robustness.
    N, H, W, C = x.shape
    OH = (H - k) // s + 1
    OW = (W - k) // s + 1
    cols = []
    for kh in range(k):
        for kw in range(k):
            cols.append(x[:, kh:kh + s * (OH - 1) + 1:s,
                          kw:kw + s * (OW - 1) + 1:s, :])
    patches = jnp.concatenate(cols, axis=-1)            # (N, OH, OW, k*k*C)
    return patches.reshape(N * OH * OW, k * k * C), (N, OH, OW)


def conv_bn_relu(x_nhwc, wm, gamma_p, beta_p, *, k, s, cout):
    """Conv2d (stride s, no padding, bias folded away) -> BatchNorm2d (batch stats) -> ReLU."""
    patches, (N, OH, OW) = im2col(x_nhwc, k, s)
    M = patches.shape[0]
    tm, Mpad = _pick_tm(M)
    if Mpad != M:
        # zero rows -> zero conv outputs -> no effect on the BN partial sums
        patches = jnp.pad(patches, ((0, Mpad - M), (0, 0)))
    y, stats = conv_matmul_stats(patches, wm, tm=tm)
    z = bn_relu_fused(y, stats, gamma_p, beta_p, tm=tm, inv_m=1.0 / M)
    return z[:M, :cout].reshape(N, OH, OW, cout)


# ----------------------------------------------------------------------------
# Parameters (deterministic synthetic init; shapes match the nn.Module)
# ----------------------------------------------------------------------------
def init_params(key):
    ks = jax.random.split(key, 16)
    p = {}
    p["w1"] = 0.05 * jax.random.normal(ks[0], (32, 4, 8, 8), jnp.float32)
    p["b1"] = 0.05 * jax.random.normal(ks[1], (32,), jnp.float32)
    p["g1"] = 1.0 + 0.1 * jax.random.normal(ks[2], (32,), jnp.float32)
    p["be1"] = 0.1 * jax.random.normal(ks[3], (32,), jnp.float32)

    p["w2"] = 0.05 * jax.random.normal(ks[4], (64, 32, 4, 4), jnp.float32)
    p["b2"] = 0.05 * jax.random.normal(ks[5], (64,), jnp.float32)
    p["g2"] = 1.0 + 0.1 * jax.random.normal(ks[6], (64,), jnp.float32)
    p["be2"] = 0.1 * jax.random.normal(ks[7], (64,), jnp.float32)

    p["w3"] = 0.05 * jax.random.normal(ks[8], (128, 64, 4, 4), jnp.float32)
    p["b3"] = 0.05 * jax.random.normal(ks[9], (128,), jnp.float32)
    p["g3"] = 1.0 + 0.1 * jax.random.normal(ks[10], (128,), jnp.float32)
    p["be3"] = 0.1 * jax.random.normal(ks[11], (128,), jnp.float32)

    # nn.Linear weights stored PyTorch-style (out_features, in_features)
    p["wfc1"] = 0.03 * jax.random.normal(ks[12], (512, 3 * 3 * 128), jnp.float32)
    p["bfc1"] = 0.03 * jax.random.normal(ks[13], (512,), jnp.float32)
    p["wfc2"] = 0.03 * jax.random.normal(ks[14], (3, 512), jnp.float32)
    p["bfc2"] = 0.03 * jax.random.normal(ks[15], (3,), jnp.float32)
    return p


def prepare_params(p):
    """One-time (outside jit) conversion of PyTorch-layout params into kernel operands."""
    def conv_w(w):
        cout, cin, k, _ = w.shape
        # (Cout,Cin,K,K) -> (K*K*Cin, Cout) matching im2col's (kh,kw,cin) order; lane-pad to 128
        wm = jnp.transpose(w, (2, 3, 1, 0)).reshape(k * k * cin, cout)
        wm = jnp.pad(wm, ((0, 0), (0, LANES - cout)))
        return wm.astype(jnp.bfloat16)

    def lane_pad(v):
        return jnp.zeros((1, LANES), jnp.float32).at[0, :v.shape[0]].set(v)

    q = {"w1": conv_w(p["w1"]), "w2": conv_w(p["w2"]), "w3": conv_w(p["w3"])}
    # Conv biases b1/b2/b3 intentionally unused: training-mode BatchNorm subtracts the
    # batch mean, which cancels a constant per-channel bias exactly (variance unaffected).
    for i in (1, 2, 3):
        q[f"g{i}"] = lane_pad(p[f"g{i}"].astype(jnp.float32))
        q[f"be{i}"] = lane_pad(p[f"be{i}"].astype(jnp.float32))

    # flatten = Linear(3*3*128, 512).  PyTorch flattens NCHW (c,h,w); our conv3 output is
    # NHWC (h,w,c), so fold that permutation into fc1's rows here, once; then split the
    # 1152 rows into 9 per-spatial-position (128,512) blocks for the fused kernel.
    wfc1 = p["wfc1"].T                                               # (1152,512), rows c*9+h*3+w
    wfc1 = wfc1.reshape(128, 3, 3, 512).transpose(1, 2, 0, 3)        # (3,3,128,512) rows (h,w,c)
    q["wfc1"] = wfc1.reshape(9, 128, 512).astype(jnp.bfloat16)
    q["bfc1"] = p["bfc1"].reshape(1, 512).astype(jnp.float32)

    # fc2 = Linear(512, 3): lane-pad the 3-wide output to 128 (exact; sliced back after).
    w2p = jnp.zeros((512, LANES), jnp.float32).at[:, :3].set(p["wfc2"].T)
    q["wfc2"] = w2p.astype(jnp.bfloat16)
    q["bfc2"] = jnp.zeros((1, LANES), jnp.float32).at[0, :3].set(p["bfc2"])
    return q


# ----------------------------------------------------------------------------
# Forward pass (mirrors DeepQNetwork.forward, BatchNorm in training mode)
# ----------------------------------------------------------------------------
def deep_q_forward(params, observation):
    # observation.view(-1, 4, 84, 84)   (NCHW, like PyTorch) -> NHWC bf16 matmul operands
    x = observation.reshape(-1, 4, 84, 84).astype(jnp.float32)
    n = x.shape[0]
    x = jnp.transpose(x, (0, 2, 3, 1)).astype(jnp.bfloat16)

    x = conv_bn_relu(x, params["w1"], params["g1"], params["be1"], k=8, s=4, cout=32)
    x = conv_bn_relu(x, params["w2"], params["g2"], params["be2"], k=4, s=2, cout=64)

    if n <= 48:
        # Fused conv3 + BN + ReLU + Linear(1152,512) + ReLU + Linear(512,3): one pallas_call.
        patches3, (_, oh, ow) = im2col(x, 4, 2)                    # (n*9, 1024), rows (n, p)
        assert oh == 3 and ow == 3
        n_pad = max(16, _round_up(n, 16))                          # keep bf16 tiles aligned
        p3 = patches3.reshape(n, 9, 1024).transpose(1, 0, 2)       # (9, n, 1024)
        p3 = jnp.pad(p3, ((0, 0), (0, n_pad - n), (0, 0)))
        out = conv3_fc_fused(p3, params, n_true=n)
        return out[:n, :3]

    # Large-batch fallback: separate conv3 stage + fused FC tail.
    x = conv_bn_relu(x, params["w3"], params["g3"], params["be3"], k=4, s=2, cout=128)
    xf = x.reshape(n, 9 * 128)                                     # NHWC flatten matches wfc1
    out = fc_tail(xf, params["wfc1"].reshape(9 * 128, 512), params["bfc1"],
                  params["wfc2"], params["bfc2"])
    return out[:n, :3]


if __name__ == "__main__":
    key = jax.random.PRNGKey(0)
    pkey, xkey = jax.random.split(key)
    params = init_params(pkey)
    kparams = prepare_params(params)          # weight transforms done once, outside jit

    # batch=2 frames of 4x84x84 (the forward's view(-1, 4, 84, 84) fixes the spatial size)
    observation = jax.random.uniform(xkey, (2, 4, 84, 84), jnp.float32)

    fwd = jax.jit(deep_q_forward)
    actions = jax.block_until_ready(fwd(kparams, observation))
    assert actions.shape == (2, 3)
    assert bool(jnp.all(jnp.isfinite(actions)))
    print("KERNEL_OK")
</pallas_src>

<mosaic_0001>
module attributes {stable_mosaic.version = 11 : i64} {
  func.func @_conv_mm_stats_kernel(%arg0: i32, %arg1: memref<400x256xbf16, #tpu.memory_space<vmem>>, %arg2: memref<256x128xbf16, #tpu.memory_space<vmem>>, %arg3: memref<400x128xbf16, #tpu.memory_space<vmem>>, %arg4: memref<1x2x128xf32, #tpu.memory_space<vmem>>) attributes {dimension_semantics = [#tpu.dimension_semantics<parallel>], iteration_bounds = array<i64: 2>, scalar_prefetch = 0 : i64, scratch_operands = 0 : i64, tpu.core_type = #tpu.core_type<tc>, window_params = [{transform_indices = @transform_0, window_bounds = array<i64: 400, 256>}, {pipeline_mode = #tpu.pipeline_mode<synchronous>, transform_indices = @transform_1, window_bounds = array<i64: 256, 128>}, {transform_indices = @transform_2, window_bounds = array<i64: 400, 128>}, {transform_indices = @transform_3, window_bounds = array<i64: 1, 2, 128>}]} {
    %c0 = arith.constant 0 : index
    %c0_0 = arith.constant 0 : index
    %0 = vector.load %arg1[%c0, %c0_0] : memref<400x256xbf16, #tpu.memory_space<vmem>>, vector<400x256xbf16>
    %c0_1 = arith.constant 0 : index
    %c0_2 = arith.constant 0 : index
    %1 = vector.load %arg2[%c0_1, %c0_2] : memref<256x128xbf16, #tpu.memory_space<vmem>>, vector<256x128xbf16>
    %cst = arith.constant dense<0.000000e+00> : vector<400x128xf32>
    %2 = tpu.matmul %0, %1, %cst {dimension_numbers = #tpu.dot_dimension_numbers<[1], [0], [0], [1], [0, 0, 1, 1], [], []>} : vector<400x256xbf16>, vector<256x128xbf16>, vector<400x128xf32> -> vector<400x128xf32>
    %3 = arith.truncf %2 : vector<400x128xf32> to vector<400x128xbf16>
    %c0_3 = arith.constant 0 : index
    %c0_4 = arith.constant 0 : index
    %4 = vector.load %arg3[%c0_3, %c0_4] : memref<400x128xbf16, #tpu.memory_space<vmem>>, vector<400x128xbf16>
    tpu.vector_store %arg3[%c0_3, %c0_4], %3 {strides = array<i32>} : memref<400x128xbf16, #tpu.memory_space<vmem>>, vector<400x128xbf16>,
    %cst_5 = arith.constant dense<0.000000e+00> : vector<128xf32>
    %5 = vector.multi_reduction <add>, %2, %cst_5 [0] : vector<400x128xf32> to vector<128xf32>
    %6 = vector.shape_cast %5 : vector<128xf32> to vector<1x128xf32>
    %7 = vector.shape_cast %6 : vector<1x128xf32> to vector<1x1x128xf32>
    %c0_6 = arith.constant 0 : index
    %c0_7 = arith.constant 0 : index
    %c0_8 = arith.constant 0 : index
    %8 = vector.load %arg4[%c0_6, %c0_7, %c0_8] : memref<1x2x128xf32, #tpu.memory_space<vmem>>, vector<1x1x128xf32>
    tpu.vector_store %arg4[%c0_6, %c0_7, %c0_8], %7 {strides = array<i32>} : memref<1x2x128xf32, #tpu.memory_space<vmem>>, vector<1x1x128xf32>,
    %9 = arith.mulf %2, %2 : vector<400x128xf32>
    %cst_9 = arith.constant dense<0.000000e+00> : vector<128xf32>
    %10 = vector.multi_reduction <add>, %9, %cst_9 [0] : vector<400x128xf32> to vector<128xf32>
    %11 = vector.shape_cast %10 : vector<128xf32> to vector<1x128xf32>
    %12 = vector.shape_cast %11 : vector<1x128xf32> to vector<1x1x128xf32>
    %c0_10 = arith.constant 0 : index
    %c1 = arith.constant 1 : index
    %c0_11 = arith.constant 0 : index
    %13 = vector.load %arg4[%c0_10, %c1, %c0_11] : memref<1x2x128xf32, #tpu.memory_space<vmem>>, vector<1x1x128xf32>
    tpu.vector_store %arg4[%c0_10, %c1, %c0_11], %12 {strides = array<i32>} : memref<1x2x128xf32, #tpu.memory_space<vmem>>, vector<1x1x128xf32>,
    return
  }
  func.func @transform_0(%arg0: i32) -> (i32, i32) {
    %c0_i32 = arith.constant 0 : i32
    %c0_i32_0 = arith.constant 0 : i32
    return %arg0, %c0_i32 : i32, i32
  }
  func.func @transform_1(%arg0: i32) -> (i32, i32) {
    %c0_i32 = arith.constant 0 : i32
    %c0_i32_0 = arith.constant 0 : i32
    %c0_i32_1 = arith.constant 0 : i32
    return %c0_i32, %c0_i32_0 : i32, i32
  }
  func.func @transform_2(%arg0: i32) -> (i32, i32) {
    %c0_i32 = arith.constant 0 : i32
    %c0_i32_0 = arith.constant 0 : i32
    return %arg0, %c0_i32 : i32, i32
  }
  func.func @transform_3(%arg0: i32) -> (i32, i32, i32) {
    %c0_i32 = arith.constant 0 : i32
    %c0_i32_0 = arith.constant 0 : i32
    %c0_i32_1 = arith.constant 0 : i32
    return %arg0, %c0_i32, %c0_i32_0 : i32, i32, i32
  }
}

module attributes {stable_mosaic.version = 11 : i64} {
  func.func @_bn_relu_stats_kernel(%arg0: i32, %arg1: memref<400x128xbf16, #tpu.memory_space<vmem>>, %arg2: memref<2x2x128xf32, #tpu.memory_space<vmem>>, %arg3: memref<1x128xf32, #tpu.memory_space<vmem>>, %arg4: memref<1x128xf32, #tpu.memory_space<vmem>>, %arg5: memref<400x128xbf16, #tpu.memory_space<vmem>>) attributes {dimension_semantics = [#tpu.dimension_semantics<parallel>], iteration_bounds = array<i64: 2>, scalar_prefetch = 0 : i64, scratch_operands = 0 : i64, tpu.core_type = #tpu.core_type<tc>, window_params = [{transform_indices = @transform_0, window_bounds = array<i64: 400, 128>}, {pipeline_mode = #tpu.pipeline_mode<synchronous>, transform_indices = @transform_1, window_bounds = array<i64: 2, 2, 128>}, {pipeline_mode = #tpu.pipeline_mode<synchronous>, transform_indices = @transform_2, window_bounds = array<i64: 1, 128>}, {pipeline_mode = #tpu.pipeline_mode<synchronous>, transform_indices = @transform_3, window_bounds = array<i64: 1, 128>}, {transform_indices = @transform_4, window_bounds = array<i64: 400, 128>}]} {
    %c0 = arith.constant 0 : index
    %c0_0 = arith.constant 0 : index
    %c0_1 = arith.constant 0 : index
    %0 = vector.load %arg2[%c0, %c0_0, %c0_1] : memref<2x2x128xf32, #tpu.memory_space<vmem>>, vector<2x2x128xf32>
    %cst = arith.constant dense<0.000000e+00> : vector<2x128xf32>
    %1 = vector.multi_reduction <add>, %0, %cst [0] : vector<2x2x128xf32> to vector<2x128xf32>
    %2 = vector.extract_strided_slice %1 {offsets = [0, 0], sizes = [1, 128], strides = [1, 1]} : vector<2x128xf32> to vector<1x128xf32>
    %cst_2 = arith.constant 1.250000e-03 : f32
    %3 = vector.broadcast %cst_2 : f32 to vector<1x128xf32>
    %4 = arith.mulf %2, %3 : vector<1x128xf32>
    %5 = vector.extract_strided_slice %1 {offsets = [1, 0], sizes = [1, 128], strides = [1, 1]} : vector<2x128xf32> to vector<1x128xf32>
    %cst_3 = arith.constant 1.250000e-03 : f32
    %6 = vector.broadcast %cst_3 : f32 to vector<1x128xf32>
    %7 = arith.mulf %5, %6 : vector<1x128xf32>
    %8 = arith.mulf %4, %4 : vector<1x128xf32>
    %9 = arith.subf %7, %8 : vector<1x128xf32>
    %cst_4 = arith.constant 0.000000e+00 : f32
    %10 = vector.broadcast %cst_4 : f32 to vector<1x128xf32>
    %11 = arith.maximumf %9, %10 : vector<1x128xf32>
    %c0_5 = arith.constant 0 : index
    %c0_6 = arith.constant 0 : index
    %12 = vector.load %arg3[%c0_5, %c0_6] : memref<1x128xf32, #tpu.memory_space<vmem>>, vector<1x128xf32>
    %cst_7 = arith.constant 9.99999974E-6 : f32
    %13 = vector.broadcast %cst_7 : f32 to vector<1x128xf32>
    %14 = arith.addf %11, %13 : vector<1x128xf32>
    %15 = math.rsqrt %14 : vector<1x128xf32>
    %16 = arith.mulf %12, %15 : vector<1x128xf32>
    %c0_8 = arith.constant 0 : index
    %c0_9 = arith.constant 0 : index
    %17 = vector.load %arg4[%c0_8, %c0_9] : memref<1x128xf32, #tpu.memory_space<vmem>>, vector<1x128xf32>
    %18 = arith.mulf %4, %16 : vector<1x128xf32>
    %19 = arith.subf %17, %18 : vector<1x128xf32>
    %c0_10 = arith.constant 0 : index
    %c0_11 = arith.constant 0 : index
    %20 = vector.load %arg1[%c0_10, %c0_11] : memref<400x128xbf16, #tpu.memory_space<vmem>>, vector<400x128xbf16>
    %21 = arith.extf %20 : vector<400x128xbf16> to vector<400x128xf32>
    %22 = vector.broadcast %16 : vector<1x128xf32> to vector<400x128xf32>
    %23 = arith.mulf %21, %22 : vector<400x128xf32>
    %24 = vector.broadcast %19 : vector<1x128xf32> to vector<400x128xf32>
    %25 = arith.addf %23, %24 : vector<400x128xf32>
    %cst_12 = arith.constant 0.000000e+00 : f32
    %26 = vector.broadcast %cst_12 : f32 to vector<400x128xf32>
    %27 = arith.maximumf %25, %26 : vector<400x128xf32>
    %28 = arith.truncf %27 : vector<400x128xf32> to vector<400x128xbf16>
    %c0_13 = arith.constant 0 : index
    %c0_14 = arith.constant 0 : index
    %29 = vector.load %arg5[%c0_13, %c0_14] : memref<400x128xbf16, #tpu.memory_space<vmem>>, vector<400x128xbf16>
    tpu.vector_store %arg5[%c0_13, %c0_14], %28 {strides = array<i32>} : memref<400x128xbf16, #tpu.memory_space<vmem>>, vector<400x128xbf16>,
    return
  }
  func.func @transform_0(%arg0: i32) -> (i32, i32) {
    %c0_i32 = arith.constant 0 : i32
    %c0_i32_0 = arith.constant 0 : i32
    return %arg0, %c0_i32 : i32, i32
  }
  func.func @transform_1(%arg0: i32) -> (i32, i32, i32) {
    %c0_i32 = arith.constant 0 : i32
    %c0_i32_0 = arith.constant 0 : i32
    %c0_i32_1 = arith.constant 0 : i32
    %c0_i32_2 = arith.constant 0 : i32
    return %c0_i32, %c0_i32_0, %c0_i32_1 : i32, i32, i32
  }
  func.func @transform_2(%arg0: i32) -> (i32, i32) {
    %c0_i32 = arith.constant 0 : i32
    %c0_i32_0 = arith.constant 0 : i32
    %c0_i32_1 = arith.constant 0 : i32
    return %c0_i32, %c0_i32_0 : i32, i32
  }
  func.func @transform_3(%arg0: i32) -> (i32, i32) {
    %c0_i32 = arith.constant 0 : i32
    %c0_i32_0 = arith.constant 0 : i32
    %c0_i32_1 = arith.constant 0 : i32
    return %c0_i32, %c0_i32_0 : i32, i32
  }
  func.func @transform_4(%arg0: i32) -> (i32, i32) {
    %c0_i32 = arith.constant 0 : i32
    %c0_i32_0 = arith.constant 0 : i32
    return %arg0, %c0_i32 : i32, i32
  }
}

module attributes {stable_mosaic.version = 11 : i64} {
  func.func @_conv_mm_stats_kernel(%arg0: i32, %arg1: memref<176x512xbf16, #tpu.memory_space<vmem>>, %arg2: memref<512x128xbf16, #tpu.memory_space<vmem>>, %arg3: memref<176x128xbf16, #tpu.memory_space<vmem>>, %arg4: memref<1x2x128xf32, #tpu.memory_space<vmem>>) attributes {dimension_semantics = [#tpu.dimension_semantics<parallel>], iteration_bounds = array<i64: 1>, scalar_prefetch = 0 : i64, scratch_operands = 0 : i64, tpu.core_type = #tpu.core_type<tc>, window_params = [{transform_indices = @transform_0, window_bounds = array<i64: 176, 512>}, {pipeline_mode = #tpu.pipeline_mode<synchronous>, transform_indices = @transform_1, window_bounds = array<i64: 512, 128>}, {transform_indices = @transform_2, window_bounds = array<i64: 176, 128>}, {transform_indices = @transform_3, window_bounds = array<i64: 1, 2, 128>}]} {
    %c0 = arith.constant 0 : index
    %c0_0 = arith.constant 0 : index
    %0 = vector.load %arg1[%c0, %c0_0] : memref<176x512xbf16, #tpu.memory_space<vmem>>, vector<176x512xbf16>
    %c0_1 = arith.constant 0 : index
    %c0_2 = arith.constant 0 : index
    %1 = vector.load %arg2[%c0_1, %c0_2] : memref<512x128xbf16, #tpu.memory_space<vmem>>, vector<512x128xbf16>
    %cst = arith.constant dense<0.000000e+00> : vector<176x128xf32>
    %2 = tpu.matmul %0, %1, %cst {dimension_numbers = #tpu.dot_dimension_numbers<[1], [0], [0], [1], [0, 0, 1, 1], [], []>} : vector<176x512xbf16>, vector<512x128xbf16>, vector<176x128xf32> -> vector<176x128xf32>
    %3 = arith.truncf %2 : vector<176x128xf32> to vector<176x128xbf16>
    %c0_3 = arith.constant 0 : index
    %c0_4 = arith.constant 0 : index
    %4 = vector.load %arg3[%c0_3, %c0_4] : memref<176x128xbf16, #tpu.memory_space<vmem>>, vector<176x128xbf16>
    tpu.vector_store %arg3[%c0_3, %c0_4], %3 {strides = array<i32>} : memref<176x128xbf16, #tpu.memory_space<vmem>>, vector<176x128xbf16>,
    %cst_5 = arith.constant dense<0.000000e+00> : vector<128xf32>
    %5 = vector.multi_reduction <add>, %2, %cst_5 [0] : vector<176x128xf32> to vector<128xf32>
    %6 = vector.shape_cast %5 : vector<128xf32> to vector<1x128xf32>
    %7 = vector.shape_cast %6 : vector<1x128xf32> to vector<1x1x128xf32>
    %c0_6 = arith.constant 0 : index
    %c0_7 = arith.constant 0 : index
    %c0_8 = arith.constant 0 : index
    %8 = vector.load %arg4[%c0_6, %c0_7, %c0_8] : memref<1x2x128xf32, #tpu.memory_space<vmem>>, vector<1x1x128xf32>
    tpu.vector_store %arg4[%c0_6, %c0_7, %c0_8], %7 {strides = array<i32>} : memref<1x2x128xf32, #tpu.memory_space<vmem>>, vector<1x1x128xf32>,
    %9 = arith.mulf %2, %2 : vector<176x128xf32>
    %cst_9 = arith.constant dense<0.000000e+00> : vector<128xf32>
    %10 = vector.multi_reduction <add>, %9, %cst_9 [0] : vector<176x128xf32> to vector<128xf32>
    %11 = vector.shape_cast %10 : vector<128xf32> to vector<1x128xf32>
    %12 = vector.shape_cast %11 : vector<1x128xf32> to vector<1x1x128xf32>
    %c0_10 = arith.constant 0 : index
    %c1 = arith.constant 1 : index
    %c0_11 = arith.constant 0 : index
    %13 = vector.load %arg4[%c0_10, %c1, %c0_11] : memref<1x2x128xf32, #tpu.memory_space<vmem>>, vector<1x1x128xf32>
    tpu.vector_store %arg4[%c0_10, %c1, %c0_11], %12 {strides = array<i32>} : memref<1x2x128xf32, #tpu.memory_space<vmem>>, vector<1x1x128xf32>,
    return
  }
  func.func @transform_0(%arg0: i32) -> (i32, i32) {
    %c0_i32 = arith.constant 0 : i32
    %c0_i32_0 = arith.constant 0 : i32
    return %arg0, %c0_i32 : i32, i32
  }
  func.func @transform_1(%arg0: i32) -> (i32, i32) {
    %c0_i32 = arith.constant 0 : i32
    %c0_i32_0 = arith.constant 0 : i32
    %c0_i32_1 = arith.constant 0 : i32
    return %c0_i32, %c0_i32_0 : i32, i32
  }
  func.func @transform_2(%arg0: i32) -> (i32, i32) {
    %c0_i32 = arith.constant 0 : i32
    %c0_i32_0 = arith.constant 0 : i32
    return %arg0, %c0_i32 : i32, i32
  }
  func.func @transform_3(%arg0: i32) -> (i32, i32, i32) {
    %c0_i32 = arith.constant 0 : i32
    %c0_i32_0 = arith.constant 0 : i32
    %c0_i32_1 = arith.constant 0 : i32
    return %arg0, %c0_i32, %c0_i32_0 : i32, i32, i32
  }
}

module attributes {stable_mosaic.version = 11 : i64} {
  func.func @_bn_relu_stats_kernel(%arg0: i32, %arg1: memref<176x128xbf16, #tpu.memory_space<vmem>>, %arg2: memref<1x2x128xf32, #tpu.memory_space<vmem>>, %arg3: memref<1x128xf32, #tpu.memory_space<vmem>>, %arg4: memref<1x128xf32, #tpu.memory_space<vmem>>, %arg5: memref<176x128xbf16, #tpu.memory_space<vmem>>) attributes {dimension_semantics = [#tpu.dimension_semantics<parallel>], iteration_bounds = array<i64: 1>, scalar_prefetch = 0 : i64, scratch_operands = 0 : i64, tpu.core_type = #tpu.core_type<tc>, window_params = [{transform_indices = @transform_0, window_bounds = array<i64: 176, 128>}, {pipeline_mode = #tpu.pipeline_mode<synchronous>, transform_indices = @transform_1, window_bounds = array<i64: 1, 2, 128>}, {pipeline_mode = #tpu.pipeline_mode<synchronous>, transform_indices = @transform_2, window_bounds = array<i64: 1, 128>}, {pipeline_mode = #tpu.pipeline_mode<synchronous>, transform_indices = @transform_3, window_bounds = array<i64: 1, 128>}, {transform_indices = @transform_4, window_bounds = array<i64: 176, 128>}]} {
    %c0 = arith.constant 0 : index
    %c0_0 = arith.constant 0 : index
    %c0_1 = arith.constant 0 : index
    %0 = vector.load %arg2[%c0, %c0_0, %c0_1] : memref<1x2x128xf32, #tpu.memory_space<vmem>>, vector<1x2x128xf32>
    %cst = arith.constant dense<0.000000e+00> : vector<2x128xf32>
    %1 = vector.multi_reduction <add>, %0, %cst [0] : vector<1x2x128xf32> to vector<2x128xf32>
    %2 = vector.extract_strided_slice %1 {offsets = [0, 0], sizes = [1, 128], strides = [1, 1]} : vector<2x128xf32> to vector<1x128xf32>
    %cst_2 = arith.constant 0.00617283955 : f32
    %3 = vector.broadcast %cst_2 : f32 to vector<1x128xf32>
    %4 = arith.mulf %2, %3 : vector<1x128xf32>
    %5 = vector.extract_strided_slice %1 {offsets = [1, 0], sizes = [1, 128], strides = [1, 1]} : vector<2x128xf32> to vector<1x128xf32>
    %cst_3 = arith.constant 0.00617283955 : f32
    %6 = vector.broadcast %cst_3 : f32 to vector<1x128xf32>
    %7 = arith.mulf %5, %6 : vector<1x128xf32>
    %8 = arith.mulf %4, %4 : vector<1x128xf32>
    %9 = arith.subf %7, %8 : vector<1x128xf32>
    %cst_4 = arith.constant 0.000000e+00 : f32
    %10 = vector.broadcast %cst_4 : f32 to vector<1x128xf32>
    %11 = arith.maximumf %9, %10 : vector<1x128xf32>
    %c0_5 = arith.constant 0 : index
    %c0_6 = arith.constant 0 : index
    %12 = vector.load %arg3[%c0_5, %c0_6] : memref<1x128xf32, #tpu.memory_space<vmem>>, vector<1x128xf32>
    %cst_7 = arith.constant 9.99999974E-6 : f32
    %13 = vector.broadcast %cst_7 : f32 to vector<1x128xf32>
    %14 = arith.addf %11, %13 : vector<1x128xf32>
    %15 = math.rsqrt %14 : vector<1x128xf32>
    %16 = arith.mulf %12, %15 : vector<1x128xf32>
    %c0_8 = arith.constant 0 : index
    %c0_9 = arith.constant 0 : index
    %17 = vector.load %arg4[%c0_8, %c0_9] : memref<1x128xf32, #tpu.memory_space<vmem>>, vector<1x128xf32>
    %18 = arith.mulf %4, %16 : vector<1x128xf32>
    %19 = arith.subf %17, %18 : vector<1x128xf32>
    %c0_10 = arith.constant 0 : index
    %c0_11 = arith.constant 0 : index
    %20 = vector.load %arg1[%c0_10, %c0_11] : memref<176x128xbf16, #tpu.memory_space<vmem>>, vector<176x128xbf16>
    %21 = arith.extf %20 : vector<176x128xbf16> to vector<176x128xf32>
    %22 = vector.broadcast %16 : vector<1x128xf32> to vector<176x128xf32>
    %23 = arith.mulf %21, %22 : vector<176x128xf32>
    %24 = vector.broadcast %19 : vector<1x128xf32> to vector<176x128xf32>
    %25 = arith.addf %23, %24 : vector<176x128xf32>
    %cst_12 = arith.constant 0.000000e+00 : f32
    %26 = vector.broadcast %cst_12 : f32 to vector<176x128xf32>
    %27 = arith.maximumf %25, %26 : vector<176x128xf32>
    %28 = arith.truncf %27 : vector<176x128xf32> to vector<176x128xbf16>
    %c0_13 = arith.constant 0 : index
    %c0_14 = arith.constant 0 : index
    %29 = vector.load %arg5[%c0_13, %c0_14] : memref<176x128xbf16, #tpu.memory_space<vmem>>, vector<176x128xbf16>
    tpu.vector_store %arg5[%c0_13, %c0_14], %28 {strides = array<i32>} : memref<176x128xbf16, #tpu.memory_space<vmem>>, vector<176x128xbf16>,
    return
  }
  func.func @transform_0(%arg0: i32) -> (i32, i32) {
    %c0_i32 = arith.constant 0 : i32
    %c0_i32_0 = arith.constant 0 : i32
    return %arg0, %c0_i32 : i32, i32
  }
  func.func @transform_1(%arg0: i32) -> (i32, i32, i32) {
    %c0_i32 = arith.constant 0 : i32
    %c0_i32_0 = arith.constant 0 : i32
    %c0_i32_1 = arith.constant 0 : i32
    %c0_i32_2 = arith.constant 0 : i32
    return %c0_i32, %c0_i32_0, %c0_i32_1 : i32, i32, i32
  }
  func.func @transform_2(%arg0: i32) -> (i32, i32) {
    %c0_i32 = arith.constant 0 : i32
    %c0_i32_0 = arith.constant 0 : i32
    %c0_i32_1 = arith.constant 0 : i32
    return %c0_i32, %c0_i32_0 : i32, i32
  }
  func.func @transform_3(%arg0: i32) -> (i32, i32) {
    %c0_i32 = arith.constant 0 : i32
    %c0_i32_0 = arith.constant 0 : i32
    %c0_i32_1 = arith.constant 0 : i32
    return %c0_i32, %c0_i32_0 : i32, i32
  }
  func.func @transform_4(%arg0: i32) -> (i32, i32) {
    %c0_i32 = arith.constant 0 : i32
    %c0_i32_0 = arith.constant 0 : i32
    return %arg0, %c0_i32 : i32, i32
  }
}

module attributes {stable_mosaic.version = 11 : i64} {
  func.func @_conv3_fc_fused_kernel(%arg0: memref<9x16x1024xbf16, #tpu.memory_space<vmem>>, %arg1: memref<1024x128xbf16, #tpu.memory_space<vmem>>, %arg2: memref<1x128xf32, #tpu.memory_space<vmem>>, %arg3: memref<1x128xf32, #tpu.memory_space<vmem>>, %arg4: memref<9x128x512xbf16, #tpu.memory_space<vmem>>, %arg5: memref<1x512xf32, #tpu.memory_space<vmem>>, %arg6: memref<512x128xbf16, #tpu.memory_space<vmem>>, %arg7: memref<1x128xf32, #tpu.memory_space<vmem>>, %arg8: memref<16x128xf32, #tpu.memory_space<vmem>>) attributes {dimension_semantics = [], scalar_prefetch = 0 : i64, scratch_operands = 0 : i64, tpu.core_type = #tpu.core_type<tc>} {
    %cst = arith.constant 0.000000e+00 : f32
    %0 = vector.broadcast %cst : f32 to vector<1x128xf32>
    %cst_0 = arith.constant 0.000000e+00 : f32
    %1 = vector.broadcast %cst_0 : f32 to vector<1x128xf32>
    %c0 = arith.constant 0 : index
    %c0_1 = arith.constant 0 : index
    %c0_2 = arith.constant 0 : index
    %2 = vector.load %arg0[%c0, %c0_1, %c0_2] : memref<9x16x1024xbf16, #tpu.memory_space<vmem>>, vector<1x16x1024xbf16>
    %3 = vector.shape_cast %2 : vector<1x16x1024xbf16> to vector<16x1024xbf16>
    %c0_3 = arith.constant 0 : index
    %c0_4 = arith.constant 0 : index
    %4 = vector.load %arg1[%c0_3, %c0_4] : memref<1024x128xbf16, #tpu.memory_space<vmem>>, vector<1024x128xbf16>
    %cst_5 = arith.constant dense<0.000000e+00> : vector<16x128xf32>
    %5 = tpu.matmul %3, %4, %cst_5 {dimension_numbers = #tpu.dot_dimension_numbers<[1], [0], [0], [1], [0, 0, 1, 1], [], []>} : vector<16x1024xbf16>, vector<1024x128xbf16>, vector<16x128xf32> -> vector<16x128xf32>
    %cst_6 = arith.constant dense<0.000000e+00> : vector<128xf32>
    %6 = vector.multi_reduction <add>, %5, %cst_6 [0] : vector<16x128xf32> to vector<128xf32>
    %7 = vector.shape_cast %6 : vector<128xf32> to vector<1x128xf32>
    %8 = arith.addf %0, %7 : vector<1x128xf32>
    %9 = arith.mulf %5, %5 : vector<16x128xf32>
    %cst_7 = arith.constant dense<0.000000e+00> : vector<128xf32>
    %10 = vector.multi_reduction <add>, %9, %cst_7 [0] : vector<16x128xf32> to vector<128xf32>
    %11 = vector.shape_cast %10 : vector<128xf32> to vector<1x128xf32>
    %12 = arith.addf %1, %11 : vector<1x128xf32>
    %c1 = arith.constant 1 : index
    %c0_8 = arith.constant 0 : index
    %c0_9 = arith.constant 0 : index
    %13 = vector.load %arg0[%c1, %c0_8, %c0_9] : memref<9x16x1024xbf16, #tpu.memory_space<vmem>>, vector<1x16x1024xbf16>
    %14 = vector.shape_cast %13 : vector<1x16x1024xbf16> to vector<16x1024xbf16>
    %c0_10 = arith.constant 0 : index
    %c0_11 = arith.constant 0 : index
    %15 = vector.load %arg1[%c0_10, %c0_11] : memref<1024x128xbf16, #tpu.memory_space<vmem>>, vector<1024x128xbf16>
    %cst_12 = arith.constant dense<0.000000e+00> : vector<16x128xf32>
    %16 = tpu.matmul %14, %15, %cst_12 {dimension_numbers = #tpu.dot_dimension_numbers<[1], [0], [0], [1], [0, 0, 1, 1], [], []>} : vector<16x1024xbf16>, vector<1024x128xbf16>, vector<16x128xf32> -> vector<16x128xf32>
    %cst_13 = arith.constant dense<0.000000e+00> : vector<128xf32>
    %17 = vector.multi_reduction <add>, %16, %cst_13 [0] : vector<16x128xf32> to vector<128xf32>
    %18 = vector.shape_cast %17 : vector<128xf32> to vector<1x128xf32>
    %19 = arith.addf %8, %18 : vector<1x128xf32>
    %20 = arith.mulf %16, %16 : vector<16x128xf32>
    %cst_14 = arith.constant dense<0.000000e+00> : vector<128xf32>
    %21 = vector.multi_reduction <add>, %20, %cst_14 [0] : vector<16x128xf32> to vector<128xf32>
    %22 = vector.shape_cast %21 : vector<128xf32> to vector<1x128xf32>
    %23 = arith.addf %12, %22 : vector<1x128xf32>
    %c2 = arith.constant 2 : index
    %c0_15 = arith.constant 0 : index
    %c0_16 = arith.constant 0 : index
    %24 = vector.load %arg0[%c2, %c0_15, %c0_16] : memref<9x16x1024xbf16, #tpu.memory_space<vmem>>, vector<1x16x1024xbf16>
    %25 = vector.shape_cast %24 : vector<1x16x1024xbf16> to vector<16x1024xbf16>
    %c0_17 = arith.constant 0 : index
    %c0_18 = arith.constant 0 : index
    %26 = vector.load %arg1[%c0_17, %c0_18] : memref<1024x128xbf16, #tpu.memory_space<vmem>>, vector<1024x128xbf16>
    %cst_19 = arith.constant dense<0.000000e+00> : vector<16x128xf32>
    %27 = tpu.matmul %25, %26, %cst_19 {dimension_numbers = #tpu.dot_dimension_numbers<[1], [0], [0], [1], [0, 0, 1, 1], [], []>} : vector<16x1024xbf16>, vector<1024x128xbf16>, vector<16x128xf32> -> vector<16x128xf32>
    %cst_20 = arith.constant dense<0.000000e+00> : vector<128xf32>
    %28 = vector.multi_reduction <add>, %27, %cst_20 [0] : vector<16x128xf32> to vector<128xf32>
    %29 = vector.shape_cast %28 : vector<128xf32> to vector<1x128xf32>
    %30 = arith.addf %19, %29 : vector<1x128xf32>
    %31 = arith.mulf %27, %27 : vector<16x128xf32>
    %cst_21 = arith.constant dense<0.000000e+00> : vector<128xf32>
    %32 = vector.multi_reduction <add>, %31, %cst_21 [0] : vector<16x128xf32> to vector<128xf32>
    %33 = vector.shape_cast %32 : vector<128xf32> to vector<1x128xf32>
    %34 = arith.addf %23, %33 : vector<1x128xf32>
    %c3 = arith.constant 3 : index
    %c0_22 = arith.constant 0 : index
    %c0_23 = arith.constant 0 : index
    %35 = vector.load %arg0[%c3, %c0_22, %c0_23] : memref<9x16x1024xbf16, #tpu.memory_space<vmem>>, vector<1x16x1024xbf16>
    %36 = vector.shape_cast %35 : vector<1x16x1024xbf16> to vector<16x1024xbf16>
    %c0_24 = arith.constant 0 : index
    %c0_25 = arith.constant 0 : index
    %37 = vector.load %arg1[%c0_24, %c0_25] : memref<1024x128xbf16, #tpu.memory_space<vmem>>, vector<1024x128xbf16>
    %cst_26 = arith.constant dense<0.000000e+00> : vector<16x128xf32>
    %38 = tpu.matmul %36, %37, %cst_26 {dimension_numbers = #tpu.dot_dimension_numbers<[1], [0], [0], [1], [0, 0, 1, 1], [], []>} : vector<16x1024xbf16>, vector<1024x128xbf16>, vector<16x128xf32> -> vector<16x128xf32>
    %cst_27 = arith.constant dense<0.000000e+00> : vector<128xf32>
    %39 = vector.multi_reduction <add>, %38, %cst_27 [0] : vector<16x128xf32> to vector<128xf32>
    %40 = vector.shape_cast %39 : vector<128xf32> to vector<1x128xf32>
    %41 = arith.addf %30, %40 : vector<1x128xf32>
    %42 = arith.mulf %38, %38 : vector<16x128xf32>
    %cst_28 = arith.constant dense<0.000000e+00> : vector<128xf32>
    %43 = vector.multi_reduction <add>, %42, %cst_28 [0] : vector<16x128xf32> to vector<128xf32>
    %44 = vector.shape_cast %43 : vector<128xf32> to vector<1x128xf32>
    %45 = arith.addf %34, %44 : vector<1x128xf32>
    %c4 = arith.constant 4 : index
    %c0_29 = arith.constant 0 : index
    %c0_30 = arith.constant 0 : index
    %46 = vector.load %arg0[%c4, %c0_29, %c0_30] : memref<9x16x1024xbf16, #tpu.memory_space<vmem>>, vector<1x16x1024xbf16>
    %47 = vector.shape_cast %46 : vector<1x16x1024xbf16> to vector<16x1024xbf16>
    %c0_31 = arith.constant 0 : index
    %c0_32 = arith.constant 0 : index
    %48 = vector.load %arg1[%c0_31, %c0_32] : memref<1024x128xbf16, #tpu.memory_space<vmem>>, vector<1024x128xbf16>
    %cst_33 = arith.constant dense<0.000000e+00> : vector<16x128xf32>
    %49 = tpu.matmul %47, %48, %cst_33 {dimension_numbers = #tpu.dot_dimension_numbers<[1], [0], [0], [1], [0, 0, 1, 1], [], []>} : vector<16x1024xbf16>, vector<1024x128xbf16>, vector<16x128xf32> -> vector<16x128xf32>
    %cst_34 = arith.constant dense<0.000000e+00> : vector<128xf32>
    %50 = vector.multi_reduction <add>, %49, %cst_34 [0] : vector<16x128xf32> to vector<128xf32>
    %51 = vector.shape_cast %50 : vector<128xf32> to vector<1x128xf32>
    %52 = arith.addf %41, %51 : vector<1x128xf32>
    %53 = arith.mulf %49, %49 : vector<16x128xf32>
    %cst_35 = arith.constant dense<0.000000e+00> : vector<128xf32>
    %54 = vector.multi_reduction <add>, %53, %cst_35 [0] : vector<16x128xf32> to vector<128xf32>
    %55 = vector.shape_cast %54 : vector<128xf32> to vector<1x128xf32>
    %56 = arith.addf %45, %55 : vector<1x128xf32>
    %c5 = arith.constant 5 : index
    %c0_36 = arith.constant 0 : index
    %c0_37 = arith.constant 0 : index
    %57 = vector.load %arg0[%c5, %c0_36, %c0_37] : memref<9x16x1024xbf16, #tpu.memory_space<vmem>>, vector<1x16x1024xbf16>
    %58 = vector.shape_cast %57 : vector<1x16x1024xbf16> to vector<16x1024xbf16>
    %c0_38 = arith.constant 0 : index
    %c0_39 = arith.constant 0 : index
    %59 = vector.load %arg1[%c0_38, %c0_39] : memref<1024x128xbf16, #tpu.memory_space<vmem>>, vector<1024x128xbf16>
    %cst_40 = arith.constant dense<0.000000e+00> : vector<16x128xf32>
    %60 = tpu.matmul %58, %59, %cst_40 {dimension_numbers = #tpu.dot_dimension_numbers<[1], [0], [0], [1], [0, 0, 1, 1], [], []>} : vector<16x1024xbf16>, vector<1024x128xbf16>, vector<16x128xf32> -> vector<16x128xf32>
    %cst_41 = arith.constant dense<0.000000e+00> : vector<128xf32>
    %61 = vector.multi_reduction <add>, %60, %cst_41 [0] : vector<16x128xf32> to vector<128xf32>
    %62 = vector.shape_cast %61 : vector<128xf32> to vector<1x128xf32>
    %63 = arith.addf %52, %62 : vector<1x128xf32>
    %64 = arith.mulf %60, %60 : vector<16x128xf32>
    %cst_42 = arith.constant dense<0.000000e+00> : vector<128xf32>
    %65 = vector.multi_reduction <add>, %64, %cst_42 [0] : vector<16x128xf32> to vector<128xf32>
    %66 = vector.shape_cast %65 : vector<128xf32> to vector<1x128xf32>
    %67 = arith.addf %56, %66 : vector<1x128xf32>
    %c6 = arith.constant 6 : index
    %c0_43 = arith.constant 0 : index
    %c0_44 = arith.constant 0 : index
    %68 = vector.load %arg0[%c6, %c0_43, %c0_44] : memref<9x16x1024xbf16, #tpu.memory_space<vmem>>, vector<1x16x1024xbf16>
    %69 = vector.shape_cast %68 : vector<1x16x1024xbf16> to vector<16x1024xbf16>
    %c0_45 = arith.constant 0 : index
    %c0_46 = arith.constant 0 : index
    %70 = vector.load %arg1[%c0_45, %c0_46] : memref<1024x128xbf16, #tpu.memory_space<vmem>>, vector<1024x128xbf16>
    %cst_47 = arith.constant dense<0.000000e+00> : vector<16x128xf32>
    %71 = tpu.matmul %69, %70, %cst_47 {dimension_numbers = #tpu.dot_dimension_numbers<[1], [0], [0], [1], [0, 0, 1, 1], [], []>} : vector<16x1024xbf16>, vector<1024x128xbf16>, vector<16x128xf32> -> vector<16x128xf32>
    %cst_48 = arith.constant dense<0.000000e+00> : vector<128xf32>
    %72 = vector.multi_reduction <add>, %71, %cst_48 [0] : vector<16x128xf32> to vector<128xf32>
    %73 = vector.shape_cast %72 : vector<128xf32> to vector<1x128xf32>
    %74 = arith.addf %63, %73 : vector<1x128xf32>
    %75 = arith.mulf %71, %71 : vector<16x128xf32>
    %cst_49 = arith.constant dense<0.000000e+00> : vector<128xf32>
    %76 = vector.multi_reduction <add>, %75, %cst_49 [0] : vector<16x128xf32> to vector<128xf32>
    %77 = vector.shape_cast %76 : vector<128xf32> to vector<1x128xf32>
    %78 = arith.addf %67, %77 : vector<1x128xf32>
    %c7 = arith.constant 7 : index
    %c0_50 = arith.constant 0 : index
    %c0_51 = arith.constant 0 : index
    %79 = vector.load %arg0[%c7, %c0_50, %c0_51] : memref<9x16x1024xbf16, #tpu.memory_space<vmem>>, vector<1x16x1024xbf16>
    %80 = vector.shape_cast %79 : vector<1x16x1024xbf16> to vector<16x1024xbf16>
    %c0_52 = arith.constant 0 : index
    %c0_53 = arith.constant 0 : index
    %81 = vector.load %arg1[%c0_52, %c0_53] : memref<1024x128xbf16, #tpu.memory_space<vmem>>, vector<1024x128xbf16>
    %cst_54 = arith.constant dense<0.000000e+00> : vector<16x128xf32>
    %82 = tpu.matmul %80, %81, %cst_54 {dimension_numbers = #tpu.dot_dimension_numbers<[1], [0], [0], [1], [0, 0, 1, 1], [], []>} : vector<16x1024xbf16>, vector<1024x128xbf16>, vector<16x128xf32> -> vector<16x128xf32>
    %cst_55 = arith.constant dense<0.000000e+00> : vector<128xf32>
    %83 = vector.multi_reduction <add>, %82, %cst_55 [0] : vector<16x128xf32> to vector<128xf32>
    %84 = vector.shape_cast %83 : vector<128xf32> to vector<1x128xf32>
    %85 = arith.addf %74, %84 : vector<1x128xf32>
    %86 = arith.mulf %82, %82 : vector<16x128xf32>
    %cst_56 = arith.constant dense<0.000000e+00> : vector<128xf32>
    %87 = vector.multi_reduction <add>, %86, %cst_56 [0] : vector<16x128xf32> to vector<128xf32>
    %88 = vector.shape_cast %87 : vector<128xf32> to vector<1x128xf32>
    %89 = arith.addf %78, %88 : vector<1x128xf32>
    %c8 = arith.constant 8 : index
    %c0_57 = arith.constant 0 : index
    %c0_58 = arith.constant 0 : index
    %90 = vector.load %arg0[%c8, %c0_57, %c0_58] : memref<9x16x1024xbf16, #tpu.memory_space<vmem>>, vector<1x16x1024xbf16>
    %91 = vector.shape_cast %90 : vector<1x16x1024xbf16> to vector<16x1024xbf16>
    %c0_59 = arith.constant 0 : index
    %c0_60 = arith.constant 0 : index
    %92 = vector.load %arg1[%c0_59, %c0_60] : memref<1024x128xbf16, #tpu.memory_space<vmem>>, vector<1024x128xbf16>
    %cst_61 = arith.constant dense<0.000000e+00> : vector<16x128xf32>
    %93 = tpu.matmul %91, %92, %cst_61 {dimension_numbers = #tpu.dot_dimension_numbers<[1], [0], [0], [1], [0, 0, 1, 1], [], []>} : vector<16x1024xbf16>, vector<1024x128xbf16>, vector<16x128xf32> -> vector<16x128xf32>
    %cst_62 = arith.constant dense<0.000000e+00> : vector<128xf32>
    %94 = vector.multi_reduction <add>, %93, %cst_62 [0] : vector<16x128xf32> to vector<128xf32>
    %95 = vector.shape_cast %94 : vector<128xf32> to vector<1x128xf32>
    %96 = arith.addf %85, %95 : vector<1x128xf32>
    %97 = arith.mulf %93, %93 : vector<16x128xf32>
    %cst_63 = arith.constant dense<0.000000e+00> : vector<128xf32>
    %98 = vector.multi_reduction <add>, %97, %cst_63 [0] : vector<16x128xf32> to vector<128xf32>
    %99 = vector.shape_cast %98 : vector<128xf32> to vector<1x128xf32>
    %100 = arith.addf %89, %99 : vector<1x128xf32>
    %cst_64 = arith.constant 0.055555556 : f32
    %101 = vector.broadcast %cst_64 : f32 to vector<1x128xf32>
    %102 = arith.mulf %96, %101 : vector<1x128xf32>
    %cst_65 = arith.constant 0.055555556 : f32
    %103 = vector.broadcast %cst_65 : f32 to vector<1x128xf32>
    %104 = arith.mulf %100, %103 : vector<1x128xf32>
    %105 = arith.mulf %102, %102 : vector<1x128xf32>
    %106 = arith.subf %104, %105 : vector<1x128xf32>
    %cst_66 = arith.constant 0.000000e+00 : f32
    %107 = vector.broadcast %cst_66 : f32 to vector<1x128xf32>
    %108 = arith.maximumf %106, %107 : vector<1x128xf32>
    %c0_67 = arith.constant 0 : index
    %c0_68 = arith.constant 0 : index
    %109 = vector.load %arg2[%c0_67, %c0_68] : memref<1x128xf32, #tpu.memory_space<vmem>>, vector<1x128xf32>
    %cst_69 = arith.constant 9.99999974E-6 : f32
    %110 = vector.broadcast %cst_69 : f32 to vector<1x128xf32>
    %111 = arith.addf %108, %110 : vector<1x128xf32>
    %112 = math.rsqrt %111 : vector<1x128xf32>
    %113 = arith.mulf %109, %112 : vector<1x128xf32>
    %c0_70 = arith.constant 0 : index
    %c0_71 = arith.constant 0 : index
    %114 = vector.load %arg3[%c0_70, %c0_71] : memref<1x128xf32, #tpu.memory_space<vmem>>, vector<1x128xf32>
    %115 = arith.mulf %102, %113 : vector<1x128xf32>
    %116 = arith.subf %114, %115 : vector<1x128xf32>
    %cst_72 = arith.constant 0.000000e+00 : f32
    %117 = vector.broadcast %cst_72 : f32 to vector<16x512xf32>
    %118 = vector.broadcast %113 : vector<1x128xf32> to vector<16x128xf32>
    %119 = arith.mulf %5, %118 : vector<16x128xf32>
    %120 = vector.broadcast %116 : vector<1x128xf32> to vector<16x128xf32>
    %121 = arith.addf %119, %120 : vector<16x128xf32>
    %cst_73 = arith.constant 0.000000e+00 : f32
    %122 = vector.broadcast %cst_73 : f32 to vector<16x128xf32>
    %123 = arith.maximumf %121, %122 : vector<16x128xf32>
    %124 = arith.truncf %123 : vector<16x128xf32> to vector<16x128xbf16>
    %c0_74 = arith.constant 0 : index
    %c0_75 = arith.constant 0 : index
    %c0_76 = arith.constant 0 : index
    %125 = vector.load %arg4[%c0_74, %c0_75, %c0_76] : memref<9x128x512xbf16, #tpu.memory_space<vmem>>, vector<1x128x512xbf16>
    %126 = vector.shape_cast %125 : vector<1x128x512xbf16> to vector<128x512xbf16>
    %cst_77 = arith.constant dense<0.000000e+00> : vector<16x512xf32>
    %127 = tpu.matmul %124, %126, %cst_77 {dimension_numbers = #tpu.dot_dimension_numbers<[1], [0], [0], [1], [0, 0, 1, 1], [], []>} : vector<16x128xbf16>, vector<128x512xbf16>, vector<16x512xf32> -> vector<16x512xf32>
    %128 = arith.addf %117, %127 : vector<16x512xf32>
    %129 = vector.broadcast %113 : vector<1x128xf32> to vector<16x128xf32>
    %130 = arith.mulf %16, %129 : vector<16x128xf32>
    %131 = vector.broadcast %116 : vector<1x128xf32> to vector<16x128xf32>
    %132 = arith.addf %130, %131 : vector<16x128xf32>
    %cst_78 = arith.constant 0.000000e+00 : f32
    %133 = vector.broadcast %cst_78 : f32 to vector<16x128xf32>
    %134 = arith.maximumf %132, %133 : vector<16x128xf32>
    %135 = arith.truncf %134 : vector<16x128xf32> to vector<16x128xbf16>
    %c1_79 = arith.constant 1 : index
    %c0_80 = arith.constant 0 : index
    %c0_81 = arith.constant 0 : index
    %136 = vector.load %arg4[%c1_79, %c0_80, %c0_81] : memref<9x128x512xbf16, #tpu.memory_space<vmem>>, vector<1x128x512xbf16>
    %137 = vector.shape_cast %136 : vector<1x128x512xbf16> to vector<128x512xbf16>
    %cst_82 = arith.constant dense<0.000000e+00> : vector<16x512xf32>
    %138 = tpu.matmul %135, %137, %cst_82 {dimension_numbers = #tpu.dot_dimension_numbers<[1], [0], [0], [1], [0, 0, 1, 1], [], []>} : vector<16x128xbf16>, vector<128x512xbf16>, vector<16x512xf32> -> vector<16x512xf32>
    %139 = arith.addf %128, %138 : vector<16x512xf32>
    %140 = vector.broadcast %113 : vector<1x128xf32> to vector<16x128xf32>
    %141 = arith.mulf %27, %140 : vector<16x128xf32>
    %142 = vector.broadcast %116 : vector<1x128xf32> to vector<16x128xf32>
    %143 = arith.addf %141, %142 : vector<16x128xf32>
    %cst_83 = arith.constant 0.000000e+00 : f32
    %144 = vector.broadcast %cst_83 : f32 to vector<16x128xf32>
    %145 = arith.maximumf %143, %144 : vector<16x128xf32>
    %146 = arith.truncf %145 : vector<16x128xf32> to vector<16x128xbf16>
    %c2_84 = arith.constant 2 : index
    %c0_85 = arith.constant 0 : index
    %c0_86 = arith.constant 0 : index
    %147 = vector.load %arg4[%c2_84, %c0_85, %c0_86] : memref<9x128x512xbf16, #tpu.memory_space<vmem>>, vector<1x128x512xbf16>
    %148 = vector.shape_cast %147 : vector<1x128x512xbf16> to vector<128x512xbf16>
    %cst_87 = arith.constant dense<0.000000e+00> : vector<16x512xf32>
    %149 = tpu.matmul %146, %148, %cst_87 {dimension_numbers = #tpu.dot_dimension_numbers<[1], [0], [0], [1], [0, 0, 1, 1], [], []>} : vector<16x128xbf16>, vector<128x512xbf16>, vector<16x512xf32> -> vector<16x512xf32>
    %150 = arith.addf %139, %149 : vector<16x512xf32>
    %151 = vector.broadcast %113 : vector<1x128xf32> to vector<16x128xf32>
    %152 = arith.mulf %38, %151 : vector<16x128xf32>
    %153 = vector.broadcast %116 : vector<1x128xf32> to vector<16x128xf32>
    %154 = arith.addf %152, %153 : vector<16x128xf32>
    %cst_88 = arith.constant 0.000000e+00 : f32
    %155 = vector.broadcast %cst_88 : f32 to vector<16x128xf32>
    %156 = arith.maximumf %154, %155 : vector<16x128xf32>
    %157 = arith.truncf %156 : vector<16x128xf32> to vector<16x128xbf16>
    %c3_89 = arith.constant 3 : index
    %c0_90 = arith.constant 0 : index
    %c0_91 = arith.constant 0 : index
    %158 = vector.load %arg4[%c3_89, %c0_90, %c0_91] : memref<9x128x512xbf16, #tpu.memory_space<vmem>>, vector<1x128x512xbf16>
    %159 = vector.shape_cast %158 : vector<1x128x512xbf16> to vector<128x512xbf16>
    %cst_92 = arith.constant dense<0.000000e+00> : vector<16x512xf32>
    %160 = tpu.matmul %157, %159, %cst_92 {dimension_numbers = #tpu.dot_dimension_numbers<[1], [0], [0], [1], [0, 0, 1, 1], [], []>} : vector<16x128xbf16>, vector<128x512xbf16>, vector<16x512xf32> -> vector<16x512xf32>
    %161 = arith.addf %150, %160 : vector<16x512xf32>
    %162 = vector.broadcast %113 : vector<1x128xf32> to vector<16x128xf32>
    %163 = arith.mulf %49, %162 : vector<16x128xf32>
    %164 = vector.broadcast %116 : vector<1x128xf32> to vector<16x128xf32>
    %165 = arith.addf %163, %164 : vector<16x128xf32>
    %cst_93 = arith.constant 0.000000e+00 : f32
    %166 = vector.broadcast %cst_93 : f32 to vector<16x128xf32>
    %167 = arith.maximumf %165, %166 : vector<16x128xf32>
    %168 = arith.truncf %167 : vector<16x128xf32> to vector<16x128xbf16>
    %c4_94 = arith.constant 4 : index
    %c0_95 = arith.constant 0 : index
    %c0_96 = arith.constant 0 : index
    %169 = vector.load %arg4[%c4_94, %c0_95, %c0_96] : memref<9x128x512xbf16, #tpu.memory_space<vmem>>, vector<1x128x512xbf16>
    %170 = vector.shape_cast %169 : vector<1x128x512xbf16> to vector<128x512xbf16>
    %cst_97 = arith.constant dense<0.000000e+00> : vector<16x512xf32>
    %171 = tpu.matmul %168, %170, %cst_97 {dimension_numbers = #tpu.dot_dimension_numbers<[1], [0], [0], [1], [0, 0, 1, 1], [], []>} : vector<16x128xbf16>, vector<128x512xbf16>, vector<16x512xf32> -> vector<16x512xf32>
    %172 = arith.addf %161, %171 : vector<16x512xf32>
    %173 = vector.broadcast %113 : vector<1x128xf32> to vector<16x128xf32>
    %174 = arith.mulf %60, %173 : vector<16x128xf32>
    %175 = vector.broadcast %116 : vector<1x128xf32> to vector<16x128xf32>
    %176 = arith.addf %174, %175 : vector<16x128xf32>
    %cst_98 = arith.constant 0.000000e+00 : f32
    %177 = vector.broadcast %cst_98 : f32 to vector<16x128xf32>
    %178 = arith.maximumf %176, %177 : vector<16x128xf32>
    %179 = arith.truncf %178 : vector<16x128xf32> to vector<16x128xbf16>
    %c5_99 = arith.constant 5 : index
    %c0_100 = arith.constant 0 : index
    %c0_101 = arith.constant 0 : index
    %180 = vector.load %arg4[%c5_99, %c0_100, %c0_101] : memref<9x128x512xbf16, #tpu.memory_space<vmem>>, vector<1x128x512xbf16>
    %181 = vector.shape_cast %180 : vector<1x128x512xbf16> to vector<128x512xbf16>
    %cst_102 = arith.constant dense<0.000000e+00> : vector<16x512xf32>
    %182 = tpu.matmul %179, %181, %cst_102 {dimension_numbers = #tpu.dot_dimension_numbers<[1], [0], [0], [1], [0, 0, 1, 1], [], []>} : vector<16x128xbf16>, vector<128x512xbf16>, vector<16x512xf32> -> vector<16x512xf32>
    %183 = arith.addf %172, %182 : vector<16x512xf32>
    %184 = vector.broadcast %113 : vector<1x128xf32> to vector<16x128xf32>
    %185 = arith.mulf %71, %184 : vector<16x128xf32>
    %186 = vector.broadcast %116 : vector<1x128xf32> to vector<16x128xf32>
    %187 = arith.addf %185, %186 : vector<16x128xf32>
    %cst_103 = arith.constant 0.000000e+00 : f32
    %188 = vector.broadcast %cst_103 : f32 to vector<16x128xf32>
    %189 = arith.maximumf %187, %188 : vector<16x128xf32>
    %190 = arith.truncf %189 : vector<16x128xf32> to vector<16x128xbf16>
    %c6_104 = arith.constant 6 : index
    %c0_105 = arith.constant 0 : index
    %c0_106 = arith.constant 0 : index
    %191 = vector.load %arg4[%c6_104, %c0_105, %c0_106] : memref<9x128x512xbf16, #tpu.memory_space<vmem>>, vector<1x128x512xbf16>
    %192 = vector.shape_cast %191 : vector<1x128x512xbf16> to vector<128x512xbf16>
    %cst_107 = arith.constant dense<0.000000e+00> : vector<16x512xf32>
    %193 = tpu.matmul %190, %192, %cst_107 {dimension_numbers = #tpu.dot_dimension_numbers<[1], [0], [0], [1], [0, 0, 1, 1], [], []>} : vector<16x128xbf16>, vector<128x512xbf16>, vector<16x512xf32> -> vector<16x512xf32>
    %194 = arith.addf %183, %193 : vector<16x512xf32>
    %195 = vector.broadcast %113 : vector<1x128xf32> to vector<16x128xf32>
    %196 = arith.mulf %82, %195 : vector<16x128xf32>
    %197 = vector.broadcast %116 : vector<1x128xf32> to vector<16x128xf32>
    %198 = arith.addf %196, %197 : vector<16x128xf32>
    %cst_108 = arith.constant 0.000000e+00 : f32
    %199 = vector.broadcast %cst_108 : f32 to vector<16x128xf32>
    %200 = arith.maximumf %198, %199 : vector<16x128xf32>
    %201 = arith.truncf %200 : vector<16x128xf32> to vector<16x128xbf16>
    %c7_109 = arith.constant 7 : index
    %c0_110 = arith.constant 0 : index
    %c0_111 = arith.constant 0 : index
    %202 = vector.load %arg4[%c7_109, %c0_110, %c0_111] : memref<9x128x512xbf16, #tpu.memory_space<vmem>>, vector<1x128x512xbf16>
    %203 = vector.shape_cast %202 : vector<1x128x512xbf16> to vector<128x512xbf16>
    %cst_112 = arith.constant dense<0.000000e+00> : vector<16x512xf32>
    %204 = tpu.matmul %201, %203, %cst_112 {dimension_numbers = #tpu.dot_dimension_numbers<[1], [0], [0], [1], [0, 0, 1, 1], [], []>} : vector<16x128xbf16>, vector<128x512xbf16>, vector<16x512xf32> -> vector<16x512xf32>
    %205 = arith.addf %194, %204 : vector<16x512xf32>
    %206 = vector.broadcast %113 : vector<1x128xf32> to vector<16x128xf32>
    %207 = arith.mulf %93, %206 : vector<16x128xf32>
    %208 = vector.broadcast %116 : vector<1x128xf32> to vector<16x128xf32>
    %209 = arith.addf %207, %208 : vector<16x128xf32>
    %cst_113 = arith.constant 0.000000e+00 : f32
    %210 = vector.broadcast %cst_113 : f32 to vector<16x128xf32>
    %211 = arith.maximumf %209, %210 : vector<16x128xf32>
    %212 = arith.truncf %211 : vector<16x128xf32> to vector<16x128xbf16>
    %c8_114 = arith.constant 8 : index
    %c0_115 = arith.constant 0 : index
    %c0_116 = arith.constant 0 : index
    %213 = vector.load %arg4[%c8_114, %c0_115, %c0_116] : memref<9x128x512xbf16, #tpu.memory_space<vmem>>, vector<1x128x512xbf16>
    %214 = vector.shape_cast %213 : vector<1x128x512xbf16> to vector<128x512xbf16>
    %cst_117 = arith.constant dense<0.000000e+00> : vector<16x512xf32>
    %215 = tpu.matmul %212, %214, %cst_117 {dimension_numbers = #tpu.dot_dimension_numbers<[1], [0], [0], [1], [0, 0, 1, 1], [], []>} : vector<16x128xbf16>, vector<128x512xbf16>, vector<16x512xf32> -> vector<16x512xf32>
    %216 = arith.addf %205, %215 : vector<16x512xf32>
    %c0_118 = arith.constant 0 : index
    %c0_119 = arith.constant 0 : index
    %217 = vector.load %arg5[%c0_118, %c0_119] : memref<1x512xf32, #tpu.memory_space<vmem>>, vector<1x512xf32>
    %218 = vector.broadcast %217 : vector<1x512xf32> to vector<16x512xf32>
    %219 = arith.addf %216, %218 : vector<16x512xf32>
    %cst_120 = arith.constant 0.000000e+00 : f32
    %220 = vector.broadcast %cst_120 : f32 to vector<16x512xf32>
    %221 = arith.maximumf %219, %220 : vector<16x512xf32>
    %222 = arith.truncf %221 : vector<16x512xf32> to vector<16x512xbf16>
    %c0_121 = arith.constant 0 : index
    %c0_122 = arith.constant 0 : index
    %223 = vector.load %arg6[%c0_121, %c0_122] : memref<512x128xbf16, #tpu.memory_space<vmem>>, vector<512x128xbf16>
    %cst_123 = arith.constant dense<0.000000e+00> : vector<16x128xf32>
    %224 = tpu.matmul %222, %223, %cst_123 {dimension_numbers = #tpu.dot_dimension_numbers<[1], [0], [0], [1], [0, 0, 1, 1], [], []>} : vector<16x512xbf16>, vector<512x128xbf16>, vector<16x128xf32> -> vector<16x128xf32>
    %c0_124 = arith.constant 0 : index
    %c0_125 = arith.constant 0 : index
    %225 = vector.load %arg7[%c0_124, %c0_125] : memref<1x128xf32, #tpu.memory_space<vmem>>, vector<1x128xf32>
    %226 = vector.broadcast %225 : vector<1x128xf32> to vector<16x128xf32>
    %227 = arith.addf %224, %226 : vector<16x128xf32>
    %c0_126 = arith.constant 0 : index
    %c0_127 = arith.constant 0 : index
    %228 = vector.load %arg8[%c0_126, %c0_127] : memref<16x128xf32, #tpu.memory_space<vmem>>, vector<16x128xf32>
    tpu.vector_store %arg8[%c0_126, %c0_127], %227 {strides = array<i32>} : memref<16x128xf32, #tpu.memory_space<vmem>>, vector<16x128xf32>,
    return
  }
}

</mosaic_0001>

<llo_original>
// kernel: deep_q_forward.5
$region0: #{deep_q_forward.5}
  #allocation0 [shape = 'u32[]', space=smem, size = 0x4, offset = 0x4, fixed_abs, tag = 'smem constant byte address 0x4 - core index']
  #allocation1 [shape = 'u32[144,128]{1,0:T(1,128)}', space=vmem, size = 0x12000, scoped, tag = 'internal scratch']
  %s0 = inlined_call_operand.vmem [shape: bf16[800,256], index: 0, kind: input, shape index: {}]
  %s1 = inlined_call_operand.vmem [shape: bf16[256,128], index: 1, kind: input, shape index: {}]
  %s2 = inlined_call_operand.vmem [shape: bf16[800,128], index: 2, kind: output, shape index: {0}]
  %s3 = inlined_call_operand.vmem [shape: f32[2,2,128], index: 3, kind: output, shape index: {1}]
  %4 = xla_tuple %s2, %s3
  %s5 = sld [smem:[#allocation0]]
  $region49: #{deep_q_forward.5} parent=0
    _
  %s7 = ssub.s32 1, %s5
  %s8 = scalar_select 0, %s7, %s5
  loop: start=0, step=1, limit=4
  $region2: #{deep_q_forward.5} parent=0 // loop_pre_header
    _
  $region3: #{deep_q_forward.5} parent=0 // loop_header
    %s10 = sphi 0, %s14
    %p11 = scmp.ge.s32.totalorder %s10, 4
    %s20 = sphi 0, %s22
    %s23 = sphi 0, %s20
    %s24 = sphi 0, %s23
    %s40 = sphi 0, %s24
    %s44 = sphi 0, %s44
    %s46 = sphi 0, %s44
    %s47 = sphi 0, %s46
    %s61 = sphi 0, %s47
    %s67 = sphi 0, %s69
    %s70 = sphi 0, %s67
    %s71 = sphi 0, %s70
    %s87 = sphi 0, %s71
    %s93 = sphi 0, %s95
    %s96 = sphi 0, %s93
    %s97 = sphi 0, %s96
    %s113 = sphi 0, %s97
  $region4: #{deep_q_forward.5} parent=0 // loop_header_branch
    %13 = sbr.rel (%p11) target = $region8
  $region5: #{deep_q_forward.5} parent=0 // loop_body
    %s15 = ssub.s32 %s10, 1
    %s16 = ssub.s32 %s10, 2
    %s17 = sadd.s32 %s10, 1
    %s18 = ssub.s32 %s10, %s17
    %p19 = scmp.eq.s32.totalorder %s18, 0
    %s21 = sadd.s32 %s20, 1
    %s22 = scalar_select %p19, %s20, %s21
    %p25 = pneg %p19
    %p26 = scmp.eq.s32.totalorder %s10, 1
    %p27 = por %p25, %p26
    %p28 = scmp.ne.s32.totalorder %s20, %s23
    %p29 = scmp.eq.s32.totalorder %s10, 0
    %p30 = por %p28, %p29
    %p31 = scmp.ne.s32.totalorder %s20, %s23
    %p32 = scmp.eq.s32.totalorder %s15, 1
    %p33 = por %p31, %p32
    %p34 = scmp.ne.s32.totalorder %s23, %s24
    %p35 = scmp.eq.s32.totalorder %s15, 0
    %p36 = por %p34, %p35
    %p37 = scmp.ne.s32.totalorder %s23, %s24
    %p38 = scmp.eq.s32.totalorder %s16, 1
    %p39 = por %p37, %p38
    %p41 = scmp.ne.s32.totalorder %s24, %s40
    %p42 = scmp.eq.s32.totalorder %s16, 0
    %p43 = por %p41, %p42
    %s45 = sadd.s32 %s44, 1
    %p48 = scmp.eq.s32.totalorder %s10, 1
    %p49 = scmp.ne.s32.totalorder %s44, %s46
    %p50 = scmp.eq.s32.totalorder %s10, 0
    %p51 = por %p49, %p50
    %p52 = scmp.ne.s32.totalorder %s44, %s46
    %p53 = scmp.eq.s32.totalorder %s15, 1
    %p54 = por %p52, %p53
    %p55 = scmp.ne.s32.totalorder %s46, %s47
    %p56 = scmp.eq.s32.totalorder %s15, 0
    %p57 = por %p55, %p56
    %p58 = scmp.ne.s32.totalorder %s46, %s47
    %p59 = scmp.eq.s32.totalorder %s16, 1
    %p60 = por %p58, %p59
    %p62 = scmp.ne.s32.totalorder %s47, %s61
    %p63 = scmp.eq.s32.totalorder %s16, 0
    %p64 = por %p62, %p63
    %s65 = ssub.s32 %s10, %s17
    %p66 = scmp.eq.s32.totalorder %s65, 0
    %s68 = sadd.s32 %s67, 1
    %s69 = scalar_select %p66, %s67, %s68
    %p72 = pneg %p66
    %p73 = scmp.eq.s32.totalorder %s10, 1
    %p74 = por %p72, %p73
    %p75 = scmp.ne.s32.totalorder %s67, %s70
    %p76 = scmp.eq.s32.totalorder %s10, 0
    %p77 = por %p75, %p76
    %p78 = scmp.ne.s32.totalorder %s67, %s70
    %p79 = scmp.eq.s32.totalorder %s15, 1
    %p80 = por %p78, %p79
    %p81 = scmp.ne.s32.totalorder %s70, %s71
    %p82 = scmp.eq.s32.totalorder %s15, 0
    %p83 = por %p81, %p82
    %p84 = scmp.ne.s32.totalorder %s70, %s71
    %p85 = scmp.eq.s32.totalorder %s16, 1
    %p86 = por %p84, %p85
    %p88 = scmp.ne.s32.totalorder %s71, %s87
    %p89 = scmp.eq.s32.totalorder %s16, 0
    %p90 = por %p88, %p89
    %s91 = ssub.s32 %s10, %s17
    %p92 = scmp.eq.s32.totalorder %s91, 0
    %s94 = sadd.s32 %s93, 1
    %s95 = scalar_select %p92, %s93, %s94
    %p98 = pneg %p92
    %p99 = scmp.eq.s32.totalorder %s10, 1
    %p100 = por %p98, %p99
    %p101 = scmp.ne.s32.totalorder %s93, %s96
    %p102 = scmp.eq.s32.totalorder %s10, 0
    %p103 = por %p101, %p102
    %p104 = scmp.ne.s32.totalorder %s93, %s96
    %p105 = scmp.eq.s32.totalorder %s15, 1
    %p106 = por %p104, %p105
    %p107 = scmp.ne.s32.totalorder %s96, %s97
    %p108 = scmp.eq.s32.totalorder %s15, 0
    %p109 = por %p107, %p108
    %p110 = scmp.ne.s32.totalorder %s96, %s97
    %p111 = scmp.eq.s32.totalorder %s16, 1
    %p112 = por %p110, %p111
    %p114 = scmp.ne.s32.totalorder %s97, %s113
    %p115 = scmp.eq.s32.totalorder %s16, 0
    %p116 = por %p114, %p115
    %p117 = scmp.le.s32.totalorder 1, %s10
    %p118 = scmp.lt.s32.totalorder %s10, 3
    %p119 = pnand %p117, %p118
    %p120 = pneg %p119
    // Predicated region
    $region9: #{deep_q_forward.5} parent=5 // pred_check
      _
    $region10: #{deep_q_forward.5} parent=5 // pred_check_branch
      %122 = sbr.rel (%p119) target = $region12
    $region11: #{deep_q_forward.5} parent=5 // pred_region
      %s123 = ssub.s32 %s10, 1
      // Predicated region
      $region13: #{deep_q_forward.5} parent=11 // pred_check
        %p124 = pneg %p57
      $region14: #{deep_q_forward.5} parent=11 // pred_check_branch
        %126 = sbr.rel (%p124) target = $region16
      $region15: #{deep_q_forward.5} parent=11 // pred_region
        _
      $region16: #{deep_q_forward.5} parent=11 // pred_fallthru
        _
    $region12: #{deep_q_forward.5} parent=5 // pred_fallthru
      _
    %p127 = scmp.lt.s32.totalorder %s10, 2
    // Predicated region
    $region17: #{deep_q_forward.5} parent=5 // pred_check
      %p128 = pneg %p127
    $region18: #{deep_q_forward.5} parent=5 // pred_check_branch
      %130 = sbr.rel (%p128) target = $region20
    $region19: #{deep_q_forward.5} parent=5 // pred_region
      // Predicated region
      $region21: #{deep_q_forward.5} parent=19 // pred_check
        %p131 = pneg %p30
      $region22: #{deep_q_forward.5} parent=19 // pred_check_branch
        %133 = sbr.rel (%p131) target = $region24
      $region23: #{deep_q_forward.5} parent=19 // pred_region
        %s134 = smul.u32 50, %s10
        %p135 = scmp.lt.s32.totalorder %s134, 99
        %s136 = scalar_select %p135, %s134, 99
        %s137 = smul.addr %s136, 2
        %s138 = smul.addr %s137, 4
        %s139 = scalar_lea.vmem %s0, %s138
        %s140 = smul.u32 50, %s10
      $region24: #{deep_q_forward.5} parent=19 // pred_fallthru
        _
    $region20: #{deep_q_forward.5} parent=5 // pred_fallthru
      _
    %p141 = scmp.le.s32.totalorder 1, %s10
    %p142 = scmp.lt.s32.totalorder %s10, 3
    %p143 = pnand %p141, %p142
    %p144 = pneg %p143
    // Predicated region
    $region25: #{deep_q_forward.5} parent=5 // pred_check
      _
    $region26: #{deep_q_forward.5} parent=5 // pred_check_branch
      %146 = sbr.rel (%p143) target = $region28
    $region27: #{deep_q_forward.5} parent=5 // pred_region
      %s147 = ssub.s32 %s10, 1
      %s148 = smul.u32 50, %s15
      %p149 = scmp.lt.s32.totalorder %s148, 99
      %s150 = scalar_select %p149, %s148, 99
      %s151 = smul.addr %s150, 2
      %s152 = smul.addr %s151, 4
      %s153 = scalar_lea.vmem %s0, %s152
      %p154 = pneg %p36
      %p155 = pneg %p33
      %p156 = pneg %p57
      %p157 = pneg %p54
      %p158 = pneg %p83
      %p159 = pneg %p80
      %s160 = smul.u32 50, %s15
      %p161 = scmp.lt.s32.totalorder %s160, 99
      %s162 = scalar_select %p161, %s160, 99
      %s163 = smul.addr %s162, 4
      %s164 = scalar_lea.vmem %s2, %s163
      %p165 = pneg %p109
      %p166 = pneg %p106
      %p167 = scmp.lt.s32.totalorder %s15, 1
      %s168 = scalar_select %p167, %s15, 1
      %s169 = smul.addr %s168, 2
      %s170 = scalar_lea.vmem %s3, %s169
      %s171 = smul.u32 50, %s15
      %p172 = scmp.lt.s32.totalorder %s171, 99
      %s173 = scalar_select %p172, %s171, 99
      %s174 = smul.addr %s173, 2
      %s175 = smul.addr %s174, 4
      %s176 = scalar_lea.vmem %s0, %s175
      %s177 = smul.u32 50, %s15
      %s178 = smul.u32 50, %s15
      %p179 = scmp.lt.s32.totalorder %s178, 99
      %s180 = scalar_select %p179, %s178, 99
      %s181 = smul.addr %s180, 4
      %s182 = scalar_lea.vmem %s2, %s181
      %s183 = smul.u32 50, %s15
      %p184 = scmp.lt.s32.totalorder %s15, 1
      %s185 = scalar_select %p184, %s15, 1
      %s186 = smul.addr %s185, 2
      %s187 = scalar_lea.vmem %s3, %s186
      %v189 = vld [vmem:[%s176] sm:$0xff]
      %v190 = vld [vmem:[%s176 + $0x8] sm:$0xff]
      %v191 = vld [vmem:[%s176 + $0x10] sm:$0xff]
      %v192 = vld [vmem:[%s176 + $0x18] sm:$0xff]
      %v193 = vld [vmem:[%s176 + $0x20] sm:$0xff]
      %v194 = vld [vmem:[%s176 + $0x28] sm:$0xff]
      %v195 = vld [vmem:[%s176 + $0x30] sm:$0xff]
      %v196 = vld [vmem:[%s176 + $0x38] sm:$0xff]
      %v197 = vld [vmem:[%s176 + $0x40] sm:$0xff]
      %v198 = vld [vmem:[%s176 + $0x48] sm:$0xff]
      %v199 = vld [vmem:[%s176 + $0x50] sm:$0xff]
      %v200 = vld [vmem:[%s176 + $0x58] sm:$0xff]
      %v201 = vld [vmem:[%s176 + $0x60] sm:$0xff]
      %v202 = vld [vmem:[%s176 + $0x68] sm:$0xff]
      %v203 = vld [vmem:[%s176 + $0x70] sm:$0xff]
      %v204 = vld [vmem:[%s176 + $0x78] sm:$0xff]
      %v205 = vld [vmem:[%s176 + $0x80] sm:$0xff]
      %v206 = vld [vmem:[%s176 + $0x88] sm:$0xff]
      %v207 = vld [vmem:[%s176 + $0x90] sm:$0xff]
      %v208 = vld [vmem:[%s176 + $0x98] sm:$0xff]
      %v209 = vld [vmem:[%s176 + $0xa0] sm:$0xff]
      %v210 = vld [vmem:[%s176 + $0xa8] sm:$0xff]
      %v211 = vld [vmem:[%s176 + $0xb0] sm:$0xff]
      %v212 = vld [vmem:[%s176 + $0xb8] sm:$0xff]
      %v213 = vld [vmem:[%s176 + $0xc0] sm:$0xff]
      %v214 = vld [vmem:[%s176 + $0xc8] sm:$0xff]
      %v215 = vld [vmem:[%s176 + $0xd0] sm:$0xff]
      %v216 = vld [vmem:[%s176 + $0xd8] sm:$0xff]
      %v217 = vld [vmem:[%s176 + $0xe0] sm:$0xff]
      %v218 = vld [vmem:[%s176 + $0xe8] sm:$0xff]
      %v219 = vld [vmem:[%s176 + $0xf0] sm:$0xff]
      %v220 = vld [vmem:[%s176 + $0xf8] sm:$0xff]
      %v221 = vld [vmem:[%s176 + $0x100] sm:$0xff]
      %v222 = vld [vmem:[%s176 + $0x108] sm:$0xff]
      %v223 = vld [vmem:[%s176 + $0x110] sm:$0xff]
      %v224 = vld [vmem:[%s176 + $0x118] sm:$0xff]
      %v225 = vld [vmem:[%s176 + $0x120] sm:$0xff]
      %v226 = vld [vmem:[%s176 + $0x128] sm:$0xff]
      %v227 = vld [vmem:[%s176 + $0x130] sm:$0xff]
      %v228 = vld [vmem:[%s176 + $0x138] sm:$0xff]
      %v229 = vld [vmem:[%s176 + $0x140] sm:$0xff]
      %v230 = vld [vmem:[%s176 + $0x148] sm:$0xff]
      %v231 = vld [vmem:[%s176 + $0x150] sm:$0xff]
      %v232 = vld [vmem:[%s176 + $0x158] sm:$0xff]
      %v233 = vld [vmem:[%s176 + $0x160] sm:$0xff]
      %v234 = vld [vmem:[%s176 + $0x168] sm:$0xff]
      %v235 = vld [vmem:[%s176 + $0x170] sm:$0xff]
      %v236 = vld [vmem:[%s176 + $0x178] sm:$0xff]
      %v237 = vld [vmem:[%s176 + $0x180] sm:$0xff]
      %v238 = vld [vmem:[%s176 + $0x188] sm:$0xff]
      %v239 = vld [vmem:[%s1] sm:$0xf]
      %v240 = vld [vmem:[%s1 + $0x4] sm:$0xf]
      %v241 = vld [vmem:[%s1 + $0x8] sm:$0xf]
      %v242 = vld [vmem:[%s1 + $0xc] sm:$0xf]
      %v243 = vld [vmem:[%s1 + $0x10] sm:$0xf]
      %v244 = vld [vmem:[%s1 + $0x14] sm:$0xf]
      %v245 = vld [vmem:[%s1 + $0x18] sm:$0xf]
      %v246 = vld [vmem:[%s1 + $0x1c] sm:$0xf]
      %v247 = vld [vmem:[%s1 + $0x20] sm:$0xf]
      %v248 = vld [vmem:[%s1 + $0x24] sm:$0xf]
      %v249 = vld [vmem:[%s1 + $0x28] sm:$0xf]
      %v250 = vld [vmem:[%s1 + $0x2c] sm:$0xf]
      %v251 = vld [vmem:[%s1 + $0x30] sm:$0xf]
      %v252 = vld [vmem:[%s1 + $0x34] sm:$0xf]
      %v253 = vld [vmem:[%s1 + $0x38] sm:$0xf]
      %v254 = vld [vmem:[%s1 + $0x3c] sm:$0xf]
      %v255 = vld [vmem:[%s1 + $0x40] sm:$0xf]
      %v256 = vld [vmem:[%s1 + $0x44] sm:$0xf]
      %v257 = vld [vmem:[%s1 + $0x48] sm:$0xf]
      %v258 = vld [vmem:[%s1 + $0x4c] sm:$0xf]
      %v259 = vld [vmem:[%s1 + $0x50] sm:$0xf]
      %v260 = vld [vmem:[%s1 + $0x54] sm:$0xf]
      %v261 = vld [vmem:[%s1 + $0x58] sm:$0xf]
      %v262 = vld [vmem:[%s1 + $0x5c] sm:$0xf]
      %v263 = vld [vmem:[%s1 + $0x60] sm:$0xf]
      %v264 = vld [vmem:[%s1 + $0x64] sm:$0xf]
      %v265 = vld [vmem:[%s1 + $0x68] sm:$0xf]
      %v266 = vld [vmem:[%s1 + $0x6c] sm:$0xf]
      %v267 = vld [vmem:[%s1 + $0x70] sm:$0xf]
      %v268 = vld [vmem:[%s1 + $0x74] sm:$0xf]
      %v269 = vld [vmem:[%s1 + $0x78] sm:$0xf]
      %v270 = vld [vmem:[%s1 + $0x7c] sm:$0xf]
      %v321 = vunpack.c.l.b16 %v189
      %v322 = vunpack.c.h.b16 %v189
      %v323 = vunpack.c.l.b16 %v190
      %v324 = vunpack.c.h.b16 %v190
      %v325 = vunpack.c.l.b16 %v191
      %v326 = vunpack.c.h.b16 %v191
      %v327 = vunpack.c.l.b16 %v192
      %v328 = vunpack.c.h.b16 %v192
      %v329 = vunpack.c.l.b16 %v193
      %v330 = vunpack.c.h.b16 %v193
      %v331 = vunpack.c.l.b16 %v194
      %v332 = vunpack.c.h.b16 %v194
      %v333 = vunpack.c.l.b16 %v195
      %v334 = vunpack.c.h.b16 %v195
      %v335 = vunpack.c.l.b16 %v196
      %v336 = vunpack.c.h.b16 %v196
      %v337 = vunpack.c.l.b16 %v197
      %v338 = vunpack.c.h.b16 %v197
      %v339 = vunpack.c.l.b16 %v198
      %v340 = vunpack.c.h.b16 %v198
      %v341 = vunpack.c.l.b16 %v199
      %v342 = vunpack.c.h.b16 %v199
      %v343 = vunpack.c.l.b16 %v200
      %v344 = vunpack.c.h.b16 %v200
      %v345 = vunpack.c.l.b16 %v201
      %v346 = vunpack.c.h.b16 %v201
      %v347 = vunpack.c.l.b16 %v202
      %v348 = vunpack.c.h.b16 %v202
      %v349 = vunpack.c.l.b16 %v203
      %v350 = vunpack.c.h.b16 %v203
      %v351 = vunpack.c.l.b16 %v204
      %v352 = vunpack.c.h.b16 %v204
      %v353 = vunpack.c.l.b16 %v205
      %v354 = vunpack.c.h.b16 %v205
      %v355 = vunpack.c.l.b16 %v206
      %v356 = vunpack.c.h.b16 %v206
      %v357 = vunpack.c.l.b16 %v207
      %v358 = vunpack.c.h.b16 %v207
      %v359 = vunpack.c.l.b16 %v208
      %v360 = vunpack.c.h.b16 %v208
      %v361 = vunpack.c.l.b16 %v209
      %v362 = vunpack.c.h.b16 %v209
      %v363 = vunpack.c.l.b16 %v210
      %v364 = vunpack.c.h.b16 %v210
      %v365 = vunpack.c.l.b16 %v211
      %v366 = vunpack.c.h.b16 %v211
      %v367 = vunpack.c.l.b16 %v212
      %v368 = vunpack.c.h.b16 %v212
      %v369 = vunpack.c.l.b16 %v213
      %v370 = vunpack.c.h.b16 %v213
      %v371 = vunpack.c.l.b16 %v214
      %v372 = vunpack.c.h.b16 %v214
      %v373 = vunpack.c.l.b16 %v215
      %v374 = vunpack.c.h.b16 %v215
      %v375 = vunpack.c.l.b16 %v216
      %v376 = vunpack.c.h.b16 %v216
      %v377 = vunpack.c.l.b16 %v217
      %v378 = vunpack.c.h.b16 %v217
      %v379 = vunpack.c.l.b16 %v218
      %v380 = vunpack.c.h.b16 %v218
      %v381 = vunpack.c.l.b16 %v219
      %v382 = vunpack.c.h.b16 %v219
      %v383 = vunpack.c.l.b16 %v220
      %v384 = vunpack.c.h.b16 %v220
      %v385 = vunpack.c.l.b16 %v221
      %v386 = vunpack.c.h.b16 %v221
      %v387 = vunpack.c.l.b16 %v222
      %v388 = vunpack.c.h.b16 %v222
      %v389 = vunpack.c.l.b16 %v223
      %v390 = vunpack.c.h.b16 %v223
      %v391 = vunpack.c.l.b16 %v224
      %v392 = vunpack.c.h.b16 %v224
      %v393 = vunpack.c.l.b16 %v225
      %v394 = vunpack.c.h.b16 %v225
      %v395 = vunpack.c.l.b16 %v226
      %v396 = vunpack.c.h.b16 %v226
      %v397 = vunpack.c.l.b16 %v227
      %v398 = vunpack.c.h.b16 %v227
      %v399 = vunpack.c.l.b16 %v228
      %v400 = vunpack.c.h.b16 %v228
      %v401 = vunpack.c.l.b16 %v229
      %v402 = vunpack.c.h.b16 %v229
      %v403 = vunpack.c.l.b16 %v230
      %v404 = vunpack.c.h.b16 %v230
      %v405 = vunpack.c.l.b16 %v231
      %v406 = vunpack.c.h.b16 %v231
      %v407 = vunpack.c.l.b16 %v232
      %v408 = vunpack.c.h.b16 %v232
      %v409 = vunpack.c.l.b16 %v233
      %v410 = vunpack.c.h.b16 %v233
      %v411 = vunpack.c.l.b16 %v234
      %v412 = vunpack.c.h.b16 %v234
      %v413 = vunpack.c.l.b16 %v235
      %v414 = vunpack.c.h.b16 %v235
      %v415 = vunpack.c.l.b16 %v236
      %v416 = vunpack.c.h.b16 %v236
      %v417 = vunpack.c.l.b16 %v237
      %v418 = vunpack.c.h.b16 %v237
      %v419 = vunpack.c.l.b16 %v238
      %v420 = vunpack.c.h.b16 %v238
      %v421 = vpack.c.b16 %v323, %v321
      %v422 = vpack.c.b16 %v324, %v322
      %v423 = vpack.c.b16 %v327, %v325
      %v424 = vpack.c.b16 %v328, %v326
      %v425 = vpack.c.b16 %v331, %v329
      %v426 = vpack.c.b16 %v332, %v330
      %v427 = vpack.c.b16 %v335, %v333
      %v428 = vpack.c.b16 %v336, %v334
      %v429 = vpack.c.b16 %v339, %v337
      %v430 = vpack.c.b16 %v340, %v338
      %v431 = vpack.c.b16 %v343, %v341
      %v432 = vpack.c.b16 %v344, %v342
      %v433 = vpack.c.b16 %v347, %v345
      %v434 = vpack.c.b16 %v348, %v346
      %v435 = vpack.c.b16 %v351, %v349
      %v436 = vpack.c.b16 %v352, %v350
      %v437 = vpack.c.b16 %v355, %v353
      %v438 = vpack.c.b16 %v356, %v354
      %v439 = vpack.c.b16 %v359, %v357
      %v440 = vpack.c.b16 %v360, %v358
      %v441 = vpack.c.b16 %v363, %v361
      %v442 = vpack.c.b16 %v364, %v362
      %v443 = vpack.c.b16 %v367, %v365
      %v444 = vpack.c.b16 %v368, %v366
      %v445 = vpack.c.b16 %v371, %v369
      %v446 = vpack.c.b16 %v372, %v370
      %v447 = vpack.c.b16 %v375, %v373
      %v448 = vpack.c.b16 %v376, %v374
      %v449 = vpack.c.b16 %v379, %v377
      %v450 = vpack.c.b16 %v380, %v378
      %v451 = vpack.c.b16 %v383, %v381
      %v452 = vpack.c.b16 %v384, %v382
      %v453 = vpack.c.b16 %v387, %v385
      %v454 = vpack.c.b16 %v388, %v386
      %v455 = vpack.c.b16 %v391, %v389
      %v456 = vpack.c.b16 %v392, %v390
      %v457 = vpack.c.b16 %v395, %v393
      %v458 = vpack.c.b16 %v396, %v394
      %v459 = vpack.c.b16 %v399, %v397
      %v460 = vpack.c.b16 %v400, %v398
      %v461 = vpack.c.b16 %v403, %v401
      %v462 = vpack.c.b16 %v404, %v402
      %v463 = vpack.c.b16 %v407, %v405
      %v464 = vpack.c.b16 %v408, %v406
      %v465 = vpack.c.b16 %v411, %v409
      %v466 = vpack.c.b16 %v412, %v410
      %v467 = vpack.c.b16 %v415, %v413
      %v468 = vpack.c.b16 %v416, %v414
      %v469 = vpack.c.b16 %v419, %v417
      %v470 = vpack.c.b16 %v420, %v418
      %v553 = vunpack.c.l.b16 %v239
      %v554 = vunpack.c.l.b16 %v240
      %v555 = vunpack.c.l.b16 %v241
      %v556 = vunpack.c.l.b16 %v242
      %v557 = vunpack.c.l.b16 %v243
      %v558 = vunpack.c.l.b16 %v244
      %v559 = vunpack.c.l.b16 %v245
      %v560 = vunpack.c.l.b16 %v246
      %v561 = vunpack.c.l.b16 %v247
      %v562 = vunpack.c.l.b16 %v248
      %v563 = vunpack.c.l.b16 %v249
      %v564 = vunpack.c.l.b16 %v250
      %v565 = vunpack.c.l.b16 %v251
      %v566 = vunpack.c.l.b16 %v252
      %v567 = vunpack.c.l.b16 %v253
      %v568 = vunpack.c.l.b16 %v254
      %v569 = vunpack.c.l.b16 %v255
      %v570 = vunpack.c.l.b16 %v256
      %v571 = vunpack.c.l.b16 %v257
      %v572 = vunpack.c.l.b16 %v258
      %v573 = vunpack.c.l.b16 %v259
      %v574 = vunpack.c.l.b16 %v260
      %v575 = vunpack.c.l.b16 %v261
      %v576 = vunpack.c.l.b16 %v262
      %v577 = vunpack.c.l.b16 %v263
      %v578 = vunpack.c.l.b16 %v264
      %v579 = vunpack.c.l.b16 %v265
      %v580 = vunpack.c.l.b16 %v266
      %v581 = vunpack.c.l.b16 %v267
      %v582 = vunpack.c.l.b16 %v268
      %v583 = vunpack.c.l.b16 %v269
      %v584 = vunpack.c.l.b16 %v270
      %v585 = vpack.c.b16 %v554, %v553
      %v586 = vpack.c.b16 %v556, %v555
      %v587 = vpack.c.b16 %v558, %v557
      %v588 = vpack.c.b16 %v560, %v559
      %v589 = vpack.c.b16 %v562, %v561
      %v590 = vpack.c.b16 %v564, %v563
      %v591 = vpack.c.b16 %v566, %v565
      %v592 = vpack.c.b16 %v568, %v567
      %v593 = vpack.c.b16 %v570, %v569
      %v594 = vpack.c.b16 %v572, %v571
      %v595 = vpack.c.b16 %v574, %v573
      %v596 = vpack.c.b16 %v576, %v575
      %v597 = vpack.c.b16 %v578, %v577
      %v598 = vpack.c.b16 %v580, %v579
      %v599 = vpack.c.b16 %v582, %v581
      %v600 = vpack.c.b16 %v584, %v583
      %617 = vmatprep.subr.bf16.mxu0 0
      %618 = vmatpush1.bf16.msra.mxu0 %v592
      %619 = vmatprep.subr.bf16.mxu0 0
      %620 = vmatpush1.bf16.msra.mxu0 %v591
      %621 = vmatprep.subr.bf16.mxu0 0
      %622 = vmatpush1.bf16.msra.mxu0 %v590
      %623 = vmatprep.subr.bf16.mxu0 0
      %624 = vmatpush1.bf16.msra.mxu0 %v589
      %625 = vmatprep.subr.bf16.mxu0 0
      %626 = vmatpush1.bf16.msra.mxu0 %v588
      %627 = vmatprep.subr.bf16.mxu0 0
      %628 = vmatpush1.bf16.msra.mxu0 %v587
      %629 = vmatprep.subr.bf16.mxu0 0
      %630 = vmatpush1.bf16.msra.mxu0 %v586
      %631 = vmatprep.subr.bf16.mxu0 0
      %632 = vmatpush1.bf16.msra.mxu0 %v585
      %633 = vmatprep.subr.bf16.mxu0 0
      %634 = vmatpush2.bf16.msra.mxu0 %v600
      %635 = vmatprep.subr.bf16.mxu0 0
      %636 = vmatpush2.bf16.msra.mxu0 %v599
      %637 = vmatprep.subr.bf16.mxu0 0
      %638 = vmatpush2.bf16.msra.mxu0 %v598
      %639 = vmatprep.subr.bf16.mxu0 0
      %640 = vmatpush2.bf16.msra.mxu0 %v597
      %641 = vmatprep.subr.bf16.mxu0 0
      %642 = vmatpush2.bf16.msra.mxu0 %v596
      %643 = vmatprep.subr.bf16.mxu0 0
      %644 = vmatpush2.bf16.msra.mxu0 %v595
      %645 = vmatprep.subr.bf16.mxu0 0
      %646 = vmatpush2.bf16.msra.mxu0 %v594
      %647 = vmatprep.subr.bf16.mxu0 0
      %648 = vmatpush2.bf16.msra.mxu0 %v593
      %649 = vmatprep.mubr.bf16.mxu0 %v422
      %650 = vmatmul.mubr.bf16.gmra.mxu0 %v421
      %v651 = vpop.f32.mrf.mxu0
      %v652 = vadd.f32 0.0, %v651
      %v653 = vpop.f32.mrf.mxu0
      %v654 = vpop.f32.mrf.mxu0
      %v655 = vadd.f32 0.0, %v654
      %v656 = vpop.f32.mrf.mxu0
      %657 = vmatprep.mubr.bf16.mxu0 %v424
      %658 = vmatmul.mubr.bf16.gmra.mxu0 %v423
      %v659 = vpop.f32.mrf.mxu0
      %v660 = vadd.f32 0.0, %v659
      %v661 = vpop.f32.mrf.mxu0
      %v662 = vpop.f32.mrf.mxu0
      %v663 = vadd.f32 0.0, %v662
      %v664 = vpop.f32.mrf.mxu0
      %665 = vmatprep.mubr.bf16.mxu0 %v426
      %666 = vmatmul.mubr.bf16.gmra.mxu0 %v425
      %v667 = vpop.f32.mrf.mxu0
      %v668 = vadd.f32 0.0, %v667
      %v669 = vpop.f32.mrf.mxu0
      %v670 = vpop.f32.mrf.mxu0
      %v671 = vadd.f32 0.0, %v670
      %v672 = vpop.f32.mrf.mxu0
      %673 = vmatprep.mubr.bf16.mxu0 %v428
      %674 = vmatmul.mubr.bf16.gmra.mxu0 %v427
      %v675 = vpop.f32.mrf.mxu0
      %v676 = vadd.f32 0.0, %v675
      %v677 = vpop.f32.mrf.mxu0
      %v678 = vpop.f32.mrf.mxu0
      %v679 = vadd.f32 0.0, %v678
      %v680 = vpop.f32.mrf.mxu0
      %681 = vmatprep.mubr.bf16.mxu0 %v430
      %682 = vmatmul.mubr.bf16.gmra.mxu0 %v429
      %v683 = vpop.f32.mrf.mxu0
      %v684 = vadd.f32 0.0, %v683
      %v685 = vpop.f32.mrf.mxu0
      %v686 = vpop.f32.mrf.mxu0
      %v687 = vadd.f32 0.0, %v686
      %v688 = vpop.f32.mrf.mxu0
      %689 = vmatprep.mubr.bf16.mxu0 %v432
      %690 = vmatmul.mubr.bf16.gmra.mxu0 %v431
      %v691 = vpop.f32.mrf.mxu0
      %v692 = vadd.f32 0.0, %v691
      %v693 = vpop.f32.mrf.mxu0
      %v694 = vpop.f32.mrf.mxu0
      %v695 = vadd.f32 0.0, %v694
      %v696 = vpop.f32.mrf.mxu0
      %697 = vmatprep.mubr.bf16.mxu0 %v434
      %698 = vmatmul.mubr.bf16.gmra.mxu0 %v433
      %v699 = vpop.f32.mrf.mxu0
      %v700 = vadd.f32 0.0, %v699
      %v701 = vpop.f32.mrf.mxu0
      %v702 = vpop.f32.mrf.mxu0
      %v703 = vadd.f32 0.0, %v702
      %v704 = vpop.f32.mrf.mxu0
      %705 = vmatprep.mubr.bf16.mxu0 %v436
      %706 = vmatmul.mubr.bf16.gmra.mxu0 %v435
      %v707 = vpop.f32.mrf.mxu0
      %v708 = vadd.f32 0.0, %v707
      %v709 = vpop.f32.mrf.mxu0
      %v710 = vpop.f32.mrf.mxu0
      %v711 = vadd.f32 0.0, %v710
      %v712 = vpop.f32.mrf.mxu0
      %713 = vmatprep.mubr.bf16.mxu0 %v438
      %714 = vmatmul.mubr.bf16.gmra.mxu0 %v437
      %v715 = vpop.f32.mrf.mxu0
      %v716 = vadd.f32 0.0, %v715
      %v717 = vpop.f32.mrf.mxu0
      %v718 = vpop.f32.mrf.mxu0
      %v719 = vadd.f32 0.0, %v718
      %v720 = vpop.f32.mrf.mxu0
      %721 = vmatprep.mubr.bf16.mxu0 %v440
      %722 = vmatmul.mubr.bf16.gmra.mxu0 %v439
      %v723 = vpop.f32.mrf.mxu0
      %v724 = vadd.f32 0.0, %v723
      %v725 = vpop.f32.mrf.mxu0
      %v726 = vpop.f32.mrf.mxu0
      %v727 = vadd.f32 0.0, %v726
      %v728 = vpop.f32.mrf.mxu0
      %729 = vmatprep.mubr.bf16.mxu0 %v442
      %730 = vmatmul.mubr.bf16.gmra.mxu0 %v441
      %v731 = vpop.f32.mrf.mxu0
      %v732 = vadd.f32 0.0, %v731
      %v733 = vpop.f32.mrf.mxu0
      %v734 = vpop.f32.mrf.mxu0
      %v735 = vadd.f32 0.0, %v734
      %v736 = vpop.f32.mrf.mxu0
      %737 = vmatprep.mubr.bf16.mxu0 %v444
      %738 = vmatmul.mubr.bf16.gmra.mxu0 %v443
      %v739 = vpop.f32.mrf.mxu0
      %v740 = vadd.f32 0.0, %v739
      %v741 = vpop.f32.mrf.mxu0
      %v742 = vpop.f32.mrf.mxu0
      %v743 = vadd.f32 0.0, %v742
      %v744 = vpop.f32.mrf.mxu0
      %745 = vmatprep.mubr.bf16.mxu0 %v446
      %746 = vmatmul.mubr.bf16.gmra.mxu0 %v445
      %v747 = vpop.f32.mrf.mxu0
      %v748 = vadd.f32 0.0, %v747
      %v749 = vpop.f32.mrf.mxu0
      %v750 = vpop.f32.mrf.mxu0
      %v751 = vadd.f32 0.0, %v750
      %v752 = vpop.f32.mrf.mxu0
      %753 = vmatprep.mubr.bf16.mxu0 %v448
      %754 = vmatmul.mubr.bf16.gmra.mxu0 %v447
      %v755 = vpop.f32.mrf.mxu0
      %v756 = vadd.f32 0.0, %v755
      %v757 = vpop.f32.mrf.mxu0
      %v758 = vpop.f32.mrf.mxu0
      %v759 = vadd.f32 0.0, %v758
      %v760 = vpop.f32.mrf.mxu0
      %761 = vmatprep.mubr.bf16.mxu0 %v450
      %762 = vmatmul.mubr.bf16.gmra.mxu0 %v449
      %v763 = vpop.f32.mrf.mxu0
      %v764 = vadd.f32 0.0, %v763
      %v765 = vpop.f32.mrf.mxu0
      %v766 = vpop.f32.mrf.mxu0
      %v767 = vadd.f32 0.0, %v766
      %v768 = vpop.f32.mrf.mxu0
      %769 = vmatprep.mubr.bf16.mxu0 %v452
      %770 = vmatmul.mubr.bf16.gmra.mxu0 %v451
      %v771 = vpop.f32.mrf.mxu0
      %v772 = vadd.f32 0.0, %v771
      %v773 = vpop.f32.mrf.mxu0
      %v774 = vpop.f32.mrf.mxu0
      %v775 = vadd.f32 0.0, %v774
      %v776 = vpop.f32.mrf.mxu0
      %777 = vmatprep.mubr.bf16.mxu0 %v454
      %778 = vmatmul.mubr.bf16.gmra.mxu0 %v453
      %v779 = vpop.f32.mrf.mxu0
      %v780 = vadd.f32 0.0, %v779
      %v781 = vpop.f32.mrf.mxu0
      %v782 = vpop.f32.mrf.mxu0
      %v783 = vadd.f32 0.0, %v782
      %v784 = vpop.f32.mrf.mxu0
      %785 = vmatprep.mubr.bf16.mxu0 %v456
      %786 = vmatmul.mubr.bf16.gmra.mxu0 %v455
      %v787 = vpop.f32.mrf.mxu0
      %v788 = vadd.f32 0.0, %v787
      %v789 = vpop.f32.mrf.mxu0
      %v790 = vpop.f32.mrf.mxu0
      %v791 = vadd.f32 0.0, %v790
      %v792 = vpop.f32.mrf.mxu0
      %793 = vmatprep.mubr.bf16.mxu0 %v458
      %794 = vmatmul.mubr.bf16.gmra.mxu0 %v457
      %v795 = vpop.f32.mrf.mxu0
      %v796 = vadd.f32 0.0, %v795
      %v797 = vpop.f32.mrf.mxu0
      %v798 = vpop.f32.mrf.mxu0
      %v799 = vadd.f32 0.0, %v798
      %v800 = vpop.f32.mrf.mxu0
      %801 = vmatprep.mubr.bf16.mxu0 %v460
      %802 = vmatmul.mubr.bf16.gmra.mxu0 %v459
      %v803 = vpop.f32.mrf.mxu0
      %v804 = vadd.f32 0.0, %v803
      %v805 = vpop.f32.mrf.mxu0
      %v806 = vpop.f32.mrf.mxu0
      %v807 = vadd.f32 0.0, %v806
      %v808 = vpop.f32.mrf.mxu0
      %809 = vmatprep.mubr.bf16.mxu0 %v462
      %810 = vmatmul.mubr.bf16.gmra.mxu0 %v461
      %v811 = vpop.f32.mrf.mxu0
      %v812 = vadd.f32 0.0, %v811
      %v813 = vpop.f32.mrf.mxu0
      %v814 = vpop.f32.mrf.mxu0
      %v815 = vadd.f32 0.0, %v814
      %v816 = vpop.f32.mrf.mxu0
      %817 = vmatprep.mubr.bf16.mxu0 %v464
      %818 = vmatmul.mubr.bf16.gmra.mxu0 %v463
      %v819 = vpop.f32.mrf.mxu0
      %v820 = vadd.f32 0.0, %v819
      %v821 = vpop.f32.mrf.mxu0
      %v822 = vpop.f32.mrf.mxu0
      %v823 = vadd.f32 0.0, %v822
      %v824 = vpop.f32.mrf.mxu0
      %825 = vmatprep.mubr.bf16.mxu0 %v466
      %826 = vmatmul.mubr.bf16.gmra.mxu0 %v465
      %v827 = vpop.f32.mrf.mxu0
      %v828 = vadd.f32 0.0, %v827
      %v829 = vpop.f32.mrf.mxu0
      %v830 = vpop.f32.mrf.mxu0
      %v831 = vadd.f32 0.0, %v830
      %v832 = vpop.f32.mrf.mxu0
      %833 = vmatprep.mubr.bf16.mxu0 %v468
      %834 = vmatmul.mubr.bf16.gmra.mxu0 %v467
      %v835 = vpop.f32.mrf.mxu0
      %v836 = vadd.f32 0.0, %v835
      %v837 = vpop.f32.mrf.mxu0
      %v838 = vpop.f32.mrf.mxu0
      %v839 = vadd.f32 0.0, %v838
      %v840 = vpop.f32.mrf.mxu0
      %841 = vmatprep.mubr.bf16.mxu0 %v470
      %842 = vmatmul.mubr.bf16.gmra.mxu0 %v469
      %v843 = vpop.f32.mrf.mxu0
      %v844 = vadd.f32 0.0, %v843
      %v845 = vpop.f32.mrf.mxu0
      %v846 = vpop.f32.mrf.mxu0
      %v847 = vadd.f32 0.0, %v846
      %v848 = vpop.f32.mrf.mxu0
      %849 = vdwg.mxu0
      %v850 = vpack.c.bf16 %v655, %v652
      %v851 = vpack.c.bf16 %v663, %v660
      %v852 = vpack.c.bf16 %v671, %v668
      %v853 = vpack.c.bf16 %v679, %v676
      %v854 = vpack.c.bf16 %v687, %v684
      %v855 = vpack.c.bf16 %v695, %v692
      %v856 = vpack.c.bf16 %v703, %v700
      %v857 = vpack.c.bf16 %v711, %v708
      %v858 = vpack.c.bf16 %v719, %v716
      %v859 = vpack.c.bf16 %v727, %v724
      %v860 = vpack.c.bf16 %v735, %v732
      %v861 = vpack.c.bf16 %v743, %v740
      %v862 = vpack.c.bf16 %v751, %v748
      %v863 = vpack.c.bf16 %v759, %v756
      %v864 = vpack.c.bf16 %v767, %v764
      %v865 = vpack.c.bf16 %v775, %v772
      %v866 = vpack.c.bf16 %v783, %v780
      %v867 = vpack.c.bf16 %v791, %v788
      %v868 = vpack.c.bf16 %v799, %v796
      %v869 = vpack.c.bf16 %v807, %v804
      %v870 = vpack.c.bf16 %v815, %v812
      %v871 = vpack.c.bf16 %v823, %v820
      %v872 = vpack.c.bf16 %v831, %v828
      %v873 = vpack.c.bf16 %v839, %v836
      %v874 = vpack.c.bf16 %v847, %v844
      %v900 = vunpack.c.l.b16 %v850
      %v901 = vunpack.c.h.b16 %v850
      %v902 = vunpack.c.l.b16 %v851
      %v903 = vunpack.c.h.b16 %v851
      %v904 = vunpack.c.l.b16 %v852
      %v905 = vunpack.c.h.b16 %v852
      %v906 = vunpack.c.l.b16 %v853
      %v907 = vunpack.c.h.b16 %v853
      %v908 = vunpack.c.l.b16 %v854
      %v909 = vunpack.c.h.b16 %v854
      %v910 = vunpack.c.l.b16 %v855
      %v911 = vunpack.c.h.b16 %v855
      %v912 = vunpack.c.l.b16 %v856
      %v913 = vunpack.c.h.b16 %v856
      %v914 = vunpack.c.l.b16 %v857
      %v915 = vunpack.c.h.b16 %v857
      %v916 = vunpack.c.l.b16 %v858
      %v917 = vunpack.c.h.b16 %v858
      %v918 = vunpack.c.l.b16 %v859
      %v919 = vunpack.c.h.b16 %v859
      %v920 = vunpack.c.l.b16 %v860
      %v921 = vunpack.c.h.b16 %v860
      %v922 = vunpack.c.l.b16 %v861
      %v923 = vunpack.c.h.b16 %v861
      %v924 = vunpack.c.l.b16 %v862
      %v925 = vunpack.c.h.b16 %v862
      %v926 = vunpack.c.l.b16 %v863
      %v927 = vunpack.c.h.b16 %v863
      %v928 = vunpack.c.l.b16 %v864
      %v929 = vunpack.c.h.b16 %v864
      %v930 = vunpack.c.l.b16 %v865
      %v931 = vunpack.c.h.b16 %v865
      %v932 = vunpack.c.l.b16 %v866
      %v933 = vunpack.c.h.b16 %v866
      %v934 = vunpack.c.l.b16 %v867
      %v935 = vunpack.c.h.b16 %v867
      %v936 = vunpack.c.l.b16 %v868
      %v937 = vunpack.c.h.b16 %v868
      %v938 = vunpack.c.l.b16 %v869
      %v939 = vunpack.c.h.b16 %v869
      %v940 = vunpack.c.l.b16 %v870
      %v941 = vunpack.c.h.b16 %v870
      %v942 = vunpack.c.l.b16 %v871
      %v943 = vunpack.c.h.b16 %v871
      %v944 = vunpack.c.l.b16 %v872
      %v945 = vunpack.c.h.b16 %v872
      %v946 = vunpack.c.l.b16 %v873
      %v947 = vunpack.c.h.b16 %v873
      %v948 = vunpack.c.l.b16 %v874
      %v949 = vunpack.c.h.b16 %v874
      %v950 = vpack.c.b16 %v900, %v900
      %v951 = vpack.c.b16 %v901, %v901
      %v952 = vpack.c.b16 %v902, %v902
      %v953 = vpack.c.b16 %v903, %v903
      %v954 = vpack.c.b16 %v904, %v904
      %v955 = vpack.c.b16 %v905, %v905
      %v956 = vpack.c.b16 %v906, %v906
      %v957 = vpack.c.b16 %v907, %v907
      %v958 = vpack.c.b16 %v908, %v908
      %v959 = vpack.c.b16 %v909, %v909
      %v960 = vpack.c.b16 %v910, %v910
      %v961 = vpack.c.b16 %v911, %v911
      %v962 = vpack.c.b16 %v912, %v912
      %v963 = vpack.c.b16 %v913, %v913
      %v964 = vpack.c.b16 %v914, %v914
      %v965 = vpack.c.b16 %v915, %v915
      %v966 = vpack.c.b16 %v916, %v916
      %v967 = vpack.c.b16 %v917, %v917
      %v968 = vpack.c.b16 %v918, %v918
      %v969 = vpack.c.b16 %v919, %v919
      %v970 = vpack.c.b16 %v920, %v920
      %v971 = vpack.c.b16 %v921, %v921
      %v972 = vpack.c.b16 %v922, %v922
      %v973 = vpack.c.b16 %v923, %v923
      %v974 = vpack.c.b16 %v924, %v924
      %v975 = vpack.c.b16 %v925, %v925
      %v976 = vpack.c.b16 %v926, %v926
      %v977 = vpack.c.b16 %v927, %v927
      %v978 = vpack.c.b16 %v928, %v928
      %v979 = vpack.c.b16 %v929, %v929
      %v980 = vpack.c.b16 %v930, %v930
      %v981 = vpack.c.b16 %v931, %v931
      %v982 = vpack.c.b16 %v932, %v932
      %v983 = vpack.c.b16 %v933, %v933
      %v984 = vpack.c.b16 %v934, %v934
      %v985 = vpack.c.b16 %v935, %v935
      %v986 = vpack.c.b16 %v936, %v936
      %v987 = vpack.c.b16 %v937, %v937
      %v988 = vpack.c.b16 %v938, %v938
      %v989 = vpack.c.b16 %v939, %v939
      %v990 = vpack.c.b16 %v940, %v940
      %v991 = vpack.c.b16 %v941, %v941
      %v992 = vpack.c.b16 %v942, %v942
      %v993 = vpack.c.b16 %v943, %v943
      %v994 = vpack.c.b16 %v944, %v944
      %v995 = vpack.c.b16 %v945, %v945
      %v996 = vpack.c.b16 %v946, %v946
      %v997 = vpack.c.b16 %v947, %v947
      %v998 = vpack.c.b16 %v948, %v948
      %v999 = vpack.c.b16 %v949, %v949
      %1050 = vst [vmem:[%s182] sm:$0xf] %v950
      %1051 = vst [vmem:[%s182 + $0x4] sm:$0xf] %v951
      %1052 = vst [vmem:[%s182 + $0x8] sm:$0xf] %v952
      %1053 = vst [vmem:[%s182 + $0xc] sm:$0xf] %v953
      %1054 = vst [vmem:[%s182 + $0x10] sm:$0xf] %v954
      %1055 = vst [vmem:[%s182 + $0x14] sm:$0xf] %v955
      %1056 = vst [vmem:[%s182 + $0x18] sm:$0xf] %v956
      %1057 = vst [vmem:[%s182 + $0x1c] sm:$0xf] %v957
      %1058 = vst [vmem:[%s182 + $0x20] sm:$0xf] %v958
      %1059 = vst [vmem:[%s182 + $0x24] sm:$0xf] %v959
      %1060 = vst [vmem:[%s182 + $0x28] sm:$0xf] %v960
      %1061 = vst [vmem:[%s182 + $0x2c] sm:$0xf] %v961
      %1062 = vst [vmem:[%s182 + $0x30] sm:$0xf] %v962
      %1063 = vst [vmem:[%s182 + $0x34] sm:$0xf] %v963
      %1064 = vst [vmem:[%s182 + $0x38] sm:$0xf] %v964
      %1065 = vst [vmem:[%s182 + $0x3c] sm:$0xf] %v965
      %1066 = vst [vmem:[%s182 + $0x40] sm:$0xf] %v966
      %1067 = vst [vmem:[%s182 + $0x44] sm:$0xf] %v967
      %1068 = vst [vmem:[%s182 + $0x48] sm:$0xf] %v968
      %1069 = vst [vmem:[%s182 + $0x4c] sm:$0xf] %v969
      %1070 = vst [vmem:[%s182 + $0x50] sm:$0xf] %v970
      %1071 = vst [vmem:[%s182 + $0x54] sm:$0xf] %v971
      %1072 = vst [vmem:[%s182 + $0x58] sm:$0xf] %v972
      %1073 = vst [vmem:[%s182 + $0x5c] sm:$0xf] %v973
      %1074 = vst [vmem:[%s182 + $0x60] sm:$0xf] %v974
      %1075 = vst [vmem:[%s182 + $0x64] sm:$0xf] %v975
      %1076 = vst [vmem:[%s182 + $0x68] sm:$0xf] %v976
      %1077 = vst [vmem:[%s182 + $0x6c] sm:$0xf] %v977
      %1078 = vst [vmem:[%s182 + $0x70] sm:$0xf] %v978
      %1079 = vst [vmem:[%s182 + $0x74] sm:$0xf] %v979
      %1080 = vst [vmem:[%s182 + $0x78] sm:$0xf] %v980
      %1081 = vst [vmem:[%s182 + $0x7c] sm:$0xf] %v981
      %1082 = vst [vmem:[%s182 + $0x80] sm:$0xf] %v982
      %1083 = vst [vmem:[%s182 + $0x84] sm:$0xf] %v983
      %1084 = vst [vmem:[%s182 + $0x88] sm:$0xf] %v984
      %1085 = vst [vmem:[%s182 + $0x8c] sm:$0xf] %v985
      %1086 = vst [vmem:[%s182 + $0x90] sm:$0xf] %v986
      %1087 = vst [vmem:[%s182 + $0x94] sm:$0xf] %v987
      %1088 = vst [vmem:[%s182 + $0x98] sm:$0xf] %v988
      %1089 = vst [vmem:[%s182 + $0x9c] sm:$0xf] %v989
      %1090 = vst [vmem:[%s182 + $0xa0] sm:$0xf] %v990
      %1091 = vst [vmem:[%s182 + $0xa4] sm:$0xf] %v991
      %1092 = vst [vmem:[%s182 + $0xa8] sm:$0xf] %v992
      %1093 = vst [vmem:[%s182 + $0xac] sm:$0xf] %v993
      %1094 = vst [vmem:[%s182 + $0xb0] sm:$0xf] %v994
      %1095 = vst [vmem:[%s182 + $0xb4] sm:$0xf] %v995
      %1096 = vst [vmem:[%s182 + $0xb8] sm:$0xf] %v996
      %1097 = vst [vmem:[%s182 + $0xbc] sm:$0xf] %v997
      %1098 = vst [vmem:[%s182 + $0xc0] sm:$0xf] %v998
      %1099 = vst [vmem:[%s182 + $0xc4] sm:$0xf] %v999
      %v1100 = vadd.f32 %v652, %v655
      %v1101 = vadd.f32 %v1100, %v660
      %v1102 = vadd.f32 %v1101, %v663
      %v1103 = vadd.f32 %v1102, %v668
      %v1104 = vadd.f32 %v1103, %v671
      %v1105 = vadd.f32 %v1104, %v676
      %v1106 = vadd.f32 %v1105, %v679
      %v1107 = vadd.f32 %v1106, %v684
      %v1108 = vadd.f32 %v1107, %v687
      %v1109 = vadd.f32 %v1108, %v692
      %v1110 = vadd.f32 %v1109, %v695
      %v1111 = vadd.f32 %v1110, %v700
      %v1112 = vadd.f32 %v1111, %v703
      %v1113 = vadd.f32 %v1112, %v708
      %v1114 = vadd.f32 %v1113, %v711
      %v1115 = vadd.f32 %v1114, %v716
      %v1116 = vadd.f32 %v1115, %v719
      %v1117 = vadd.f32 %v1116, %v724
      %v1118 = vadd.f32 %v1117, %v727
      %v1119 = vadd.f32 %v1118, %v732
      %v1120 = vadd.f32 %v1119, %v735
      %v1121 = vadd.f32 %v1120, %v740
      %v1122 = vadd.f32 %v1121, %v743
      %v1123 = vadd.f32 %v1122, %v748
      %v1124 = vadd.f32 %v1123, %v751
      %v1125 = vadd.f32 %v1124, %v756
      %v1126 = vadd.f32 %v1125, %v759
      %v1127 = vadd.f32 %v1126, %v764
      %v1128 = vadd.f32 %v1127, %v767
      %v1129 = vadd.f32 %v1128, %v772
      %v1130 = vadd.f32 %v1129, %v775
      %v1131 = vadd.f32 %v1130, %v780
      %v1132 = vadd.f32 %v1131, %v783
      %v1133 = vadd.f32 %v1132, %v788
      %v1134 = vadd.f32 %v1133, %v791
      %v1135 = vadd.f32 %v1134, %v796
      %v1136 = vadd.f32 %v1135, %v799
      %v1137 = vadd.f32 %v1136, %v804
      %v1138 = vadd.f32 %v1137, %v807
      %v1139 = vadd.f32 %v1138, %v812
      %v1140 = vadd.f32 %v1139, %v815
      %v1141 = vadd.f32 %v1140, %v820
      %v1142 = vadd.f32 %v1141, %v823
      %v1143 = vadd.f32 %v1142, %v828
      %v1144 = vadd.f32 %v1143, %v831
      %v1145 = vadd.f32 %v1144, %v836
      %v1146 = vadd.f32 %v1145, %v839
      %v1147 = vadd.f32 %v1146, %v844
      %v1148 = vadd.f32 %v1147, %v847
      %v1149 = vrot.slane %v1148, 4
      %v1150 = vadd.f32 %v1148, %v1149
      %v1151 = vrot.slane %v1150, 2
      %v1152 = vadd.f32 %v1150, %v1151
      %v1153 = vrot.slane %v1152, 1
      %v1154 = vadd.f32 %v1152, %v1153
      %1155 = vst [vmem:[%s187] sm:$0x1] %v1154
      %v1156 = vmul.f32 %v652, %v652
      %v1157 = vmul.f32 %v655, %v655
      %v1158 = vmul.f32 %v660, %v660
      %v1159 = vmul.f32 %v663, %v663
      %v1160 = vmul.f32 %v668, %v668
      %v1161 = vmul.f32 %v671, %v671
      %v1162 = vmul.f32 %v676, %v676
      %v1163 = vmul.f32 %v679, %v679
      %v1164 = vmul.f32 %v684, %v684
      %v1165 = vmul.f32 %v687, %v687
      %v1166 = vmul.f32 %v692, %v692
      %v1167 = vmul.f32 %v695, %v695
      %v1168 = vmul.f32 %v700, %v700
      %v1169 = vmul.f32 %v703, %v703
      %v1170 = vmul.f32 %v708, %v708
      %v1171 = vmul.f32 %v711, %v711
      %v1172 = vmul.f32 %v716, %v716
      %v1173 = vmul.f32 %v719, %v719
      %v1174 = vmul.f32 %v724, %v724
      %v1175 = vmul.f32 %v727, %v727
      %v1176 = vmul.f32 %v732, %v732
      %v1177 = vmul.f32 %v735, %v735
      %v1178 = vmul.f32 %v740, %v740
      %v1179 = vmul.f32 %v743, %v743
      %v1180 = vmul.f32 %v748, %v748
      %v1181 = vmul.f32 %v751, %v751
      %v1182 = vmul.f32 %v756, %v756
      %v1183 = vmul.f32 %v759, %v759
      %v1184 = vmul.f32 %v764, %v764
      %v1185 = vmul.f32 %v767, %v767
      %v1186 = vmul.f32 %v772, %v772
      %v1187 = vmul.f32 %v775, %v775
      %v1188 = vmul.f32 %v780, %v780
      %v1189 = vmul.f32 %v783, %v783
      %v1190 = vmul.f32 %v788, %v788
      %v1191 = vmul.f32 %v791, %v791
      %v1192 = vmul.f32 %v796, %v796
      %v1193 = vmul.f32 %v799, %v799
      %v1194 = vmul.f32 %v804, %v804
      %v1195 = vmul.f32 %v807, %v807
      %v1196 = vmul.f32 %v812, %v812
      %v1197 = vmul.f32 %v815, %v815
      %v1198 = vmul.f32 %v820, %v820
      %v1199 = vmul.f32 %v823, %v823
      %v1200 = vmul.f32 %v828, %v828
      %v1201 = vmul.f32 %v831, %v831
      %v1202 = vmul.f32 %v836, %v836
      %v1203 = vmul.f32 %v839, %v839
      %v1204 = vmul.f32 %v844, %v844
      %v1205 = vmul.f32 %v847, %v847
      %v1206 = vadd.f32 %v1156, %v1157
      %v1207 = vadd.f32 %v1206, %v1158
      %v1208 = vadd.f32 %v1207, %v1159
      %v1209 = vadd.f32 %v1208, %v1160
      %v1210 = vadd.f32 %v1209, %v1161
      %v1211 = vadd.f32 %v1210, %v1162
      %v1212 = vadd.f32 %v1211, %v1163
      %v1213 = vadd.f32 %v1212, %v1164
      %v1214 = vadd.f32 %v1213, %v1165
      %v1215 = vadd.f32 %v1214, %v1166
      %v1216 = vadd.f32 %v1215, %v1167
      %v1217 = vadd.f32 %v1216, %v1168
      %v1218 = vadd.f32 %v1217, %v1169
      %v1219 = vadd.f32 %v1218, %v1170
      %v1220 = vadd.f32 %v1219, %v1171
      %v1221 = vadd.f32 %v1220, %v1172
      %v1222 = vadd.f32 %v1221, %v1173
      %v1223 = vadd.f32 %v1222, %v1174
      %v1224 = vadd.f32 %v1223, %v1175
      %v1225 = vadd.f32 %v1224, %v1176
      %v1226 = vadd.f32 %v1225, %v1177
      %v1227 = vadd.f32 %v1226, %v1178
      %v1228 = vadd.f32 %v1227, %v1179
      %v1229 = vadd.f32 %v1228, %v1180
      %v1230 = vadd.f32 %v1229, %v1181
      %v1231 = vadd.f32 %v1230, %v1182
      %v1232 = vadd.f32 %v1231, %v1183
      %v1233 = vadd.f32 %v1232, %v1184
      %v1234 = vadd.f32 %v1233, %v1185
      %v1235 = vadd.f32 %v1234, %v1186
      %v1236 = vadd.f32 %v1235, %v1187
      %v1237 = vadd.f32 %v1236, %v1188
      %v1238 = vadd.f32 %v1237, %v1189
      %v1239 = vadd.f32 %v1238, %v1190
      %v1240 = vadd.f32 %v1239, %v1191
      %v1241 = vadd.f32 %v1240, %v1192
      %v1242 = vadd.f32 %v1241, %v1193
      %v1243 = vadd.f32 %v1242, %v1194
      %v1244 = vadd.f32 %v1243, %v1195
      %v1245 = vadd.f32 %v1244, %v1196
      %v1246 = vadd.f32 %v1245, %v1197
      %v1247 = vadd.f32 %v1246, %v1198
      %v1248 = vadd.f32 %v1247, %v1199
      %v1249 = vadd.f32 %v1248, %v1200
      %v1250 = vadd.f32 %v1249, %v1201
      %v1251 = vadd.f32 %v1250, %v1202
      %v1252 = vadd.f32 %v1251, %v1203
      %v1253 = vadd.f32 %v1252, %v1204
      %v1254 = vadd.f32 %v1253, %v1205
      %v1255 = vrot.slane %v1254, 4
      %v1256 = vadd.f32 %v1254, %v1255
      %v1257 = vrot.slane %v1256, 2
      %v1258 = vadd.f32 %v1256, %v1257
      %v1259 = vrot.slane %v1258, 1
      %v1260 = vadd.f32 %v1258, %v1259
      %1261 = vst [vmem:[%s187 + $0x1] sm:$0x1] %v1260
      %s1262 = smul.u32 50, %s15
      %p1263 = scmp.lt.s32.totalorder %s1262, 99
      %s1264 = scalar_select %p1263, %s1262, 99
      %s1265 = smul.addr %s1264, 4
      %s1266 = scalar_lea.vmem %s2, %s1265
      %p1267 = scmp.lt.s32.totalorder %s15, 1
      %s1268 = scalar_select %p1267, %s15, 1
      %s1269 = smul.addr %s1268, 2
      %s1270 = scalar_lea.vmem %s3, %s1269
      // Predicated region
      $region29: #{deep_q_forward.5} parent=27 // pred_check
        %p1271 = pneg %p80
      $region30: #{deep_q_forward.5} parent=27 // pred_check_branch
        %1273 = sbr.rel (%p1271) target = $region32
      $region31: #{deep_q_forward.5} parent=27 // pred_region
        %s1274 = smul.u32 50, %s15
      $region32: #{deep_q_forward.5} parent=27 // pred_fallthru
        _
      // Predicated region
      $region33: #{deep_q_forward.5} parent=27 // pred_check
        %p1275 = pneg %p106
      $region34: #{deep_q_forward.5} parent=27 // pred_check_branch
        %1277 = sbr.rel (%p1275) target = $region36
      $region35: #{deep_q_forward.5} parent=27 // pred_region
        _
      $region36: #{deep_q_forward.5} parent=27 // pred_fallthru
        _
    $region28: #{deep_q_forward.5} parent=5 // pred_fallthru
      _
    %p1278 = scmp.le.s32.totalorder 2, %s10
    // Predicated region
    $region37: #{deep_q_forward.5} parent=5 // pred_check
      %p1279 = pneg %p1278
    $region38: #{deep_q_forward.5} parent=5 // pred_check_branch
      %1281 = sbr.rel (%p1279) target = $region40
    $region39: #{deep_q_forward.5} parent=5 // pred_region
      %s1282 = ssub.s32 %s10, 2
      // Predicated region
      $region41: #{deep_q_forward.5} parent=39 // pred_check
        %p1283 = pneg %p86
      $region42: #{deep_q_forward.5} parent=39 // pred_check_branch
        %1285 = sbr.rel (%p1283) target = $region44
      $region43: #{deep_q_forward.5} parent=39 // pred_region
        %s1286 = smul.u32 50, %s16
        %p1287 = scmp.lt.s32.totalorder %s1286, 99
        %s1288 = scalar_select %p1287, %s1286, 99
        %s1289 = smul.addr %s1288, 4
        %s1290 = scalar_lea.vmem %s2, %s1289
      $region44: #{deep_q_forward.5} parent=39 // pred_fallthru
        _
      // Predicated region
      $region45: #{deep_q_forward.5} parent=39 // pred_check
        %p1291 = pneg %p112
      $region46: #{deep_q_forward.5} parent=39 // pred_check_branch
        %1293 = sbr.rel (%p1291) target = $region48
      $region47: #{deep_q_forward.5} parent=39 // pred_region
        %p1294 = scmp.lt.s32.totalorder %s16, 1
        %s1295 = scalar_select %p1294, %s16, 1
        %s1296 = smul.addr %s1295, 2
        %s1297 = scalar_lea.vmem %s3, %s1296
      $region48: #{deep_q_forward.5} parent=39 // pred_fallthru
        _
    $region40: #{deep_q_forward.5} parent=5 // pred_fallthru
      _
  $region6: #{deep_q_forward.5} parent=0 // loop_footer
    %s14 = sadd.s32 1, %s10
  $region7: #{deep_q_forward.5} parent=0 // loop_footer_branch
    %9 = sbr.rel target = $region3
  $region8: #{deep_q_forward.5} parent=0 // loop_exit
    _

// kernel: deep_q_forward.6
$region0: #{deep_q_forward.6}
  #allocation0 [shape = 'u32[]', space=smem, size = 0x4, offset = 0x4, fixed_abs, tag = 'smem constant byte address 0x4 - core index']
  #allocation1 [shape = 'u32[144,128]{1,0:T(1,128)}', space=vmem, size = 0x12000, scoped, tag = 'internal scratch']
  %s0 = inlined_call_operand.vmem [shape: bf16[800,128], index: 0, kind: input, shape index: {}]
  %s1 = inlined_call_operand.vmem [shape: f32[2,2,128], index: 1, kind: input, shape index: {}]
  %s2 = inlined_call_operand.vmem [shape: f32[1,128], index: 2, kind: input, shape index: {}]
  %s3 = inlined_call_operand.vmem [shape: f32[1,128], index: 3, kind: input, shape index: {}]
  %s4 = inlined_call_operand.vmem [shape: bf16[800,128], index: 4, kind: output, shape index: {}]
  %s5 = sld [smem:[#allocation0]]
  $region49: #{deep_q_forward.6} parent=0
    _
  %s7 = ssub.s32 1, %s5
  %s8 = scalar_select 0, %s7, %s5
  loop: start=0, step=1, limit=4
  $region2: #{deep_q_forward.6} parent=0 // loop_pre_header
    _
  $region3: #{deep_q_forward.6} parent=0 // loop_header
    %s10 = sphi 0, %s14
    %p11 = scmp.ge.s32.totalorder %s10, 4
    %s20 = sphi 0, %s22
    %s23 = sphi 0, %s20
    %s24 = sphi 0, %s23
    %s40 = sphi 0, %s24
    %s44 = sphi 0, %s44
    %s46 = sphi 0, %s44
    %s47 = sphi 0, %s46
    %s61 = sphi 0, %s47
    %s65 = sphi 0, %s65
    %s67 = sphi 0, %s65
    %s68 = sphi 0, %s67
    %s82 = sphi 0, %s68
    %s86 = sphi 0, %s86
    %s88 = sphi 0, %s86
    %s89 = sphi 0, %s88
    %s103 = sphi 0, %s89
    %s109 = sphi 0, %s111
    %s112 = sphi 0, %s109
    %s113 = sphi 0, %s112
    %s129 = sphi 0, %s113
  $region4: #{deep_q_forward.6} parent=0 // loop_header_branch
    %13 = sbr.rel (%p11) target = $region8
  $region5: #{deep_q_forward.6} parent=0 // loop_body
    %s15 = ssub.s32 %s10, 1
    %s16 = ssub.s32 %s10, 2
    %s17 = sadd.s32 %s10, 1
    %s18 = ssub.s32 %s10, %s17
    %p19 = scmp.eq.s32.totalorder %s18, 0
    %s21 = sadd.s32 %s20, 1
    %s22 = scalar_select %p19, %s20, %s21
    %p25 = pneg %p19
    %p26 = scmp.eq.s32.totalorder %s10, 1
    %p27 = por %p25, %p26
    %p28 = scmp.ne.s32.totalorder %s20, %s23
    %p29 = scmp.eq.s32.totalorder %s10, 0
    %p30 = por %p28, %p29
    %p31 = scmp.ne.s32.totalorder %s20, %s23
    %p32 = scmp.eq.s32.totalorder %s15, 1
    %p33 = por %p31, %p32
    %p34 = scmp.ne.s32.totalorder %s23, %s24
    %p35 = scmp.eq.s32.totalorder %s15, 0
    %p36 = por %p34, %p35
    %p37 = scmp.ne.s32.totalorder %s23, %s24
    %p38 = scmp.eq.s32.totalorder %s16, 1
    %p39 = por %p37, %p38
    %p41 = scmp.ne.s32.totalorder %s24, %s40
    %p42 = scmp.eq.s32.totalorder %s16, 0
    %p43 = por %p41, %p42
    %s45 = sadd.s32 %s44, 1
    %p48 = scmp.eq.s32.totalorder %s10, 1
    %p49 = scmp.ne.s32.totalorder %s44, %s46
    %p50 = scmp.eq.s32.totalorder %s10, 0
    %p51 = por %p49, %p50
    %p52 = scmp.ne.s32.totalorder %s44, %s46
    %p53 = scmp.eq.s32.totalorder %s15, 1
    %p54 = por %p52, %p53
    %p55 = scmp.ne.s32.totalorder %s46, %s47
    %p56 = scmp.eq.s32.totalorder %s15, 0
    %p57 = por %p55, %p56
    %p58 = scmp.ne.s32.totalorder %s46, %s47
    %p59 = scmp.eq.s32.totalorder %s16, 1
    %p60 = por %p58, %p59
    %p62 = scmp.ne.s32.totalorder %s47, %s61
    %p63 = scmp.eq.s32.totalorder %s16, 0
    %p64 = por %p62, %p63
    %s66 = sadd.s32 %s65, 1
    %p69 = scmp.eq.s32.totalorder %s10, 1
    %p70 = scmp.ne.s32.totalorder %s65, %s67
    %p71 = scmp.eq.s32.totalorder %s10, 0
    %p72 = por %p70, %p71
    %p73 = scmp.ne.s32.totalorder %s65, %s67
    %p74 = scmp.eq.s32.totalorder %s15, 1
    %p75 = por %p73, %p74
    %p76 = scmp.ne.s32.totalorder %s67, %s68
    %p77 = scmp.eq.s32.totalorder %s15, 0
    %p78 = por %p76, %p77
    %p79 = scmp.ne.s32.totalorder %s67, %s68
    %p80 = scmp.eq.s32.totalorder %s16, 1
    %p81 = por %p79, %p80
    %p83 = scmp.ne.s32.totalorder %s68, %s82
    %p84 = scmp.eq.s32.totalorder %s16, 0
    %p85 = por %p83, %p84
    %s87 = sadd.s32 %s86, 1
    %p90 = scmp.eq.s32.totalorder %s10, 1
    %p91 = scmp.ne.s32.totalorder %s86, %s88
    %p92 = scmp.eq.s32.totalorder %s10, 0
    %p93 = por %p91, %p92
    %p94 = scmp.ne.s32.totalorder %s86, %s88
    %p95 = scmp.eq.s32.totalorder %s15, 1
    %p96 = por %p94, %p95
    %p97 = scmp.ne.s32.totalorder %s88, %s89
    %p98 = scmp.eq.s32.totalorder %s15, 0
    %p99 = por %p97, %p98
    %p100 = scmp.ne.s32.totalorder %s88, %s89
    %p101 = scmp.eq.s32.totalorder %s16, 1
    %p102 = por %p100, %p101
    %p104 = scmp.ne.s32.totalorder %s89, %s103
    %p105 = scmp.eq.s32.totalorder %s16, 0
    %p106 = por %p104, %p105
    %s107 = ssub.s32 %s10, %s17
    %p108 = scmp.eq.s32.totalorder %s107, 0
    %s110 = sadd.s32 %s109, 1
    %s111 = scalar_select %p108, %s109, %s110
    %p114 = pneg %p108
    %p115 = scmp.eq.s32.totalorder %s10, 1
    %p116 = por %p114, %p115
    %p117 = scmp.ne.s32.totalorder %s109, %s112
    %p118 = scmp.eq.s32.totalorder %s10, 0
    %p119 = por %p117, %p118
    %p120 = scmp.ne.s32.totalorder %s109, %s112
    %p121 = scmp.eq.s32.totalorder %s15, 1
    %p122 = por %p120, %p121
    %p123 = scmp.ne.s32.totalorder %s112, %s113
    %p124 = scmp.eq.s32.totalorder %s15, 0
    %p125 = por %p123, %p124
    %p126 = scmp.ne.s32.totalorder %s112, %s113
    %p127 = scmp.eq.s32.totalorder %s16, 1
    %p128 = por %p126, %p127
    %p130 = scmp.ne.s32.totalorder %s113, %s129
    %p131 = scmp.eq.s32.totalorder %s16, 0
    %p132 = por %p130, %p131
    %p133 = scmp.le.s32.totalorder 1, %s10
    %p134 = scmp.lt.s32.totalorder %s10, 3
    %p135 = pnand %p133, %p134
    %p136 = pneg %p135
    // Predicated region
    $region9: #{deep_q_forward.6} parent=5 // pred_check
      _
    $region10: #{deep_q_forward.6} parent=5 // pred_check_branch
      %138 = sbr.rel (%p135) target = $region12
    $region11: #{deep_q_forward.6} parent=5 // pred_region
      %s139 = ssub.s32 %s10, 1
      // Predicated region
      $region13: #{deep_q_forward.6} parent=11 // pred_check
        %p140 = pneg %p57
      $region14: #{deep_q_forward.6} parent=11 // pred_check_branch
        %142 = sbr.rel (%p140) target = $region16
      $region15: #{deep_q_forward.6} parent=11 // pred_region
        _
      $region16: #{deep_q_forward.6} parent=11 // pred_fallthru
        _
      // Predicated region
      $region17: #{deep_q_forward.6} parent=11 // pred_check
        %p143 = pneg %p78
      $region18: #{deep_q_forward.6} parent=11 // pred_check_branch
        %145 = sbr.rel (%p143) target = $region20
      $region19: #{deep_q_forward.6} parent=11 // pred_region
        _
      $region20: #{deep_q_forward.6} parent=11 // pred_fallthru
        _
      // Predicated region
      $region21: #{deep_q_forward.6} parent=11 // pred_check
        %p146 = pneg %p99
      $region22: #{deep_q_forward.6} parent=11 // pred_check_branch
        %148 = sbr.rel (%p146) target = $region24
      $region23: #{deep_q_forward.6} parent=11 // pred_region
        _
      $region24: #{deep_q_forward.6} parent=11 // pred_fallthru
        _
    $region12: #{deep_q_forward.6} parent=5 // pred_fallthru
      _
    %p149 = scmp.lt.s32.totalorder %s10, 2
    // Predicated region
    $region25: #{deep_q_forward.6} parent=5 // pred_check
      %p150 = pneg %p149
    $region26: #{deep_q_forward.6} parent=5 // pred_check_branch
      %152 = sbr.rel (%p150) target = $region28
    $region27: #{deep_q_forward.6} parent=5 // pred_region
      // Predicated region
      $region29: #{deep_q_forward.6} parent=27 // pred_check
        %p153 = pneg %p30
      $region30: #{deep_q_forward.6} parent=27 // pred_check_branch
        %155 = sbr.rel (%p153) target = $region32
      $region31: #{deep_q_forward.6} parent=27 // pred_region
        %s156 = smul.u32 50, %s10
        %p157 = scmp.lt.s32.totalorder %s156, 99
        %s158 = scalar_select %p157, %s156, 99
        %s159 = smul.addr %s158, 4
        %s160 = scalar_lea.vmem %s0, %s159
        %s161 = smul.u32 50, %s10
      $region32: #{deep_q_forward.6} parent=27 // pred_fallthru
        _
    $region28: #{deep_q_forward.6} parent=5 // pred_fallthru
      _
    %p162 = scmp.le.s32.totalorder 1, %s10
    %p163 = scmp.lt.s32.totalorder %s10, 3
    %p164 = pnand %p162, %p163
    %p165 = pneg %p164
    // Predicated region
    $region33: #{deep_q_forward.6} parent=5 // pred_check
      _
    $region34: #{deep_q_forward.6} parent=5 // pred_check_branch
      %167 = sbr.rel (%p164) target = $region36
    $region35: #{deep_q_forward.6} parent=5 // pred_region
      %s168 = ssub.s32 %s10, 1
      %s169 = smul.u32 50, %s15
      %p170 = scmp.lt.s32.totalorder %s169, 99
      %s171 = scalar_select %p170, %s169, 99
      %s172 = smul.addr %s171, 4
      %s173 = scalar_lea.vmem %s0, %s172
      %p174 = pneg %p36
      %p175 = pneg %p33
      %p176 = pneg %p57
      %p177 = pneg %p54
      %p178 = pneg %p78
      %p179 = pneg %p75
      %p180 = pneg %p99
      %p181 = pneg %p96
      %p182 = pneg %p125
      %p183 = pneg %p122
      %s184 = smul.u32 50, %s15
      %p185 = scmp.lt.s32.totalorder %s184, 99
      %s186 = scalar_select %p185, %s184, 99
      %s187 = smul.addr %s186, 4
      %s188 = scalar_lea.vmem %s4, %s187
      %s189 = smul.u32 50, %s15
      %p190 = scmp.lt.s32.totalorder %s189, 99
      %s191 = scalar_select %p190, %s189, 99
      %s192 = smul.addr %s191, 4
      %s193 = scalar_lea.vmem %s0, %s192
      %s194 = smul.u32 50, %s15
      %s195 = smul.u32 50, %s15
      %p196 = scmp.lt.s32.totalorder %s195, 99
      %s197 = scalar_select %p196, %s195, 99
      %s198 = smul.addr %s197, 4
      %s199 = scalar_lea.vmem %s4, %s198
      %s200 = smul.u32 50, %s15
      %v201 = vld [vmem:[%s1] sm:$0x3]
      %v202 = vld [vmem:[%s1 + $0x2] sm:$0x3]
      %vm203 = vcmask 1041408
      %v204 = vsel %vm203, %v201, 0.0
      %v205 = vsel %vm203, %v202, 0.0
      %v206 = vadd.f32 %v204, %v205
      %v207 = vmul.f32 %v206, 0.00125
      %v208 = vmul.f32 %v207, %v207
      %v210 = vrot.slane %v208, 7
      %v212 = vsub.f32 %v207, %v210
      %v213 = vmax.f32 %v212, 0.0
      %v214 = vld [vmem:[%s2] sm:$0x1]
      %v215 = vadd.f32 %v213, 1e-05
      %v216 = vrsqrt.pop %v215
      %v219 = vunpack.c.l.s4 1966171168
      %v220 = vunpack.c.0.s8 %v219
      %v221 = vlaneseq
      %v222 = vshrl.u32 %v221, 7
      %v223 = vsub.s32 %v220, %v222
      %v224 = vrot.slane %v216, %v223
      %v225 = vcombine.high %v224, %v224
      %v227 = vunpack.c.l.s4 1966171168
      %v228 = vunpack.c.0.s8 %v227
      %v229 = vlaneseq
      %v230 = vshrl.u32 %v229, 7
      %v231 = vsub.s32 %v228, %v230
      %v232 = vrot.slane %v225, %v231
      %v234 = vmul.f32 %v214, %v232
      %v235 = vld [vmem:[%s3] sm:$0x1]
      %v236 = vmul.f32 %v207, %v234
      %v237 = vsub.f32 %v235, %v236
      %v238 = vld [vmem:[%s193] sm:$0xf]
      %v239 = vld [vmem:[%s193 + $0x4] sm:$0xf]
      %v240 = vld [vmem:[%s193 + $0x8] sm:$0xf]
      %v241 = vld [vmem:[%s193 + $0xc] sm:$0xf]
      %v242 = vld [vmem:[%s193 + $0x10] sm:$0xf]
      %v243 = vld [vmem:[%s193 + $0x14] sm:$0xf]
      %v244 = vld [vmem:[%s193 + $0x18] sm:$0xf]
      %v245 = vld [vmem:[%s193 + $0x1c] sm:$0xf]
      %v246 = vld [vmem:[%s193 + $0x20] sm:$0xf]
      %v247 = vld [vmem:[%s193 + $0x24] sm:$0xf]
      %v248 = vld [vmem:[%s193 + $0x28] sm:$0xf]
      %v249 = vld [vmem:[%s193 + $0x2c] sm:$0xf]
      %v250 = vld [vmem:[%s193 + $0x30] sm:$0xf]
      %v251 = vld [vmem:[%s193 + $0x34] sm:$0xf]
      %v252 = vld [vmem:[%s193 + $0x38] sm:$0xf]
      %v253 = vld [vmem:[%s193 + $0x3c] sm:$0xf]
      %v254 = vld [vmem:[%s193 + $0x40] sm:$0xf]
      %v255 = vld [vmem:[%s193 + $0x44] sm:$0xf]
      %v256 = vld [vmem:[%s193 + $0x48] sm:$0xf]
      %v257 = vld [vmem:[%s193 + $0x4c] sm:$0xf]
      %v258 = vld [vmem:[%s193 + $0x50] sm:$0xf]
      %v259 = vld [vmem:[%s193 + $0x54] sm:$0xf]
      %v260 = vld [vmem:[%s193 + $0x58] sm:$0xf]
      %v261 = vld [vmem:[%s193 + $0x5c] sm:$0xf]
      %v262 = vld [vmem:[%s193 + $0x60] sm:$0xf]
      %v263 = vld [vmem:[%s193 + $0x64] sm:$0xf]
      %v264 = vld [vmem:[%s193 + $0x68] sm:$0xf]
      %v265 = vld [vmem:[%s193 + $0x6c] sm:$0xf]
      %v266 = vld [vmem:[%s193 + $0x70] sm:$0xf]
      %v267 = vld [vmem:[%s193 + $0x74] sm:$0xf]
      %v268 = vld [vmem:[%s193 + $0x78] sm:$0xf]
      %v269 = vld [vmem:[%s193 + $0x7c] sm:$0xf]
      %v270 = vld [vmem:[%s193 + $0x80] sm:$0xf]
      %v271 = vld [vmem:[%s193 + $0x84] sm:$0xf]
      %v272 = vld [vmem:[%s193 + $0x88] sm:$0xf]
      %v273 = vld [vmem:[%s193 + $0x8c] sm:$0xf]
      %v274 = vld [vmem:[%s193 + $0x90] sm:$0xf]
      %v275 = vld [vmem:[%s193 + $0x94] sm:$0xf]
      %v276 = vld [vmem:[%s193 + $0x98] sm:$0xf]
      %v277 = vld [vmem:[%s193 + $0x9c] sm:$0xf]
      %v278 = vld [vmem:[%s193 + $0xa0] sm:$0xf]
      %v279 = vld [vmem:[%s193 + $0xa4] sm:$0xf]
      %v280 = vld [vmem:[%s193 + $0xa8] sm:$0xf]
      %v281 = vld [vmem:[%s193 + $0xac] sm:$0xf]
      %v282 = vld [vmem:[%s193 + $0xb0] sm:$0xf]
      %v283 = vld [vmem:[%s193 + $0xb4] sm:$0xf]
      %v284 = vld [vmem:[%s193 + $0xb8] sm:$0xf]
      %v285 = vld [vmem:[%s193 + $0xbc] sm:$0xf]
      %v286 = vld [vmem:[%s193 + $0xc0] sm:$0xf]
      %v287 = vld [vmem:[%s193 + $0xc4] sm:$0xf]
      %v288 = vunpack.c.l.bf16 %v238
      %v289 = vunpack.c.l.bf16 %v239
      %v290 = vunpack.c.l.bf16 %v240
      %v291 = vunpack.c.l.bf16 %v241
      %v292 = vunpack.c.l.bf16 %v242
      %v293 = vunpack.c.l.bf16 %v243
      %v294 = vunpack.c.l.bf16 %v244
      %v295 = vunpack.c.l.bf16 %v245
      %v296 = vunpack.c.l.bf16 %v246
      %v297 = vunpack.c.l.bf16 %v247
      %v298 = vunpack.c.l.bf16 %v248
      %v299 = vunpack.c.l.bf16 %v249
      %v300 = vunpack.c.l.bf16 %v250
      %v301 = vunpack.c.l.bf16 %v251
      %v302 = vunpack.c.l.bf16 %v252
      %v303 = vunpack.c.l.bf16 %v253
      %v304 = vunpack.c.l.bf16 %v254
      %v305 = vunpack.c.l.bf16 %v255
      %v306 = vunpack.c.l.bf16 %v256
      %v307 = vunpack.c.l.bf16 %v257
      %v308 = vunpack.c.l.bf16 %v258
      %v309 = vunpack.c.l.bf16 %v259
      %v310 = vunpack.c.l.bf16 %v260
      %v311 = vunpack.c.l.bf16 %v261
      %v312 = vunpack.c.l.bf16 %v262
      %v313 = vunpack.c.l.bf16 %v263
      %v314 = vunpack.c.l.bf16 %v264
      %v315 = vunpack.c.l.bf16 %v265
      %v316 = vunpack.c.l.bf16 %v266
      %v317 = vunpack.c.l.bf16 %v267
      %v318 = vunpack.c.l.bf16 %v268
      %v319 = vunpack.c.l.bf16 %v269
      %v320 = vunpack.c.l.bf16 %v270
      %v321 = vunpack.c.l.bf16 %v271
      %v322 = vunpack.c.l.bf16 %v272
      %v323 = vunpack.c.l.bf16 %v273
      %v324 = vunpack.c.l.bf16 %v274
      %v325 = vunpack.c.l.bf16 %v275
      %v326 = vunpack.c.l.bf16 %v276
      %v327 = vunpack.c.l.bf16 %v277
      %v328 = vunpack.c.l.bf16 %v278
      %v329 = vunpack.c.l.bf16 %v279
      %v330 = vunpack.c.l.bf16 %v280
      %v331 = vunpack.c.l.bf16 %v281
      %v332 = vunpack.c.l.bf16 %v282
      %v333 = vunpack.c.l.bf16 %v283
      %v334 = vunpack.c.l.bf16 %v284
      %v335 = vunpack.c.l.bf16 %v285
      %v336 = vunpack.c.l.bf16 %v286
      %v337 = vunpack.c.l.bf16 %v287
      %v339 = vlaneseq
      %v340 = vshrl.u32 %v339, 7
      %v341 = vsub.s32 0, %v340
      %v342 = vrot.slane %v234, %v341
      %v344 = vmul.f32 %v288, %v342
      %v345 = vmul.f32 %v289, %v342
      %v346 = vmul.f32 %v290, %v342
      %v347 = vmul.f32 %v291, %v342
      %v348 = vmul.f32 %v292, %v342
      %v349 = vmul.f32 %v293, %v342
      %v350 = vmul.f32 %v294, %v342
      %v351 = vmul.f32 %v295, %v342
      %v352 = vmul.f32 %v296, %v342
      %v353 = vmul.f32 %v297, %v342
      %v354 = vmul.f32 %v298, %v342
      %v355 = vmul.f32 %v299, %v342
      %v356 = vmul.f32 %v300, %v342
      %v357 = vmul.f32 %v301, %v342
      %v358 = vmul.f32 %v302, %v342
      %v359 = vmul.f32 %v303, %v342
      %v360 = vmul.f32 %v304, %v342
      %v361 = vmul.f32 %v305, %v342
      %v362 = vmul.f32 %v306, %v342
      %v363 = vmul.f32 %v307, %v342
      %v364 = vmul.f32 %v308, %v342
      %v365 = vmul.f32 %v309, %v342
      %v366 = vmul.f32 %v310, %v342
      %v367 = vmul.f32 %v311, %v342
      %v368 = vmul.f32 %v312, %v342
      %v369 = vmul.f32 %v313, %v342
      %v370 = vmul.f32 %v314, %v342
      %v371 = vmul.f32 %v315, %v342
      %v372 = vmul.f32 %v316, %v342
      %v373 = vmul.f32 %v317, %v342
      %v374 = vmul.f32 %v318, %v342
      %v375 = vmul.f32 %v319, %v342
      %v376 = vmul.f32 %v320, %v342
      %v377 = vmul.f32 %v321, %v342
      %v378 = vmul.f32 %v322, %v342
      %v379 = vmul.f32 %v323, %v342
      %v380 = vmul.f32 %v324, %v342
      %v381 = vmul.f32 %v325, %v342
      %v382 = vmul.f32 %v326, %v342
      %v383 = vmul.f32 %v327, %v342
      %v384 = vmul.f32 %v328, %v342
      %v385 = vmul.f32 %v329, %v342
      %v386 = vmul.f32 %v330, %v342
      %v387 = vmul.f32 %v331, %v342
      %v388 = vmul.f32 %v332, %v342
      %v389 = vmul.f32 %v333, %v342
      %v390 = vmul.f32 %v334, %v342
      %v391 = vmul.f32 %v335, %v342
      %v392 = vmul.f32 %v336, %v342
      %v393 = vmul.f32 %v337, %v342
      %v395 = vlaneseq
      %v396 = vshrl.u32 %v395, 7
      %v397 = vsub.s32 0, %v396
      %v398 = vrot.slane %v237, %v397
      %v400 = vadd.f32 %v344, %v398
      %v401 = vadd.f32 %v345, %v398
      %v402 = vadd.f32 %v346, %v398
      %v403 = vadd.f32 %v347, %v398
      %v404 = vadd.f32 %v348, %v398
      %v405 = vadd.f32 %v349, %v398
      %v406 = vadd.f32 %v350, %v398
      %v407 = vadd.f32 %v351, %v398
      %v408 = vadd.f32 %v352, %v398
      %v409 = vadd.f32 %v353, %v398
      %v410 = vadd.f32 %v354, %v398
      %v411 = vadd.f32 %v355, %v398
      %v412 = vadd.f32 %v356, %v398
      %v413 = vadd.f32 %v357, %v398
      %v414 = vadd.f32 %v358, %v398
      %v415 = vadd.f32 %v359, %v398
      %v416 = vadd.f32 %v360, %v398
      %v417 = vadd.f32 %v361, %v398
      %v418 = vadd.f32 %v362, %v398
      %v419 = vadd.f32 %v363, %v398
      %v420 = vadd.f32 %v364, %v398
      %v421 = vadd.f32 %v365, %v398
      %v422 = vadd.f32 %v366, %v398
      %v423 = vadd.f32 %v367, %v398
      %v424 = vadd.f32 %v368, %v398
      %v425 = vadd.f32 %v369, %v398
      %v426 = vadd.f32 %v370, %v398
      %v427 = vadd.f32 %v371, %v398
      %v428 = vadd.f32 %v372, %v398
      %v429 = vadd.f32 %v373, %v398
      %v430 = vadd.f32 %v374, %v398
      %v431 = vadd.f32 %v375, %v398
      %v432 = vadd.f32 %v376, %v398
      %v433 = vadd.f32 %v377, %v398
      %v434 = vadd.f32 %v378, %v398
      %v435 = vadd.f32 %v379, %v398
      %v436 = vadd.f32 %v380, %v398
      %v437 = vadd.f32 %v381, %v398
      %v438 = vadd.f32 %v382, %v398
      %v439 = vadd.f32 %v383, %v398
      %v440 = vadd.f32 %v384, %v398
      %v441 = vadd.f32 %v385, %v398
      %v442 = vadd.f32 %v386, %v398
      %v443 = vadd.f32 %v387, %v398
      %v444 = vadd.f32 %v388, %v398
      %v445 = vadd.f32 %v389, %v398
      %v446 = vadd.f32 %v390, %v398
      %v447 = vadd.f32 %v391, %v398
      %v448 = vadd.f32 %v392, %v398
      %v449 = vadd.f32 %v393, %v398
      %v450 = vmax.f32 %v400, 0.0
      %v451 = vmax.f32 %v401, 0.0
      %v452 = vmax.f32 %v402, 0.0
      %v453 = vmax.f32 %v403, 0.0
      %v454 = vmax.f32 %v404, 0.0
      %v455 = vmax.f32 %v405, 0.0
      %v456 = vmax.f32 %v406, 0.0
      %v457 = vmax.f32 %v407, 0.0
      %v458 = vmax.f32 %v408, 0.0
      %v459 = vmax.f32 %v409, 0.0
      %v460 = vmax.f32 %v410, 0.0
      %v461 = vmax.f32 %v411, 0.0
      %v462 = vmax.f32 %v412, 0.0
      %v463 = vmax.f32 %v413, 0.0
      %v464 = vmax.f32 %v414, 0.0
      %v465 = vmax.f32 %v415, 0.0
      %v466 = vmax.f32 %v416, 0.0
      %v467 = vmax.f32 %v417, 0.0
      %v468 = vmax.f32 %v418, 0.0
      %v469 = vmax.f32 %v419, 0.0
      %v470 = vmax.f32 %v420, 0.0
      %v471 = vmax.f32 %v421, 0.0
      %v472 = vmax.f32 %v422, 0.0
      %v473 = vmax.f32 %v423, 0.0
      %v474 = vmax.f32 %v424, 0.0
      %v475 = vmax.f32 %v425, 0.0
      %v476 = vmax.f32 %v426, 0.0
      %v477 = vmax.f32 %v427, 0.0
      %v478 = vmax.f32 %v428, 0.0
      %v479 = vmax.f32 %v429, 0.0
      %v480 = vmax.f32 %v430, 0.0
      %v481 = vmax.f32 %v431, 0.0
      %v482 = vmax.f32 %v432, 0.0
      %v483 = vmax.f32 %v433, 0.0
      %v484 = vmax.f32 %v434, 0.0
      %v485 = vmax.f32 %v435, 0.0
      %v486 = vmax.f32 %v436, 0.0
      %v487 = vmax.f32 %v437, 0.0
      %v488 = vmax.f32 %v438, 0.0
      %v489 = vmax.f32 %v439, 0.0
      %v490 = vmax.f32 %v440, 0.0
      %v491 = vmax.f32 %v441, 0.0
      %v492 = vmax.f32 %v442, 0.0
      %v493 = vmax.f32 %v443, 0.0
      %v494 = vmax.f32 %v444, 0.0
      %v495 = vmax.f32 %v445, 0.0
      %v496 = vmax.f32 %v446, 0.0
      %v497 = vmax.f32 %v447, 0.0
      %v498 = vmax.f32 %v448, 0.0
      %v499 = vmax.f32 %v449, 0.0
      %v500 = vpack.c.bf16 %v451, %v450
      %v501 = vpack.c.bf16 %v453, %v452
      %v502 = vpack.c.bf16 %v455, %v454
      %v503 = vpack.c.bf16 %v457, %v456
      %v504 = vpack.c.bf16 %v459, %v458
      %v505 = vpack.c.bf16 %v461, %v460
      %v506 = vpack.c.bf16 %v463, %v462
      %v507 = vpack.c.bf16 %v465, %v464
      %v508 = vpack.c.bf16 %v467, %v466
      %v509 = vpack.c.bf16 %v469, %v468
      %v510 = vpack.c.bf16 %v471, %v470
      %v511 = vpack.c.bf16 %v473, %v472
      %v512 = vpack.c.bf16 %v475, %v474
      %v513 = vpack.c.bf16 %v477, %v476
      %v514 = vpack.c.bf16 %v479, %v478
      %v515 = vpack.c.bf16 %v481, %v480
      %v516 = vpack.c.bf16 %v483, %v482
      %v517 = vpack.c.bf16 %v485, %v484
      %v518 = vpack.c.bf16 %v487, %v486
      %v519 = vpack.c.bf16 %v489, %v488
      %v520 = vpack.c.bf16 %v491, %v490
      %v521 = vpack.c.bf16 %v493, %v492
      %v522 = vpack.c.bf16 %v495, %v494
      %v523 = vpack.c.bf16 %v497, %v496
      %v524 = vpack.c.bf16 %v499, %v498
      %v550 = vunpack.c.l.b16 %v500
      %v551 = vunpack.c.h.b16 %v500
      %v552 = vunpack.c.l.b16 %v501
      %v553 = vunpack.c.h.b16 %v501
      %v554 = vunpack.c.l.b16 %v502
      %v555 = vunpack.c.h.b16 %v502
      %v556 = vunpack.c.l.b16 %v503
      %v557 = vunpack.c.h.b16 %v503
      %v558 = vunpack.c.l.b16 %v504
      %v559 = vunpack.c.h.b16 %v504
      %v560 = vunpack.c.l.b16 %v505
      %v561 = vunpack.c.h.b16 %v505
      %v562 = vunpack.c.l.b16 %v506
      %v563 = vunpack.c.h.b16 %v506
      %v564 = vunpack.c.l.b16 %v507
      %v565 = vunpack.c.h.b16 %v507
      %v566 = vunpack.c.l.b16 %v508
      %v567 = vunpack.c.h.b16 %v508
      %v568 = vunpack.c.l.b16 %v509
      %v569 = vunpack.c.h.b16 %v509
      %v570 = vunpack.c.l.b16 %v510
      %v571 = vunpack.c.h.b16 %v510
      %v572 = vunpack.c.l.b16 %v511
      %v573 = vunpack.c.h.b16 %v511
      %v574 = vunpack.c.l.b16 %v512
      %v575 = vunpack.c.h.b16 %v512
      %v576 = vunpack.c.l.b16 %v513
      %v577 = vunpack.c.h.b16 %v513
      %v578 = vunpack.c.l.b16 %v514
      %v579 = vunpack.c.h.b16 %v514
      %v580 = vunpack.c.l.b16 %v515
      %v581 = vunpack.c.h.b16 %v515
      %v582 = vunpack.c.l.b16 %v516
      %v583 = vunpack.c.h.b16 %v516
      %v584 = vunpack.c.l.b16 %v517
      %v585 = vunpack.c.h.b16 %v517
      %v586 = vunpack.c.l.b16 %v518
      %v587 = vunpack.c.h.b16 %v518
      %v588 = vunpack.c.l.b16 %v519
      %v589 = vunpack.c.h.b16 %v519
      %v590 = vunpack.c.l.b16 %v520
      %v591 = vunpack.c.h.b16 %v520
      %v592 = vunpack.c.l.b16 %v521
      %v593 = vunpack.c.h.b16 %v521
      %v594 = vunpack.c.l.b16 %v522
      %v595 = vunpack.c.h.b16 %v522
      %v596 = vunpack.c.l.b16 %v523
      %v597 = vunpack.c.h.b16 %v523
      %v598 = vunpack.c.l.b16 %v524
      %v599 = vunpack.c.h.b16 %v524
      %v600 = vpack.c.b16 %v550, %v550
      %v601 = vpack.c.b16 %v551, %v551
      %v602 = vpack.c.b16 %v552, %v552
      %v603 = vpack.c.b16 %v553, %v553
      %v604 = vpack.c.b16 %v554, %v554
      %v605 = vpack.c.b16 %v555, %v555
      %v606 = vpack.c.b16 %v556, %v556
      %v607 = vpack.c.b16 %v557, %v557
      %v608 = vpack.c.b16 %v558, %v558
      %v609 = vpack.c.b16 %v559, %v559
      %v610 = vpack.c.b16 %v560, %v560
      %v611 = vpack.c.b16 %v561, %v561
      %v612 = vpack.c.b16 %v562, %v562
      %v613 = vpack.c.b16 %v563, %v563
      %v614 = vpack.c.b16 %v564, %v564
      %v615 = vpack.c.b16 %v565, %v565
      %v616 = vpack.c.b16 %v566, %v566
      %v617 = vpack.c.b16 %v567, %v567
      %v618 = vpack.c.b16 %v568, %v568
      %v619 = vpack.c.b16 %v569, %v569
      %v620 = vpack.c.b16 %v570, %v570
      %v621 = vpack.c.b16 %v571, %v571
      %v622 = vpack.c.b16 %v572, %v572
      %v623 = vpack.c.b16 %v573, %v573
      %v624 = vpack.c.b16 %v574, %v574
      %v625 = vpack.c.b16 %v575, %v575
      %v626 = vpack.c.b16 %v576, %v576
      %v627 = vpack.c.b16 %v577, %v577
      %v628 = vpack.c.b16 %v578, %v578
      %v629 = vpack.c.b16 %v579, %v579
      %v630 = vpack.c.b16 %v580, %v580
      %v631 = vpack.c.b16 %v581, %v581
      %v632 = vpack.c.b16 %v582, %v582
      %v633 = vpack.c.b16 %v583, %v583
      %v634 = vpack.c.b16 %v584, %v584
      %v635 = vpack.c.b16 %v585, %v585
      %v636 = vpack.c.b16 %v586, %v586
      %v637 = vpack.c.b16 %v587, %v587
      %v638 = vpack.c.b16 %v588, %v588
      %v639 = vpack.c.b16 %v589, %v589
      %v640 = vpack.c.b16 %v590, %v590
      %v641 = vpack.c.b16 %v591, %v591
      %v642 = vpack.c.b16 %v592, %v592
      %v643 = vpack.c.b16 %v593, %v593
      %v644 = vpack.c.b16 %v594, %v594
      %v645 = vpack.c.b16 %v595, %v595
      %v646 = vpack.c.b16 %v596, %v596
      %v647 = vpack.c.b16 %v597, %v597
      %v648 = vpack.c.b16 %v598, %v598
      %v649 = vpack.c.b16 %v599, %v599
      %700 = vst [vmem:[%s199] sm:$0xf] %v600
      %701 = vst [vmem:[%s199 + $0x4] sm:$0xf] %v601
      %702 = vst [vmem:[%s199 + $0x8] sm:$0xf] %v602
      %703 = vst [vmem:[%s199 + $0xc] sm:$0xf] %v603
      %704 = vst [vmem:[%s199 + $0x10] sm:$0xf] %v604
      %705 = vst [vmem:[%s199 + $0x14] sm:$0xf] %v605
      %706 = vst [vmem:[%s199 + $0x18] sm:$0xf] %v606
      %707 = vst [vmem:[%s199 + $0x1c] sm:$0xf] %v607
      %708 = vst [vmem:[%s199 + $0x20] sm:$0xf] %v608
      %709 = vst [vmem:[%s199 + $0x24] sm:$0xf] %v609
      %710 = vst [vmem:[%s199 + $0x28] sm:$0xf] %v610
      %711 = vst [vmem:[%s199 + $0x2c] sm:$0xf] %v611
      %712 = vst [vmem:[%s199 + $0x30] sm:$0xf] %v612
      %713 = vst [vmem:[%s199 + $0x34] sm:$0xf] %v613
      %714 = vst [vmem:[%s199 + $0x38] sm:$0xf] %v614
      %715 = vst [vmem:[%s199 + $0x3c] sm:$0xf] %v615
      %716 = vst [vmem:[%s199 + $0x40] sm:$0xf] %v616
      %717 = vst [vmem:[%s199 + $0x44] sm:$0xf] %v617
      %718 = vst [vmem:[%s199 + $0x48] sm:$0xf] %v618
      %719 = vst [vmem:[%s199 + $0x4c] sm:$0xf] %v619
      %720 = vst [vmem:[%s199 + $0x50] sm:$0xf] %v620
      %721 = vst [vmem:[%s199 + $0x54] sm:$0xf] %v621
      %722 = vst [vmem:[%s199 + $0x58] sm:$0xf] %v622
      %723 = vst [vmem:[%s199 + $0x5c] sm:$0xf] %v623
      %724 = vst [vmem:[%s199 + $0x60] sm:$0xf] %v624
      %725 = vst [vmem:[%s199 + $0x64] sm:$0xf] %v625
      %726 = vst [vmem:[%s199 + $0x68] sm:$0xf] %v626
      %727 = vst [vmem:[%s199 + $0x6c] sm:$0xf] %v627
      %728 = vst [vmem:[%s199 + $0x70] sm:$0xf] %v628
      %729 = vst [vmem:[%s199 + $0x74] sm:$0xf] %v629
      %730 = vst [vmem:[%s199 + $0x78] sm:$0xf] %v630
      %731 = vst [vmem:[%s199 + $0x7c] sm:$0xf] %v631
      %732 = vst [vmem:[%s199 + $0x80] sm:$0xf] %v632
      %733 = vst [vmem:[%s199 + $0x84] sm:$0xf] %v633
      %734 = vst [vmem:[%s199 + $0x88] sm:$0xf] %v634
      %735 = vst [vmem:[%s199 + $0x8c] sm:$0xf] %v635
      %736 = vst [vmem:[%s199 + $0x90] sm:$0xf] %v636
      %737 = vst [vmem:[%s199 + $0x94] sm:$0xf] %v637
      %738 = vst [vmem:[%s199 + $0x98] sm:$0xf] %v638
      %739 = vst [vmem:[%s199 + $0x9c] sm:$0xf] %v639
      %740 = vst [vmem:[%s199 + $0xa0] sm:$0xf] %v640
      %741 = vst [vmem:[%s199 + $0xa4] sm:$0xf] %v641
      %742 = vst [vmem:[%s199 + $0xa8] sm:$0xf] %v642
      %743 = vst [vmem:[%s199 + $0xac] sm:$0xf] %v643
      %744 = vst [vmem:[%s199 + $0xb0] sm:$0xf] %v644
      %745 = vst [vmem:[%s199 + $0xb4] sm:$0xf] %v645
      %746 = vst [vmem:[%s199 + $0xb8] sm:$0xf] %v646
      %747 = vst [vmem:[%s199 + $0xbc] sm:$0xf] %v647
      %748 = vst [vmem:[%s199 + $0xc0] sm:$0xf] %v648
      %749 = vst [vmem:[%s199 + $0xc4] sm:$0xf] %v649
      %s750 = smul.u32 50, %s15
      %p751 = scmp.lt.s32.totalorder %s750, 99
      %s752 = scalar_select %p751, %s750, 99
      %s753 = smul.addr %s752, 4
      %s754 = scalar_lea.vmem %s4, %s753
      // Predicated region
      $region37: #{deep_q_forward.6} parent=35 // pred_check
        %p755 = pneg %p122
      $region38: #{deep_q_forward.6} parent=35 // pred_check_branch
        %757 = sbr.rel (%p755) target = $region40
      $region39: #{deep_q_forward.6} parent=35 // pred_region
        %s758 = smul.u32 50, %s15
      $region40: #{deep_q_forward.6} parent=35 // pred_fallthru
        _
    $region36: #{deep_q_forward.6} parent=5 // pred_fallthru
      _
    %p759 = scmp.le.s32.totalorder 2, %s10
    // Predicated region
    $region41: #{deep_q_forward.6} parent=5 // pred_check
      %p760 = pneg %p759
    $region42: #{deep_q_forward.6} parent=5 // pred_check_branch
      %762 = sbr.rel (%p760) target = $region44
    $region43: #{deep_q_forward.6} parent=5 // pred_region
      %s763 = ssub.s32 %s10, 2
      // Predicated region
      $region45: #{deep_q_forward.6} parent=43 // pred_check
        %p764 = pneg %p128
      $region46: #{deep_q_forward.6} parent=43 // pred_check_branch
        %766 = sbr.rel (%p764) target = $region48
      $region47: #{deep_q_forward.6} parent=43 // pred_region
        %s767 = smul.u32 50, %s16
        %p768 = scmp.lt.s32.totalorder %s767, 99
        %s769 = scalar_select %p768, %s767, 99
        %s770 = smul.addr %s769, 4
        %s771 = scalar_lea.vmem %s4, %s770
      $region48: #{deep_q_forward.6} parent=43 // pred_fallthru
        _
    $region44: #{deep_q_forward.6} parent=5 // pred_fallthru
      _
  $region6: #{deep_q_forward.6} parent=0 // loop_footer
    %s14 = sadd.s32 1, %s10
  $region7: #{deep_q_forward.6} parent=0 // loop_footer_branch
    %9 = sbr.rel target = $region3
  $region8: #{deep_q_forward.6} parent=0 // loop_exit
    _

// kernel: deep_q_forward.7
$region0: #{deep_q_forward.7}
  #allocation0 [shape = 'u32[]', space=smem, size = 0x4, offset = 0x4, fixed_abs, tag = 'smem constant byte address 0x4 - core index']
  #allocation1 [shape = 'u32[144,128]{1,0:T(1,128)}', space=vmem, size = 0x12000, scoped, tag = 'internal scratch']
  %s0 = inlined_call_operand.vmem [shape: bf16[176,512], index: 0, kind: input, shape index: {}]
  %s1 = inlined_call_operand.vmem [shape: bf16[512,128], index: 1, kind: input, shape index: {}]
  %s2 = inlined_call_operand.vmem [shape: bf16[176,128], index: 2, kind: output, shape index: {0}]
  %s3 = inlined_call_operand.vmem [shape: f32[1,2,128], index: 3, kind: output, shape index: {1}]
  %4 = xla_tuple %s2, %s3
  %s5 = sld [smem:[#allocation0]]
  $region26: #{deep_q_forward.7} parent=0
    _
  %s7 = ssub.s32 1, %s5
  %s8 = scalar_select 0, %s7, %s5
  // Predicated region
  $region2: #{deep_q_forward.7} parent=0 // pred_check
    _
  $region3: #{deep_q_forward.7} parent=0 // pred_check_branch
    %10 = sbr.rel (0) target = $region5
  $region4: #{deep_q_forward.7} parent=0 // pred_region
    _
  $region5: #{deep_q_forward.7} parent=0 // pred_fallthru
    _
  // Predicated region
  $region6: #{deep_q_forward.7} parent=0 // pred_check
    _
  $region7: #{deep_q_forward.7} parent=0 // pred_check_branch
    %12 = sbr.rel (0) target = $region9
  $region8: #{deep_q_forward.7} parent=0 // pred_region
    _
  $region9: #{deep_q_forward.7} parent=0 // pred_fallthru
    _
  %v14 = vld [vmem:[%s0] sm:$0xff]
  %v15 = vld [vmem:[%s0 + $0x8] sm:$0xff]
  %v16 = vld [vmem:[%s0 + $0x10] sm:$0xff]
  %v17 = vld [vmem:[%s0 + $0x18] sm:$0xff]
  %v18 = vld [vmem:[%s0 + $0x20] sm:$0xff]
  %v19 = vld [vmem:[%s0 + $0x28] sm:$0xff]
  %v20 = vld [vmem:[%s0 + $0x30] sm:$0xff]
  %v21 = vld [vmem:[%s0 + $0x38] sm:$0xff]
  %v22 = vld [vmem:[%s0 + $0x40] sm:$0xff]
  %v23 = vld [vmem:[%s0 + $0x48] sm:$0xff]
  %v24 = vld [vmem:[%s0 + $0x50] sm:$0xff]
  %v25 = vld [vmem:[%s0 + $0x58] sm:$0xff]
  %v26 = vld [vmem:[%s0 + $0x60] sm:$0xff]
  %v27 = vld [vmem:[%s0 + $0x68] sm:$0xff]
  %v28 = vld [vmem:[%s0 + $0x70] sm:$0xff]
  %v29 = vld [vmem:[%s0 + $0x78] sm:$0xff]
  %v30 = vld [vmem:[%s0 + $0x80] sm:$0xff]
  %v31 = vld [vmem:[%s0 + $0x88] sm:$0xff]
  %v32 = vld [vmem:[%s0 + $0x90] sm:$0xff]
  %v33 = vld [vmem:[%s0 + $0x98] sm:$0xff]
  %v34 = vld [vmem:[%s0 + $0xa0] sm:$0xff]
  %v35 = vld [vmem:[%s0 + $0xa8] sm:$0xff]
  %v36 = vld [vmem:[%s0 + $0xb0] sm:$0xff]
  %v37 = vld [vmem:[%s0 + $0xb8] sm:$0xff]
  %v38 = vld [vmem:[%s0 + $0xc0] sm:$0xff]
  %v39 = vld [vmem:[%s0 + $0xc8] sm:$0xff]
  %v40 = vld [vmem:[%s0 + $0xd0] sm:$0xff]
  %v41 = vld [vmem:[%s0 + $0xd8] sm:$0xff]
  %v42 = vld [vmem:[%s0 + $0xe0] sm:$0xff]
  %v43 = vld [vmem:[%s0 + $0xe8] sm:$0xff]
  %v44 = vld [vmem:[%s0 + $0xf0] sm:$0xff]
  %v45 = vld [vmem:[%s0 + $0xf8] sm:$0xff]
  %v46 = vld [vmem:[%s0 + $0x100] sm:$0xff]
  %v47 = vld [vmem:[%s0 + $0x108] sm:$0xff]
  %v48 = vld [vmem:[%s0 + $0x110] sm:$0xff]
  %v49 = vld [vmem:[%s0 + $0x118] sm:$0xff]
  %v50 = vld [vmem:[%s0 + $0x120] sm:$0xff]
  %v51 = vld [vmem:[%s0 + $0x128] sm:$0xff]
  %v52 = vld [vmem:[%s0 + $0x130] sm:$0xff]
  %v53 = vld [vmem:[%s0 + $0x138] sm:$0xff]
  %v54 = vld [vmem:[%s0 + $0x140] sm:$0xff]
  %v55 = vld [vmem:[%s0 + $0x148] sm:$0xff]
  %v56 = vld [vmem:[%s0 + $0x150] sm:$0xff]
  %v57 = vld [vmem:[%s0 + $0x158] sm:$0xff]
  %v58 = vld [vmem:[%s1] sm:$0xf]
  %v59 = vld [vmem:[%s1 + $0x4] sm:$0xf]
  %v60 = vld [vmem:[%s1 + $0x8] sm:$0xf]
  %v61 = vld [vmem:[%s1 + $0xc] sm:$0xf]
  %v62 = vld [vmem:[%s1 + $0x10] sm:$0xf]
  %v63 = vld [vmem:[%s1 + $0x14] sm:$0xf]
  %v64 = vld [vmem:[%s1 + $0x18] sm:$0xf]
  %v65 = vld [vmem:[%s1 + $0x1c] sm:$0xf]
  %v66 = vld [vmem:[%s1 + $0x20] sm:$0xf]
  %v67 = vld [vmem:[%s1 + $0x24] sm:$0xf]
  %v68 = vld [vmem:[%s1 + $0x28] sm:$0xf]
  %v69 = vld [vmem:[%s1 + $0x2c] sm:$0xf]
  %v70 = vld [vmem:[%s1 + $0x30] sm:$0xf]
  %v71 = vld [vmem:[%s1 + $0x34] sm:$0xf]
  %v72 = vld [vmem:[%s1 + $0x38] sm:$0xf]
  %v73 = vld [vmem:[%s1 + $0x3c] sm:$0xf]
  %v74 = vld [vmem:[%s1 + $0x40] sm:$0xf]
  %v75 = vld [vmem:[%s1 + $0x44] sm:$0xf]
  %v76 = vld [vmem:[%s1 + $0x48] sm:$0xf]
  %v77 = vld [vmem:[%s1 + $0x4c] sm:$0xf]
  %v78 = vld [vmem:[%s1 + $0x50] sm:$0xf]
  %v79 = vld [vmem:[%s1 + $0x54] sm:$0xf]
  %v80 = vld [vmem:[%s1 + $0x58] sm:$0xf]
  %v81 = vld [vmem:[%s1 + $0x5c] sm:$0xf]
  %v82 = vld [vmem:[%s1 + $0x60] sm:$0xf]
  %v83 = vld [vmem:[%s1 + $0x64] sm:$0xf]
  %v84 = vld [vmem:[%s1 + $0x68] sm:$0xf]
  %v85 = vld [vmem:[%s1 + $0x6c] sm:$0xf]
  %v86 = vld [vmem:[%s1 + $0x70] sm:$0xf]
  %v87 = vld [vmem:[%s1 + $0x74] sm:$0xf]
  %v88 = vld [vmem:[%s1 + $0x78] sm:$0xf]
  %v89 = vld [vmem:[%s1 + $0x7c] sm:$0xf]
  %v90 = vld [vmem:[%s1 + $0x80] sm:$0xf]
  %v91 = vld [vmem:[%s1 + $0x84] sm:$0xf]
  %v92 = vld [vmem:[%s1 + $0x88] sm:$0xf]
  %v93 = vld [vmem:[%s1 + $0x8c] sm:$0xf]
  %v94 = vld [vmem:[%s1 + $0x90] sm:$0xf]
  %v95 = vld [vmem:[%s1 + $0x94] sm:$0xf]
  %v96 = vld [vmem:[%s1 + $0x98] sm:$0xf]
  %v97 = vld [vmem:[%s1 + $0x9c] sm:$0xf]
  %v98 = vld [vmem:[%s1 + $0xa0] sm:$0xf]
  %v99 = vld [vmem:[%s1 + $0xa4] sm:$0xf]
  %v100 = vld [vmem:[%s1 + $0xa8] sm:$0xf]
  %v101 = vld [vmem:[%s1 + $0xac] sm:$0xf]
  %v102 = vld [vmem:[%s1 + $0xb0] sm:$0xf]
  %v103 = vld [vmem:[%s1 + $0xb4] sm:$0xf]
  %v104 = vld [vmem:[%s1 + $0xb8] sm:$0xf]
  %v105 = vld [vmem:[%s1 + $0xbc] sm:$0xf]
  %v106 = vld [vmem:[%s1 + $0xc0] sm:$0xf]
  %v107 = vld [vmem:[%s1 + $0xc4] sm:$0xf]
  %v108 = vld [vmem:[%s1 + $0xc8] sm:$0xf]
  %v109 = vld [vmem:[%s1 + $0xcc] sm:$0xf]
  %v110 = vld [vmem:[%s1 + $0xd0] sm:$0xf]
  %v111 = vld [vmem:[%s1 + $0xd4] sm:$0xf]
  %v112 = vld [vmem:[%s1 + $0xd8] sm:$0xf]
  %v113 = vld [vmem:[%s1 + $0xdc] sm:$0xf]
  %v114 = vld [vmem:[%s1 + $0xe0] sm:$0xf]
  %v115 = vld [vmem:[%s1 + $0xe4] sm:$0xf]
  %v116 = vld [vmem:[%s1 + $0xe8] sm:$0xf]
  %v117 = vld [vmem:[%s1 + $0xec] sm:$0xf]
  %v118 = vld [vmem:[%s1 + $0xf0] sm:$0xf]
  %v119 = vld [vmem:[%s1 + $0xf4] sm:$0xf]
  %v120 = vld [vmem:[%s1 + $0xf8] sm:$0xf]
  %v121 = vld [vmem:[%s1 + $0xfc] sm:$0xf]
  %v166 = vunpack.c.l.b16 %v14
  %v167 = vunpack.c.h.b16 %v14
  %v168 = vunpack.c.l.b16 %v15
  %v169 = vunpack.c.h.b16 %v15
  %v170 = vunpack.c.l.b16 %v16
  %v171 = vunpack.c.h.b16 %v16
  %v172 = vunpack.c.l.b16 %v17
  %v173 = vunpack.c.h.b16 %v17
  %v174 = vunpack.c.l.b16 %v18
  %v175 = vunpack.c.h.b16 %v18
  %v176 = vunpack.c.l.b16 %v19
  %v177 = vunpack.c.h.b16 %v19
  %v178 = vunpack.c.l.b16 %v20
  %v179 = vunpack.c.h.b16 %v20
  %v180 = vunpack.c.l.b16 %v21
  %v181 = vunpack.c.h.b16 %v21
  %v182 = vunpack.c.l.b16 %v22
  %v183 = vunpack.c.h.b16 %v22
  %v184 = vunpack.c.l.b16 %v23
  %v185 = vunpack.c.h.b16 %v23
  %v186 = vunpack.c.l.b16 %v24
  %v187 = vunpack.c.h.b16 %v24
  %v188 = vunpack.c.l.b16 %v25
  %v189 = vunpack.c.h.b16 %v25
  %v190 = vunpack.c.l.b16 %v26
  %v191 = vunpack.c.h.b16 %v26
  %v192 = vunpack.c.l.b16 %v27
  %v193 = vunpack.c.h.b16 %v27
  %v194 = vunpack.c.l.b16 %v28
  %v195 = vunpack.c.h.b16 %v28
  %v196 = vunpack.c.l.b16 %v29
  %v197 = vunpack.c.h.b16 %v29
  %v198 = vunpack.c.l.b16 %v30
  %v199 = vunpack.c.h.b16 %v30
  %v200 = vunpack.c.l.b16 %v31
  %v201 = vunpack.c.h.b16 %v31
  %v202 = vunpack.c.l.b16 %v32
  %v203 = vunpack.c.h.b16 %v32
  %v204 = vunpack.c.l.b16 %v33
  %v205 = vunpack.c.h.b16 %v33
  %v206 = vunpack.c.l.b16 %v34
  %v207 = vunpack.c.h.b16 %v34
  %v208 = vunpack.c.l.b16 %v35
  %v209 = vunpack.c.h.b16 %v35
  %v210 = vunpack.c.l.b16 %v36
  %v211 = vunpack.c.h.b16 %v36
  %v212 = vunpack.c.l.b16 %v37
  %v213 = vunpack.c.h.b16 %v37
  %v214 = vunpack.c.l.b16 %v38
  %v215 = vunpack.c.h.b16 %v38
  %v216 = vunpack.c.l.b16 %v39
  %v217 = vunpack.c.h.b16 %v39
  %v218 = vunpack.c.l.b16 %v40
  %v219 = vunpack.c.h.b16 %v40
  %v220 = vunpack.c.l.b16 %v41
  %v221 = vunpack.c.h.b16 %v41
  %v222 = vunpack.c.l.b16 %v42
  %v223 = vunpack.c.h.b16 %v42
  %v224 = vunpack.c.l.b16 %v43
  %v225 = vunpack.c.h.b16 %v43
  %v226 = vunpack.c.l.b16 %v44
  %v227 = vunpack.c.h.b16 %v44
  %v228 = vunpack.c.l.b16 %v45
  %v229 = vunpack.c.h.b16 %v45
  %v230 = vunpack.c.l.b16 %v46
  %v231 = vunpack.c.h.b16 %v46
  %v232 = vunpack.c.l.b16 %v47
  %v233 = vunpack.c.h.b16 %v47
  %v234 = vunpack.c.l.b16 %v48
  %v235 = vunpack.c.h.b16 %v48
  %v236 = vunpack.c.l.b16 %v49
  %v237 = vunpack.c.h.b16 %v49
  %v238 = vunpack.c.l.b16 %v50
  %v239 = vunpack.c.h.b16 %v50
  %v240 = vunpack.c.l.b16 %v51
  %v241 = vunpack.c.h.b16 %v51
  %v242 = vunpack.c.l.b16 %v52
  %v243 = vunpack.c.h.b16 %v52
  %v244 = vunpack.c.l.b16 %v53
  %v245 = vunpack.c.h.b16 %v53
  %v246 = vunpack.c.l.b16 %v54
  %v247 = vunpack.c.h.b16 %v54
  %v248 = vunpack.c.l.b16 %v55
  %v249 = vunpack.c.h.b16 %v55
  %v250 = vunpack.c.l.b16 %v56
  %v251 = vunpack.c.h.b16 %v56
  %v252 = vunpack.c.l.b16 %v57
  %v253 = vunpack.c.h.b16 %v57
  %v254 = vpack.c.b16 %v170, %v166
  %v255 = vpack.c.b16 %v171, %v167
  %v256 = vpack.c.b16 %v172, %v168
  %v257 = vpack.c.b16 %v173, %v169
  %v258 = vpack.c.b16 %v178, %v174
  %v259 = vpack.c.b16 %v179, %v175
  %v260 = vpack.c.b16 %v180, %v176
  %v261 = vpack.c.b16 %v181, %v177
  %v262 = vpack.c.b16 %v186, %v182
  %v263 = vpack.c.b16 %v187, %v183
  %v264 = vpack.c.b16 %v188, %v184
  %v265 = vpack.c.b16 %v189, %v185
  %v266 = vpack.c.b16 %v194, %v190
  %v267 = vpack.c.b16 %v195, %v191
  %v268 = vpack.c.b16 %v196, %v192
  %v269 = vpack.c.b16 %v197, %v193
  %v270 = vpack.c.b16 %v202, %v198
  %v271 = vpack.c.b16 %v203, %v199
  %v272 = vpack.c.b16 %v204, %v200
  %v273 = vpack.c.b16 %v205, %v201
  %v274 = vpack.c.b16 %v210, %v206
  %v275 = vpack.c.b16 %v211, %v207
  %v276 = vpack.c.b16 %v212, %v208
  %v277 = vpack.c.b16 %v213, %v209
  %v278 = vpack.c.b16 %v218, %v214
  %v279 = vpack.c.b16 %v219, %v215
  %v280 = vpack.c.b16 %v220, %v216
  %v281 = vpack.c.b16 %v221, %v217
  %v282 = vpack.c.b16 %v226, %v222
  %v283 = vpack.c.b16 %v227, %v223
  %v284 = vpack.c.b16 %v228, %v224
  %v285 = vpack.c.b16 %v229, %v225
  %v286 = vpack.c.b16 %v234, %v230
  %v287 = vpack.c.b16 %v235, %v231
  %v288 = vpack.c.b16 %v236, %v232
  %v289 = vpack.c.b16 %v237, %v233
  %v290 = vpack.c.b16 %v242, %v238
  %v291 = vpack.c.b16 %v243, %v239
  %v292 = vpack.c.b16 %v244, %v240
  %v293 = vpack.c.b16 %v245, %v241
  %v294 = vpack.c.b16 %v250, %v246
  %v295 = vpack.c.b16 %v251, %v247
  %v296 = vpack.c.b16 %v252, %v248
  %v297 = vpack.c.b16 %v253, %v249
  %v406 = vunpack.c.l.b16 %v58
  %v407 = vunpack.c.l.b16 %v59
  %v408 = vunpack.c.l.b16 %v60
  %v409 = vunpack.c.l.b16 %v61
  %v410 = vunpack.c.l.b16 %v62
  %v411 = vunpack.c.l.b16 %v63
  %v412 = vunpack.c.l.b16 %v64
  %v413 = vunpack.c.l.b16 %v65
  %v414 = vunpack.c.l.b16 %v66
  %v415 = vunpack.c.l.b16 %v67
  %v416 = vunpack.c.l.b16 %v68
  %v417 = vunpack.c.l.b16 %v69
  %v418 = vunpack.c.l.b16 %v70
  %v419 = vunpack.c.l.b16 %v71
  %v420 = vunpack.c.l.b16 %v72
  %v421 = vunpack.c.l.b16 %v73
  %v422 = vunpack.c.l.b16 %v74
  %v423 = vunpack.c.l.b16 %v75
  %v424 = vunpack.c.l.b16 %v76
  %v425 = vunpack.c.l.b16 %v77
  %v426 = vunpack.c.l.b16 %v78
  %v427 = vunpack.c.l.b16 %v79
  %v428 = vunpack.c.l.b16 %v80
  %v429 = vunpack.c.l.b16 %v81
  %v430 = vunpack.c.l.b16 %v82
  %v431 = vunpack.c.l.b16 %v83
  %v432 = vunpack.c.l.b16 %v84
  %v433 = vunpack.c.l.b16 %v85
  %v434 = vunpack.c.l.b16 %v86
  %v435 = vunpack.c.l.b16 %v87
  %v436 = vunpack.c.l.b16 %v88
  %v437 = vunpack.c.l.b16 %v89
  %v438 = vunpack.c.l.b16 %v90
  %v439 = vunpack.c.l.b16 %v91
  %v440 = vunpack.c.l.b16 %v92
  %v441 = vunpack.c.l.b16 %v93
  %v442 = vunpack.c.l.b16 %v94
  %v443 = vunpack.c.l.b16 %v95
  %v444 = vunpack.c.l.b16 %v96
  %v445 = vunpack.c.l.b16 %v97
  %v446 = vunpack.c.l.b16 %v98
  %v447 = vunpack.c.l.b16 %v99
  %v448 = vunpack.c.l.b16 %v100
  %v449 = vunpack.c.l.b16 %v101
  %v450 = vunpack.c.l.b16 %v102
  %v451 = vunpack.c.l.b16 %v103
  %v452 = vunpack.c.l.b16 %v104
  %v453 = vunpack.c.l.b16 %v105
  %v454 = vunpack.c.l.b16 %v106
  %v455 = vunpack.c.l.b16 %v107
  %v456 = vunpack.c.l.b16 %v108
  %v457 = vunpack.c.l.b16 %v109
  %v458 = vunpack.c.l.b16 %v110
  %v459 = vunpack.c.l.b16 %v111
  %v460 = vunpack.c.l.b16 %v112
  %v461 = vunpack.c.l.b16 %v113
  %v462 = vunpack.c.l.b16 %v114
  %v463 = vunpack.c.l.b16 %v115
  %v464 = vunpack.c.l.b16 %v116
  %v465 = vunpack.c.l.b16 %v117
  %v466 = vunpack.c.l.b16 %v118
  %v467 = vunpack.c.l.b16 %v119
  %v468 = vunpack.c.l.b16 %v120
  %v469 = vunpack.c.l.b16 %v121
  %v470 = vpack.c.b16 %v407, %v406
  %v471 = vpack.c.b16 %v409, %v408
  %v472 = vpack.c.b16 %v411, %v410
  %v473 = vpack.c.b16 %v413, %v412
  %v474 = vpack.c.b16 %v415, %v414
  %v475 = vpack.c.b16 %v417, %v416
  %v476 = vpack.c.b16 %v419, %v418
  %v477 = vpack.c.b16 %v421, %v420
  %v478 = vpack.c.b16 %v423, %v422
  %v479 = vpack.c.b16 %v425, %v424
  %v480 = vpack.c.b16 %v427, %v426
  %v481 = vpack.c.b16 %v429, %v428
  %v482 = vpack.c.b16 %v431, %v430
  %v483 = vpack.c.b16 %v433, %v432
  %v484 = vpack.c.b16 %v435, %v434
  %v485 = vpack.c.b16 %v437, %v436
  %v486 = vpack.c.b16 %v439, %v438
  %v487 = vpack.c.b16 %v441, %v440
  %v488 = vpack.c.b16 %v443, %v442
  %v489 = vpack.c.b16 %v445, %v444
  %v490 = vpack.c.b16 %v447, %v446
  %v491 = vpack.c.b16 %v449, %v448
  %v492 = vpack.c.b16 %v451, %v450
  %v493 = vpack.c.b16 %v453, %v452
  %v494 = vpack.c.b16 %v455, %v454
  %v495 = vpack.c.b16 %v457, %v456
  %v496 = vpack.c.b16 %v459, %v458
  %v497 = vpack.c.b16 %v461, %v460
  %v498 = vpack.c.b16 %v463, %v462
  %v499 = vpack.c.b16 %v465, %v464
  %v500 = vpack.c.b16 %v467, %v466
  %v501 = vpack.c.b16 %v469, %v468
  %534 = vmatprep.subr.bf16.mxu0 0
  %535 = vmatpush1.bf16.msra.mxu0 %v477
  %536 = vmatprep.subr.bf16.mxu0 0
  %537 = vmatpush1.bf16.msra.mxu0 %v476
  %538 = vmatprep.subr.bf16.mxu0 0
  %539 = vmatpush1.bf16.msra.mxu0 %v475
  %540 = vmatprep.subr.bf16.mxu0 0
  %541 = vmatpush1.bf16.msra.mxu0 %v474
  %542 = vmatprep.subr.bf16.mxu0 0
  %543 = vmatpush1.bf16.msra.mxu0 %v473
  %544 = vmatprep.subr.bf16.mxu0 0
  %545 = vmatpush1.bf16.msra.mxu0 %v472
  %546 = vmatprep.subr.bf16.mxu0 0
  %547 = vmatpush1.bf16.msra.mxu0 %v471
  %548 = vmatprep.subr.bf16.mxu0 0
  %549 = vmatpush1.bf16.msra.mxu0 %v470
  %550 = vmatprep.subr.bf16.mxu0 0
  %551 = vmatpush2.bf16.msra.mxu0 %v485
  %552 = vmatprep.subr.bf16.mxu0 0
  %553 = vmatpush2.bf16.msra.mxu0 %v484
  %554 = vmatprep.subr.bf16.mxu0 0
  %555 = vmatpush2.bf16.msra.mxu0 %v483
  %556 = vmatprep.subr.bf16.mxu0 0
  %557 = vmatpush2.bf16.msra.mxu0 %v482
  %558 = vmatprep.subr.bf16.mxu0 0
  %559 = vmatpush2.bf16.msra.mxu0 %v481
  %560 = vmatprep.subr.bf16.mxu0 0
  %561 = vmatpush2.bf16.msra.mxu0 %v480
  %562 = vmatprep.subr.bf16.mxu0 0
  %563 = vmatpush2.bf16.msra.mxu0 %v479
  %564 = vmatprep.subr.bf16.mxu0 0
  %565 = vmatpush2.bf16.msra.mxu0 %v478
  %566 = vmatprep.mubr.bf16.mxu0 %v255
  %567 = vmatmul.mubr.bf16.gmra.mxu0 %v254
  %v568 = vpop.f32.mrf.mxu0
  %v569 = vadd.f32 0.0, %v568
  %v570 = vpop.f32.mrf.mxu0
  %v571 = vpop.f32.mrf.mxu0
  %v572 = vadd.f32 0.0, %v571
  %v573 = vpop.f32.mrf.mxu0
  %574 = vmatprep.mubr.bf16.mxu0 %v259
  %575 = vmatmul.mubr.bf16.gmra.mxu0 %v258
  %v576 = vpop.f32.mrf.mxu0
  %v577 = vadd.f32 0.0, %v576
  %v578 = vpop.f32.mrf.mxu0
  %v579 = vpop.f32.mrf.mxu0
  %v580 = vadd.f32 0.0, %v579
  %v581 = vpop.f32.mrf.mxu0
  %582 = vmatprep.mubr.bf16.mxu0 %v263
  %583 = vmatmul.mubr.bf16.gmra.mxu0 %v262
  %v584 = vpop.f32.mrf.mxu0
  %v585 = vadd.f32 0.0, %v584
  %v586 = vpop.f32.mrf.mxu0
  %v587 = vpop.f32.mrf.mxu0
  %v588 = vadd.f32 0.0, %v587
  %v589 = vpop.f32.mrf.mxu0
  %590 = vmatprep.mubr.bf16.mxu0 %v267
  %591 = vmatmul.mubr.bf16.gmra.mxu0 %v266
  %v592 = vpop.f32.mrf.mxu0
  %v593 = vadd.f32 0.0, %v592
  %v594 = vpop.f32.mrf.mxu0
  %v595 = vpop.f32.mrf.mxu0
  %v596 = vadd.f32 0.0, %v595
  %v597 = vpop.f32.mrf.mxu0
  %598 = vmatprep.mubr.bf16.mxu0 %v271
  %599 = vmatmul.mubr.bf16.gmra.mxu0 %v270
  %v600 = vpop.f32.mrf.mxu0
  %v601 = vadd.f32 0.0, %v600
  %v602 = vpop.f32.mrf.mxu0
  %v603 = vpop.f32.mrf.mxu0
  %v604 = vadd.f32 0.0, %v603
  %v605 = vpop.f32.mrf.mxu0
  %606 = vmatprep.mubr.bf16.mxu0 %v275
  %607 = vmatmul.mubr.bf16.gmra.mxu0 %v274
  %v608 = vpop.f32.mrf.mxu0
  %v609 = vadd.f32 0.0, %v608
  %v610 = vpop.f32.mrf.mxu0
  %v611 = vpop.f32.mrf.mxu0
  %v612 = vadd.f32 0.0, %v611
  %v613 = vpop.f32.mrf.mxu0
  %614 = vmatprep.mubr.bf16.mxu0 %v279
  %615 = vmatmul.mubr.bf16.gmra.mxu0 %v278
  %v616 = vpop.f32.mrf.mxu0
  %v617 = vadd.f32 0.0, %v616
  %v618 = vpop.f32.mrf.mxu0
  %v619 = vpop.f32.mrf.mxu0
  %v620 = vadd.f32 0.0, %v619
  %v621 = vpop.f32.mrf.mxu0
  %622 = vmatprep.mubr.bf16.mxu0 %v283
  %623 = vmatmul.mubr.bf16.gmra.mxu0 %v282
  %v624 = vpop.f32.mrf.mxu0
  %v625 = vadd.f32 0.0, %v624
  %v626 = vpop.f32.mrf.mxu0
  %v627 = vpop.f32.mrf.mxu0
  %v628 = vadd.f32 0.0, %v627
  %v629 = vpop.f32.mrf.mxu0
  %630 = vmatprep.mubr.bf16.mxu0 %v287
  %631 = vmatmul.mubr.bf16.gmra.mxu0 %v286
  %v632 = vpop.f32.mrf.mxu0
  %v633 = vadd.f32 0.0, %v632
  %v634 = vpop.f32.mrf.mxu0
  %v635 = vpop.f32.mrf.mxu0
  %v636 = vadd.f32 0.0, %v635
  %v637 = vpop.f32.mrf.mxu0
  %638 = vmatprep.mubr.bf16.mxu0 %v291
  %639 = vmatmul.mubr.bf16.gmra.mxu0 %v290
  %v640 = vpop.f32.mrf.mxu0
  %v641 = vadd.f32 0.0, %v640
  %v642 = vpop.f32.mrf.mxu0
  %v643 = vpop.f32.mrf.mxu0
  %v644 = vadd.f32 0.0, %v643
  %v645 = vpop.f32.mrf.mxu0
  %646 = vmatprep.mubr.bf16.mxu0 %v295
  %647 = vmatmul.mubr.bf16.gmra.mxu0 %v294
  %v648 = vpop.f32.mrf.mxu0
  %v649 = vadd.f32 0.0, %v648
  %v650 = vpop.f32.mrf.mxu0
  %v651 = vpop.f32.mrf.mxu0
  %v652 = vadd.f32 0.0, %v651
  %v653 = vpop.f32.mrf.mxu0
  %654 = vdwg.mxu0
  %655 = vmatprep.subr.bf16.mxu0 0
  %656 = vmatpush1.bf16.msra.mxu0 %v493
  %657 = vmatprep.subr.bf16.mxu0 0
  %658 = vmatpush1.bf16.msra.mxu0 %v492
  %659 = vmatprep.subr.bf16.mxu0 0
  %660 = vmatpush1.bf16.msra.mxu0 %v491
  %661 = vmatprep.subr.bf16.mxu0 0
  %662 = vmatpush1.bf16.msra.mxu0 %v490
  %663 = vmatprep.subr.bf16.mxu0 0
  %664 = vmatpush1.bf16.msra.mxu0 %v489
  %665 = vmatprep.subr.bf16.mxu0 0
  %666 = vmatpush1.bf16.msra.mxu0 %v488
  %667 = vmatprep.subr.bf16.mxu0 0
  %668 = vmatpush1.bf16.msra.mxu0 %v487
  %669 = vmatprep.subr.bf16.mxu0 0
  %670 = vmatpush1.bf16.msra.mxu0 %v486
  %671 = vmatprep.subr.bf16.mxu0 0
  %672 = vmatpush2.bf16.msra.mxu0 %v501
  %673 = vmatprep.subr.bf16.mxu0 0
  %674 = vmatpush2.bf16.msra.mxu0 %v500
  %675 = vmatprep.subr.bf16.mxu0 0
  %676 = vmatpush2.bf16.msra.mxu0 %v499
  %677 = vmatprep.subr.bf16.mxu0 0
  %678 = vmatpush2.bf16.msra.mxu0 %v498
  %679 = vmatprep.subr.bf16.mxu0 0
  %680 = vmatpush2.bf16.msra.mxu0 %v497
  %681 = vmatprep.subr.bf16.mxu0 0
  %682 = vmatpush2.bf16.msra.mxu0 %v496
  %683 = vmatprep.subr.bf16.mxu0 0
  %684 = vmatpush2.bf16.msra.mxu0 %v495
  %685 = vmatprep.subr.bf16.mxu0 0
  %686 = vmatpush2.bf16.msra.mxu0 %v494
  %687 = vmatprep.mubr.bf16.mxu0 %v257
  %688 = vmatmul.mubr.bf16.gmra.mxu0 %v256
  %v689 = vpop.f32.mrf.mxu0
  %v690 = vadd.f32 %v569, %v689
  %v691 = vpop.f32.mrf.mxu0
  %v692 = vpop.f32.mrf.mxu0
  %v693 = vadd.f32 %v572, %v692
  %v694 = vpop.f32.mrf.mxu0
  %695 = vmatprep.mubr.bf16.mxu0 %v261
  %696 = vmatmul.mubr.bf16.gmra.mxu0 %v260
  %v697 = vpop.f32.mrf.mxu0
  %v698 = vadd.f32 %v577, %v697
  %v699 = vpop.f32.mrf.mxu0
  %v700 = vpop.f32.mrf.mxu0
  %v701 = vadd.f32 %v580, %v700
  %v702 = vpop.f32.mrf.mxu0
  %703 = vmatprep.mubr.bf16.mxu0 %v265
  %704 = vmatmul.mubr.bf16.gmra.mxu0 %v264
  %v705 = vpop.f32.mrf.mxu0
  %v706 = vadd.f32 %v585, %v705
  %v707 = vpop.f32.mrf.mxu0
  %v708 = vpop.f32.mrf.mxu0
  %v709 = vadd.f32 %v588, %v708
  %v710 = vpop.f32.mrf.mxu0
  %711 = vmatprep.mubr.bf16.mxu0 %v269
  %712 = vmatmul.mubr.bf16.gmra.mxu0 %v268
  %v713 = vpop.f32.mrf.mxu0
  %v714 = vadd.f32 %v593, %v713
  %v715 = vpop.f32.mrf.mxu0
  %v716 = vpop.f32.mrf.mxu0
  %v717 = vadd.f32 %v596, %v716
  %v718 = vpop.f32.mrf.mxu0
  %719 = vmatprep.mubr.bf16.mxu0 %v273
  %720 = vmatmul.mubr.bf16.gmra.mxu0 %v272
  %v721 = vpop.f32.mrf.mxu0
  %v722 = vadd.f32 %v601, %v721
  %v723 = vpop.f32.mrf.mxu0
  %v724 = vpop.f32.mrf.mxu0
  %v725 = vadd.f32 %v604, %v724
  %v726 = vpop.f32.mrf.mxu0
  %727 = vmatprep.mubr.bf16.mxu0 %v277
  %728 = vmatmul.mubr.bf16.gmra.mxu0 %v276
  %v729 = vpop.f32.mrf.mxu0
  %v730 = vadd.f32 %v609, %v729
  %v731 = vpop.f32.mrf.mxu0
  %v732 = vpop.f32.mrf.mxu0
  %v733 = vadd.f32 %v612, %v732
  %v734 = vpop.f32.mrf.mxu0
  %735 = vmatprep.mubr.bf16.mxu0 %v281
  %736 = vmatmul.mubr.bf16.gmra.mxu0 %v280
  %v737 = vpop.f32.mrf.mxu0
  %v738 = vadd.f32 %v617, %v737
  %v739 = vpop.f32.mrf.mxu0
  %v740 = vpop.f32.mrf.mxu0
  %v741 = vadd.f32 %v620, %v740
  %v742 = vpop.f32.mrf.mxu0
  %743 = vmatprep.mubr.bf16.mxu0 %v285
  %744 = vmatmul.mubr.bf16.gmra.mxu0 %v284
  %v745 = vpop.f32.mrf.mxu0
  %v746 = vadd.f32 %v625, %v745
  %v747 = vpop.f32.mrf.mxu0
  %v748 = vpop.f32.mrf.mxu0
  %v749 = vadd.f32 %v628, %v748
  %v750 = vpop.f32.mrf.mxu0
  %751 = vmatprep.mubr.bf16.mxu0 %v289
  %752 = vmatmul.mubr.bf16.gmra.mxu0 %v288
  %v753 = vpop.f32.mrf.mxu0
  %v754 = vadd.f32 %v633, %v753
  %v755 = vpop.f32.mrf.mxu0
  %v756 = vpop.f32.mrf.mxu0
  %v757 = vadd.f32 %v636, %v756
  %v758 = vpop.f32.mrf.mxu0
  %759 = vmatprep.mubr.bf16.mxu0 %v293
  %760 = vmatmul.mubr.bf16.gmra.mxu0 %v292
  %v761 = vpop.f32.mrf.mxu0
  %v762 = vadd.f32 %v641, %v761
  %v763 = vpop.f32.mrf.mxu0
  %v764 = vpop.f32.mrf.mxu0
  %v765 = vadd.f32 %v644, %v764
  %v766 = vpop.f32.mrf.mxu0
  %767 = vmatprep.mubr.bf16.mxu0 %v297
  %768 = vmatmul.mubr.bf16.gmra.mxu0 %v296
  %v769 = vpop.f32.mrf.mxu0
  %v770 = vadd.f32 %v649, %v769
  %v771 = vpop.f32.mrf.mxu0
  %v772 = vpop.f32.mrf.mxu0
  %v773 = vadd.f32 %v652, %v772
  %v774 = vpop.f32.mrf.mxu0
  %775 = vdwg.mxu0
  %v776 = vpack.c.bf16 %v693, %v690
  %v777 = vpack.c.bf16 %v701, %v698
  %v778 = vpack.c.bf16 %v709, %v706
  %v779 = vpack.c.bf16 %v717, %v714
  %v780 = vpack.c.bf16 %v725, %v722
  %v781 = vpack.c.bf16 %v733, %v730
  %v782 = vpack.c.bf16 %v741, %v738
  %v783 = vpack.c.bf16 %v749, %v746
  %v784 = vpack.c.bf16 %v757, %v754
  %v785 = vpack.c.bf16 %v765, %v762
  %v786 = vpack.c.bf16 %v773, %v770
  %v798 = vunpack.c.l.b16 %v776
  %v799 = vunpack.c.h.b16 %v776
  %v800 = vunpack.c.l.b16 %v777
  %v801 = vunpack.c.h.b16 %v777
  %v802 = vunpack.c.l.b16 %v778
  %v803 = vunpack.c.h.b16 %v778
  %v804 = vunpack.c.l.b16 %v779
  %v805 = vunpack.c.h.b16 %v779
  %v806 = vunpack.c.l.b16 %v780
  %v807 = vunpack.c.h.b16 %v780
  %v808 = vunpack.c.l.b16 %v781
  %v809 = vunpack.c.h.b16 %v781
  %v810 = vunpack.c.l.b16 %v782
  %v811 = vunpack.c.h.b16 %v782
  %v812 = vunpack.c.l.b16 %v783
  %v813 = vunpack.c.h.b16 %v783
  %v814 = vunpack.c.l.b16 %v784
  %v815 = vunpack.c.h.b16 %v784
  %v816 = vunpack.c.l.b16 %v785
  %v817 = vunpack.c.h.b16 %v785
  %v818 = vunpack.c.l.b16 %v786
  %v819 = vunpack.c.h.b16 %v786
  %v820 = vpack.c.b16 %v798, %v798
  %v821 = vpack.c.b16 %v799, %v799
  %v822 = vpack.c.b16 %v800, %v800
  %v823 = vpack.c.b16 %v801, %v801
  %v824 = vpack.c.b16 %v802, %v802
  %v825 = vpack.c.b16 %v803, %v803
  %v826 = vpack.c.b16 %v804, %v804
  %v827 = vpack.c.b16 %v805, %v805
  %v828 = vpack.c.b16 %v806, %v806
  %v829 = vpack.c.b16 %v807, %v807
  %v830 = vpack.c.b16 %v808, %v808
  %v831 = vpack.c.b16 %v809, %v809
  %v832 = vpack.c.b16 %v810, %v810
  %v833 = vpack.c.b16 %v811, %v811
  %v834 = vpack.c.b16 %v812, %v812
  %v835 = vpack.c.b16 %v813, %v813
  %v836 = vpack.c.b16 %v814, %v814
  %v837 = vpack.c.b16 %v815, %v815
  %v838 = vpack.c.b16 %v816, %v816
  %v839 = vpack.c.b16 %v817, %v817
  %v840 = vpack.c.b16 %v818, %v818
  %v841 = vpack.c.b16 %v819, %v819
  %864 = vst [vmem:[%s2] sm:$0xf] %v820
  %865 = vst [vmem:[%s2 + $0x4] sm:$0xf] %v821
  %866 = vst [vmem:[%s2 + $0x8] sm:$0xf] %v822
  %867 = vst [vmem:[%s2 + $0xc] sm:$0xf] %v823
  %868 = vst [vmem:[%s2 + $0x10] sm:$0xf] %v824
  %869 = vst [vmem:[%s2 + $0x14] sm:$0xf] %v825
  %870 = vst [vmem:[%s2 + $0x18] sm:$0xf] %v826
  %871 = vst [vmem:[%s2 + $0x1c] sm:$0xf] %v827
  %872 = vst [vmem:[%s2 + $0x20] sm:$0xf] %v828
  %873 = vst [vmem:[%s2 + $0x24] sm:$0xf] %v829
  %874 = vst [vmem:[%s2 + $0x28] sm:$0xf] %v830
  %875 = vst [vmem:[%s2 + $0x2c] sm:$0xf] %v831
  %876 = vst [vmem:[%s2 + $0x30] sm:$0xf] %v832
  %877 = vst [vmem:[%s2 + $0x34] sm:$0xf] %v833
  %878 = vst [vmem:[%s2 + $0x38] sm:$0xf] %v834
  %879 = vst [vmem:[%s2 + $0x3c] sm:$0xf] %v835
  %880 = vst [vmem:[%s2 + $0x40] sm:$0xf] %v836
  %881 = vst [vmem:[%s2 + $0x44] sm:$0xf] %v837
  %882 = vst [vmem:[%s2 + $0x48] sm:$0xf] %v838
  %883 = vst [vmem:[%s2 + $0x4c] sm:$0xf] %v839
  %884 = vst [vmem:[%s2 + $0x50] sm:$0xf] %v840
  %885 = vst [vmem:[%s2 + $0x54] sm:$0xf] %v841
  %v886 = vadd.f32 %v690, %v693
  %v887 = vadd.f32 %v886, %v698
  %v888 = vadd.f32 %v887, %v701
  %v889 = vadd.f32 %v888, %v706
  %v890 = vadd.f32 %v889, %v709
  %v891 = vadd.f32 %v890, %v714
  %v892 = vadd.f32 %v891, %v717
  %v893 = vadd.f32 %v892, %v722
  %v894 = vadd.f32 %v893, %v725
  %v895 = vadd.f32 %v894, %v730
  %v896 = vadd.f32 %v895, %v733
  %v897 = vadd.f32 %v896, %v738
  %v898 = vadd.f32 %v897, %v741
  %v899 = vadd.f32 %v898, %v746
  %v900 = vadd.f32 %v899, %v749
  %v901 = vadd.f32 %v900, %v754
  %v902 = vadd.f32 %v901, %v757
  %v903 = vadd.f32 %v902, %v762
  %v904 = vadd.f32 %v903, %v765
  %v905 = vadd.f32 %v904, %v770
  %v906 = vadd.f32 %v905, %v773
  %v907 = vrot.slane %v906, 4
  %v908 = vadd.f32 %v906, %v907
  %v909 = vrot.slane %v908, 2
  %v910 = vadd.f32 %v908, %v909
  %v911 = vrot.slane %v910, 1
  %v912 = vadd.f32 %v910, %v911
  %913 = vst [vmem:[%s3] sm:$0x1] %v912
  %v914 = vmul.f32 %v690, %v690
  %v915 = vmul.f32 %v693, %v693
  %v916 = vmul.f32 %v698, %v698
  %v917 = vmul.f32 %v701, %v701
  %v918 = vmul.f32 %v706, %v706
  %v919 = vmul.f32 %v709, %v709
  %v920 = vmul.f32 %v714, %v714
  %v921 = vmul.f32 %v717, %v717
  %v922 = vmul.f32 %v722, %v722
  %v923 = vmul.f32 %v725, %v725
  %v924 = vmul.f32 %v730, %v730
  %v925 = vmul.f32 %v733, %v733
  %v926 = vmul.f32 %v738, %v738
  %v927 = vmul.f32 %v741, %v741
  %v928 = vmul.f32 %v746, %v746
  %v929 = vmul.f32 %v749, %v749
  %v930 = vmul.f32 %v754, %v754
  %v931 = vmul.f32 %v757, %v757
  %v932 = vmul.f32 %v762, %v762
  %v933 = vmul.f32 %v765, %v765
  %v934 = vmul.f32 %v770, %v770
  %v935 = vmul.f32 %v773, %v773
  %v936 = vadd.f32 %v914, %v915
  %v937 = vadd.f32 %v936, %v916
  %v938 = vadd.f32 %v937, %v917
  %v939 = vadd.f32 %v938, %v918
  %v940 = vadd.f32 %v939, %v919
  %v941 = vadd.f32 %v940, %v920
  %v942 = vadd.f32 %v941, %v921
  %v943 = vadd.f32 %v942, %v922
  %v944 = vadd.f32 %v943, %v923
  %v945 = vadd.f32 %v944, %v924
  %v946 = vadd.f32 %v945, %v925
  %v947 = vadd.f32 %v946, %v926
  %v948 = vadd.f32 %v947, %v927
  %v949 = vadd.f32 %v948, %v928
  %v950 = vadd.f32 %v949, %v929
  %v951 = vadd.f32 %v950, %v930
  %v952 = vadd.f32 %v951, %v931
  %v953 = vadd.f32 %v952, %v932
  %v954 = vadd.f32 %v953, %v933
  %v955 = vadd.f32 %v954, %v934
  %v956 = vadd.f32 %v955, %v935
  %v957 = vrot.slane %v956, 4
  %v958 = vadd.f32 %v956, %v957
  %v959 = vrot.slane %v958, 2
  %v960 = vadd.f32 %v958, %v959
  %v961 = vrot.slane %v960, 1
  %v962 = vadd.f32 %v960, %v961
  %963 = vst [vmem:[%s3 + $0x1] sm:$0x1] %v962
  // Predicated region
  $region10: #{deep_q_forward.7} parent=0 // pred_check
    _
  $region11: #{deep_q_forward.7} parent=0 // pred_check_branch
    %965 = sbr.rel (0) target = $region13
  $region12: #{deep_q_forward.7} parent=0 // pred_region
    _
  $region13: #{deep_q_forward.7} parent=0 // pred_fallthru
    _
  // Predicated region
  $region14: #{deep_q_forward.7} parent=0 // pred_check
    _
  $region15: #{deep_q_forward.7} parent=0 // pred_check_branch
    %967 = sbr.rel (0) target = $region17
  $region16: #{deep_q_forward.7} parent=0 // pred_region
    _
  $region17: #{deep_q_forward.7} parent=0 // pred_fallthru
    _
  // Predicated region
  $region18: #{deep_q_forward.7} parent=0 // pred_check
    _
  $region19: #{deep_q_forward.7} parent=0 // pred_check_branch
    %969 = sbr.rel (0) target = $region21
  $region20: #{deep_q_forward.7} parent=0 // pred_region
    _
  $region21: #{deep_q_forward.7} parent=0 // pred_fallthru
    _
  // Predicated region
  $region22: #{deep_q_forward.7} parent=0 // pred_check
    _
  $region23: #{deep_q_forward.7} parent=0 // pred_check_branch
    %971 = sbr.rel (0) target = $region25
  $region24: #{deep_q_forward.7} parent=0 // pred_region
    _
  $region25: #{deep_q_forward.7} parent=0 // pred_fallthru
    _

// kernel: deep_q_forward.8
$region0: #{deep_q_forward.8}
  #allocation0 [shape = 'u32[]', space=smem, size = 0x4, offset = 0x4, fixed_abs, tag = 'smem constant byte address 0x4 - core index']
  #allocation1 [shape = 'u32[144,128]{1,0:T(1,128)}', space=vmem, size = 0x12000, scoped, tag = 'internal scratch']
  %s0 = inlined_call_operand.vmem [shape: bf16[176,128], index: 0, kind: input, shape index: {}]
  %s1 = inlined_call_operand.vmem [shape: f32[1,2,128], index: 1, kind: input, shape index: {}]
  %s2 = inlined_call_operand.vmem [shape: f32[1,128], index: 2, kind: input, shape index: {}]
  %s3 = inlined_call_operand.vmem [shape: f32[1,128], index: 3, kind: input, shape index: {}]
  %s4 = inlined_call_operand.vmem [shape: bf16[176,128], index: 4, kind: output, shape index: {}]
  %s5 = sld [smem:[#allocation0]]
  $region26: #{deep_q_forward.8} parent=0
    _
  %s7 = ssub.s32 1, %s5
  %s8 = scalar_select 0, %s7, %s5
  // Predicated region
  $region2: #{deep_q_forward.8} parent=0 // pred_check
    _
  $region3: #{deep_q_forward.8} parent=0 // pred_check_branch
    %10 = sbr.rel (0) target = $region5
  $region4: #{deep_q_forward.8} parent=0 // pred_region
    _
  $region5: #{deep_q_forward.8} parent=0 // pred_fallthru
    _
  // Predicated region
  $region6: #{deep_q_forward.8} parent=0 // pred_check
    _
  $region7: #{deep_q_forward.8} parent=0 // pred_check_branch
    %12 = sbr.rel (0) target = $region9
  $region8: #{deep_q_forward.8} parent=0 // pred_region
    _
  $region9: #{deep_q_forward.8} parent=0 // pred_fallthru
    _
  // Predicated region
  $region10: #{deep_q_forward.8} parent=0 // pred_check
    _
  $region11: #{deep_q_forward.8} parent=0 // pred_check_branch
    %14 = sbr.rel (0) target = $region13
  $region12: #{deep_q_forward.8} parent=0 // pred_region
    _
  $region13: #{deep_q_forward.8} parent=0 // pred_fallthru
    _
  // Predicated region
  $region14: #{deep_q_forward.8} parent=0 // pred_check
    _
  $region15: #{deep_q_forward.8} parent=0 // pred_check_branch
    %16 = sbr.rel (0) target = $region17
  $region16: #{deep_q_forward.8} parent=0 // pred_region
    _
  $region17: #{deep_q_forward.8} parent=0 // pred_fallthru
    _
  %v17 = vld [vmem:[%s1] sm:$0x3]
  %v18 = vadd.f32 %v17, 0.0
  %v19 = vmul.f32 %v18, 0.0061728396
  %v20 = vmul.f32 %v19, %v19
  %v22 = vrot.slane %v20, 7
  %v24 = vsub.f32 %v19, %v22
  %v25 = vmax.f32 %v24, 0.0
  %v26 = vld [vmem:[%s2] sm:$0x1]
  %v27 = vadd.f32 %v25, 1e-05
  %v28 = vrsqrt.pop %v27
  %v31 = vunpack.c.l.s4 1966171168
  %v32 = vunpack.c.0.s8 %v31
  %v33 = vlaneseq
  %v34 = vshrl.u32 %v33, 7
  %v35 = vsub.s32 %v32, %v34
  %v36 = vrot.slane %v28, %v35
  %v37 = vcombine.high %v36, %v36
  %v39 = vunpack.c.l.s4 1966171168
  %v40 = vunpack.c.0.s8 %v39
  %v41 = vlaneseq
  %v42 = vshrl.u32 %v41, 7
  %v43 = vsub.s32 %v40, %v42
  %v44 = vrot.slane %v37, %v43
  %v46 = vmul.f32 %v26, %v44
  %v47 = vld [vmem:[%s3] sm:$0x1]
  %v48 = vmul.f32 %v19, %v46
  %v49 = vsub.f32 %v47, %v48
  %v50 = vld [vmem:[%s0] sm:$0xf]
  %v51 = vld [vmem:[%s0 + $0x4] sm:$0xf]
  %v52 = vld [vmem:[%s0 + $0x8] sm:$0xf]
  %v53 = vld [vmem:[%s0 + $0xc] sm:$0xf]
  %v54 = vld [vmem:[%s0 + $0x10] sm:$0xf]
  %v55 = vld [vmem:[%s0 + $0x14] sm:$0xf]
  %v56 = vld [vmem:[%s0 + $0x18] sm:$0xf]
  %v57 = vld [vmem:[%s0 + $0x1c] sm:$0xf]
  %v58 = vld [vmem:[%s0 + $0x20] sm:$0xf]
  %v59 = vld [vmem:[%s0 + $0x24] sm:$0xf]
  %v60 = vld [vmem:[%s0 + $0x28] sm:$0xf]
  %v61 = vld [vmem:[%s0 + $0x2c] sm:$0xf]
  %v62 = vld [vmem:[%s0 + $0x30] sm:$0xf]
  %v63 = vld [vmem:[%s0 + $0x34] sm:$0xf]
  %v64 = vld [vmem:[%s0 + $0x38] sm:$0xf]
  %v65 = vld [vmem:[%s0 + $0x3c] sm:$0xf]
  %v66 = vld [vmem:[%s0 + $0x40] sm:$0xf]
  %v67 = vld [vmem:[%s0 + $0x44] sm:$0xf]
  %v68 = vld [vmem:[%s0 + $0x48] sm:$0xf]
  %v69 = vld [vmem:[%s0 + $0x4c] sm:$0xf]
  %v70 = vld [vmem:[%s0 + $0x50] sm:$0xf]
  %v71 = vld [vmem:[%s0 + $0x54] sm:$0xf]
  %v72 = vunpack.c.l.bf16 %v50
  %v73 = vunpack.c.l.bf16 %v51
  %v74 = vunpack.c.l.bf16 %v52
  %v75 = vunpack.c.l.bf16 %v53
  %v76 = vunpack.c.l.bf16 %v54
  %v77 = vunpack.c.l.bf16 %v55
  %v78 = vunpack.c.l.bf16 %v56
  %v79 = vunpack.c.l.bf16 %v57
  %v80 = vunpack.c.l.bf16 %v58
  %v81 = vunpack.c.l.bf16 %v59
  %v82 = vunpack.c.l.bf16 %v60
  %v83 = vunpack.c.l.bf16 %v61
  %v84 = vunpack.c.l.bf16 %v62
  %v85 = vunpack.c.l.bf16 %v63
  %v86 = vunpack.c.l.bf16 %v64
  %v87 = vunpack.c.l.bf16 %v65
  %v88 = vunpack.c.l.bf16 %v66
  %v89 = vunpack.c.l.bf16 %v67
  %v90 = vunpack.c.l.bf16 %v68
  %v91 = vunpack.c.l.bf16 %v69
  %v92 = vunpack.c.l.bf16 %v70
  %v93 = vunpack.c.l.bf16 %v71
  %v95 = vlaneseq
  %v96 = vshrl.u32 %v95, 7
  %v97 = vsub.s32 0, %v96
  %v98 = vrot.slane %v46, %v97
  %v100 = vmul.f32 %v72, %v98
  %v101 = vmul.f32 %v73, %v98
  %v102 = vmul.f32 %v74, %v98
  %v103 = vmul.f32 %v75, %v98
  %v104 = vmul.f32 %v76, %v98
  %v105 = vmul.f32 %v77, %v98
  %v106 = vmul.f32 %v78, %v98
  %v107 = vmul.f32 %v79, %v98
  %v108 = vmul.f32 %v80, %v98
  %v109 = vmul.f32 %v81, %v98
  %v110 = vmul.f32 %v82, %v98
  %v111 = vmul.f32 %v83, %v98
  %v112 = vmul.f32 %v84, %v98
  %v113 = vmul.f32 %v85, %v98
  %v114 = vmul.f32 %v86, %v98
  %v115 = vmul.f32 %v87, %v98
  %v116 = vmul.f32 %v88, %v98
  %v117 = vmul.f32 %v89, %v98
  %v118 = vmul.f32 %v90, %v98
  %v119 = vmul.f32 %v91, %v98
  %v120 = vmul.f32 %v92, %v98
  %v121 = vmul.f32 %v93, %v98
  %v123 = vlaneseq
  %v124 = vshrl.u32 %v123, 7
  %v125 = vsub.s32 0, %v124
  %v126 = vrot.slane %v49, %v125
  %v128 = vadd.f32 %v100, %v126
  %v129 = vadd.f32 %v101, %v126
  %v130 = vadd.f32 %v102, %v126
  %v131 = vadd.f32 %v103, %v126
  %v132 = vadd.f32 %v104, %v126
  %v133 = vadd.f32 %v105, %v126
  %v134 = vadd.f32 %v106, %v126
  %v135 = vadd.f32 %v107, %v126
  %v136 = vadd.f32 %v108, %v126
  %v137 = vadd.f32 %v109, %v126
  %v138 = vadd.f32 %v110, %v126
  %v139 = vadd.f32 %v111, %v126
  %v140 = vadd.f32 %v112, %v126
  %v141 = vadd.f32 %v113, %v126
  %v142 = vadd.f32 %v114, %v126
  %v143 = vadd.f32 %v115, %v126
  %v144 = vadd.f32 %v116, %v126
  %v145 = vadd.f32 %v117, %v126
  %v146 = vadd.f32 %v118, %v126
  %v147 = vadd.f32 %v119, %v126
  %v148 = vadd.f32 %v120, %v126
  %v149 = vadd.f32 %v121, %v126
  %v150 = vmax.f32 %v128, 0.0
  %v151 = vmax.f32 %v129, 0.0
  %v152 = vmax.f32 %v130, 0.0
  %v153 = vmax.f32 %v131, 0.0
  %v154 = vmax.f32 %v132, 0.0
  %v155 = vmax.f32 %v133, 0.0
  %v156 = vmax.f32 %v134, 0.0
  %v157 = vmax.f32 %v135, 0.0
  %v158 = vmax.f32 %v136, 0.0
  %v159 = vmax.f32 %v137, 0.0
  %v160 = vmax.f32 %v138, 0.0
  %v161 = vmax.f32 %v139, 0.0
  %v162 = vmax.f32 %v140, 0.0
  %v163 = vmax.f32 %v141, 0.0
  %v164 = vmax.f32 %v142, 0.0
  %v165 = vmax.f32 %v143, 0.0
  %v166 = vmax.f32 %v144, 0.0
  %v167 = vmax.f32 %v145, 0.0
  %v168 = vmax.f32 %v146, 0.0
  %v169 = vmax.f32 %v147, 0.0
  %v170 = vmax.f32 %v148, 0.0
  %v171 = vmax.f32 %v149, 0.0
  %v172 = vpack.c.bf16 %v151, %v150
  %v173 = vpack.c.bf16 %v153, %v152
  %v174 = vpack.c.bf16 %v155, %v154
  %v175 = vpack.c.bf16 %v157, %v156
  %v176 = vpack.c.bf16 %v159, %v158
  %v177 = vpack.c.bf16 %v161, %v160
  %v178 = vpack.c.bf16 %v163, %v162
  %v179 = vpack.c.bf16 %v165, %v164
  %v180 = vpack.c.bf16 %v167, %v166
  %v181 = vpack.c.bf16 %v169, %v168
  %v182 = vpack.c.bf16 %v171, %v170
  %v194 = vunpack.c.l.b16 %v172
  %v195 = vunpack.c.h.b16 %v172
  %v196 = vunpack.c.l.b16 %v173
  %v197 = vunpack.c.h.b16 %v173
  %v198 = vunpack.c.l.b16 %v174
  %v199 = vunpack.c.h.b16 %v174
  %v200 = vunpack.c.l.b16 %v175
  %v201 = vunpack.c.h.b16 %v175
  %v202 = vunpack.c.l.b16 %v176
  %v203 = vunpack.c.h.b16 %v176
  %v204 = vunpack.c.l.b16 %v177
  %v205 = vunpack.c.h.b16 %v177
  %v206 = vunpack.c.l.b16 %v178
  %v207 = vunpack.c.h.b16 %v178
  %v208 = vunpack.c.l.b16 %v179
  %v209 = vunpack.c.h.b16 %v179
  %v210 = vunpack.c.l.b16 %v180
  %v211 = vunpack.c.h.b16 %v180
  %v212 = vunpack.c.l.b16 %v181
  %v213 = vunpack.c.h.b16 %v181
  %v214 = vunpack.c.l.b16 %v182
  %v215 = vunpack.c.h.b16 %v182
  %v216 = vpack.c.b16 %v194, %v194
  %v217 = vpack.c.b16 %v195, %v195
  %v218 = vpack.c.b16 %v196, %v196
  %v219 = vpack.c.b16 %v197, %v197
  %v220 = vpack.c.b16 %v198, %v198
  %v221 = vpack.c.b16 %v199, %v199
  %v222 = vpack.c.b16 %v200, %v200
  %v223 = vpack.c.b16 %v201, %v201
  %v224 = vpack.c.b16 %v202, %v202
  %v225 = vpack.c.b16 %v203, %v203
  %v226 = vpack.c.b16 %v204, %v204
  %v227 = vpack.c.b16 %v205, %v205
  %v228 = vpack.c.b16 %v206, %v206
  %v229 = vpack.c.b16 %v207, %v207
  %v230 = vpack.c.b16 %v208, %v208
  %v231 = vpack.c.b16 %v209, %v209
  %v232 = vpack.c.b16 %v210, %v210
  %v233 = vpack.c.b16 %v211, %v211
  %v234 = vpack.c.b16 %v212, %v212
  %v235 = vpack.c.b16 %v213, %v213
  %v236 = vpack.c.b16 %v214, %v214
  %v237 = vpack.c.b16 %v215, %v215
  %260 = vst [vmem:[%s4] sm:$0xf] %v216
  %261 = vst [vmem:[%s4 + $0x4] sm:$0xf] %v217
  %262 = vst [vmem:[%s4 + $0x8] sm:$0xf] %v218
  %263 = vst [vmem:[%s4 + $0xc] sm:$0xf] %v219
  %264 = vst [vmem:[%s4 + $0x10] sm:$0xf] %v220
  %265 = vst [vmem:[%s4 + $0x14] sm:$0xf] %v221
  %266 = vst [vmem:[%s4 + $0x18] sm:$0xf] %v222
  %267 = vst [vmem:[%s4 + $0x1c] sm:$0xf] %v223
  %268 = vst [vmem:[%s4 + $0x20] sm:$0xf] %v224
  %269 = vst [vmem:[%s4 + $0x24] sm:$0xf] %v225
  %270 = vst [vmem:[%s4 + $0x28] sm:$0xf] %v226
  %271 = vst [vmem:[%s4 + $0x2c] sm:$0xf] %v227
  %272 = vst [vmem:[%s4 + $0x30] sm:$0xf] %v228
  %273 = vst [vmem:[%s4 + $0x34] sm:$0xf] %v229
  %274 = vst [vmem:[%s4 + $0x38] sm:$0xf] %v230
  %275 = vst [vmem:[%s4 + $0x3c] sm:$0xf] %v231
  %276 = vst [vmem:[%s4 + $0x40] sm:$0xf] %v232
  %277 = vst [vmem:[%s4 + $0x44] sm:$0xf] %v233
  %278 = vst [vmem:[%s4 + $0x48] sm:$0xf] %v234
  %279 = vst [vmem:[%s4 + $0x4c] sm:$0xf] %v235
  %280 = vst [vmem:[%s4 + $0x50] sm:$0xf] %v236
  %281 = vst [vmem:[%s4 + $0x54] sm:$0xf] %v237
  // Predicated region
  $region18: #{deep_q_forward.8} parent=0 // pred_check
    _
  $region19: #{deep_q_forward.8} parent=0 // pred_check_branch
    %283 = sbr.rel (0) target = $region21
  $region20: #{deep_q_forward.8} parent=0 // pred_region
    _
  $region21: #{deep_q_forward.8} parent=0 // pred_fallthru
    _
  // Predicated region
  $region22: #{deep_q_forward.8} parent=0 // pred_check
    _
  $region23: #{deep_q_forward.8} parent=0 // pred_check_branch
    %285 = sbr.rel (0) target = $region25
  $region24: #{deep_q_forward.8} parent=0 // pred_region
    _
  $region25: #{deep_q_forward.8} parent=0 // pred_fallthru
    _

// kernel: deep_q_forward.9
$region0: #{deep_q_forward.9}
  #allocation0 [shape = 'u32[]', space=smem, size = 0x4, offset = 0x4, fixed_abs, tag = 'smem constant byte address 0x4 - core index']
  #allocation1 [shape = 'u32[144,128]{1,0:T(1,128)}', space=vmem, size = 0x12000, scoped, tag = 'internal scratch']
  %s0 = inlined_call_operand.vmem [shape: bf16[9,16,1024], index: 0, kind: input, shape index: {}]
  %s1 = inlined_call_operand.vmem [shape: bf16[1024,128], index: 1, kind: input, shape index: {}]
  %s2 = inlined_call_operand.vmem [shape: f32[1,128], index: 2, kind: input, shape index: {}]
  %s3 = inlined_call_operand.vmem [shape: f32[1,128], index: 3, kind: input, shape index: {}]
  %s4 = inlined_call_operand.vmem [shape: bf16[9,128,512], index: 4, kind: input, shape index: {}]
  %s5 = inlined_call_operand.vmem [shape: f32[1,512], index: 5, kind: input, shape index: {}]
  %s6 = inlined_call_operand.vmem [shape: bf16[512,128], index: 6, kind: input, shape index: {}]
  %s7 = inlined_call_operand.vmem [shape: f32[1,128], index: 7, kind: input, shape index: {}]
  %s8 = inlined_call_operand.vmem [shape: f32[16,128], index: 8, kind: output, shape index: {}]
  %s9 = sld [smem:[#allocation0]]
  $region42: #{deep_q_forward.9} parent=0
    _
  %s11 = ssub.s32 1, %s9
  %s12 = scalar_select 0, %s11, %s9
  // Predicated region
  $region2: #{deep_q_forward.9} parent=0 // pred_check
    _
  $region3: #{deep_q_forward.9} parent=0 // pred_check_branch
    %14 = sbr.rel (0) target = $region5
  $region4: #{deep_q_forward.9} parent=0 // pred_region
    _
  $region5: #{deep_q_forward.9} parent=0 // pred_fallthru
    _
  // Predicated region
  $region6: #{deep_q_forward.9} parent=0 // pred_check
    _
  $region7: #{deep_q_forward.9} parent=0 // pred_check_branch
    %16 = sbr.rel (0) target = $region9
  $region8: #{deep_q_forward.9} parent=0 // pred_region
    _
  $region9: #{deep_q_forward.9} parent=0 // pred_fallthru
    _
  // Predicated region
  $region10: #{deep_q_forward.9} parent=0 // pred_check
    _
  $region11: #{deep_q_forward.9} parent=0 // pred_check_branch
    %18 = sbr.rel (0) target = $region13
  $region12: #{deep_q_forward.9} parent=0 // pred_region
    _
  $region13: #{deep_q_forward.9} parent=0 // pred_fallthru
    _
  // Predicated region
  $region14: #{deep_q_forward.9} parent=0 // pred_check
    _
  $region15: #{deep_q_forward.9} parent=0 // pred_check_branch
    %20 = sbr.rel (0) target = $region17
  $region16: #{deep_q_forward.9} parent=0 // pred_region
    _
  $region17: #{deep_q_forward.9} parent=0 // pred_fallthru
    _
  // Predicated region
  $region18: #{deep_q_forward.9} parent=0 // pred_check
    _
  $region19: #{deep_q_forward.9} parent=0 // pred_check_branch
    %22 = sbr.rel (0) target = $region21
  $region20: #{deep_q_forward.9} parent=0 // pred_region
    _
  $region21: #{deep_q_forward.9} parent=0 // pred_fallthru
    _
  // Predicated region
  $region22: #{deep_q_forward.9} parent=0 // pred_check
    _
  $region23: #{deep_q_forward.9} parent=0 // pred_check_branch
    %24 = sbr.rel (0) target = $region25
  $region24: #{deep_q_forward.9} parent=0 // pred_region
    _
  $region25: #{deep_q_forward.9} parent=0 // pred_fallthru
    _
  // Predicated region
  $region26: #{deep_q_forward.9} parent=0 // pred_check
    _
  $region27: #{deep_q_forward.9} parent=0 // pred_check_branch
    %26 = sbr.rel (0) target = $region29
  $region28: #{deep_q_forward.9} parent=0 // pred_region
    _
  $region29: #{deep_q_forward.9} parent=0 // pred_fallthru
    _
  // Predicated region
  $region30: #{deep_q_forward.9} parent=0 // pred_check
    _
  $region31: #{deep_q_forward.9} parent=0 // pred_check_branch
    %28 = sbr.rel (0) target = $region33
  $region32: #{deep_q_forward.9} parent=0 // pred_region
    _
  $region33: #{deep_q_forward.9} parent=0 // pred_fallthru
    _
  %v30 = vld [vmem:[%s0] sm:$0xff]
  %v31 = vld [vmem:[%s0 + $0x8] sm:$0xff]
  %v32 = vld [vmem:[%s0 + $0x10] sm:$0xff]
  %v33 = vld [vmem:[%s0 + $0x18] sm:$0xff]
  %v34 = vld [vmem:[%s0 + $0x20] sm:$0xff]
  %v35 = vld [vmem:[%s0 + $0x28] sm:$0xff]
  %v36 = vld [vmem:[%s0 + $0x30] sm:$0xff]
  %v37 = vld [vmem:[%s0 + $0x38] sm:$0xff]
  %v38 = vld [vmem:[%s1] sm:$0xf]
  %v39 = vld [vmem:[%s1 + $0x4] sm:$0xf]
  %v40 = vld [vmem:[%s1 + $0x8] sm:$0xf]
  %v41 = vld [vmem:[%s1 + $0xc] sm:$0xf]
  %v42 = vld [vmem:[%s1 + $0x10] sm:$0xf]
  %v43 = vld [vmem:[%s1 + $0x14] sm:$0xf]
  %v44 = vld [vmem:[%s1 + $0x18] sm:$0xf]
  %v45 = vld [vmem:[%s1 + $0x1c] sm:$0xf]
  %v46 = vld [vmem:[%s1 + $0x20] sm:$0xf]
  %v47 = vld [vmem:[%s1 + $0x24] sm:$0xf]
  %v48 = vld [vmem:[%s1 + $0x28] sm:$0xf]
  %v49 = vld [vmem:[%s1 + $0x2c] sm:$0xf]
  %v50 = vld [vmem:[%s1 + $0x30] sm:$0xf]
  %v51 = vld [vmem:[%s1 + $0x34] sm:$0xf]
  %v52 = vld [vmem:[%s1 + $0x38] sm:$0xf]
  %v53 = vld [vmem:[%s1 + $0x3c] sm:$0xf]
  %v54 = vld [vmem:[%s1 + $0x40] sm:$0xf]
  %v55 = vld [vmem:[%s1 + $0x44] sm:$0xf]
  %v56 = vld [vmem:[%s1 + $0x48] sm:$0xf]
  %v57 = vld [vmem:[%s1 + $0x4c] sm:$0xf]
  %v58 = vld [vmem:[%s1 + $0x50] sm:$0xf]
  %v59 = vld [vmem:[%s1 + $0x54] sm:$0xf]
  %v60 = vld [vmem:[%s1 + $0x58] sm:$0xf]
  %v61 = vld [vmem:[%s1 + $0x5c] sm:$0xf]
  %v62 = vld [vmem:[%s1 + $0x60] sm:$0xf]
  %v63 = vld [vmem:[%s1 + $0x64] sm:$0xf]
  %v64 = vld [vmem:[%s1 + $0x68] sm:$0xf]
  %v65 = vld [vmem:[%s1 + $0x6c] sm:$0xf]
  %v66 = vld [vmem:[%s1 + $0x70] sm:$0xf]
  %v67 = vld [vmem:[%s1 + $0x74] sm:$0xf]
  %v68 = vld [vmem:[%s1 + $0x78] sm:$0xf]
  %v69 = vld [vmem:[%s1 + $0x7c] sm:$0xf]
  %v70 = vld [vmem:[%s1 + $0x80] sm:$0xf]
  %v71 = vld [vmem:[%s1 + $0x84] sm:$0xf]
  %v72 = vld [vmem:[%s1 + $0x88] sm:$0xf]
  %v73 = vld [vmem:[%s1 + $0x8c] sm:$0xf]
  %v74 = vld [vmem:[%s1 + $0x90] sm:$0xf]
  %v75 = vld [vmem:[%s1 + $0x94] sm:$0xf]
  %v76 = vld [vmem:[%s1 + $0x98] sm:$0xf]
  %v77 = vld [vmem:[%s1 + $0x9c] sm:$0xf]
  %v78 = vld [vmem:[%s1 + $0xa0] sm:$0xf]
  %v79 = vld [vmem:[%s1 + $0xa4] sm:$0xf]
  %v80 = vld [vmem:[%s1 + $0xa8] sm:$0xf]
  %v81 = vld [vmem:[%s1 + $0xac] sm:$0xf]
  %v82 = vld [vmem:[%s1 + $0xb0] sm:$0xf]
  %v83 = vld [vmem:[%s1 + $0xb4] sm:$0xf]
  %v84 = vld [vmem:[%s1 + $0xb8] sm:$0xf]
  %v85 = vld [vmem:[%s1 + $0xbc] sm:$0xf]
  %v86 = vld [vmem:[%s1 + $0xc0] sm:$0xf]
  %v87 = vld [vmem:[%s1 + $0xc4] sm:$0xf]
  %v88 = vld [vmem:[%s1 + $0xc8] sm:$0xf]
  %v89 = vld [vmem:[%s1 + $0xcc] sm:$0xf]
  %v90 = vld [vmem:[%s1 + $0xd0] sm:$0xf]
  %v91 = vld [vmem:[%s1 + $0xd4] sm:$0xf]
  %v92 = vld [vmem:[%s1 + $0xd8] sm:$0xf]
  %v93 = vld [vmem:[%s1 + $0xdc] sm:$0xf]
  %v94 = vld [vmem:[%s1 + $0xe0] sm:$0xf]
  %v95 = vld [vmem:[%s1 + $0xe4] sm:$0xf]
  %v96 = vld [vmem:[%s1 + $0xe8] sm:$0xf]
  %v97 = vld [vmem:[%s1 + $0xec] sm:$0xf]
  %v98 = vld [vmem:[%s1 + $0xf0] sm:$0xf]
  %v99 = vld [vmem:[%s1 + $0xf4] sm:$0xf]
  %v100 = vld [vmem:[%s1 + $0xf8] sm:$0xf]
  %v101 = vld [vmem:[%s1 + $0xfc] sm:$0xf]
  %v102 = vld [vmem:[%s1 + $0x100] sm:$0xf]
  %v103 = vld [vmem:[%s1 + $0x104] sm:$0xf]
  %v104 = vld [vmem:[%s1 + $0x108] sm:$0xf]
  %v105 = vld [vmem:[%s1 + $0x10c] sm:$0xf]
  %v106 = vld [vmem:[%s1 + $0x110] sm:$0xf]
  %v107 = vld [vmem:[%s1 + $0x114] sm:$0xf]
  %v108 = vld [vmem:[%s1 + $0x118] sm:$0xf]
  %v109 = vld [vmem:[%s1 + $0x11c] sm:$0xf]
  %v110 = vld [vmem:[%s1 + $0x120] sm:$0xf]
  %v111 = vld [vmem:[%s1 + $0x124] sm:$0xf]
  %v112 = vld [vmem:[%s1 + $0x128] sm:$0xf]
  %v113 = vld [vmem:[%s1 + $0x12c] sm:$0xf]
  %v114 = vld [vmem:[%s1 + $0x130] sm:$0xf]
  %v115 = vld [vmem:[%s1 + $0x134] sm:$0xf]
  %v116 = vld [vmem:[%s1 + $0x138] sm:$0xf]
  %v117 = vld [vmem:[%s1 + $0x13c] sm:$0xf]
  %v118 = vld [vmem:[%s1 + $0x140] sm:$0xf]
  %v119 = vld [vmem:[%s1 + $0x144] sm:$0xf]
  %v120 = vld [vmem:[%s1 + $0x148] sm:$0xf]
  %v121 = vld [vmem:[%s1 + $0x14c] sm:$0xf]
  %v122 = vld [vmem:[%s1 + $0x150] sm:$0xf]
  %v123 = vld [vmem:[%s1 + $0x154] sm:$0xf]
  %v124 = vld [vmem:[%s1 + $0x158] sm:$0xf]
  %v125 = vld [vmem:[%s1 + $0x15c] sm:$0xf]
  %v126 = vld [vmem:[%s1 + $0x160] sm:$0xf]
  %v127 = vld [vmem:[%s1 + $0x164] sm:$0xf]
  %v128 = vld [vmem:[%s1 + $0x168] sm:$0xf]
  %v129 = vld [vmem:[%s1 + $0x16c] sm:$0xf]
  %v130 = vld [vmem:[%s1 + $0x170] sm:$0xf]
  %v131 = vld [vmem:[%s1 + $0x174] sm:$0xf]
  %v132 = vld [vmem:[%s1 + $0x178] sm:$0xf]
  %v133 = vld [vmem:[%s1 + $0x17c] sm:$0xf]
  %v134 = vld [vmem:[%s1 + $0x180] sm:$0xf]
  %v135 = vld [vmem:[%s1 + $0x184] sm:$0xf]
  %v136 = vld [vmem:[%s1 + $0x188] sm:$0xf]
  %v137 = vld [vmem:[%s1 + $0x18c] sm:$0xf]
  %v138 = vld [vmem:[%s1 + $0x190] sm:$0xf]
  %v139 = vld [vmem:[%s1 + $0x194] sm:$0xf]
  %v140 = vld [vmem:[%s1 + $0x198] sm:$0xf]
  %v141 = vld [vmem:[%s1 + $0x19c] sm:$0xf]
  %v142 = vld [vmem:[%s1 + $0x1a0] sm:$0xf]
  %v143 = vld [vmem:[%s1 + $0x1a4] sm:$0xf]
  %v144 = vld [vmem:[%s1 + $0x1a8] sm:$0xf]
  %v145 = vld [vmem:[%s1 + $0x1ac] sm:$0xf]
  %v146 = vld [vmem:[%s1 + $0x1b0] sm:$0xf]
  %v147 = vld [vmem:[%s1 + $0x1b4] sm:$0xf]
  %v148 = vld [vmem:[%s1 + $0x1b8] sm:$0xf]
  %v149 = vld [vmem:[%s1 + $0x1bc] sm:$0xf]
  %v150 = vld [vmem:[%s1 + $0x1c0] sm:$0xf]
  %v151 = vld [vmem:[%s1 + $0x1c4] sm:$0xf]
  %v152 = vld [vmem:[%s1 + $0x1c8] sm:$0xf]
  %v153 = vld [vmem:[%s1 + $0x1cc] sm:$0xf]
  %v154 = vld [vmem:[%s1 + $0x1d0] sm:$0xf]
  %v155 = vld [vmem:[%s1 + $0x1d4] sm:$0xf]
  %v156 = vld [vmem:[%s1 + $0x1d8] sm:$0xf]
  %v157 = vld [vmem:[%s1 + $0x1dc] sm:$0xf]
  %v158 = vld [vmem:[%s1 + $0x1e0] sm:$0xf]
  %v159 = vld [vmem:[%s1 + $0x1e4] sm:$0xf]
  %v160 = vld [vmem:[%s1 + $0x1e8] sm:$0xf]
  %v161 = vld [vmem:[%s1 + $0x1ec] sm:$0xf]
  %v162 = vld [vmem:[%s1 + $0x1f0] sm:$0xf]
  %v163 = vld [vmem:[%s1 + $0x1f4] sm:$0xf]
  %v164 = vld [vmem:[%s1 + $0x1f8] sm:$0xf]
  %v165 = vld [vmem:[%s1 + $0x1fc] sm:$0xf]
  %v174 = vunpack.c.l.b16 %v30
  %v175 = vunpack.c.h.b16 %v30
  %v176 = vunpack.c.l.b16 %v31
  %v177 = vunpack.c.h.b16 %v31
  %v178 = vunpack.c.l.b16 %v32
  %v179 = vunpack.c.h.b16 %v32
  %v180 = vunpack.c.l.b16 %v33
  %v181 = vunpack.c.h.b16 %v33
  %v182 = vunpack.c.l.b16 %v34
  %v183 = vunpack.c.h.b16 %v34
  %v184 = vunpack.c.l.b16 %v35
  %v185 = vunpack.c.h.b16 %v35
  %v186 = vunpack.c.l.b16 %v36
  %v187 = vunpack.c.h.b16 %v36
  %v188 = vunpack.c.l.b16 %v37
  %v189 = vunpack.c.h.b16 %v37
  %v190 = vpack.c.b16 %v182, %v174
  %v191 = vpack.c.b16 %v183, %v175
  %v192 = vpack.c.b16 %v184, %v176
  %v193 = vpack.c.b16 %v185, %v177
  %v194 = vpack.c.b16 %v186, %v178
  %v195 = vpack.c.b16 %v187, %v179
  %v196 = vpack.c.b16 %v188, %v180
  %v197 = vpack.c.b16 %v189, %v181
  %v334 = vunpack.c.l.b16 %v38
  %v335 = vunpack.c.l.b16 %v39
  %v336 = vunpack.c.l.b16 %v40
  %v337 = vunpack.c.l.b16 %v41
  %v338 = vunpack.c.l.b16 %v42
  %v339 = vunpack.c.l.b16 %v43
  %v340 = vunpack.c.l.b16 %v44
  %v341 = vunpack.c.l.b16 %v45
  %v342 = vunpack.c.l.b16 %v46
  %v343 = vunpack.c.l.b16 %v47
  %v344 = vunpack.c.l.b16 %v48
  %v345 = vunpack.c.l.b16 %v49
  %v346 = vunpack.c.l.b16 %v50
  %v347 = vunpack.c.l.b16 %v51
  %v348 = vunpack.c.l.b16 %v52
  %v349 = vunpack.c.l.b16 %v53
  %v350 = vunpack.c.l.b16 %v54
  %v351 = vunpack.c.l.b16 %v55
  %v352 = vunpack.c.l.b16 %v56
  %v353 = vunpack.c.l.b16 %v57
  %v354 = vunpack.c.l.b16 %v58
  %v355 = vunpack.c.l.b16 %v59
  %v356 = vunpack.c.l.b16 %v60
  %v357 = vunpack.c.l.b16 %v61
  %v358 = vunpack.c.l.b16 %v62
  %v359 = vunpack.c.l.b16 %v63
  %v360 = vunpack.c.l.b16 %v64
  %v361 = vunpack.c.l.b16 %v65
  %v362 = vunpack.c.l.b16 %v66
  %v363 = vunpack.c.l.b16 %v67
  %v364 = vunpack.c.l.b16 %v68
  %v365 = vunpack.c.l.b16 %v69
  %v366 = vunpack.c.l.b16 %v70
  %v367 = vunpack.c.l.b16 %v71
  %v368 = vunpack.c.l.b16 %v72
  %v369 = vunpack.c.l.b16 %v73
  %v370 = vunpack.c.l.b16 %v74
  %v371 = vunpack.c.l.b16 %v75
  %v372 = vunpack.c.l.b16 %v76
  %v373 = vunpack.c.l.b16 %v77
  %v374 = vunpack.c.l.b16 %v78
  %v375 = vunpack.c.l.b16 %v79
  %v376 = vunpack.c.l.b16 %v80
  %v377 = vunpack.c.l.b16 %v81
  %v378 = vunpack.c.l.b16 %v82
  %v379 = vunpack.c.l.b16 %v83
  %v380 = vunpack.c.l.b16 %v84
  %v381 = vunpack.c.l.b16 %v85
  %v382 = vunpack.c.l.b16 %v86
  %v383 = vunpack.c.l.b16 %v87
  %v384 = vunpack.c.l.b16 %v88
  %v385 = vunpack.c.l.b16 %v89
  %v386 = vunpack.c.l.b16 %v90
  %v387 = vunpack.c.l.b16 %v91
  %v388 = vunpack.c.l.b16 %v92
  %v389 = vunpack.c.l.b16 %v93
  %v390 = vunpack.c.l.b16 %v94
  %v391 = vunpack.c.l.b16 %v95
  %v392 = vunpack.c.l.b16 %v96
  %v393 = vunpack.c.l.b16 %v97
  %v394 = vunpack.c.l.b16 %v98
  %v395 = vunpack.c.l.b16 %v99
  %v396 = vunpack.c.l.b16 %v100
  %v397 = vunpack.c.l.b16 %v101
  %v398 = vunpack.c.l.b16 %v102
  %v399 = vunpack.c.l.b16 %v103
  %v400 = vunpack.c.l.b16 %v104
  %v401 = vunpack.c.l.b16 %v105
  %v402 = vunpack.c.l.b16 %v106
  %v403 = vunpack.c.l.b16 %v107
  %v404 = vunpack.c.l.b16 %v108
  %v405 = vunpack.c.l.b16 %v109
  %v406 = vunpack.c.l.b16 %v110
  %v407 = vunpack.c.l.b16 %v111
  %v408 = vunpack.c.l.b16 %v112
  %v409 = vunpack.c.l.b16 %v113
  %v410 = vunpack.c.l.b16 %v114
  %v411 = vunpack.c.l.b16 %v115
  %v412 = vunpack.c.l.b16 %v116
  %v413 = vunpack.c.l.b16 %v117
  %v414 = vunpack.c.l.b16 %v118
  %v415 = vunpack.c.l.b16 %v119
  %v416 = vunpack.c.l.b16 %v120
  %v417 = vunpack.c.l.b16 %v121
  %v418 = vunpack.c.l.b16 %v122
  %v419 = vunpack.c.l.b16 %v123
  %v420 = vunpack.c.l.b16 %v124
  %v421 = vunpack.c.l.b16 %v125
  %v422 = vunpack.c.l.b16 %v126
  %v423 = vunpack.c.l.b16 %v127
  %v424 = vunpack.c.l.b16 %v128
  %v425 = vunpack.c.l.b16 %v129
  %v426 = vunpack.c.l.b16 %v130
  %v427 = vunpack.c.l.b16 %v131
  %v428 = vunpack.c.l.b16 %v132
  %v429 = vunpack.c.l.b16 %v133
  %v430 = vunpack.c.l.b16 %v134
  %v431 = vunpack.c.l.b16 %v135
  %v432 = vunpack.c.l.b16 %v136
  %v433 = vunpack.c.l.b16 %v137
  %v434 = vunpack.c.l.b16 %v138
  %v435 = vunpack.c.l.b16 %v139
  %v436 = vunpack.c.l.b16 %v140
  %v437 = vunpack.c.l.b16 %v141
  %v438 = vunpack.c.l.b16 %v142
  %v439 = vunpack.c.l.b16 %v143
  %v440 = vunpack.c.l.b16 %v144
  %v441 = vunpack.c.l.b16 %v145
  %v442 = vunpack.c.l.b16 %v146
  %v443 = vunpack.c.l.b16 %v147
  %v444 = vunpack.c.l.b16 %v148
  %v445 = vunpack.c.l.b16 %v149
  %v446 = vunpack.c.l.b16 %v150
  %v447 = vunpack.c.l.b16 %v151
  %v448 = vunpack.c.l.b16 %v152
  %v449 = vunpack.c.l.b16 %v153
  %v450 = vunpack.c.l.b16 %v154
  %v451 = vunpack.c.l.b16 %v155
  %v452 = vunpack.c.l.b16 %v156
  %v453 = vunpack.c.l.b16 %v157
  %v454 = vunpack.c.l.b16 %v158
  %v455 = vunpack.c.l.b16 %v159
  %v456 = vunpack.c.l.b16 %v160
  %v457 = vunpack.c.l.b16 %v161
  %v458 = vunpack.c.l.b16 %v162
  %v459 = vunpack.c.l.b16 %v163
  %v460 = vunpack.c.l.b16 %v164
  %v461 = vunpack.c.l.b16 %v165
  %v462 = vpack.c.b16 %v335, %v334
  %v463 = vpack.c.b16 %v337, %v336
  %v464 = vpack.c.b16 %v339, %v338
  %v465 = vpack.c.b16 %v341, %v340
  %v466 = vpack.c.b16 %v343, %v342
  %v467 = vpack.c.b16 %v345, %v344
  %v468 = vpack.c.b16 %v347, %v346
  %v469 = vpack.c.b16 %v349, %v348
  %v470 = vpack.c.b16 %v351, %v350
  %v471 = vpack.c.b16 %v353, %v352
  %v472 = vpack.c.b16 %v355, %v354
  %v473 = vpack.c.b16 %v357, %v356
  %v474 = vpack.c.b16 %v359, %v358
  %v475 = vpack.c.b16 %v361, %v360
  %v476 = vpack.c.b16 %v363, %v362
  %v477 = vpack.c.b16 %v365, %v364
  %v478 = vpack.c.b16 %v367, %v366
  %v479 = vpack.c.b16 %v369, %v368
  %v480 = vpack.c.b16 %v371, %v370
  %v481 = vpack.c.b16 %v373, %v372
  %v482 = vpack.c.b16 %v375, %v374
  %v483 = vpack.c.b16 %v377, %v376
  %v484 = vpack.c.b16 %v379, %v378
  %v485 = vpack.c.b16 %v381, %v380
  %v486 = vpack.c.b16 %v383, %v382
  %v487 = vpack.c.b16 %v385, %v384
  %v488 = vpack.c.b16 %v387, %v386
  %v489 = vpack.c.b16 %v389, %v388
  %v490 = vpack.c.b16 %v391, %v390
  %v491 = vpack.c.b16 %v393, %v392
  %v492 = vpack.c.b16 %v395, %v394
  %v493 = vpack.c.b16 %v397, %v396
  %v494 = vpack.c.b16 %v399, %v398
  %v495 = vpack.c.b16 %v401, %v400
  %v496 = vpack.c.b16 %v403, %v402
  %v497 = vpack.c.b16 %v405, %v404
  %v498 = vpack.c.b16 %v407, %v406
  %v499 = vpack.c.b16 %v409, %v408
  %v500 = vpack.c.b16 %v411, %v410
  %v501 = vpack.c.b16 %v413, %v412
  %v502 = vpack.c.b16 %v415, %v414
  %v503 = vpack.c.b16 %v417, %v416
  %v504 = vpack.c.b16 %v419, %v418
  %v505 = vpack.c.b16 %v421, %v420
  %v506 = vpack.c.b16 %v423, %v422
  %v507 = vpack.c.b16 %v425, %v424
  %v508 = vpack.c.b16 %v427, %v426
  %v509 = vpack.c.b16 %v429, %v428
  %v510 = vpack.c.b16 %v431, %v430
  %v511 = vpack.c.b16 %v433, %v432
  %v512 = vpack.c.b16 %v435, %v434
  %v513 = vpack.c.b16 %v437, %v436
  %v514 = vpack.c.b16 %v439, %v438
  %v515 = vpack.c.b16 %v441, %v440
  %v516 = vpack.c.b16 %v443, %v442
  %v517 = vpack.c.b16 %v445, %v444
  %v518 = vpack.c.b16 %v447, %v446
  %v519 = vpack.c.b16 %v449, %v448
  %v520 = vpack.c.b16 %v451, %v450
  %v521 = vpack.c.b16 %v453, %v452
  %v522 = vpack.c.b16 %v455, %v454
  %v523 = vpack.c.b16 %v457, %v456
  %v524 = vpack.c.b16 %v459, %v458
  %v525 = vpack.c.b16 %v461, %v460
  %590 = vmatprep.subr.bf16.mxu0 0
  %591 = vmatpush1.bf16.msra.mxu0 %v469
  %592 = vmatprep.subr.bf16.mxu0 0
  %593 = vmatpush1.bf16.msra.mxu0 %v468
  %594 = vmatprep.subr.bf16.mxu0 0
  %595 = vmatpush1.bf16.msra.mxu0 %v467
  %596 = vmatprep.subr.bf16.mxu0 0
  %597 = vmatpush1.bf16.msra.mxu0 %v466
  %598 = vmatprep.subr.bf16.mxu0 0
  %599 = vmatpush1.bf16.msra.mxu0 %v465
  %600 = vmatprep.subr.bf16.mxu0 0
  %601 = vmatpush1.bf16.msra.mxu0 %v464
  %602 = vmatprep.subr.bf16.mxu0 0
  %603 = vmatpush1.bf16.msra.mxu0 %v463
  %604 = vmatprep.subr.bf16.mxu0 0
  %605 = vmatpush1.bf16.msra.mxu0 %v462
  %606 = vmatprep.subr.bf16.mxu0 0
  %607 = vmatpush2.bf16.msra.mxu0 %v477
  %608 = vmatprep.subr.bf16.mxu0 0
  %609 = vmatpush2.bf16.msra.mxu0 %v476
  %610 = vmatprep.subr.bf16.mxu0 0
  %611 = vmatpush2.bf16.msra.mxu0 %v475
  %612 = vmatprep.subr.bf16.mxu0 0
  %613 = vmatpush2.bf16.msra.mxu0 %v474
  %614 = vmatprep.subr.bf16.mxu0 0
  %615 = vmatpush2.bf16.msra.mxu0 %v473
  %616 = vmatprep.subr.bf16.mxu0 0
  %617 = vmatpush2.bf16.msra.mxu0 %v472
  %618 = vmatprep.subr.bf16.mxu0 0
  %619 = vmatpush2.bf16.msra.mxu0 %v471
  %620 = vmatprep.subr.bf16.mxu0 0
  %621 = vmatpush2.bf16.msra.mxu0 %v470
  %622 = vmatprep.mubr.bf16.mxu0 %v191
  %623 = vmatmul.mubr.bf16.gmra.mxu0 %v190
  %v624 = vpop.f32.mrf.mxu0
  %v625 = vadd.f32 0.0, %v624
  %v626 = vpop.f32.mrf.mxu0
  %v627 = vpop.f32.mrf.mxu0
  %v628 = vadd.f32 0.0, %v627
  %v629 = vpop.f32.mrf.mxu0
  %630 = vdwg.mxu0
  %631 = vmatprep.subr.bf16.mxu0 0
  %632 = vmatpush1.bf16.msra.mxu0 %v485
  %633 = vmatprep.subr.bf16.mxu0 0
  %634 = vmatpush1.bf16.msra.mxu0 %v484
  %635 = vmatprep.subr.bf16.mxu0 0
  %636 = vmatpush1.bf16.msra.mxu0 %v483
  %637 = vmatprep.subr.bf16.mxu0 0
  %638 = vmatpush1.bf16.msra.mxu0 %v482
  %639 = vmatprep.subr.bf16.mxu0 0
  %640 = vmatpush1.bf16.msra.mxu0 %v481
  %641 = vmatprep.subr.bf16.mxu0 0
  %642 = vmatpush1.bf16.msra.mxu0 %v480
  %643 = vmatprep.subr.bf16.mxu0 0
  %644 = vmatpush1.bf16.msra.mxu0 %v479
  %645 = vmatprep.subr.bf16.mxu0 0
  %646 = vmatpush1.bf16.msra.mxu0 %v478
  %647 = vmatprep.subr.bf16.mxu0 0
  %648 = vmatpush2.bf16.msra.mxu0 %v493
  %649 = vmatprep.subr.bf16.mxu0 0
  %650 = vmatpush2.bf16.msra.mxu0 %v492
  %651 = vmatprep.subr.bf16.mxu0 0
  %652 = vmatpush2.bf16.msra.mxu0 %v491
  %653 = vmatprep.subr.bf16.mxu0 0
  %654 = vmatpush2.bf16.msra.mxu0 %v490
  %655 = vmatprep.subr.bf16.mxu0 0
  %656 = vmatpush2.bf16.msra.mxu0 %v489
  %657 = vmatprep.subr.bf16.mxu0 0
  %658 = vmatpush2.bf16.msra.mxu0 %v488
  %659 = vmatprep.subr.bf16.mxu0 0
  %660 = vmatpush2.bf16.msra.mxu0 %v487
  %661 = vmatprep.subr.bf16.mxu0 0
  %662 = vmatpush2.bf16.msra.mxu0 %v486
  %663 = vmatprep.mubr.bf16.mxu0 %v193
  %664 = vmatmul.mubr.bf16.gmra.mxu0 %v192
  %v665 = vpop.f32.mrf.mxu0
  %v666 = vadd.f32 %v625, %v665
  %v667 = vpop.f32.mrf.mxu0
  %v668 = vpop.f32.mrf.mxu0
  %v669 = vadd.f32 %v628, %v668
  %v670 = vpop.f32.mrf.mxu0
  %671 = vdwg.mxu0
  %672 = vmatprep.subr.bf16.mxu0 0
  %673 = vmatpush1.bf16.msra.mxu0 %v501
  %674 = vmatprep.subr.bf16.mxu0 0
  %675 = vmatpush1.bf16.msra.mxu0 %v500
  %676 = vmatprep.subr.bf16.mxu0 0
  %677 = vmatpush1.bf16.msra.mxu0 %v499
  %678 = vmatprep.subr.bf16.mxu0 0
  %679 = vmatpush1.bf16.msra.mxu0 %v498
  %680 = vmatprep.subr.bf16.mxu0 0
  %681 = vmatpush1.bf16.msra.mxu0 %v497
  %682 = vmatprep.subr.bf16.mxu0 0
  %683 = vmatpush1.bf16.msra.mxu0 %v496
  %684 = vmatprep.subr.bf16.mxu0 0
  %685 = vmatpush1.bf16.msra.mxu0 %v495
  %686 = vmatprep.subr.bf16.mxu0 0
  %687 = vmatpush1.bf16.msra.mxu0 %v494
  %688 = vmatprep.subr.bf16.mxu0 0
  %689 = vmatpush2.bf16.msra.mxu0 %v509
  %690 = vmatprep.subr.bf16.mxu0 0
  %691 = vmatpush2.bf16.msra.mxu0 %v508
  %692 = vmatprep.subr.bf16.mxu0 0
  %693 = vmatpush2.bf16.msra.mxu0 %v507
  %694 = vmatprep.subr.bf16.mxu0 0
  %695 = vmatpush2.bf16.msra.mxu0 %v506
  %696 = vmatprep.subr.bf16.mxu0 0
  %697 = vmatpush2.bf16.msra.mxu0 %v505
  %698 = vmatprep.subr.bf16.mxu0 0
  %699 = vmatpush2.bf16.msra.mxu0 %v504
  %700 = vmatprep.subr.bf16.mxu0 0
  %701 = vmatpush2.bf16.msra.mxu0 %v503
  %702 = vmatprep.subr.bf16.mxu0 0
  %703 = vmatpush2.bf16.msra.mxu0 %v502
  %704 = vmatprep.mubr.bf16.mxu0 %v195
  %705 = vmatmul.mubr.bf16.gmra.mxu0 %v194
  %v706 = vpop.f32.mrf.mxu0
  %v707 = vadd.f32 %v666, %v706
  %v708 = vpop.f32.mrf.mxu0
  %v709 = vpop.f32.mrf.mxu0
  %v710 = vadd.f32 %v669, %v709
  %v711 = vpop.f32.mrf.mxu0
  %712 = vdwg.mxu0
  %713 = vmatprep.subr.bf16.mxu0 0
  %714 = vmatpush1.bf16.msra.mxu0 %v517
  %715 = vmatprep.subr.bf16.mxu0 0
  %716 = vmatpush1.bf16.msra.mxu0 %v516
  %717 = vmatprep.subr.bf16.mxu0 0
  %718 = vmatpush1.bf16.msra.mxu0 %v515
  %719 = vmatprep.subr.bf16.mxu0 0
  %720 = vmatpush1.bf16.msra.mxu0 %v514
  %721 = vmatprep.subr.bf16.mxu0 0
  %722 = vmatpush1.bf16.msra.mxu0 %v513
  %723 = vmatprep.subr.bf16.mxu0 0
  %724 = vmatpush1.bf16.msra.mxu0 %v512
  %725 = vmatprep.subr.bf16.mxu0 0
  %726 = vmatpush1.bf16.msra.mxu0 %v511
  %727 = vmatprep.subr.bf16.mxu0 0
  %728 = vmatpush1.bf16.msra.mxu0 %v510
  %729 = vmatprep.subr.bf16.mxu0 0
  %730 = vmatpush2.bf16.msra.mxu0 %v525
  %731 = vmatprep.subr.bf16.mxu0 0
  %732 = vmatpush2.bf16.msra.mxu0 %v524
  %733 = vmatprep.subr.bf16.mxu0 0
  %734 = vmatpush2.bf16.msra.mxu0 %v523
  %735 = vmatprep.subr.bf16.mxu0 0
  %736 = vmatpush2.bf16.msra.mxu0 %v522
  %737 = vmatprep.subr.bf16.mxu0 0
  %738 = vmatpush2.bf16.msra.mxu0 %v521
  %739 = vmatprep.subr.bf16.mxu0 0
  %740 = vmatpush2.bf16.msra.mxu0 %v520
  %741 = vmatprep.subr.bf16.mxu0 0
  %742 = vmatpush2.bf16.msra.mxu0 %v519
  %743 = vmatprep.subr.bf16.mxu0 0
  %744 = vmatpush2.bf16.msra.mxu0 %v518
  %745 = vmatprep.mubr.bf16.mxu0 %v197
  %746 = vmatmul.mubr.bf16.gmra.mxu0 %v196
  %v747 = vpop.f32.mrf.mxu0
  %v748 = vadd.f32 %v707, %v747
  %v749 = vpop.f32.mrf.mxu0
  %v750 = vpop.f32.mrf.mxu0
  %v751 = vadd.f32 %v710, %v750
  %v752 = vpop.f32.mrf.mxu0
  %753 = vdwg.mxu0
  %v754 = vadd.f32 %v748, %v751
  %v755 = vrot.slane %v754, 4
  %v756 = vadd.f32 %v754, %v755
  %v757 = vrot.slane %v756, 2
  %v758 = vadd.f32 %v756, %v757
  %v759 = vrot.slane %v758, 1
  %v760 = vadd.f32 %v758, %v759
  %v761 = vadd.f32 %v760, 0.0
  %v762 = vmul.f32 %v748, %v748
  %v763 = vmul.f32 %v751, %v751
  %v764 = vadd.f32 %v762, %v763
  %v765 = vrot.slane %v764, 4
  %v766 = vadd.f32 %v764, %v765
  %v767 = vrot.slane %v766, 2
  %v768 = vadd.f32 %v766, %v767
  %v769 = vrot.slane %v768, 1
  %v770 = vadd.f32 %v768, %v769
  %v771 = vadd.f32 %v770, 0.0
  %s772 = scalar_lea.vmem %s0, 64
  %v773 = vld [vmem:[%s772] sm:$0xff]
  %v774 = vld [vmem:[%s772 + $0x8] sm:$0xff]
  %v775 = vld [vmem:[%s772 + $0x10] sm:$0xff]
  %v776 = vld [vmem:[%s772 + $0x18] sm:$0xff]
  %v777 = vld [vmem:[%s772 + $0x20] sm:$0xff]
  %v778 = vld [vmem:[%s772 + $0x28] sm:$0xff]
  %v779 = vld [vmem:[%s772 + $0x30] sm:$0xff]
  %v780 = vld [vmem:[%s772 + $0x38] sm:$0xff]
  %v789 = vunpack.c.l.b16 %v773
  %v790 = vunpack.c.h.b16 %v773
  %v791 = vunpack.c.l.b16 %v774
  %v792 = vunpack.c.h.b16 %v774
  %v793 = vunpack.c.l.b16 %v775
  %v794 = vunpack.c.h.b16 %v775
  %v795 = vunpack.c.l.b16 %v776
  %v796 = vunpack.c.h.b16 %v776
  %v797 = vunpack.c.l.b16 %v777
  %v798 = vunpack.c.h.b16 %v777
  %v799 = vunpack.c.l.b16 %v778
  %v800 = vunpack.c.h.b16 %v778
  %v801 = vunpack.c.l.b16 %v779
  %v802 = vunpack.c.h.b16 %v779
  %v803 = vunpack.c.l.b16 %v780
  %v804 = vunpack.c.h.b16 %v780
  %v805 = vpack.c.b16 %v797, %v789
  %v806 = vpack.c.b16 %v798, %v790
  %v807 = vpack.c.b16 %v799, %v791
  %v808 = vpack.c.b16 %v800, %v792
  %v809 = vpack.c.b16 %v801, %v793
  %v810 = vpack.c.b16 %v802, %v794
  %v811 = vpack.c.b16 %v803, %v795
  %v812 = vpack.c.b16 %v804, %v796
  %821 = vmatprep.subr.bf16.mxu0 0
  %822 = vmatpush1.bf16.msra.mxu0 %v469
  %823 = vmatprep.subr.bf16.mxu0 0
  %824 = vmatpush1.bf16.msra.mxu0 %v468
  %825 = vmatprep.subr.bf16.mxu0 0
  %826 = vmatpush1.bf16.msra.mxu0 %v467
  %827 = vmatprep.subr.bf16.mxu0 0
  %828 = vmatpush1.bf16.msra.mxu0 %v466
  %829 = vmatprep.subr.bf16.mxu0 0
  %830 = vmatpush1.bf16.msra.mxu0 %v465
  %831 = vmatprep.subr.bf16.mxu0 0
  %832 = vmatpush1.bf16.msra.mxu0 %v464
  %833 = vmatprep.subr.bf16.mxu0 0
  %834 = vmatpush1.bf16.msra.mxu0 %v463
  %835 = vmatprep.subr.bf16.mxu0 0
  %836 = vmatpush1.bf16.msra.mxu0 %v462
  %837 = vmatprep.subr.bf16.mxu0 0
  %838 = vmatpush2.bf16.msra.mxu0 %v477
  %839 = vmatprep.subr.bf16.mxu0 0
  %840 = vmatpush2.bf16.msra.mxu0 %v476
  %841 = vmatprep.subr.bf16.mxu0 0
  %842 = vmatpush2.bf16.msra.mxu0 %v475
  %843 = vmatprep.subr.bf16.mxu0 0
  %844 = vmatpush2.bf16.msra.mxu0 %v474
  %845 = vmatprep.subr.bf16.mxu0 0
  %846 = vmatpush2.bf16.msra.mxu0 %v473
  %847 = vmatprep.subr.bf16.mxu0 0
  %848 = vmatpush2.bf16.msra.mxu0 %v472
  %849 = vmatprep.subr.bf16.mxu0 0
  %850 = vmatpush2.bf16.msra.mxu0 %v471
  %851 = vmatprep.subr.bf16.mxu0 0
  %852 = vmatpush2.bf16.msra.mxu0 %v470
  %853 = vmatprep.mubr.bf16.mxu0 %v806
  %854 = vmatmul.mubr.bf16.gmra.mxu0 %v805
  %v855 = vpop.f32.mrf.mxu0
  %v856 = vadd.f32 0.0, %v855
  %v857 = vpop.f32.mrf.mxu0
  %v858 = vpop.f32.mrf.mxu0
  %v859 = vadd.f32 0.0, %v858
  %v860 = vpop.f32.mrf.mxu0
  %861 = vdwg.mxu0
  %862 = vmatprep.subr.bf16.mxu0 0
  %863 = vmatpush1.bf16.msra.mxu0 %v485
  %864 = vmatprep.subr.bf16.mxu0 0
  %865 = vmatpush1.bf16.msra.mxu0 %v484
  %866 = vmatprep.subr.bf16.mxu0 0
  %867 = vmatpush1.bf16.msra.mxu0 %v483
  %868 = vmatprep.subr.bf16.mxu0 0
  %869 = vmatpush1.bf16.msra.mxu0 %v482
  %870 = vmatprep.subr.bf16.mxu0 0
  %871 = vmatpush1.bf16.msra.mxu0 %v481
  %872 = vmatprep.subr.bf16.mxu0 0
  %873 = vmatpush1.bf16.msra.mxu0 %v480
  %874 = vmatprep.subr.bf16.mxu0 0
  %875 = vmatpush1.bf16.msra.mxu0 %v479
  %876 = vmatprep.subr.bf16.mxu0 0
  %877 = vmatpush1.bf16.msra.mxu0 %v478
  %878 = vmatprep.subr.bf16.mxu0 0
  %879 = vmatpush2.bf16.msra.mxu0 %v493
  %880 = vmatprep.subr.bf16.mxu0 0
  %881 = vmatpush2.bf16.msra.mxu0 %v492
  %882 = vmatprep.subr.bf16.mxu0 0
  %883 = vmatpush2.bf16.msra.mxu0 %v491
  %884 = vmatprep.subr.bf16.mxu0 0
  %885 = vmatpush2.bf16.msra.mxu0 %v490
  %886 = vmatprep.subr.bf16.mxu0 0
  %887 = vmatpush2.bf16.msra.mxu0 %v489
  %888 = vmatprep.subr.bf16.mxu0 0
  %889 = vmatpush2.bf16.msra.mxu0 %v488
  %890 = vmatprep.subr.bf16.mxu0 0
  %891 = vmatpush2.bf16.msra.mxu0 %v487
  %892 = vmatprep.subr.bf16.mxu0 0
  %893 = vmatpush2.bf16.msra.mxu0 %v486
  %894 = vmatprep.mubr.bf16.mxu0 %v808
  %895 = vmatmul.mubr.bf16.gmra.mxu0 %v807
  %v896 = vpop.f32.mrf.mxu0
  %v897 = vadd.f32 %v856, %v896
  %v898 = vpop.f32.mrf.mxu0
  %v899 = vpop.f32.mrf.mxu0
  %v900 = vadd.f32 %v859, %v899
  %v901 = vpop.f32.mrf.mxu0
  %902 = vdwg.mxu0
  %903 = vmatprep.subr.bf16.mxu0 0
  %904 = vmatpush1.bf16.msra.mxu0 %v501
  %905 = vmatprep.subr.bf16.mxu0 0
  %906 = vmatpush1.bf16.msra.mxu0 %v500
  %907 = vmatprep.subr.bf16.mxu0 0
  %908 = vmatpush1.bf16.msra.mxu0 %v499
  %909 = vmatprep.subr.bf16.mxu0 0
  %910 = vmatpush1.bf16.msra.mxu0 %v498
  %911 = vmatprep.subr.bf16.mxu0 0
  %912 = vmatpush1.bf16.msra.mxu0 %v497
  %913 = vmatprep.subr.bf16.mxu0 0
  %914 = vmatpush1.bf16.msra.mxu0 %v496
  %915 = vmatprep.subr.bf16.mxu0 0
  %916 = vmatpush1.bf16.msra.mxu0 %v495
  %917 = vmatprep.subr.bf16.mxu0 0
  %918 = vmatpush1.bf16.msra.mxu0 %v494
  %919 = vmatprep.subr.bf16.mxu0 0
  %920 = vmatpush2.bf16.msra.mxu0 %v509
  %921 = vmatprep.subr.bf16.mxu0 0
  %922 = vmatpush2.bf16.msra.mxu0 %v508
  %923 = vmatprep.subr.bf16.mxu0 0
  %924 = vmatpush2.bf16.msra.mxu0 %v507
  %925 = vmatprep.subr.bf16.mxu0 0
  %926 = vmatpush2.bf16.msra.mxu0 %v506
  %927 = vmatprep.subr.bf16.mxu0 0
  %928 = vmatpush2.bf16.msra.mxu0 %v505
  %929 = vmatprep.subr.bf16.mxu0 0
  %930 = vmatpush2.bf16.msra.mxu0 %v504
  %931 = vmatprep.subr.bf16.mxu0 0
  %932 = vmatpush2.bf16.msra.mxu0 %v503
  %933 = vmatprep.subr.bf16.mxu0 0
  %934 = vmatpush2.bf16.msra.mxu0 %v502
  %935 = vmatprep.mubr.bf16.mxu0 %v810
  %936 = vmatmul.mubr.bf16.gmra.mxu0 %v809
  %v937 = vpop.f32.mrf.mxu0
  %v938 = vadd.f32 %v897, %v937
  %v939 = vpop.f32.mrf.mxu0
  %v940 = vpop.f32.mrf.mxu0
  %v941 = vadd.f32 %v900, %v940
  %v942 = vpop.f32.mrf.mxu0
  %943 = vdwg.mxu0
  %944 = vmatprep.subr.bf16.mxu0 0
  %945 = vmatpush1.bf16.msra.mxu0 %v517
  %946 = vmatprep.subr.bf16.mxu0 0
  %947 = vmatpush1.bf16.msra.mxu0 %v516
  %948 = vmatprep.subr.bf16.mxu0 0
  %949 = vmatpush1.bf16.msra.mxu0 %v515
  %950 = vmatprep.subr.bf16.mxu0 0
  %951 = vmatpush1.bf16.msra.mxu0 %v514
  %952 = vmatprep.subr.bf16.mxu0 0
  %953 = vmatpush1.bf16.msra.mxu0 %v513
  %954 = vmatprep.subr.bf16.mxu0 0
  %955 = vmatpush1.bf16.msra.mxu0 %v512
  %956 = vmatprep.subr.bf16.mxu0 0
  %957 = vmatpush1.bf16.msra.mxu0 %v511
  %958 = vmatprep.subr.bf16.mxu0 0
  %959 = vmatpush1.bf16.msra.mxu0 %v510
  %960 = vmatprep.subr.bf16.mxu0 0
  %961 = vmatpush2.bf16.msra.mxu0 %v525
  %962 = vmatprep.subr.bf16.mxu0 0
  %963 = vmatpush2.bf16.msra.mxu0 %v524
  %964 = vmatprep.subr.bf16.mxu0 0
  %965 = vmatpush2.bf16.msra.mxu0 %v523
  %966 = vmatprep.subr.bf16.mxu0 0
  %967 = vmatpush2.bf16.msra.mxu0 %v522
  %968 = vmatprep.subr.bf16.mxu0 0
  %969 = vmatpush2.bf16.msra.mxu0 %v521
  %970 = vmatprep.subr.bf16.mxu0 0
  %971 = vmatpush2.bf16.msra.mxu0 %v520
  %972 = vmatprep.subr.bf16.mxu0 0
  %973 = vmatpush2.bf16.msra.mxu0 %v519
  %974 = vmatprep.subr.bf16.mxu0 0
  %975 = vmatpush2.bf16.msra.mxu0 %v518
  %976 = vmatprep.mubr.bf16.mxu0 %v812
  %977 = vmatmul.mubr.bf16.gmra.mxu0 %v811
  %v978 = vpop.f32.mrf.mxu0
  %v979 = vadd.f32 %v938, %v978
  %v980 = vpop.f32.mrf.mxu0
  %v981 = vpop.f32.mrf.mxu0
  %v982 = vadd.f32 %v941, %v981
  %v983 = vpop.f32.mrf.mxu0
  %984 = vdwg.mxu0
  %v985 = vadd.f32 %v979, %v982
  %v986 = vrot.slane %v985, 4
  %v987 = vadd.f32 %v985, %v986
  %v988 = vrot.slane %v987, 2
  %v989 = vadd.f32 %v987, %v988
  %v990 = vrot.slane %v989, 1
  %v991 = vadd.f32 %v989, %v990
  %v992 = vadd.f32 %v761, %v991
  %v993 = vmul.f32 %v979, %v979
  %v994 = vmul.f32 %v982, %v982
  %v995 = vadd.f32 %v993, %v994
  %v996 = vrot.slane %v995, 4
  %v997 = vadd.f32 %v995, %v996
  %v998 = vrot.slane %v997, 2
  %v999 = vadd.f32 %v997, %v998
  %v1000 = vrot.slane %v999, 1
  %v1001 = vadd.f32 %v999, %v1000
  %v1002 = vadd.f32 %v771, %v1001
  %s1003 = scalar_lea.vmem %s0, 128
  %v1004 = vld [vmem:[%s1003] sm:$0xff]
  %v1005 = vld [vmem:[%s1003 + $0x8] sm:$0xff]
  %v1006 = vld [vmem:[%s1003 + $0x10] sm:$0xff]
  %v1007 = vld [vmem:[%s1003 + $0x18] sm:$0xff]
  %v1008 = vld [vmem:[%s1003 + $0x20] sm:$0xff]
  %v1009 = vld [vmem:[%s1003 + $0x28] sm:$0xff]
  %v1010 = vld [vmem:[%s1003 + $0x30] sm:$0xff]
  %v1011 = vld [vmem:[%s1003 + $0x38] sm:$0xff]
  %v1020 = vunpack.c.l.b16 %v1004
  %v1021 = vunpack.c.h.b16 %v1004
  %v1022 = vunpack.c.l.b16 %v1005
  %v1023 = vunpack.c.h.b16 %v1005
  %v1024 = vunpack.c.l.b16 %v1006
  %v1025 = vunpack.c.h.b16 %v1006
  %v1026 = vunpack.c.l.b16 %v1007
  %v1027 = vunpack.c.h.b16 %v1007
  %v1028 = vunpack.c.l.b16 %v1008
  %v1029 = vunpack.c.h.b16 %v1008
  %v1030 = vunpack.c.l.b16 %v1009
  %v1031 = vunpack.c.h.b16 %v1009
  %v1032 = vunpack.c.l.b16 %v1010
  %v1033 = vunpack.c.h.b16 %v1010
  %v1034 = vunpack.c.l.b16 %v1011
  %v1035 = vunpack.c.h.b16 %v1011
  %v1036 = vpack.c.b16 %v1028, %v1020
  %v1037 = vpack.c.b16 %v1029, %v1021
  %v1038 = vpack.c.b16 %v1030, %v1022
  %v1039 = vpack.c.b16 %v1031, %v1023
  %v1040 = vpack.c.b16 %v1032, %v1024
  %v1041 = vpack.c.b16 %v1033, %v1025
  %v1042 = vpack.c.b16 %v1034, %v1026
  %v1043 = vpack.c.b16 %v1035, %v1027
  %1052 = vmatprep.subr.bf16.mxu0 0
  %1053 = vmatpush1.bf16.msra.mxu0 %v469
  %1054 = vmatprep.subr.bf16.mxu0 0
  %1055 = vmatpush1.bf16.msra.mxu0 %v468
  %1056 = vmatprep.subr.bf16.mxu0 0
  %1057 = vmatpush1.bf16.msra.mxu0 %v467
  %1058 = vmatprep.subr.bf16.mxu0 0
  %1059 = vmatpush1.bf16.msra.mxu0 %v466
  %1060 = vmatprep.subr.bf16.mxu0 0
  %1061 = vmatpush1.bf16.msra.mxu0 %v465
  %1062 = vmatprep.subr.bf16.mxu0 0
  %1063 = vmatpush1.bf16.msra.mxu0 %v464
  %1064 = vmatprep.subr.bf16.mxu0 0
  %1065 = vmatpush1.bf16.msra.mxu0 %v463
  %1066 = vmatprep.subr.bf16.mxu0 0
  %1067 = vmatpush1.bf16.msra.mxu0 %v462
  %1068 = vmatprep.subr.bf16.mxu0 0
  %1069 = vmatpush2.bf16.msra.mxu0 %v477
  %1070 = vmatprep.subr.bf16.mxu0 0
  %1071 = vmatpush2.bf16.msra.mxu0 %v476
  %1072 = vmatprep.subr.bf16.mxu0 0
  %1073 = vmatpush2.bf16.msra.mxu0 %v475
  %1074 = vmatprep.subr.bf16.mxu0 0
  %1075 = vmatpush2.bf16.msra.mxu0 %v474
  %1076 = vmatprep.subr.bf16.mxu0 0
  %1077 = vmatpush2.bf16.msra.mxu0 %v473
  %1078 = vmatprep.subr.bf16.mxu0 0
  %1079 = vmatpush2.bf16.msra.mxu0 %v472
  %1080 = vmatprep.subr.bf16.mxu0 0
  %1081 = vmatpush2.bf16.msra.mxu0 %v471
  %1082 = vmatprep.subr.bf16.mxu0 0
  %1083 = vmatpush2.bf16.msra.mxu0 %v470
  %1084 = vmatprep.mubr.bf16.mxu0 %v1037
  %1085 = vmatmul.mubr.bf16.gmra.mxu0 %v1036
  %v1086 = vpop.f32.mrf.mxu0
  %v1087 = vadd.f32 0.0, %v1086
  %v1088 = vpop.f32.mrf.mxu0
  %v1089 = vpop.f32.mrf.mxu0
  %v1090 = vadd.f32 0.0, %v1089
  %v1091 = vpop.f32.mrf.mxu0
  %1092 = vdwg.mxu0
  %1093 = vmatprep.subr.bf16.mxu0 0
  %1094 = vmatpush1.bf16.msra.mxu0 %v485
  %1095 = vmatprep.subr.bf16.mxu0 0
  %1096 = vmatpush1.bf16.msra.mxu0 %v484
  %1097 = vmatprep.subr.bf16.mxu0 0
  %1098 = vmatpush1.bf16.msra.mxu0 %v483
  %1099 = vmatprep.subr.bf16.mxu0 0
  %1100 = vmatpush1.bf16.msra.mxu0 %v482
  %1101 = vmatprep.subr.bf16.mxu0 0
  %1102 = vmatpush1.bf16.msra.mxu0 %v481
  %1103 = vmatprep.subr.bf16.mxu0 0
  %1104 = vmatpush1.bf16.msra.mxu0 %v480
  %1105 = vmatprep.subr.bf16.mxu0 0
  %1106 = vmatpush1.bf16.msra.mxu0 %v479
  %1107 = vmatprep.subr.bf16.mxu0 0
  %1108 = vmatpush1.bf16.msra.mxu0 %v478
  %1109 = vmatprep.subr.bf16.mxu0 0
  %1110 = vmatpush2.bf16.msra.mxu0 %v493
  %1111 = vmatprep.subr.bf16.mxu0 0
  %1112 = vmatpush2.bf16.msra.mxu0 %v492
  %1113 = vmatprep.subr.bf16.mxu0 0
  %1114 = vmatpush2.bf16.msra.mxu0 %v491
  %1115 = vmatprep.subr.bf16.mxu0 0
  %1116 = vmatpush2.bf16.msra.mxu0 %v490
  %1117 = vmatprep.subr.bf16.mxu0 0
  %1118 = vmatpush2.bf16.msra.mxu0 %v489
  %1119 = vmatprep.subr.bf16.mxu0 0
  %1120 = vmatpush2.bf16.msra.mxu0 %v488
  %1121 = vmatprep.subr.bf16.mxu0 0
  %1122 = vmatpush2.bf16.msra.mxu0 %v487
  %1123 = vmatprep.subr.bf16.mxu0 0
  %1124 = vmatpush2.bf16.msra.mxu0 %v486
  %1125 = vmatprep.mubr.bf16.mxu0 %v1039
  %1126 = vmatmul.mubr.bf16.gmra.mxu0 %v1038
  %v1127 = vpop.f32.mrf.mxu0
  %v1128 = vadd.f32 %v1087, %v1127
  %v1129 = vpop.f32.mrf.mxu0
  %v1130 = vpop.f32.mrf.mxu0
  %v1131 = vadd.f32 %v1090, %v1130
  %v1132 = vpop.f32.mrf.mxu0
  %1133 = vdwg.mxu0
  %1134 = vmatprep.subr.bf16.mxu0 0
  %1135 = vmatpush1.bf16.msra.mxu0 %v501
  %1136 = vmatprep.subr.bf16.mxu0 0
  %1137 = vmatpush1.bf16.msra.mxu0 %v500
  %1138 = vmatprep.subr.bf16.mxu0 0
  %1139 = vmatpush1.bf16.msra.mxu0 %v499
  %1140 = vmatprep.subr.bf16.mxu0 0
  %1141 = vmatpush1.bf16.msra.mxu0 %v498
  %1142 = vmatprep.subr.bf16.mxu0 0
  %1143 = vmatpush1.bf16.msra.mxu0 %v497
  %1144 = vmatprep.subr.bf16.mxu0 0
  %1145 = vmatpush1.bf16.msra.mxu0 %v496
  %1146 = vmatprep.subr.bf16.mxu0 0
  %1147 = vmatpush1.bf16.msra.mxu0 %v495
  %1148 = vmatprep.subr.bf16.mxu0 0
  %1149 = vmatpush1.bf16.msra.mxu0 %v494
  %1150 = vmatprep.subr.bf16.mxu0 0
  %1151 = vmatpush2.bf16.msra.mxu0 %v509
  %1152 = vmatprep.subr.bf16.mxu0 0
  %1153 = vmatpush2.bf16.msra.mxu0 %v508
  %1154 = vmatprep.subr.bf16.mxu0 0
  %1155 = vmatpush2.bf16.msra.mxu0 %v507
  %1156 = vmatprep.subr.bf16.mxu0 0
  %1157 = vmatpush2.bf16.msra.mxu0 %v506
  %1158 = vmatprep.subr.bf16.mxu0 0
  %1159 = vmatpush2.bf16.msra.mxu0 %v505
  %1160 = vmatprep.subr.bf16.mxu0 0
  %1161 = vmatpush2.bf16.msra.mxu0 %v504
  %1162 = vmatprep.subr.bf16.mxu0 0
  %1163 = vmatpush2.bf16.msra.mxu0 %v503
  %1164 = vmatprep.subr.bf16.mxu0 0
  %1165 = vmatpush2.bf16.msra.mxu0 %v502
  %1166 = vmatprep.mubr.bf16.mxu0 %v1041
  %1167 = vmatmul.mubr.bf16.gmra.mxu0 %v1040
  %v1168 = vpop.f32.mrf.mxu0
  %v1169 = vadd.f32 %v1128, %v1168
  %v1170 = vpop.f32.mrf.mxu0
  %v1171 = vpop.f32.mrf.mxu0
  %v1172 = vadd.f32 %v1131, %v1171
  %v1173 = vpop.f32.mrf.mxu0
  %1174 = vdwg.mxu0
  %1175 = vmatprep.subr.bf16.mxu0 0
  %1176 = vmatpush1.bf16.msra.mxu0 %v517
  %1177 = vmatprep.subr.bf16.mxu0 0
  %1178 = vmatpush1.bf16.msra.mxu0 %v516
  %1179 = vmatprep.subr.bf16.mxu0 0
  %1180 = vmatpush1.bf16.msra.mxu0 %v515
  %1181 = vmatprep.subr.bf16.mxu0 0
  %1182 = vmatpush1.bf16.msra.mxu0 %v514
  %1183 = vmatprep.subr.bf16.mxu0 0
  %1184 = vmatpush1.bf16.msra.mxu0 %v513
  %1185 = vmatprep.subr.bf16.mxu0 0
  %1186 = vmatpush1.bf16.msra.mxu0 %v512
  %1187 = vmatprep.subr.bf16.mxu0 0
  %1188 = vmatpush1.bf16.msra.mxu0 %v511
  %1189 = vmatprep.subr.bf16.mxu0 0
  %1190 = vmatpush1.bf16.msra.mxu0 %v510
  %1191 = vmatprep.subr.bf16.mxu0 0
  %1192 = vmatpush2.bf16.msra.mxu0 %v525
  %1193 = vmatprep.subr.bf16.mxu0 0
  %1194 = vmatpush2.bf16.msra.mxu0 %v524
  %1195 = vmatprep.subr.bf16.mxu0 0
  %1196 = vmatpush2.bf16.msra.mxu0 %v523
  %1197 = vmatprep.subr.bf16.mxu0 0
  %1198 = vmatpush2.bf16.msra.mxu0 %v522
  %1199 = vmatprep.subr.bf16.mxu0 0
  %1200 = vmatpush2.bf16.msra.mxu0 %v521
  %1201 = vmatprep.subr.bf16.mxu0 0
  %1202 = vmatpush2.bf16.msra.mxu0 %v520
  %1203 = vmatprep.subr.bf16.mxu0 0
  %1204 = vmatpush2.bf16.msra.mxu0 %v519
  %1205 = vmatprep.subr.bf16.mxu0 0
  %1206 = vmatpush2.bf16.msra.mxu0 %v518
  %1207 = vmatprep.mubr.bf16.mxu0 %v1043
  %1208 = vmatmul.mubr.bf16.gmra.mxu0 %v1042
  %v1209 = vpop.f32.mrf.mxu0
  %v1210 = vadd.f32 %v1169, %v1209
  %v1211 = vpop.f32.mrf.mxu0
  %v1212 = vpop.f32.mrf.mxu0
  %v1213 = vadd.f32 %v1172, %v1212
  %v1214 = vpop.f32.mrf.mxu0
  %1215 = vdwg.mxu0
  %v1216 = vadd.f32 %v1210, %v1213
  %v1217 = vrot.slane %v1216, 4
  %v1218 = vadd.f32 %v1216, %v1217
  %v1219 = vrot.slane %v1218, 2
  %v1220 = vadd.f32 %v1218, %v1219
  %v1221 = vrot.slane %v1220, 1
  %v1222 = vadd.f32 %v1220, %v1221
  %v1223 = vadd.f32 %v992, %v1222
  %v1224 = vmul.f32 %v1210, %v1210
  %v1225 = vmul.f32 %v1213, %v1213
  %v1226 = vadd.f32 %v1224, %v1225
  %v1227 = vrot.slane %v1226, 4
  %v1228 = vadd.f32 %v1226, %v1227
  %v1229 = vrot.slane %v1228, 2
  %v1230 = vadd.f32 %v1228, %v1229
  %v1231 = vrot.slane %v1230, 1
  %v1232 = vadd.f32 %v1230, %v1231
  %v1233 = vadd.f32 %v1002, %v1232
  %s1234 = scalar_lea.vmem %s0, 192
  %v1235 = vld [vmem:[%s1234] sm:$0xff]
  %v1236 = vld [vmem:[%s1234 + $0x8] sm:$0xff]
  %v1237 = vld [vmem:[%s1234 + $0x10] sm:$0xff]
  %v1238 = vld [vmem:[%s1234 + $0x18] sm:$0xff]
  %v1239 = vld [vmem:[%s1234 + $0x20] sm:$0xff]
  %v1240 = vld [vmem:[%s1234 + $0x28] sm:$0xff]
  %v1241 = vld [vmem:[%s1234 + $0x30] sm:$0xff]
  %v1242 = vld [vmem:[%s1234 + $0x38] sm:$0xff]
  %v1251 = vunpack.c.l.b16 %v1235
  %v1252 = vunpack.c.h.b16 %v1235
  %v1253 = vunpack.c.l.b16 %v1236
  %v1254 = vunpack.c.h.b16 %v1236
  %v1255 = vunpack.c.l.b16 %v1237
  %v1256 = vunpack.c.h.b16 %v1237
  %v1257 = vunpack.c.l.b16 %v1238
  %v1258 = vunpack.c.h.b16 %v1238
  %v1259 = vunpack.c.l.b16 %v1239
  %v1260 = vunpack.c.h.b16 %v1239
  %v1261 = vunpack.c.l.b16 %v1240
  %v1262 = vunpack.c.h.b16 %v1240
  %v1263 = vunpack.c.l.b16 %v1241
  %v1264 = vunpack.c.h.b16 %v1241
  %v1265 = vunpack.c.l.b16 %v1242
  %v1266 = vunpack.c.h.b16 %v1242
  %v1267 = vpack.c.b16 %v1259, %v1251
  %v1268 = vpack.c.b16 %v1260, %v1252
  %v1269 = vpack.c.b16 %v1261, %v1253
  %v1270 = vpack.c.b16 %v1262, %v1254
  %v1271 = vpack.c.b16 %v1263, %v1255
  %v1272 = vpack.c.b16 %v1264, %v1256
  %v1273 = vpack.c.b16 %v1265, %v1257
  %v1274 = vpack.c.b16 %v1266, %v1258
  %1283 = vmatprep.subr.bf16.mxu0 0
  %1284 = vmatpush1.bf16.msra.mxu0 %v469
  %1285 = vmatprep.subr.bf16.mxu0 0
  %1286 = vmatpush1.bf16.msra.mxu0 %v468
  %1287 = vmatprep.subr.bf16.mxu0 0
  %1288 = vmatpush1.bf16.msra.mxu0 %v467
  %1289 = vmatprep.subr.bf16.mxu0 0
  %1290 = vmatpush1.bf16.msra.mxu0 %v466
  %1291 = vmatprep.subr.bf16.mxu0 0
  %1292 = vmatpush1.bf16.msra.mxu0 %v465
  %1293 = vmatprep.subr.bf16.mxu0 0
  %1294 = vmatpush1.bf16.msra.mxu0 %v464
  %1295 = vmatprep.subr.bf16.mxu0 0
  %1296 = vmatpush1.bf16.msra.mxu0 %v463
  %1297 = vmatprep.subr.bf16.mxu0 0
  %1298 = vmatpush1.bf16.msra.mxu0 %v462
  %1299 = vmatprep.subr.bf16.mxu0 0
  %1300 = vmatpush2.bf16.msra.mxu0 %v477
  %1301 = vmatprep.subr.bf16.mxu0 0
  %1302 = vmatpush2.bf16.msra.mxu0 %v476
  %1303 = vmatprep.subr.bf16.mxu0 0
  %1304 = vmatpush2.bf16.msra.mxu0 %v475
  %1305 = vmatprep.subr.bf16.mxu0 0
  %1306 = vmatpush2.bf16.msra.mxu0 %v474
  %1307 = vmatprep.subr.bf16.mxu0 0
  %1308 = vmatpush2.bf16.msra.mxu0 %v473
  %1309 = vmatprep.subr.bf16.mxu0 0
  %1310 = vmatpush2.bf16.msra.mxu0 %v472
  %1311 = vmatprep.subr.bf16.mxu0 0
  %1312 = vmatpush2.bf16.msra.mxu0 %v471
  %1313 = vmatprep.subr.bf16.mxu0 0
  %1314 = vmatpush2.bf16.msra.mxu0 %v470
  %1315 = vmatprep.mubr.bf16.mxu0 %v1268
  %1316 = vmatmul.mubr.bf16.gmra.mxu0 %v1267
  %v1317 = vpop.f32.mrf.mxu0
  %v1318 = vadd.f32 0.0, %v1317
  %v1319 = vpop.f32.mrf.mxu0
  %v1320 = vpop.f32.mrf.mxu0
  %v1321 = vadd.f32 0.0, %v1320
  %v1322 = vpop.f32.mrf.mxu0
  %1323 = vdwg.mxu0
  %1324 = vmatprep.subr.bf16.mxu0 0
  %1325 = vmatpush1.bf16.msra.mxu0 %v485
  %1326 = vmatprep.subr.bf16.mxu0 0
  %1327 = vmatpush1.bf16.msra.mxu0 %v484
  %1328 = vmatprep.subr.bf16.mxu0 0
  %1329 = vmatpush1.bf16.msra.mxu0 %v483
  %1330 = vmatprep.subr.bf16.mxu0 0
  %1331 = vmatpush1.bf16.msra.mxu0 %v482
  %1332 = vmatprep.subr.bf16.mxu0 0
  %1333 = vmatpush1.bf16.msra.mxu0 %v481
  %1334 = vmatprep.subr.bf16.mxu0 0
  %1335 = vmatpush1.bf16.msra.mxu0 %v480
  %1336 = vmatprep.subr.bf16.mxu0 0
  %1337 = vmatpush1.bf16.msra.mxu0 %v479
  %1338 = vmatprep.subr.bf16.mxu0 0
  %1339 = vmatpush1.bf16.msra.mxu0 %v478
  %1340 = vmatprep.subr.bf16.mxu0 0
  %1341 = vmatpush2.bf16.msra.mxu0 %v493
  %1342 = vmatprep.subr.bf16.mxu0 0
  %1343 = vmatpush2.bf16.msra.mxu0 %v492
  %1344 = vmatprep.subr.bf16.mxu0 0
  %1345 = vmatpush2.bf16.msra.mxu0 %v491
  %1346 = vmatprep.subr.bf16.mxu0 0
  %1347 = vmatpush2.bf16.msra.mxu0 %v490
  %1348 = vmatprep.subr.bf16.mxu0 0
  %1349 = vmatpush2.bf16.msra.mxu0 %v489
  %1350 = vmatprep.subr.bf16.mxu0 0
  %1351 = vmatpush2.bf16.msra.mxu0 %v488
  %1352 = vmatprep.subr.bf16.mxu0 0
  %1353 = vmatpush2.bf16.msra.mxu0 %v487
  %1354 = vmatprep.subr.bf16.mxu0 0
  %1355 = vmatpush2.bf16.msra.mxu0 %v486
  %1356 = vmatprep.mubr.bf16.mxu0 %v1270
  %1357 = vmatmul.mubr.bf16.gmra.mxu0 %v1269
  %v1358 = vpop.f32.mrf.mxu0
  %v1359 = vadd.f32 %v1318, %v1358
  %v1360 = vpop.f32.mrf.mxu0
  %v1361 = vpop.f32.mrf.mxu0
  %v1362 = vadd.f32 %v1321, %v1361
  %v1363 = vpop.f32.mrf.mxu0
  %1364 = vdwg.mxu0
  %1365 = vmatprep.subr.bf16.mxu0 0
  %1366 = vmatpush1.bf16.msra.mxu0 %v501
  %1367 = vmatprep.subr.bf16.mxu0 0
  %1368 = vmatpush1.bf16.msra.mxu0 %v500
  %1369 = vmatprep.subr.bf16.mxu0 0
  %1370 = vmatpush1.bf16.msra.mxu0 %v499
  %1371 = vmatprep.subr.bf16.mxu0 0
  %1372 = vmatpush1.bf16.msra.mxu0 %v498
  %1373 = vmatprep.subr.bf16.mxu0 0
  %1374 = vmatpush1.bf16.msra.mxu0 %v497
  %1375 = vmatprep.subr.bf16.mxu0 0
  %1376 = vmatpush1.bf16.msra.mxu0 %v496
  %1377 = vmatprep.subr.bf16.mxu0 0
  %1378 = vmatpush1.bf16.msra.mxu0 %v495
  %1379 = vmatprep.subr.bf16.mxu0 0
  %1380 = vmatpush1.bf16.msra.mxu0 %v494
  %1381 = vmatprep.subr.bf16.mxu0 0
  %1382 = vmatpush2.bf16.msra.mxu0 %v509
  %1383 = vmatprep.subr.bf16.mxu0 0
  %1384 = vmatpush2.bf16.msra.mxu0 %v508
  %1385 = vmatprep.subr.bf16.mxu0 0
  %1386 = vmatpush2.bf16.msra.mxu0 %v507
  %1387 = vmatprep.subr.bf16.mxu0 0
  %1388 = vmatpush2.bf16.msra.mxu0 %v506
  %1389 = vmatprep.subr.bf16.mxu0 0
  %1390 = vmatpush2.bf16.msra.mxu0 %v505
  %1391 = vmatprep.subr.bf16.mxu0 0
  %1392 = vmatpush2.bf16.msra.mxu0 %v504
  %1393 = vmatprep.subr.bf16.mxu0 0
  %1394 = vmatpush2.bf16.msra.mxu0 %v503
  %1395 = vmatprep.subr.bf16.mxu0 0
  %1396 = vmatpush2.bf16.msra.mxu0 %v502
  %1397 = vmatprep.mubr.bf16.mxu0 %v1272
  %1398 = vmatmul.mubr.bf16.gmra.mxu0 %v1271
  %v1399 = vpop.f32.mrf.mxu0
  %v1400 = vadd.f32 %v1359, %v1399
  %v1401 = vpop.f32.mrf.mxu0
  %v1402 = vpop.f32.mrf.mxu0
  %v1403 = vadd.f32 %v1362, %v1402
  %v1404 = vpop.f32.mrf.mxu0
  %1405 = vdwg.mxu0
  %1406 = vmatprep.subr.bf16.mxu0 0
  %1407 = vmatpush1.bf16.msra.mxu0 %v517
  %1408 = vmatprep.subr.bf16.mxu0 0
  %1409 = vmatpush1.bf16.msra.mxu0 %v516
  %1410 = vmatprep.subr.bf16.mxu0 0
  %1411 = vmatpush1.bf16.msra.mxu0 %v515
  %1412 = vmatprep.subr.bf16.mxu0 0
  %1413 = vmatpush1.bf16.msra.mxu0 %v514
  %1414 = vmatprep.subr.bf16.mxu0 0
  %1415 = vmatpush1.bf16.msra.mxu0 %v513
  %1416 = vmatprep.subr.bf16.mxu0 0
  %1417 = vmatpush1.bf16.msra.mxu0 %v512
  %1418 = vmatprep.subr.bf16.mxu0 0
  %1419 = vmatpush1.bf16.msra.mxu0 %v511
  %1420 = vmatprep.subr.bf16.mxu0 0
  %1421 = vmatpush1.bf16.msra.mxu0 %v510
  %1422 = vmatprep.subr.bf16.mxu0 0
  %1423 = vmatpush2.bf16.msra.mxu0 %v525
  %1424 = vmatprep.subr.bf16.mxu0 0
  %1425 = vmatpush2.bf16.msra.mxu0 %v524
  %1426 = vmatprep.subr.bf16.mxu0 0
  %1427 = vmatpush2.bf16.msra.mxu0 %v523
  %1428 = vmatprep.subr.bf16.mxu0 0
  %1429 = vmatpush2.bf16.msra.mxu0 %v522
  %1430 = vmatprep.subr.bf16.mxu0 0
  %1431 = vmatpush2.bf16.msra.mxu0 %v521
  %1432 = vmatprep.subr.bf16.mxu0 0
  %1433 = vmatpush2.bf16.msra.mxu0 %v520
  %1434 = vmatprep.subr.bf16.mxu0 0
  %1435 = vmatpush2.bf16.msra.mxu0 %v519
  %1436 = vmatprep.subr.bf16.mxu0 0
  %1437 = vmatpush2.bf16.msra.mxu0 %v518
  %1438 = vmatprep.mubr.bf16.mxu0 %v1274
  %1439 = vmatmul.mubr.bf16.gmra.mxu0 %v1273
  %v1440 = vpop.f32.mrf.mxu0
  %v1441 = vadd.f32 %v1400, %v1440
  %v1442 = vpop.f32.mrf.mxu0
  %v1443 = vpop.f32.mrf.mxu0
  %v1444 = vadd.f32 %v1403, %v1443
  %v1445 = vpop.f32.mrf.mxu0
  %1446 = vdwg.mxu0
  %v1447 = vadd.f32 %v1441, %v1444
  %v1448 = vrot.slane %v1447, 4
  %v1449 = vadd.f32 %v1447, %v1448
  %v1450 = vrot.slane %v1449, 2
  %v1451 = vadd.f32 %v1449, %v1450
  %v1452 = vrot.slane %v1451, 1
  %v1453 = vadd.f32 %v1451, %v1452
  %v1454 = vadd.f32 %v1223, %v1453
  %v1455 = vmul.f32 %v1441, %v1441
  %v1456 = vmul.f32 %v1444, %v1444
  %v1457 = vadd.f32 %v1455, %v1456
  %v1458 = vrot.slane %v1457, 4
  %v1459 = vadd.f32 %v1457, %v1458
  %v1460 = vrot.slane %v1459, 2
  %v1461 = vadd.f32 %v1459, %v1460
  %v1462 = vrot.slane %v1461, 1
  %v1463 = vadd.f32 %v1461, %v1462
  %v1464 = vadd.f32 %v1233, %v1463
  %s1465 = scalar_lea.vmem %s0, 256
  %v1466 = vld [vmem:[%s1465] sm:$0xff]
  %v1467 = vld [vmem:[%s1465 + $0x8] sm:$0xff]
  %v1468 = vld [vmem:[%s1465 + $0x10] sm:$0xff]
  %v1469 = vld [vmem:[%s1465 + $0x18] sm:$0xff]
  %v1470 = vld [vmem:[%s1465 + $0x20] sm:$0xff]
  %v1471 = vld [vmem:[%s1465 + $0x28] sm:$0xff]
  %v1472 = vld [vmem:[%s1465 + $0x30] sm:$0xff]
  %v1473 = vld [vmem:[%s1465 + $0x38] sm:$0xff]
  %v1482 = vunpack.c.l.b16 %v1466
  %v1483 = vunpack.c.h.b16 %v1466
  %v1484 = vunpack.c.l.b16 %v1467
  %v1485 = vunpack.c.h.b16 %v1467
  %v1486 = vunpack.c.l.b16 %v1468
  %v1487 = vunpack.c.h.b16 %v1468
  %v1488 = vunpack.c.l.b16 %v1469
  %v1489 = vunpack.c.h.b16 %v1469
  %v1490 = vunpack.c.l.b16 %v1470
  %v1491 = vunpack.c.h.b16 %v1470
  %v1492 = vunpack.c.l.b16 %v1471
  %v1493 = vunpack.c.h.b16 %v1471
  %v1494 = vunpack.c.l.b16 %v1472
  %v1495 = vunpack.c.h.b16 %v1472
  %v1496 = vunpack.c.l.b16 %v1473
  %v1497 = vunpack.c.h.b16 %v1473
  %v1498 = vpack.c.b16 %v1490, %v1482
  %v1499 = vpack.c.b16 %v1491, %v1483
  %v1500 = vpack.c.b16 %v1492, %v1484
  %v1501 = vpack.c.b16 %v1493, %v1485
  %v1502 = vpack.c.b16 %v1494, %v1486
  %v1503 = vpack.c.b16 %v1495, %v1487
  %v1504 = vpack.c.b16 %v1496, %v1488
  %v1505 = vpack.c.b16 %v1497, %v1489
  %1514 = vmatprep.subr.bf16.mxu0 0
  %1515 = vmatpush1.bf16.msra.mxu0 %v469
  %1516 = vmatprep.subr.bf16.mxu0 0
  %1517 = vmatpush1.bf16.msra.mxu0 %v468
  %1518 = vmatprep.subr.bf16.mxu0 0
  %1519 = vmatpush1.bf16.msra.mxu0 %v467
  %1520 = vmatprep.subr.bf16.mxu0 0
  %1521 = vmatpush1.bf16.msra.mxu0 %v466
  %1522 = vmatprep.subr.bf16.mxu0 0
  %1523 = vmatpush1.bf16.msra.mxu0 %v465
  %1524 = vmatprep.subr.bf16.mxu0 0
  %1525 = vmatpush1.bf16.msra.mxu0 %v464
  %1526 = vmatprep.subr.bf16.mxu0 0
  %1527 = vmatpush1.bf16.msra.mxu0 %v463
  %1528 = vmatprep.subr.bf16.mxu0 0
  %1529 = vmatpush1.bf16.msra.mxu0 %v462
  %1530 = vmatprep.subr.bf16.mxu0 0
  %1531 = vmatpush2.bf16.msra.mxu0 %v477
  %1532 = vmatprep.subr.bf16.mxu0 0
  %1533 = vmatpush2.bf16.msra.mxu0 %v476
  %1534 = vmatprep.subr.bf16.mxu0 0
  %1535 = vmatpush2.bf16.msra.mxu0 %v475
  %1536 = vmatprep.subr.bf16.mxu0 0
  %1537 = vmatpush2.bf16.msra.mxu0 %v474
  %1538 = vmatprep.subr.bf16.mxu0 0
  %1539 = vmatpush2.bf16.msra.mxu0 %v473
  %1540 = vmatprep.subr.bf16.mxu0 0
  %1541 = vmatpush2.bf16.msra.mxu0 %v472
  %1542 = vmatprep.subr.bf16.mxu0 0
  %1543 = vmatpush2.bf16.msra.mxu0 %v471
  %1544 = vmatprep.subr.bf16.mxu0 0
  %1545 = vmatpush2.bf16.msra.mxu0 %v470
  %1546 = vmatprep.mubr.bf16.mxu0 %v1499
  %1547 = vmatmul.mubr.bf16.gmra.mxu0 %v1498
  %v1548 = vpop.f32.mrf.mxu0
  %v1549 = vadd.f32 0.0, %v1548
  %v1550 = vpop.f32.mrf.mxu0
  %v1551 = vpop.f32.mrf.mxu0
  %v1552 = vadd.f32 0.0, %v1551
  %v1553 = vpop.f32.mrf.mxu0
  %1554 = vdwg.mxu0
  %1555 = vmatprep.subr.bf16.mxu0 0
  %1556 = vmatpush1.bf16.msra.mxu0 %v485
  %1557 = vmatprep.subr.bf16.mxu0 0
  %1558 = vmatpush1.bf16.msra.mxu0 %v484
  %1559 = vmatprep.subr.bf16.mxu0 0
  %1560 = vmatpush1.bf16.msra.mxu0 %v483
  %1561 = vmatprep.subr.bf16.mxu0 0
  %1562 = vmatpush1.bf16.msra.mxu0 %v482
  %1563 = vmatprep.subr.bf16.mxu0 0
  %1564 = vmatpush1.bf16.msra.mxu0 %v481
  %1565 = vmatprep.subr.bf16.mxu0 0
  %1566 = vmatpush1.bf16.msra.mxu0 %v480
  %1567 = vmatprep.subr.bf16.mxu0 0
  %1568 = vmatpush1.bf16.msra.mxu0 %v479
  %1569 = vmatprep.subr.bf16.mxu0 0
  %1570 = vmatpush1.bf16.msra.mxu0 %v478
  %1571 = vmatprep.subr.bf16.mxu0 0
  %1572 = vmatpush2.bf16.msra.mxu0 %v493
  %1573 = vmatprep.subr.bf16.mxu0 0
  %1574 = vmatpush2.bf16.msra.mxu0 %v492
  %1575 = vmatprep.subr.bf16.mxu0 0
  %1576 = vmatpush2.bf16.msra.mxu0 %v491
  %1577 = vmatprep.subr.bf16.mxu0 0
  %1578 = vmatpush2.bf16.msra.mxu0 %v490
  %1579 = vmatprep.subr.bf16.mxu0 0
  %1580 = vmatpush2.bf16.msra.mxu0 %v489
  %1581 = vmatprep.subr.bf16.mxu0 0
  %1582 = vmatpush2.bf16.msra.mxu0 %v488
  %1583 = vmatprep.subr.bf16.mxu0 0
  %1584 = vmatpush2.bf16.msra.mxu0 %v487
  %1585 = vmatprep.subr.bf16.mxu0 0
  %1586 = vmatpush2.bf16.msra.mxu0 %v486
  %1587 = vmatprep.mubr.bf16.mxu0 %v1501
  %1588 = vmatmul.mubr.bf16.gmra.mxu0 %v1500
  %v1589 = vpop.f32.mrf.mxu0
  %v1590 = vadd.f32 %v1549, %v1589
  %v1591 = vpop.f32.mrf.mxu0
  %v1592 = vpop.f32.mrf.mxu0
  %v1593 = vadd.f32 %v1552, %v1592
  %v1594 = vpop.f32.mrf.mxu0
  %1595 = vdwg.mxu0
  %1596 = vmatprep.subr.bf16.mxu0 0
  %1597 = vmatpush1.bf16.msra.mxu0 %v501
  %1598 = vmatprep.subr.bf16.mxu0 0
  %1599 = vmatpush1.bf16.msra.mxu0 %v500
  %1600 = vmatprep.subr.bf16.mxu0 0
  %1601 = vmatpush1.bf16.msra.mxu0 %v499
  %1602 = vmatprep.subr.bf16.mxu0 0
  %1603 = vmatpush1.bf16.msra.mxu0 %v498
  %1604 = vmatprep.subr.bf16.mxu0 0
  %1605 = vmatpush1.bf16.msra.mxu0 %v497
  %1606 = vmatprep.subr.bf16.mxu0 0
  %1607 = vmatpush1.bf16.msra.mxu0 %v496
  %1608 = vmatprep.subr.bf16.mxu0 0
  %1609 = vmatpush1.bf16.msra.mxu0 %v495
  %1610 = vmatprep.subr.bf16.mxu0 0
  %1611 = vmatpush1.bf16.msra.mxu0 %v494
  %1612 = vmatprep.subr.bf16.mxu0 0
  %1613 = vmatpush2.bf16.msra.mxu0 %v509
  %1614 = vmatprep.subr.bf16.mxu0 0
  %1615 = vmatpush2.bf16.msra.mxu0 %v508
  %1616 = vmatprep.subr.bf16.mxu0 0
  %1617 = vmatpush2.bf16.msra.mxu0 %v507
  %1618 = vmatprep.subr.bf16.mxu0 0
  %1619 = vmatpush2.bf16.msra.mxu0 %v506
  %1620 = vmatprep.subr.bf16.mxu0 0
  %1621 = vmatpush2.bf16.msra.mxu0 %v505
  %1622 = vmatprep.subr.bf16.mxu0 0
  %1623 = vmatpush2.bf16.msra.mxu0 %v504
  %1624 = vmatprep.subr.bf16.mxu0 0
  %1625 = vmatpush2.bf16.msra.mxu0 %v503
  %1626 = vmatprep.subr.bf16.mxu0 0
  %1627 = vmatpush2.bf16.msra.mxu0 %v502
  %1628 = vmatprep.mubr.bf16.mxu0 %v1503
  %1629 = vmatmul.mubr.bf16.gmra.mxu0 %v1502
  %v1630 = vpop.f32.mrf.mxu0
  %v1631 = vadd.f32 %v1590, %v1630
  %v1632 = vpop.f32.mrf.mxu0
  %v1633 = vpop.f32.mrf.mxu0
  %v1634 = vadd.f32 %v1593, %v1633
  %v1635 = vpop.f32.mrf.mxu0
  %1636 = vdwg.mxu0
  %1637 = vmatprep.subr.bf16.mxu0 0
  %1638 = vmatpush1.bf16.msra.mxu0 %v517
  %1639 = vmatprep.subr.bf16.mxu0 0
  %1640 = vmatpush1.bf16.msra.mxu0 %v516
  %1641 = vmatprep.subr.bf16.mxu0 0
  %1642 = vmatpush1.bf16.msra.mxu0 %v515
  %1643 = vmatprep.subr.bf16.mxu0 0
  %1644 = vmatpush1.bf16.msra.mxu0 %v514
  %1645 = vmatprep.subr.bf16.mxu0 0
  %1646 = vmatpush1.bf16.msra.mxu0 %v513
  %1647 = vmatprep.subr.bf16.mxu0 0
  %1648 = vmatpush1.bf16.msra.mxu0 %v512
  %1649 = vmatprep.subr.bf16.mxu0 0
  %1650 = vmatpush1.bf16.msra.mxu0 %v511
  %1651 = vmatprep.subr.bf16.mxu0 0
  %1652 = vmatpush1.bf16.msra.mxu0 %v510
  %1653 = vmatprep.subr.bf16.mxu0 0
  %1654 = vmatpush2.bf16.msra.mxu0 %v525
  %1655 = vmatprep.subr.bf16.mxu0 0
  %1656 = vmatpush2.bf16.msra.mxu0 %v524
  %1657 = vmatprep.subr.bf16.mxu0 0
  %1658 = vmatpush2.bf16.msra.mxu0 %v523
  %1659 = vmatprep.subr.bf16.mxu0 0
  %1660 = vmatpush2.bf16.msra.mxu0 %v522
  %1661 = vmatprep.subr.bf16.mxu0 0
  %1662 = vmatpush2.bf16.msra.mxu0 %v521
  %1663 = vmatprep.subr.bf16.mxu0 0
  %1664 = vmatpush2.bf16.msra.mxu0 %v520
  %1665 = vmatprep.subr.bf16.mxu0 0
  %1666 = vmatpush2.bf16.msra.mxu0 %v519
  %1667 = vmatprep.subr.bf16.mxu0 0
  %1668 = vmatpush2.bf16.msra.mxu0 %v518
  %1669 = vmatprep.mubr.bf16.mxu0 %v1505
  %1670 = vmatmul.mubr.bf16.gmra.mxu0 %v1504
  %v1671 = vpop.f32.mrf.mxu0
  %v1672 = vadd.f32 %v1631, %v1671
  %v1673 = vpop.f32.mrf.mxu0
  %v1674 = vpop.f32.mrf.mxu0
  %v1675 = vadd.f32 %v1634, %v1674
  %v1676 = vpop.f32.mrf.mxu0
  %1677 = vdwg.mxu0
  %v1678 = vadd.f32 %v1672, %v1675
  %v1679 = vrot.slane %v1678, 4
  %v1680 = vadd.f32 %v1678, %v1679
  %v1681 = vrot.slane %v1680, 2
  %v1682 = vadd.f32 %v1680, %v1681
  %v1683 = vrot.slane %v1682, 1
  %v1684 = vadd.f32 %v1682, %v1683
  %v1685 = vadd.f32 %v1454, %v1684
  %v1686 = vmul.f32 %v1672, %v1672
  %v1687 = vmul.f32 %v1675, %v1675
  %v1688 = vadd.f32 %v1686, %v1687
  %v1689 = vrot.slane %v1688, 4
  %v1690 = vadd.f32 %v1688, %v1689
  %v1691 = vrot.slane %v1690, 2
  %v1692 = vadd.f32 %v1690, %v1691
  %v1693 = vrot.slane %v1692, 1
  %v1694 = vadd.f32 %v1692, %v1693
  %v1695 = vadd.f32 %v1464, %v1694
  %s1696 = scalar_lea.vmem %s0, 320
  %v1697 = vld [vmem:[%s1696] sm:$0xff]
  %v1698 = vld [vmem:[%s1696 + $0x8] sm:$0xff]
  %v1699 = vld [vmem:[%s1696 + $0x10] sm:$0xff]
  %v1700 = vld [vmem:[%s1696 + $0x18] sm:$0xff]
  %v1701 = vld [vmem:[%s1696 + $0x20] sm:$0xff]
  %v1702 = vld [vmem:[%s1696 + $0x28] sm:$0xff]
  %v1703 = vld [vmem:[%s1696 + $0x30] sm:$0xff]
  %v1704 = vld [vmem:[%s1696 + $0x38] sm:$0xff]
  %v1713 = vunpack.c.l.b16 %v1697
  %v1714 = vunpack.c.h.b16 %v1697
  %v1715 = vunpack.c.l.b16 %v1698
  %v1716 = vunpack.c.h.b16 %v1698
  %v1717 = vunpack.c.l.b16 %v1699
  %v1718 = vunpack.c.h.b16 %v1699
  %v1719 = vunpack.c.l.b16 %v1700
  %v1720 = vunpack.c.h.b16 %v1700
  %v1721 = vunpack.c.l.b16 %v1701
  %v1722 = vunpack.c.h.b16 %v1701
  %v1723 = vunpack.c.l.b16 %v1702
  %v1724 = vunpack.c.h.b16 %v1702
  %v1725 = vunpack.c.l.b16 %v1703
  %v1726 = vunpack.c.h.b16 %v1703
  %v1727 = vunpack.c.l.b16 %v1704
  %v1728 = vunpack.c.h.b16 %v1704
  %v1729 = vpack.c.b16 %v1721, %v1713
  %v1730 = vpack.c.b16 %v1722, %v1714
  %v1731 = vpack.c.b16 %v1723, %v1715
  %v1732 = vpack.c.b16 %v1724, %v1716
  %v1733 = vpack.c.b16 %v1725, %v1717
  %v1734 = vpack.c.b16 %v1726, %v1718
  %v1735 = vpack.c.b16 %v1727, %v1719
  %v1736 = vpack.c.b16 %v1728, %v1720
  %1745 = vmatprep.subr.bf16.mxu0 0
  %1746 = vmatpush1.bf16.msra.mxu0 %v469
  %1747 = vmatprep.subr.bf16.mxu0 0
  %1748 = vmatpush1.bf16.msra.mxu0 %v468
  %1749 = vmatprep.subr.bf16.mxu0 0
  %1750 = vmatpush1.bf16.msra.mxu0 %v467
  %1751 = vmatprep.subr.bf16.mxu0 0
  %1752 = vmatpush1.bf16.msra.mxu0 %v466
  %1753 = vmatprep.subr.bf16.mxu0 0
  %1754 = vmatpush1.bf16.msra.mxu0 %v465
  %1755 = vmatprep.subr.bf16.mxu0 0
  %1756 = vmatpush1.bf16.msra.mxu0 %v464
  %1757 = vmatprep.subr.bf16.mxu0 0
  %1758 = vmatpush1.bf16.msra.mxu0 %v463
  %1759 = vmatprep.subr.bf16.mxu0 0
  %1760 = vmatpush1.bf16.msra.mxu0 %v462
  %1761 = vmatprep.subr.bf16.mxu0 0
  %1762 = vmatpush2.bf16.msra.mxu0 %v477
  %1763 = vmatprep.subr.bf16.mxu0 0
  %1764 = vmatpush2.bf16.msra.mxu0 %v476
  %1765 = vmatprep.subr.bf16.mxu0 0
  %1766 = vmatpush2.bf16.msra.mxu0 %v475
  %1767 = vmatprep.subr.bf16.mxu0 0
  %1768 = vmatpush2.bf16.msra.mxu0 %v474
  %1769 = vmatprep.subr.bf16.mxu0 0
  %1770 = vmatpush2.bf16.msra.mxu0 %v473
  %1771 = vmatprep.subr.bf16.mxu0 0
  %1772 = vmatpush2.bf16.msra.mxu0 %v472
  %1773 = vmatprep.subr.bf16.mxu0 0
  %1774 = vmatpush2.bf16.msra.mxu0 %v471
  %1775 = vmatprep.subr.bf16.mxu0 0
  %1776 = vmatpush2.bf16.msra.mxu0 %v470
  %1777 = vmatprep.mubr.bf16.mxu0 %v1730
  %1778 = vmatmul.mubr.bf16.gmra.mxu0 %v1729
  %v1779 = vpop.f32.mrf.mxu0
  %v1780 = vadd.f32 0.0, %v1779
  %v1781 = vpop.f32.mrf.mxu0
  %v1782 = vpop.f32.mrf.mxu0
  %v1783 = vadd.f32 0.0, %v1782
  %v1784 = vpop.f32.mrf.mxu0
  %1785 = vdwg.mxu0
  %1786 = vmatprep.subr.bf16.mxu0 0
  %1787 = vmatpush1.bf16.msra.mxu0 %v485
  %1788 = vmatprep.subr.bf16.mxu0 0
  %1789 = vmatpush1.bf16.msra.mxu0 %v484
  %1790 = vmatprep.subr.bf16.mxu0 0
  %1791 = vmatpush1.bf16.msra.mxu0 %v483
  %1792 = vmatprep.subr.bf16.mxu0 0
  %1793 = vmatpush1.bf16.msra.mxu0 %v482
  %1794 = vmatprep.subr.bf16.mxu0 0
  %1795 = vmatpush1.bf16.msra.mxu0 %v481
  %1796 = vmatprep.subr.bf16.mxu0 0
  %1797 = vmatpush1.bf16.msra.mxu0 %v480
  %1798 = vmatprep.subr.bf16.mxu0 0
  %1799 = vmatpush1.bf16.msra.mxu0 %v479
  %1800 = vmatprep.subr.bf16.mxu0 0
  %1801 = vmatpush1.bf16.msra.mxu0 %v478
  %1802 = vmatprep.subr.bf16.mxu0 0
  %1803 = vmatpush2.bf16.msra.mxu0 %v493
  %1804 = vmatprep.subr.bf16.mxu0 0
  %1805 = vmatpush2.bf16.msra.mxu0 %v492
  %1806 = vmatprep.subr.bf16.mxu0 0
  %1807 = vmatpush2.bf16.msra.mxu0 %v491
  %1808 = vmatprep.subr.bf16.mxu0 0
  %1809 = vmatpush2.bf16.msra.mxu0 %v490
  %1810 = vmatprep.subr.bf16.mxu0 0
  %1811 = vmatpush2.bf16.msra.mxu0 %v489
  %1812 = vmatprep.subr.bf16.mxu0 0
  %1813 = vmatpush2.bf16.msra.mxu0 %v488
  %1814 = vmatprep.subr.bf16.mxu0 0
  %1815 = vmatpush2.bf16.msra.mxu0 %v487
  %1816 = vmatprep.subr.bf16.mxu0 0
  %1817 = vmatpush2.bf16.msra.mxu0 %v486
  %1818 = vmatprep.mubr.bf16.mxu0 %v1732
  %1819 = vmatmul.mubr.bf16.gmra.mxu0 %v1731
  %v1820 = vpop.f32.mrf.mxu0
  %v1821 = vadd.f32 %v1780, %v1820
  %v1822 = vpop.f32.mrf.mxu0
  %v1823 = vpop.f32.mrf.mxu0
  %v1824 = vadd.f32 %v1783, %v1823
  %v1825 = vpop.f32.mrf.mxu0
  %1826 = vdwg.mxu0
  %1827 = vmatprep.subr.bf16.mxu0 0
  %1828 = vmatpush1.bf16.msra.mxu0 %v501
  %1829 = vmatprep.subr.bf16.mxu0 0
  %1830 = vmatpush1.bf16.msra.mxu0 %v500
  %1831 = vmatprep.subr.bf16.mxu0 0
  %1832 = vmatpush1.bf16.msra.mxu0 %v499
  %1833 = vmatprep.subr.bf16.mxu0 0
  %1834 = vmatpush1.bf16.msra.mxu0 %v498
  %1835 = vmatprep.subr.bf16.mxu0 0
  %1836 = vmatpush1.bf16.msra.mxu0 %v497
  %1837 = vmatprep.subr.bf16.mxu0 0
  %1838 = vmatpush1.bf16.msra.mxu0 %v496
  %1839 = vmatprep.subr.bf16.mxu0 0
  %1840 = vmatpush1.bf16.msra.mxu0 %v495
  %1841 = vmatprep.subr.bf16.mxu0 0
  %1842 = vmatpush1.bf16.msra.mxu0 %v494
  %1843 = vmatprep.subr.bf16.mxu0 0
  %1844 = vmatpush2.bf16.msra.mxu0 %v509
  %1845 = vmatprep.subr.bf16.mxu0 0
  %1846 = vmatpush2.bf16.msra.mxu0 %v508
  %1847 = vmatprep.subr.bf16.mxu0 0
  %1848 = vmatpush2.bf16.msra.mxu0 %v507
  %1849 = vmatprep.subr.bf16.mxu0 0
  %1850 = vmatpush2.bf16.msra.mxu0 %v506
  %1851 = vmatprep.subr.bf16.mxu0 0
  %1852 = vmatpush2.bf16.msra.mxu0 %v505
  %1853 = vmatprep.subr.bf16.mxu0 0
  %1854 = vmatpush2.bf16.msra.mxu0 %v504
  %1855 = vmatprep.subr.bf16.mxu0 0
  %1856 = vmatpush2.bf16.msra.mxu0 %v503
  %1857 = vmatprep.subr.bf16.mxu0 0
  %1858 = vmatpush2.bf16.msra.mxu0 %v502
  %1859 = vmatprep.mubr.bf16.mxu0 %v1734
  %1860 = vmatmul.mubr.bf16.gmra.mxu0 %v1733
  %v1861 = vpop.f32.mrf.mxu0
  %v1862 = vadd.f32 %v1821, %v1861
  %v1863 = vpop.f32.mrf.mxu0
  %v1864 = vpop.f32.mrf.mxu0
  %v1865 = vadd.f32 %v1824, %v1864
  %v1866 = vpop.f32.mrf.mxu0
  %1867 = vdwg.mxu0
  %1868 = vmatprep.subr.bf16.mxu0 0
  %1869 = vmatpush1.bf16.msra.mxu0 %v517
  %1870 = vmatprep.subr.bf16.mxu0 0
  %1871 = vmatpush1.bf16.msra.mxu0 %v516
  %1872 = vmatprep.subr.bf16.mxu0 0
  %1873 = vmatpush1.bf16.msra.mxu0 %v515
  %1874 = vmatprep.subr.bf16.mxu0 0
  %1875 = vmatpush1.bf16.msra.mxu0 %v514
  %1876 = vmatprep.subr.bf16.mxu0 0
  %1877 = vmatpush1.bf16.msra.mxu0 %v513
  %1878 = vmatprep.subr.bf16.mxu0 0
  %1879 = vmatpush1.bf16.msra.mxu0 %v512
  %1880 = vmatprep.subr.bf16.mxu0 0
  %1881 = vmatpush1.bf16.msra.mxu0 %v511
  %1882 = vmatprep.subr.bf16.mxu0 0
  %1883 = vmatpush1.bf16.msra.mxu0 %v510
  %1884 = vmatprep.subr.bf16.mxu0 0
  %1885 = vmatpush2.bf16.msra.mxu0 %v525
  %1886 = vmatprep.subr.bf16.mxu0 0
  %1887 = vmatpush2.bf16.msra.mxu0 %v524
  %1888 = vmatprep.subr.bf16.mxu0 0
  %1889 = vmatpush2.bf16.msra.mxu0 %v523
  %1890 = vmatprep.subr.bf16.mxu0 0
  %1891 = vmatpush2.bf16.msra.mxu0 %v522
  %1892 = vmatprep.subr.bf16.mxu0 0
  %1893 = vmatpush2.bf16.msra.mxu0 %v521
  %1894 = vmatprep.subr.bf16.mxu0 0
  %1895 = vmatpush2.bf16.msra.mxu0 %v520
  %1896 = vmatprep.subr.bf16.mxu0 0
  %1897 = vmatpush2.bf16.msra.mxu0 %v519
  %1898 = vmatprep.subr.bf16.mxu0 0
  %1899 = vmatpush2.bf16.msra.mxu0 %v518
  %1900 = vmatprep.mubr.bf16.mxu0 %v1736
  %1901 = vmatmul.mubr.bf16.gmra.mxu0 %v1735
  %v1902 = vpop.f32.mrf.mxu0
  %v1903 = vadd.f32 %v1862, %v1902
  %v1904 = vpop.f32.mrf.mxu0
  %v1905 = vpop.f32.mrf.mxu0
  %v1906 = vadd.f32 %v1865, %v1905
  %v1907 = vpop.f32.mrf.mxu0
  %1908 = vdwg.mxu0
  %v1909 = vadd.f32 %v1903, %v1906
  %v1910 = vrot.slane %v1909, 4
  %v1911 = vadd.f32 %v1909, %v1910
  %v1912 = vrot.slane %v1911, 2
  %v1913 = vadd.f32 %v1911, %v1912
  %v1914 = vrot.slane %v1913, 1
  %v1915 = vadd.f32 %v1913, %v1914
  %v1916 = vadd.f32 %v1685, %v1915
  %v1917 = vmul.f32 %v1903, %v1903
  %v1918 = vmul.f32 %v1906, %v1906
  %v1919 = vadd.f32 %v1917, %v1918
  %v1920 = vrot.slane %v1919, 4
  %v1921 = vadd.f32 %v1919, %v1920
  %v1922 = vrot.slane %v1921, 2
  %v1923 = vadd.f32 %v1921, %v1922
  %v1924 = vrot.slane %v1923, 1
  %v1925 = vadd.f32 %v1923, %v1924
  %v1926 = vadd.f32 %v1695, %v1925
  %s1927 = scalar_lea.vmem %s0, 384
  %v1928 = vld [vmem:[%s1927] sm:$0xff]
  %v1929 = vld [vmem:[%s1927 + $0x8] sm:$0xff]
  %v1930 = vld [vmem:[%s1927 + $0x10] sm:$0xff]
  %v1931 = vld [vmem:[%s1927 + $0x18] sm:$0xff]
  %v1932 = vld [vmem:[%s1927 + $0x20] sm:$0xff]
  %v1933 = vld [vmem:[%s1927 + $0x28] sm:$0xff]
  %v1934 = vld [vmem:[%s1927 + $0x30] sm:$0xff]
  %v1935 = vld [vmem:[%s1927 + $0x38] sm:$0xff]
  %v1944 = vunpack.c.l.b16 %v1928
  %v1945 = vunpack.c.h.b16 %v1928
  %v1946 = vunpack.c.l.b16 %v1929
  %v1947 = vunpack.c.h.b16 %v1929
  %v1948 = vunpack.c.l.b16 %v1930
  %v1949 = vunpack.c.h.b16 %v1930
  %v1950 = vunpack.c.l.b16 %v1931
  %v1951 = vunpack.c.h.b16 %v1931
  %v1952 = vunpack.c.l.b16 %v1932
  %v1953 = vunpack.c.h.b16 %v1932
  %v1954 = vunpack.c.l.b16 %v1933
  %v1955 = vunpack.c.h.b16 %v1933
  %v1956 = vunpack.c.l.b16 %v1934
  %v1957 = vunpack.c.h.b16 %v1934
  %v1958 = vunpack.c.l.b16 %v1935
  %v1959 = vunpack.c.h.b16 %v1935
  %v1960 = vpack.c.b16 %v1952, %v1944
  %v1961 = vpack.c.b16 %v1953, %v1945
  %v1962 = vpack.c.b16 %v1954, %v1946
  %v1963 = vpack.c.b16 %v1955, %v1947
  %v1964 = vpack.c.b16 %v1956, %v1948
  %v1965 = vpack.c.b16 %v1957, %v1949
  %v1966 = vpack.c.b16 %v1958, %v1950
  %v1967 = vpack.c.b16 %v1959, %v1951
  %1976 = vmatprep.subr.bf16.mxu0 0
  %1977 = vmatpush1.bf16.msra.mxu0 %v469
  %1978 = vmatprep.subr.bf16.mxu0 0
  %1979 = vmatpush1.bf16.msra.mxu0 %v468
  %1980 = vmatprep.subr.bf16.mxu0 0
  %1981 = vmatpush1.bf16.msra.mxu0 %v467
  %1982 = vmatprep.subr.bf16.mxu0 0
  %1983 = vmatpush1.bf16.msra.mxu0 %v466
  %1984 = vmatprep.subr.bf16.mxu0 0
  %1985 = vmatpush1.bf16.msra.mxu0 %v465
  %1986 = vmatprep.subr.bf16.mxu0 0
  %1987 = vmatpush1.bf16.msra.mxu0 %v464
  %1988 = vmatprep.subr.bf16.mxu0 0
  %1989 = vmatpush1.bf16.msra.mxu0 %v463
  %1990 = vmatprep.subr.bf16.mxu0 0
  %1991 = vmatpush1.bf16.msra.mxu0 %v462
  %1992 = vmatprep.subr.bf16.mxu0 0
  %1993 = vmatpush2.bf16.msra.mxu0 %v477
  %1994 = vmatprep.subr.bf16.mxu0 0
  %1995 = vmatpush2.bf16.msra.mxu0 %v476
  %1996 = vmatprep.subr.bf16.mxu0 0
  %1997 = vmatpush2.bf16.msra.mxu0 %v475
  %1998 = vmatprep.subr.bf16.mxu0 0
  %1999 = vmatpush2.bf16.msra.mxu0 %v474
  %2000 = vmatprep.subr.bf16.mxu0 0
  %2001 = vmatpush2.bf16.msra.mxu0 %v473
  %2002 = vmatprep.subr.bf16.mxu0 0
  %2003 = vmatpush2.bf16.msra.mxu0 %v472
  %2004 = vmatprep.subr.bf16.mxu0 0
  %2005 = vmatpush2.bf16.msra.mxu0 %v471
  %2006 = vmatprep.subr.bf16.mxu0 0
  %2007 = vmatpush2.bf16.msra.mxu0 %v470
  %2008 = vmatprep.mubr.bf16.mxu0 %v1961
  %2009 = vmatmul.mubr.bf16.gmra.mxu0 %v1960
  %v2010 = vpop.f32.mrf.mxu0
  %v2011 = vadd.f32 0.0, %v2010
  %v2012 = vpop.f32.mrf.mxu0
  %v2013 = vpop.f32.mrf.mxu0
  %v2014 = vadd.f32 0.0, %v2013
  %v2015 = vpop.f32.mrf.mxu0
  %2016 = vdwg.mxu0
  %2017 = vmatprep.subr.bf16.mxu0 0
  %2018 = vmatpush1.bf16.msra.mxu0 %v485
  %2019 = vmatprep.subr.bf16.mxu0 0
  %2020 = vmatpush1.bf16.msra.mxu0 %v484
  %2021 = vmatprep.subr.bf16.mxu0 0
  %2022 = vmatpush1.bf16.msra.mxu0 %v483
  %2023 = vmatprep.subr.bf16.mxu0 0
  %2024 = vmatpush1.bf16.msra.mxu0 %v482
  %2025 = vmatprep.subr.bf16.mxu0 0
  %2026 = vmatpush1.bf16.msra.mxu0 %v481
  %2027 = vmatprep.subr.bf16.mxu0 0
  %2028 = vmatpush1.bf16.msra.mxu0 %v480
  %2029 = vmatprep.subr.bf16.mxu0 0
  %2030 = vmatpush1.bf16.msra.mxu0 %v479
  %2031 = vmatprep.subr.bf16.mxu0 0
  %2032 = vmatpush1.bf16.msra.mxu0 %v478
  %2033 = vmatprep.subr.bf16.mxu0 0
  %2034 = vmatpush2.bf16.msra.mxu0 %v493
  %2035 = vmatprep.subr.bf16.mxu0 0
  %2036 = vmatpush2.bf16.msra.mxu0 %v492
  %2037 = vmatprep.subr.bf16.mxu0 0
  %2038 = vmatpush2.bf16.msra.mxu0 %v491
  %2039 = vmatprep.subr.bf16.mxu0 0
  %2040 = vmatpush2.bf16.msra.mxu0 %v490
  %2041 = vmatprep.subr.bf16.mxu0 0
  %2042 = vmatpush2.bf16.msra.mxu0 %v489
  %2043 = vmatprep.subr.bf16.mxu0 0
  %2044 = vmatpush2.bf16.msra.mxu0 %v488
  %2045 = vmatprep.subr.bf16.mxu0 0
  %2046 = vmatpush2.bf16.msra.mxu0 %v487
  %2047 = vmatprep.subr.bf16.mxu0 0
  %2048 = vmatpush2.bf16.msra.mxu0 %v486
  %2049 = vmatprep.mubr.bf16.mxu0 %v1963
  %2050 = vmatmul.mubr.bf16.gmra.mxu0 %v1962
  %v2051 = vpop.f32.mrf.mxu0
  %v2052 = vadd.f32 %v2011, %v2051
  %v2053 = vpop.f32.mrf.mxu0
  %v2054 = vpop.f32.mrf.mxu0
  %v2055 = vadd.f32 %v2014, %v2054
  %v2056 = vpop.f32.mrf.mxu0
  %2057 = vdwg.mxu0
  %2058 = vmatprep.subr.bf16.mxu0 0
  %2059 = vmatpush1.bf16.msra.mxu0 %v501
  %2060 = vmatprep.subr.bf16.mxu0 0
  %2061 = vmatpush1.bf16.msra.mxu0 %v500
  %2062 = vmatprep.subr.bf16.mxu0 0
  %2063 = vmatpush1.bf16.msra.mxu0 %v499
  %2064 = vmatprep.subr.bf16.mxu0 0
  %2065 = vmatpush1.bf16.msra.mxu0 %v498
  %2066 = vmatprep.subr.bf16.mxu0 0
  %2067 = vmatpush1.bf16.msra.mxu0 %v497
  %2068 = vmatprep.subr.bf16.mxu0 0
  %2069 = vmatpush1.bf16.msra.mxu0 %v496
  %2070 = vmatprep.subr.bf16.mxu0 0
  %2071 = vmatpush1.bf16.msra.mxu0 %v495
  %2072 = vmatprep.subr.bf16.mxu0 0
  %2073 = vmatpush1.bf16.msra.mxu0 %v494
  %2074 = vmatprep.subr.bf16.mxu0 0
  %2075 = vmatpush2.bf16.msra.mxu0 %v509
  %2076 = vmatprep.subr.bf16.mxu0 0
  %2077 = vmatpush2.bf16.msra.mxu0 %v508
  %2078 = vmatprep.subr.bf16.mxu0 0
  %2079 = vmatpush2.bf16.msra.mxu0 %v507
  %2080 = vmatprep.subr.bf16.mxu0 0
  %2081 = vmatpush2.bf16.msra.mxu0 %v506
  %2082 = vmatprep.subr.bf16.mxu0 0
  %2083 = vmatpush2.bf16.msra.mxu0 %v505
  %2084 = vmatprep.subr.bf16.mxu0 0
  %2085 = vmatpush2.bf16.msra.mxu0 %v504
  %2086 = vmatprep.subr.bf16.mxu0 0
  %2087 = vmatpush2.bf16.msra.mxu0 %v503
  %2088 = vmatprep.subr.bf16.mxu0 0
  %2089 = vmatpush2.bf16.msra.mxu0 %v502
  %2090 = vmatprep.mubr.bf16.mxu0 %v1965
  %2091 = vmatmul.mubr.bf16.gmra.mxu0 %v1964
  %v2092 = vpop.f32.mrf.mxu0
  %v2093 = vadd.f32 %v2052, %v2092
  %v2094 = vpop.f32.mrf.mxu0
  %v2095 = vpop.f32.mrf.mxu0
  %v2096 = vadd.f32 %v2055, %v2095
  %v2097 = vpop.f32.mrf.mxu0
  %2098 = vdwg.mxu0
  %2099 = vmatprep.subr.bf16.mxu0 0
  %2100 = vmatpush1.bf16.msra.mxu0 %v517
  %2101 = vmatprep.subr.bf16.mxu0 0
  %2102 = vmatpush1.bf16.msra.mxu0 %v516
  %2103 = vmatprep.subr.bf16.mxu0 0
  %2104 = vmatpush1.bf16.msra.mxu0 %v515
  %2105 = vmatprep.subr.bf16.mxu0 0
  %2106 = vmatpush1.bf16.msra.mxu0 %v514
  %2107 = vmatprep.subr.bf16.mxu0 0
  %2108 = vmatpush1.bf16.msra.mxu0 %v513
  %2109 = vmatprep.subr.bf16.mxu0 0
  %2110 = vmatpush1.bf16.msra.mxu0 %v512
  %2111 = vmatprep.subr.bf16.mxu0 0
  %2112 = vmatpush1.bf16.msra.mxu0 %v511
  %2113 = vmatprep.subr.bf16.mxu0 0
  %2114 = vmatpush1.bf16.msra.mxu0 %v510
  %2115 = vmatprep.subr.bf16.mxu0 0
  %2116 = vmatpush2.bf16.msra.mxu0 %v525
  %2117 = vmatprep.subr.bf16.mxu0 0
  %2118 = vmatpush2.bf16.msra.mxu0 %v524
  %2119 = vmatprep.subr.bf16.mxu0 0
  %2120 = vmatpush2.bf16.msra.mxu0 %v523
  %2121 = vmatprep.subr.bf16.mxu0 0
  %2122 = vmatpush2.bf16.msra.mxu0 %v522
  %2123 = vmatprep.subr.bf16.mxu0 0
  %2124 = vmatpush2.bf16.msra.mxu0 %v521
  %2125 = vmatprep.subr.bf16.mxu0 0
  %2126 = vmatpush2.bf16.msra.mxu0 %v520
  %2127 = vmatprep.subr.bf16.mxu0 0
  %2128 = vmatpush2.bf16.msra.mxu0 %v519
  %2129 = vmatprep.subr.bf16.mxu0 0
  %2130 = vmatpush2.bf16.msra.mxu0 %v518
  %2131 = vmatprep.mubr.bf16.mxu0 %v1967
  %2132 = vmatmul.mubr.bf16.gmra.mxu0 %v1966
  %v2133 = vpop.f32.mrf.mxu0
  %v2134 = vadd.f32 %v2093, %v2133
  %v2135 = vpop.f32.mrf.mxu0
  %v2136 = vpop.f32.mrf.mxu0
  %v2137 = vadd.f32 %v2096, %v2136
  %v2138 = vpop.f32.mrf.mxu0
  %2139 = vdwg.mxu0
  %v2140 = vadd.f32 %v2134, %v2137
  %v2141 = vrot.slane %v2140, 4
  %v2142 = vadd.f32 %v2140, %v2141
  %v2143 = vrot.slane %v2142, 2
  %v2144 = vadd.f32 %v2142, %v2143
  %v2145 = vrot.slane %v2144, 1
  %v2146 = vadd.f32 %v2144, %v2145
  %v2147 = vadd.f32 %v1916, %v2146
  %v2148 = vmul.f32 %v2134, %v2134
  %v2149 = vmul.f32 %v2137, %v2137
  %v2150 = vadd.f32 %v2148, %v2149
  %v2151 = vrot.slane %v2150, 4
  %v2152 = vadd.f32 %v2150, %v2151
  %v2153 = vrot.slane %v2152, 2
  %v2154 = vadd.f32 %v2152, %v2153
  %v2155 = vrot.slane %v2154, 1
  %v2156 = vadd.f32 %v2154, %v2155
  %v2157 = vadd.f32 %v1926, %v2156
  %s2158 = scalar_lea.vmem %s0, 448
  %v2159 = vld [vmem:[%s2158] sm:$0xff]
  %v2160 = vld [vmem:[%s2158 + $0x8] sm:$0xff]
  %v2161 = vld [vmem:[%s2158 + $0x10] sm:$0xff]
  %v2162 = vld [vmem:[%s2158 + $0x18] sm:$0xff]
  %v2163 = vld [vmem:[%s2158 + $0x20] sm:$0xff]
  %v2164 = vld [vmem:[%s2158 + $0x28] sm:$0xff]
  %v2165 = vld [vmem:[%s2158 + $0x30] sm:$0xff]
  %v2166 = vld [vmem:[%s2158 + $0x38] sm:$0xff]
  %v2175 = vunpack.c.l.b16 %v2159
  %v2176 = vunpack.c.h.b16 %v2159
  %v2177 = vunpack.c.l.b16 %v2160
  %v2178 = vunpack.c.h.b16 %v2160
  %v2179 = vunpack.c.l.b16 %v2161
  %v2180 = vunpack.c.h.b16 %v2161
  %v2181 = vunpack.c.l.b16 %v2162
  %v2182 = vunpack.c.h.b16 %v2162
  %v2183 = vunpack.c.l.b16 %v2163
  %v2184 = vunpack.c.h.b16 %v2163
  %v2185 = vunpack.c.l.b16 %v2164
  %v2186 = vunpack.c.h.b16 %v2164
  %v2187 = vunpack.c.l.b16 %v2165
  %v2188 = vunpack.c.h.b16 %v2165
  %v2189 = vunpack.c.l.b16 %v2166
  %v2190 = vunpack.c.h.b16 %v2166
  %v2191 = vpack.c.b16 %v2183, %v2175
  %v2192 = vpack.c.b16 %v2184, %v2176
  %v2193 = vpack.c.b16 %v2185, %v2177
  %v2194 = vpack.c.b16 %v2186, %v2178
  %v2195 = vpack.c.b16 %v2187, %v2179
  %v2196 = vpack.c.b16 %v2188, %v2180
  %v2197 = vpack.c.b16 %v2189, %v2181
  %v2198 = vpack.c.b16 %v2190, %v2182
  %2207 = vmatprep.subr.bf16.mxu0 0
  %2208 = vmatpush1.bf16.msra.mxu0 %v469
  %2209 = vmatprep.subr.bf16.mxu0 0
  %2210 = vmatpush1.bf16.msra.mxu0 %v468
  %2211 = vmatprep.subr.bf16.mxu0 0
  %2212 = vmatpush1.bf16.msra.mxu0 %v467
  %2213 = vmatprep.subr.bf16.mxu0 0
  %2214 = vmatpush1.bf16.msra.mxu0 %v466
  %2215 = vmatprep.subr.bf16.mxu0 0
  %2216 = vmatpush1.bf16.msra.mxu0 %v465
  %2217 = vmatprep.subr.bf16.mxu0 0
  %2218 = vmatpush1.bf16.msra.mxu0 %v464
  %2219 = vmatprep.subr.bf16.mxu0 0
  %2220 = vmatpush1.bf16.msra.mxu0 %v463
  %2221 = vmatprep.subr.bf16.mxu0 0
  %2222 = vmatpush1.bf16.msra.mxu0 %v462
  %2223 = vmatprep.subr.bf16.mxu0 0
  %2224 = vmatpush2.bf16.msra.mxu0 %v477
  %2225 = vmatprep.subr.bf16.mxu0 0
  %2226 = vmatpush2.bf16.msra.mxu0 %v476
  %2227 = vmatprep.subr.bf16.mxu0 0
  %2228 = vmatpush2.bf16.msra.mxu0 %v475
  %2229 = vmatprep.subr.bf16.mxu0 0
  %2230 = vmatpush2.bf16.msra.mxu0 %v474
  %2231 = vmatprep.subr.bf16.mxu0 0
  %2232 = vmatpush2.bf16.msra.mxu0 %v473
  %2233 = vmatprep.subr.bf16.mxu0 0
  %2234 = vmatpush2.bf16.msra.mxu0 %v472
  %2235 = vmatprep.subr.bf16.mxu0 0
  %2236 = vmatpush2.bf16.msra.mxu0 %v471
  %2237 = vmatprep.subr.bf16.mxu0 0
  %2238 = vmatpush2.bf16.msra.mxu0 %v470
  %2239 = vmatprep.mubr.bf16.mxu0 %v2192
  %2240 = vmatmul.mubr.bf16.gmra.mxu0 %v2191
  %v2241 = vpop.f32.mrf.mxu0
  %v2242 = vadd.f32 0.0, %v2241
  %v2243 = vpop.f32.mrf.mxu0
  %v2244 = vpop.f32.mrf.mxu0
  %v2245 = vadd.f32 0.0, %v2244
  %v2246 = vpop.f32.mrf.mxu0
  %2247 = vdwg.mxu0
  %2248 = vmatprep.subr.bf16.mxu0 0
  %2249 = vmatpush1.bf16.msra.mxu0 %v485
  %2250 = vmatprep.subr.bf16.mxu0 0
  %2251 = vmatpush1.bf16.msra.mxu0 %v484
  %2252 = vmatprep.subr.bf16.mxu0 0
  %2253 = vmatpush1.bf16.msra.mxu0 %v483
  %2254 = vmatprep.subr.bf16.mxu0 0
  %2255 = vmatpush1.bf16.msra.mxu0 %v482
  %2256 = vmatprep.subr.bf16.mxu0 0
  %2257 = vmatpush1.bf16.msra.mxu0 %v481
  %2258 = vmatprep.subr.bf16.mxu0 0
  %2259 = vmatpush1.bf16.msra.mxu0 %v480
  %2260 = vmatprep.subr.bf16.mxu0 0
  %2261 = vmatpush1.bf16.msra.mxu0 %v479
  %2262 = vmatprep.subr.bf16.mxu0 0
  %2263 = vmatpush1.bf16.msra.mxu0 %v478
  %2264 = vmatprep.subr.bf16.mxu0 0
  %2265 = vmatpush2.bf16.msra.mxu0 %v493
  %2266 = vmatprep.subr.bf16.mxu0 0
  %2267 = vmatpush2.bf16.msra.mxu0 %v492
  %2268 = vmatprep.subr.bf16.mxu0 0
  %2269 = vmatpush2.bf16.msra.mxu0 %v491
  %2270 = vmatprep.subr.bf16.mxu0 0
  %2271 = vmatpush2.bf16.msra.mxu0 %v490
  %2272 = vmatprep.subr.bf16.mxu0 0
  %2273 = vmatpush2.bf16.msra.mxu0 %v489
  %2274 = vmatprep.subr.bf16.mxu0 0
  %2275 = vmatpush2.bf16.msra.mxu0 %v488
  %2276 = vmatprep.subr.bf16.mxu0 0
  %2277 = vmatpush2.bf16.msra.mxu0 %v487
  %2278 = vmatprep.subr.bf16.mxu0 0
  %2279 = vmatpush2.bf16.msra.mxu0 %v486
  %2280 = vmatprep.mubr.bf16.mxu0 %v2194
  %2281 = vmatmul.mubr.bf16.gmra.mxu0 %v2193
  %v2282 = vpop.f32.mrf.mxu0
  %v2283 = vadd.f32 %v2242, %v2282
  %v2284 = vpop.f32.mrf.mxu0
  %v2285 = vpop.f32.mrf.mxu0
  %v2286 = vadd.f32 %v2245, %v2285
  %v2287 = vpop.f32.mrf.mxu0
  %2288 = vdwg.mxu0
  %2289 = vmatprep.subr.bf16.mxu0 0
  %2290 = vmatpush1.bf16.msra.mxu0 %v501
  %2291 = vmatprep.subr.bf16.mxu0 0
  %2292 = vmatpush1.bf16.msra.mxu0 %v500
  %2293 = vmatprep.subr.bf16.mxu0 0
  %2294 = vmatpush1.bf16.msra.mxu0 %v499
  %2295 = vmatprep.subr.bf16.mxu0 0
  %2296 = vmatpush1.bf16.msra.mxu0 %v498
  %2297 = vmatprep.subr.bf16.mxu0 0
  %2298 = vmatpush1.bf16.msra.mxu0 %v497
  %2299 = vmatprep.subr.bf16.mxu0 0
  %2300 = vmatpush1.bf16.msra.mxu0 %v496
  %2301 = vmatprep.subr.bf16.mxu0 0
  %2302 = vmatpush1.bf16.msra.mxu0 %v495
  %2303 = vmatprep.subr.bf16.mxu0 0
  %2304 = vmatpush1.bf16.msra.mxu0 %v494
  %2305 = vmatprep.subr.bf16.mxu0 0
  %2306 = vmatpush2.bf16.msra.mxu0 %v509
  %2307 = vmatprep.subr.bf16.mxu0 0
  %2308 = vmatpush2.bf16.msra.mxu0 %v508
  %2309 = vmatprep.subr.bf16.mxu0 0
  %2310 = vmatpush2.bf16.msra.mxu0 %v507
  %2311 = vmatprep.subr.bf16.mxu0 0
  %2312 = vmatpush2.bf16.msra.mxu0 %v506
  %2313 = vmatprep.subr.bf16.mxu0 0
  %2314 = vmatpush2.bf16.msra.mxu0 %v505
  %2315 = vmatprep.subr.bf16.mxu0 0
  %2316 = vmatpush2.bf16.msra.mxu0 %v504
  %2317 = vmatprep.subr.bf16.mxu0 0
  %2318 = vmatpush2.bf16.msra.mxu0 %v503
  %2319 = vmatprep.subr.bf16.mxu0 0
  %2320 = vmatpush2.bf16.msra.mxu0 %v502
  %2321 = vmatprep.mubr.bf16.mxu0 %v2196
  %2322 = vmatmul.mubr.bf16.gmra.mxu0 %v2195
  %v2323 = vpop.f32.mrf.mxu0
  %v2324 = vadd.f32 %v2283, %v2323
  %v2325 = vpop.f32.mrf.mxu0
  %v2326 = vpop.f32.mrf.mxu0
  %v2327 = vadd.f32 %v2286, %v2326
  %v2328 = vpop.f32.mrf.mxu0
  %2329 = vdwg.mxu0
  %2330 = vmatprep.subr.bf16.mxu0 0
  %2331 = vmatpush1.bf16.msra.mxu0 %v517
  %2332 = vmatprep.subr.bf16.mxu0 0
  %2333 = vmatpush1.bf16.msra.mxu0 %v516
  %2334 = vmatprep.subr.bf16.mxu0 0
  %2335 = vmatpush1.bf16.msra.mxu0 %v515
  %2336 = vmatprep.subr.bf16.mxu0 0
  %2337 = vmatpush1.bf16.msra.mxu0 %v514
  %2338 = vmatprep.subr.bf16.mxu0 0
  %2339 = vmatpush1.bf16.msra.mxu0 %v513
  %2340 = vmatprep.subr.bf16.mxu0 0
  %2341 = vmatpush1.bf16.msra.mxu0 %v512
  %2342 = vmatprep.subr.bf16.mxu0 0
  %2343 = vmatpush1.bf16.msra.mxu0 %v511
  %2344 = vmatprep.subr.bf16.mxu0 0
  %2345 = vmatpush1.bf16.msra.mxu0 %v510
  %2346 = vmatprep.subr.bf16.mxu0 0
  %2347 = vmatpush2.bf16.msra.mxu0 %v525
  %2348 = vmatprep.subr.bf16.mxu0 0
  %2349 = vmatpush2.bf16.msra.mxu0 %v524
  %2350 = vmatprep.subr.bf16.mxu0 0
  %2351 = vmatpush2.bf16.msra.mxu0 %v523
  %2352 = vmatprep.subr.bf16.mxu0 0
  %2353 = vmatpush2.bf16.msra.mxu0 %v522
  %2354 = vmatprep.subr.bf16.mxu0 0
  %2355 = vmatpush2.bf16.msra.mxu0 %v521
  %2356 = vmatprep.subr.bf16.mxu0 0
  %2357 = vmatpush2.bf16.msra.mxu0 %v520
  %2358 = vmatprep.subr.bf16.mxu0 0
  %2359 = vmatpush2.bf16.msra.mxu0 %v519
  %2360 = vmatprep.subr.bf16.mxu0 0
  %2361 = vmatpush2.bf16.msra.mxu0 %v518
  %2362 = vmatprep.mubr.bf16.mxu0 %v2198
  %2363 = vmatmul.mubr.bf16.gmra.mxu0 %v2197
  %v2364 = vpop.f32.mrf.mxu0
  %v2365 = vadd.f32 %v2324, %v2364
  %v2366 = vpop.f32.mrf.mxu0
  %v2367 = vpop.f32.mrf.mxu0
  %v2368 = vadd.f32 %v2327, %v2367
  %v2369 = vpop.f32.mrf.mxu0
  %2370 = vdwg.mxu0
  %v2371 = vadd.f32 %v2365, %v2368
  %v2372 = vrot.slane %v2371, 4
  %v2373 = vadd.f32 %v2371, %v2372
  %v2374 = vrot.slane %v2373, 2
  %v2375 = vadd.f32 %v2373, %v2374
  %v2376 = vrot.slane %v2375, 1
  %v2377 = vadd.f32 %v2375, %v2376
  %v2378 = vadd.f32 %v2147, %v2377
  %v2379 = vmul.f32 %v2365, %v2365
  %v2380 = vmul.f32 %v2368, %v2368
  %v2381 = vadd.f32 %v2379, %v2380
  %v2382 = vrot.slane %v2381, 4
  %v2383 = vadd.f32 %v2381, %v2382
  %v2384 = vrot.slane %v2383, 2
  %v2385 = vadd.f32 %v2383, %v2384
  %v2386 = vrot.slane %v2385, 1
  %v2387 = vadd.f32 %v2385, %v2386
  %v2388 = vadd.f32 %v2157, %v2387
  %s2389 = scalar_lea.vmem %s0, 512
  %v2390 = vld [vmem:[%s2389] sm:$0xff]
  %v2391 = vld [vmem:[%s2389 + $0x8] sm:$0xff]
  %v2392 = vld [vmem:[%s2389 + $0x10] sm:$0xff]
  %v2393 = vld [vmem:[%s2389 + $0x18] sm:$0xff]
  %v2394 = vld [vmem:[%s2389 + $0x20] sm:$0xff]
  %v2395 = vld [vmem:[%s2389 + $0x28] sm:$0xff]
  %v2396 = vld [vmem:[%s2389 + $0x30] sm:$0xff]
  %v2397 = vld [vmem:[%s2389 + $0x38] sm:$0xff]
  %v2406 = vunpack.c.l.b16 %v2390
  %v2407 = vunpack.c.h.b16 %v2390
  %v2408 = vunpack.c.l.b16 %v2391
  %v2409 = vunpack.c.h.b16 %v2391
  %v2410 = vunpack.c.l.b16 %v2392
  %v2411 = vunpack.c.h.b16 %v2392
  %v2412 = vunpack.c.l.b16 %v2393
  %v2413 = vunpack.c.h.b16 %v2393
  %v2414 = vunpack.c.l.b16 %v2394
  %v2415 = vunpack.c.h.b16 %v2394
  %v2416 = vunpack.c.l.b16 %v2395
  %v2417 = vunpack.c.h.b16 %v2395
  %v2418 = vunpack.c.l.b16 %v2396
  %v2419 = vunpack.c.h.b16 %v2396
  %v2420 = vunpack.c.l.b16 %v2397
  %v2421 = vunpack.c.h.b16 %v2397
  %v2422 = vpack.c.b16 %v2414, %v2406
  %v2423 = vpack.c.b16 %v2415, %v2407
  %v2424 = vpack.c.b16 %v2416, %v2408
  %v2425 = vpack.c.b16 %v2417, %v2409
  %v2426 = vpack.c.b16 %v2418, %v2410
  %v2427 = vpack.c.b16 %v2419, %v2411
  %v2428 = vpack.c.b16 %v2420, %v2412
  %v2429 = vpack.c.b16 %v2421, %v2413
  %2438 = vmatprep.subr.bf16.mxu0 0
  %2439 = vmatpush1.bf16.msra.mxu0 %v469
  %2440 = vmatprep.subr.bf16.mxu0 0
  %2441 = vmatpush1.bf16.msra.mxu0 %v468
  %2442 = vmatprep.subr.bf16.mxu0 0
  %2443 = vmatpush1.bf16.msra.mxu0 %v467
  %2444 = vmatprep.subr.bf16.mxu0 0
  %2445 = vmatpush1.bf16.msra.mxu0 %v466
  %2446 = vmatprep.subr.bf16.mxu0 0
  %2447 = vmatpush1.bf16.msra.mxu0 %v465
  %2448 = vmatprep.subr.bf16.mxu0 0
  %2449 = vmatpush1.bf16.msra.mxu0 %v464
  %2450 = vmatprep.subr.bf16.mxu0 0
  %2451 = vmatpush1.bf16.msra.mxu0 %v463
  %2452 = vmatprep.subr.bf16.mxu0 0
  %2453 = vmatpush1.bf16.msra.mxu0 %v462
  %2454 = vmatprep.subr.bf16.mxu0 0
  %2455 = vmatpush2.bf16.msra.mxu0 %v477
  %2456 = vmatprep.subr.bf16.mxu0 0
  %2457 = vmatpush2.bf16.msra.mxu0 %v476
  %2458 = vmatprep.subr.bf16.mxu0 0
  %2459 = vmatpush2.bf16.msra.mxu0 %v475
  %2460 = vmatprep.subr.bf16.mxu0 0
  %2461 = vmatpush2.bf16.msra.mxu0 %v474
  %2462 = vmatprep.subr.bf16.mxu0 0
  %2463 = vmatpush2.bf16.msra.mxu0 %v473
  %2464 = vmatprep.subr.bf16.mxu0 0
  %2465 = vmatpush2.bf16.msra.mxu0 %v472
  %2466 = vmatprep.subr.bf16.mxu0 0
  %2467 = vmatpush2.bf16.msra.mxu0 %v471
  %2468 = vmatprep.subr.bf16.mxu0 0
  %2469 = vmatpush2.bf16.msra.mxu0 %v470
  %2470 = vmatprep.mubr.bf16.mxu0 %v2423
  %2471 = vmatmul.mubr.bf16.gmra.mxu0 %v2422
  %v2472 = vpop.f32.mrf.mxu0
  %v2473 = vadd.f32 0.0, %v2472
  %v2474 = vpop.f32.mrf.mxu0
  %v2475 = vpop.f32.mrf.mxu0
  %v2476 = vadd.f32 0.0, %v2475
  %v2477 = vpop.f32.mrf.mxu0
  %2478 = vdwg.mxu0
  %2479 = vmatprep.subr.bf16.mxu0 0
  %2480 = vmatpush1.bf16.msra.mxu0 %v485
  %2481 = vmatprep.subr.bf16.mxu0 0
  %2482 = vmatpush1.bf16.msra.mxu0 %v484
  %2483 = vmatprep.subr.bf16.mxu0 0
  %2484 = vmatpush1.bf16.msra.mxu0 %v483
  %2485 = vmatprep.subr.bf16.mxu0 0
  %2486 = vmatpush1.bf16.msra.mxu0 %v482
  %2487 = vmatprep.subr.bf16.mxu0 0
  %2488 = vmatpush1.bf16.msra.mxu0 %v481
  %2489 = vmatprep.subr.bf16.mxu0 0
  %2490 = vmatpush1.bf16.msra.mxu0 %v480
  %2491 = vmatprep.subr.bf16.mxu0 0
  %2492 = vmatpush1.bf16.msra.mxu0 %v479
  %2493 = vmatprep.subr.bf16.mxu0 0
  %2494 = vmatpush1.bf16.msra.mxu0 %v478
  %2495 = vmatprep.subr.bf16.mxu0 0
  %2496 = vmatpush2.bf16.msra.mxu0 %v493
  %2497 = vmatprep.subr.bf16.mxu0 0
  %2498 = vmatpush2.bf16.msra.mxu0 %v492
  %2499 = vmatprep.subr.bf16.mxu0 0
  %2500 = vmatpush2.bf16.msra.mxu0 %v491
  %2501 = vmatprep.subr.bf16.mxu0 0
  %2502 = vmatpush2.bf16.msra.mxu0 %v490
  %2503 = vmatprep.subr.bf16.mxu0 0
  %2504 = vmatpush2.bf16.msra.mxu0 %v489
  %2505 = vmatprep.subr.bf16.mxu0 0
  %2506 = vmatpush2.bf16.msra.mxu0 %v488
  %2507 = vmatprep.subr.bf16.mxu0 0
  %2508 = vmatpush2.bf16.msra.mxu0 %v487
  %2509 = vmatprep.subr.bf16.mxu0 0
  %2510 = vmatpush2.bf16.msra.mxu0 %v486
  %2511 = vmatprep.mubr.bf16.mxu0 %v2425
  %2512 = vmatmul.mubr.bf16.gmra.mxu0 %v2424
  %v2513 = vpop.f32.mrf.mxu0
  %v2514 = vadd.f32 %v2473, %v2513
  %v2515 = vpop.f32.mrf.mxu0
  %v2516 = vpop.f32.mrf.mxu0
  %v2517 = vadd.f32 %v2476, %v2516
  %v2518 = vpop.f32.mrf.mxu0
  %2519 = vdwg.mxu0
  %2520 = vmatprep.subr.bf16.mxu0 0
  %2521 = vmatpush1.bf16.msra.mxu0 %v501
  %2522 = vmatprep.subr.bf16.mxu0 0
  %2523 = vmatpush1.bf16.msra.mxu0 %v500
  %2524 = vmatprep.subr.bf16.mxu0 0
  %2525 = vmatpush1.bf16.msra.mxu0 %v499
  %2526 = vmatprep.subr.bf16.mxu0 0
  %2527 = vmatpush1.bf16.msra.mxu0 %v498
  %2528 = vmatprep.subr.bf16.mxu0 0
  %2529 = vmatpush1.bf16.msra.mxu0 %v497
  %2530 = vmatprep.subr.bf16.mxu0 0
  %2531 = vmatpush1.bf16.msra.mxu0 %v496
  %2532 = vmatprep.subr.bf16.mxu0 0
  %2533 = vmatpush1.bf16.msra.mxu0 %v495
  %2534 = vmatprep.subr.bf16.mxu0 0
  %2535 = vmatpush1.bf16.msra.mxu0 %v494
  %2536 = vmatprep.subr.bf16.mxu0 0
  %2537 = vmatpush2.bf16.msra.mxu0 %v509
  %2538 = vmatprep.subr.bf16.mxu0 0
  %2539 = vmatpush2.bf16.msra.mxu0 %v508
  %2540 = vmatprep.subr.bf16.mxu0 0
  %2541 = vmatpush2.bf16.msra.mxu0 %v507
  %2542 = vmatprep.subr.bf16.mxu0 0
  %2543 = vmatpush2.bf16.msra.mxu0 %v506
  %2544 = vmatprep.subr.bf16.mxu0 0
  %2545 = vmatpush2.bf16.msra.mxu0 %v505
  %2546 = vmatprep.subr.bf16.mxu0 0
  %2547 = vmatpush2.bf16.msra.mxu0 %v504
  %2548 = vmatprep.subr.bf16.mxu0 0
  %2549 = vmatpush2.bf16.msra.mxu0 %v503
  %2550 = vmatprep.subr.bf16.mxu0 0
  %2551 = vmatpush2.bf16.msra.mxu0 %v502
  %2552 = vmatprep.mubr.bf16.mxu0 %v2427
  %2553 = vmatmul.mubr.bf16.gmra.mxu0 %v2426
  %v2554 = vpop.f32.mrf.mxu0
  %v2555 = vadd.f32 %v2514, %v2554
  %v2556 = vpop.f32.mrf.mxu0
  %v2557 = vpop.f32.mrf.mxu0
  %v2558 = vadd.f32 %v2517, %v2557
  %v2559 = vpop.f32.mrf.mxu0
  %2560 = vdwg.mxu0
  %2561 = vmatprep.subr.bf16.mxu0 0
  %2562 = vmatpush1.bf16.msra.mxu0 %v517
  %2563 = vmatprep.subr.bf16.mxu0 0
  %2564 = vmatpush1.bf16.msra.mxu0 %v516
  %2565 = vmatprep.subr.bf16.mxu0 0
  %2566 = vmatpush1.bf16.msra.mxu0 %v515
  %2567 = vmatprep.subr.bf16.mxu0 0
  %2568 = vmatpush1.bf16.msra.mxu0 %v514
  %2569 = vmatprep.subr.bf16.mxu0 0
  %2570 = vmatpush1.bf16.msra.mxu0 %v513
  %2571 = vmatprep.subr.bf16.mxu0 0
  %2572 = vmatpush1.bf16.msra.mxu0 %v512
  %2573 = vmatprep.subr.bf16.mxu0 0
  %2574 = vmatpush1.bf16.msra.mxu0 %v511
  %2575 = vmatprep.subr.bf16.mxu0 0
  %2576 = vmatpush1.bf16.msra.mxu0 %v510
  %2577 = vmatprep.subr.bf16.mxu0 0
  %2578 = vmatpush2.bf16.msra.mxu0 %v525
  %2579 = vmatprep.subr.bf16.mxu0 0
  %2580 = vmatpush2.bf16.msra.mxu0 %v524
  %2581 = vmatprep.subr.bf16.mxu0 0
  %2582 = vmatpush2.bf16.msra.mxu0 %v523
  %2583 = vmatprep.subr.bf16.mxu0 0
  %2584 = vmatpush2.bf16.msra.mxu0 %v522
  %2585 = vmatprep.subr.bf16.mxu0 0
  %2586 = vmatpush2.bf16.msra.mxu0 %v521
  %2587 = vmatprep.subr.bf16.mxu0 0
  %2588 = vmatpush2.bf16.msra.mxu0 %v520
  %2589 = vmatprep.subr.bf16.mxu0 0
  %2590 = vmatpush2.bf16.msra.mxu0 %v519
  %2591 = vmatprep.subr.bf16.mxu0 0
  %2592 = vmatpush2.bf16.msra.mxu0 %v518
  %2593 = vmatprep.mubr.bf16.mxu0 %v2429
  %2594 = vmatmul.mubr.bf16.gmra.mxu0 %v2428
  %v2595 = vpop.f32.mrf.mxu0
  %v2596 = vadd.f32 %v2555, %v2595
  %v2597 = vpop.f32.mrf.mxu0
  %v2598 = vpop.f32.mrf.mxu0
  %v2599 = vadd.f32 %v2558, %v2598
  %v2600 = vpop.f32.mrf.mxu0
  %2601 = vdwg.mxu0
  %v2602 = vadd.f32 %v2596, %v2599
  %v2603 = vrot.slane %v2602, 4
  %v2604 = vadd.f32 %v2602, %v2603
  %v2605 = vrot.slane %v2604, 2
  %v2606 = vadd.f32 %v2604, %v2605
  %v2607 = vrot.slane %v2606, 1
  %v2608 = vadd.f32 %v2606, %v2607
  %v2609 = vadd.f32 %v2378, %v2608
  %v2610 = vmul.f32 %v2596, %v2596
  %v2611 = vmul.f32 %v2599, %v2599
  %v2612 = vadd.f32 %v2610, %v2611
  %v2613 = vrot.slane %v2612, 4
  %v2614 = vadd.f32 %v2612, %v2613
  %v2615 = vrot.slane %v2614, 2
  %v2616 = vadd.f32 %v2614, %v2615
  %v2617 = vrot.slane %v2616, 1
  %v2618 = vadd.f32 %v2616, %v2617
  %v2619 = vadd.f32 %v2388, %v2618
  %v2620 = vmul.f32 %v2609, 0.055555556
  %v2621 = vmul.f32 %v2619, 0.055555556
  %v2622 = vmul.f32 %v2620, %v2620
  %v2623 = vsub.f32 %v2621, %v2622
  %v2624 = vmax.f32 %v2623, 0.0
  %v2625 = vld [vmem:[%s2] sm:$0x1]
  %v2626 = vadd.f32 %v2624, 1e-05
  %v2627 = vrsqrt.pop %v2626
  %v2628 = vmul.f32 %v2625, %v2627
  %v2629 = vld [vmem:[%s3] sm:$0x1]
  %v2630 = vmul.f32 %v2620, %v2628
  %v2631 = vsub.f32 %v2629, %v2630
  %v2633 = vlaneseq
  %v2634 = vshrl.u32 %v2633, 7
  %v2635 = vsub.s32 0, %v2634
  %v2636 = vrot.slane %v2628, %v2635
  %v2638 = vmul.f32 %v748, %v2636
  %v2639 = vmul.f32 %v751, %v2636
  %v2641 = vlaneseq
  %v2642 = vshrl.u32 %v2641, 7
  %v2643 = vsub.s32 0, %v2642
  %v2644 = vrot.slane %v2631, %v2643
  %v2646 = vadd.f32 %v2638, %v2644
  %v2647 = vadd.f32 %v2639, %v2644
  %v2648 = vmax.f32 %v2646, 0.0
  %v2649 = vmax.f32 %v2647, 0.0
  %v2650 = vpack.c.bf16 %v2649, %v2648
  %v2651 = vld [vmem:[%s4] sm:$0xff]
  %v2652 = vld [vmem:[%s4 + $0x8] sm:$0xff]
  %v2653 = vld [vmem:[%s4 + $0x10] sm:$0xff]
  %v2654 = vld [vmem:[%s4 + $0x18] sm:$0xff]
  %v2655 = vld [vmem:[%s4 + $0x20] sm:$0xff]
  %v2656 = vld [vmem:[%s4 + $0x28] sm:$0xff]
  %v2657 = vld [vmem:[%s4 + $0x30] sm:$0xff]
  %v2658 = vld [vmem:[%s4 + $0x38] sm:$0xff]
  %v2659 = vld [vmem:[%s4 + $0x40] sm:$0xff]
  %v2660 = vld [vmem:[%s4 + $0x48] sm:$0xff]
  %v2661 = vld [vmem:[%s4 + $0x50] sm:$0xff]
  %v2662 = vld [vmem:[%s4 + $0x58] sm:$0xff]
  %v2663 = vld [vmem:[%s4 + $0x60] sm:$0xff]
  %v2664 = vld [vmem:[%s4 + $0x68] sm:$0xff]
  %v2665 = vld [vmem:[%s4 + $0x70] sm:$0xff]
  %v2666 = vld [vmem:[%s4 + $0x78] sm:$0xff]
  %v2667 = vld [vmem:[%s4 + $0x80] sm:$0xff]
  %v2668 = vld [vmem:[%s4 + $0x88] sm:$0xff]
  %v2669 = vld [vmem:[%s4 + $0x90] sm:$0xff]
  %v2670 = vld [vmem:[%s4 + $0x98] sm:$0xff]
  %v2671 = vld [vmem:[%s4 + $0xa0] sm:$0xff]
  %v2672 = vld [vmem:[%s4 + $0xa8] sm:$0xff]
  %v2673 = vld [vmem:[%s4 + $0xb0] sm:$0xff]
  %v2674 = vld [vmem:[%s4 + $0xb8] sm:$0xff]
  %v2675 = vld [vmem:[%s4 + $0xc0] sm:$0xff]
  %v2676 = vld [vmem:[%s4 + $0xc8] sm:$0xff]
  %v2677 = vld [vmem:[%s4 + $0xd0] sm:$0xff]
  %v2678 = vld [vmem:[%s4 + $0xd8] sm:$0xff]
  %v2679 = vld [vmem:[%s4 + $0xe0] sm:$0xff]
  %v2680 = vld [vmem:[%s4 + $0xe8] sm:$0xff]
  %v2681 = vld [vmem:[%s4 + $0xf0] sm:$0xff]
  %v2682 = vld [vmem:[%s4 + $0xf8] sm:$0xff]
  %v2683 = vmul.f32 %v979, %v2636
  %v2684 = vmul.f32 %v982, %v2636
  %v2685 = vadd.f32 %v2683, %v2644
  %v2686 = vadd.f32 %v2684, %v2644
  %v2687 = vmax.f32 %v2685, 0.0
  %v2688 = vmax.f32 %v2686, 0.0
  %v2689 = vpack.c.bf16 %v2688, %v2687
  %s2690 = scalar_lea.vmem %s4, 256
  %v2691 = vld [vmem:[%s2690] sm:$0xff]
  %v2692 = vld [vmem:[%s2690 + $0x8] sm:$0xff]
  %v2693 = vld [vmem:[%s2690 + $0x10] sm:$0xff]
  %v2694 = vld [vmem:[%s2690 + $0x18] sm:$0xff]
  %v2695 = vld [vmem:[%s2690 + $0x20] sm:$0xff]
  %v2696 = vld [vmem:[%s2690 + $0x28] sm:$0xff]
  %v2697 = vld [vmem:[%s2690 + $0x30] sm:$0xff]
  %v2698 = vld [vmem:[%s2690 + $0x38] sm:$0xff]
  %v2699 = vld [vmem:[%s2690 + $0x40] sm:$0xff]
  %v2700 = vld [vmem:[%s2690 + $0x48] sm:$0xff]
  %v2701 = vld [vmem:[%s2690 + $0x50] sm:$0xff]
  %v2702 = vld [vmem:[%s2690 + $0x58] sm:$0xff]
  %v2703 = vld [vmem:[%s2690 + $0x60] sm:$0xff]
  %v2704 = vld [vmem:[%s2690 + $0x68] sm:$0xff]
  %v2705 = vld [vmem:[%s2690 + $0x70] sm:$0xff]
  %v2706 = vld [vmem:[%s2690 + $0x78] sm:$0xff]
  %v2707 = vld [vmem:[%s2690 + $0x80] sm:$0xff]
  %v2708 = vld [vmem:[%s2690 + $0x88] sm:$0xff]
  %v2709 = vld [vmem:[%s2690 + $0x90] sm:$0xff]
  %v2710 = vld [vmem:[%s2690 + $0x98] sm:$0xff]
  %v2711 = vld [vmem:[%s2690 + $0xa0] sm:$0xff]
  %v2712 = vld [vmem:[%s2690 + $0xa8] sm:$0xff]
  %v2713 = vld [vmem:[%s2690 + $0xb0] sm:$0xff]
  %v2714 = vld [vmem:[%s2690 + $0xb8] sm:$0xff]
  %v2715 = vld [vmem:[%s2690 + $0xc0] sm:$0xff]
  %v2716 = vld [vmem:[%s2690 + $0xc8] sm:$0xff]
  %v2717 = vld [vmem:[%s2690 + $0xd0] sm:$0xff]
  %v2718 = vld [vmem:[%s2690 + $0xd8] sm:$0xff]
  %v2719 = vld [vmem:[%s2690 + $0xe0] sm:$0xff]
  %v2720 = vld [vmem:[%s2690 + $0xe8] sm:$0xff]
  %v2721 = vld [vmem:[%s2690 + $0xf0] sm:$0xff]
  %v2722 = vld [vmem:[%s2690 + $0xf8] sm:$0xff]
  %v2755 = vunpack.c.l.b16 %v2691
  %v2756 = vunpack.c.h.b16 %v2691
  %v2757 = vunpack.c.l.b16 %v2692
  %v2758 = vunpack.c.h.b16 %v2692
  %v2759 = vunpack.c.l.b16 %v2693
  %v2760 = vunpack.c.h.b16 %v2693
  %v2761 = vunpack.c.l.b16 %v2694
  %v2762 = vunpack.c.h.b16 %v2694
  %v2763 = vunpack.c.l.b16 %v2695
  %v2764 = vunpack.c.h.b16 %v2695
  %v2765 = vunpack.c.l.b16 %v2696
  %v2766 = vunpack.c.h.b16 %v2696
  %v2767 = vunpack.c.l.b16 %v2697
  %v2768 = vunpack.c.h.b16 %v2697
  %v2769 = vunpack.c.l.b16 %v2698
  %v2770 = vunpack.c.h.b16 %v2698
  %v2771 = vunpack.c.l.b16 %v2699
  %v2772 = vunpack.c.h.b16 %v2699
  %v2773 = vunpack.c.l.b16 %v2700
  %v2774 = vunpack.c.h.b16 %v2700
  %v2775 = vunpack.c.l.b16 %v2701
  %v2776 = vunpack.c.h.b16 %v2701
  %v2777 = vunpack.c.l.b16 %v2702
  %v2778 = vunpack.c.h.b16 %v2702
  %v2779 = vunpack.c.l.b16 %v2703
  %v2780 = vunpack.c.h.b16 %v2703
  %v2781 = vunpack.c.l.b16 %v2704
  %v2782 = vunpack.c.h.b16 %v2704
  %v2783 = vunpack.c.l.b16 %v2705
  %v2784 = vunpack.c.h.b16 %v2705
  %v2785 = vunpack.c.l.b16 %v2706
  %v2786 = vunpack.c.h.b16 %v2706
  %v2787 = vunpack.c.l.b16 %v2707
  %v2788 = vunpack.c.h.b16 %v2707
  %v2789 = vunpack.c.l.b16 %v2708
  %v2790 = vunpack.c.h.b16 %v2708
  %v2791 = vunpack.c.l.b16 %v2709
  %v2792 = vunpack.c.h.b16 %v2709
  %v2793 = vunpack.c.l.b16 %v2710
  %v2794 = vunpack.c.h.b16 %v2710
  %v2795 = vunpack.c.l.b16 %v2711
  %v2796 = vunpack.c.h.b16 %v2711
  %v2797 = vunpack.c.l.b16 %v2712
  %v2798 = vunpack.c.h.b16 %v2712
  %v2799 = vunpack.c.l.b16 %v2713
  %v2800 = vunpack.c.h.b16 %v2713
  %v2801 = vunpack.c.l.b16 %v2714
  %v2802 = vunpack.c.h.b16 %v2714
  %v2803 = vunpack.c.l.b16 %v2715
  %v2804 = vunpack.c.h.b16 %v2715
  %v2805 = vunpack.c.l.b16 %v2716
  %v2806 = vunpack.c.h.b16 %v2716
  %v2807 = vunpack.c.l.b16 %v2717
  %v2808 = vunpack.c.h.b16 %v2717
  %v2809 = vunpack.c.l.b16 %v2718
  %v2810 = vunpack.c.h.b16 %v2718
  %v2811 = vunpack.c.l.b16 %v2719
  %v2812 = vunpack.c.h.b16 %v2719
  %v2813 = vunpack.c.l.b16 %v2720
  %v2814 = vunpack.c.h.b16 %v2720
  %v2815 = vunpack.c.l.b16 %v2721
  %v2816 = vunpack.c.h.b16 %v2721
  %v2817 = vunpack.c.l.b16 %v2722
  %v2818 = vunpack.c.h.b16 %v2722
  %v2819 = vpack.c.b16 %v2759, %v2755
  %v2820 = vpack.c.b16 %v2760, %v2756
  %v2821 = vpack.c.b16 %v2761, %v2757
  %v2822 = vpack.c.b16 %v2762, %v2758
  %v2823 = vpack.c.b16 %v2767, %v2763
  %v2824 = vpack.c.b16 %v2768, %v2764
  %v2825 = vpack.c.b16 %v2769, %v2765
  %v2826 = vpack.c.b16 %v2770, %v2766
  %v2827 = vpack.c.b16 %v2775, %v2771
  %v2828 = vpack.c.b16 %v2776, %v2772
  %v2829 = vpack.c.b16 %v2777, %v2773
  %v2830 = vpack.c.b16 %v2778, %v2774
  %v2831 = vpack.c.b16 %v2783, %v2779
  %v2832 = vpack.c.b16 %v2784, %v2780
  %v2833 = vpack.c.b16 %v2785, %v2781
  %v2834 = vpack.c.b16 %v2786, %v2782
  %v2835 = vpack.c.b16 %v2791, %v2787
  %v2836 = vpack.c.b16 %v2792, %v2788
  %v2837 = vpack.c.b16 %v2793, %v2789
  %v2838 = vpack.c.b16 %v2794, %v2790
  %v2839 = vpack.c.b16 %v2799, %v2795
  %v2840 = vpack.c.b16 %v2800, %v2796
  %v2841 = vpack.c.b16 %v2801, %v2797
  %v2842 = vpack.c.b16 %v2802, %v2798
  %v2843 = vpack.c.b16 %v2807, %v2803
  %v2844 = vpack.c.b16 %v2808, %v2804
  %v2845 = vpack.c.b16 %v2809, %v2805
  %v2846 = vpack.c.b16 %v2810, %v2806
  %v2847 = vpack.c.b16 %v2815, %v2811
  %v2848 = vpack.c.b16 %v2816, %v2812
  %v2849 = vpack.c.b16 %v2817, %v2813
  %v2850 = vpack.c.b16 %v2818, %v2814
  %2883 = vmatprep.subr.bf16.mxu0 %v2848
  %2884 = vmatpush1.bf16.msra.mxu0 %v2847
  %2885 = vmatprep.subr.bf16.mxu0 %v2844
  %2886 = vmatpush1.bf16.msra.mxu0 %v2843
  %2887 = vmatprep.subr.bf16.mxu0 %v2840
  %2888 = vmatpush1.bf16.msra.mxu0 %v2839
  %2889 = vmatprep.subr.bf16.mxu0 %v2836
  %2890 = vmatpush1.bf16.msra.mxu0 %v2835
  %2891 = vmatprep.subr.bf16.mxu0 %v2832
  %2892 = vmatpush1.bf16.msra.mxu0 %v2831
  %2893 = vmatprep.subr.bf16.mxu0 %v2828
  %2894 = vmatpush1.bf16.msra.mxu0 %v2827
  %2895 = vmatprep.subr.bf16.mxu0 %v2824
  %2896 = vmatpush1.bf16.msra.mxu0 %v2823
  %2897 = vmatprep.subr.bf16.mxu0 %v2820
  %2898 = vmatpush1.bf16.msra.mxu0 %v2819
  %2899 = vmatprep.subr.bf16.mxu0 0
  %2900 = vmatpush2.bf16.msra.mxu0 0
  %2901 = vmatprep.subr.bf16.mxu0 0
  %2902 = vmatpush2.bf16.msra.mxu0 0
  %2903 = vmatprep.subr.bf16.mxu0 0
  %2904 = vmatpush2.bf16.msra.mxu0 0
  %2905 = vmatprep.subr.bf16.mxu0 0
  %2906 = vmatpush2.bf16.msra.mxu0 0
  %2907 = vmatprep.subr.bf16.mxu0 0
  %2908 = vmatpush2.bf16.msra.mxu0 0
  %2909 = vmatprep.subr.bf16.mxu0 0
  %2910 = vmatpush2.bf16.msra.mxu0 0
  %2911 = vmatprep.subr.bf16.mxu0 0
  %2912 = vmatpush2.bf16.msra.mxu0 0
  %2913 = vmatprep.subr.bf16.mxu0 0
  %2914 = vmatpush2.bf16.msra.mxu0 0
  %2915 = vmatprep.mubr.bf16.mxu0 0
  %2916 = vmatmul.mubr.bf16.gmra.mxu0 %v2689
  %v2917 = vpop.f32.mrf.mxu0
  %v2918 = vadd.f32 0.0, %v2917
  %v2919 = vpop.f32.mrf.mxu0
  %v2920 = vadd.f32 0.0, %v2919
  %v2921 = vpop.f32.mrf.mxu0
  %v2922 = vadd.f32 0.0, %v2921
  %v2923 = vpop.f32.mrf.mxu0
  %v2924 = vadd.f32 0.0, %v2923
  %2925 = vdwg.mxu0
  %2926 = vmatprep.subr.bf16.mxu0 %v2850
  %2927 = vmatpush1.bf16.msra.mxu0 %v2849
  %2928 = vmatprep.subr.bf16.mxu0 %v2846
  %2929 = vmatpush1.bf16.msra.mxu0 %v2845
  %2930 = vmatprep.subr.bf16.mxu0 %v2842
  %2931 = vmatpush1.bf16.msra.mxu0 %v2841
  %2932 = vmatprep.subr.bf16.mxu0 %v2838
  %2933 = vmatpush1.bf16.msra.mxu0 %v2837
  %2934 = vmatprep.subr.bf16.mxu0 %v2834
  %2935 = vmatpush1.bf16.msra.mxu0 %v2833
  %2936 = vmatprep.subr.bf16.mxu0 %v2830
  %2937 = vmatpush1.bf16.msra.mxu0 %v2829
  %2938 = vmatprep.subr.bf16.mxu0 %v2826
  %2939 = vmatpush1.bf16.msra.mxu0 %v2825
  %2940 = vmatprep.subr.bf16.mxu0 %v2822
  %2941 = vmatpush1.bf16.msra.mxu0 %v2821
  %2942 = vmatprep.subr.bf16.mxu0 0
  %2943 = vmatpush2.bf16.msra.mxu0 0
  %2944 = vmatprep.subr.bf16.mxu0 0
  %2945 = vmatpush2.bf16.msra.mxu0 0
  %2946 = vmatprep.subr.bf16.mxu0 0
  %2947 = vmatpush2.bf16.msra.mxu0 0
  %2948 = vmatprep.subr.bf16.mxu0 0
  %2949 = vmatpush2.bf16.msra.mxu0 0
  %2950 = vmatprep.subr.bf16.mxu0 0
  %2951 = vmatpush2.bf16.msra.mxu0 0
  %2952 = vmatprep.subr.bf16.mxu0 0
  %2953 = vmatpush2.bf16.msra.mxu0 0
  %2954 = vmatprep.subr.bf16.mxu0 0
  %2955 = vmatpush2.bf16.msra.mxu0 0
  %2956 = vmatprep.subr.bf16.mxu0 0
  %2957 = vmatpush2.bf16.msra.mxu0 0
  %2958 = vmatprep.mubr.bf16.mxu0 0
  %2959 = vmatmul.mubr.bf16.gmra.mxu0 %v2689
  %v2960 = vpop.f32.mrf.mxu0
  %v2961 = vadd.f32 0.0, %v2960
  %v2962 = vpop.f32.mrf.mxu0
  %v2963 = vadd.f32 0.0, %v2962
  %v2964 = vpop.f32.mrf.mxu0
  %v2965 = vadd.f32 0.0, %v2964
  %v2966 = vpop.f32.mrf.mxu0
  %v2967 = vadd.f32 0.0, %v2966
  %2968 = vdwg.mxu0
  %v3001 = vunpack.c.l.b16 %v2651
  %v3002 = vunpack.c.h.b16 %v2651
  %v3003 = vunpack.c.l.b16 %v2652
  %v3004 = vunpack.c.h.b16 %v2652
  %v3005 = vunpack.c.l.b16 %v2653
  %v3006 = vunpack.c.h.b16 %v2653
  %v3007 = vunpack.c.l.b16 %v2654
  %v3008 = vunpack.c.h.b16 %v2654
  %v3009 = vunpack.c.l.b16 %v2655
  %v3010 = vunpack.c.h.b16 %v2655
  %v3011 = vunpack.c.l.b16 %v2656
  %v3012 = vunpack.c.h.b16 %v2656
  %v3013 = vunpack.c.l.b16 %v2657
  %v3014 = vunpack.c.h.b16 %v2657
  %v3015 = vunpack.c.l.b16 %v2658
  %v3016 = vunpack.c.h.b16 %v2658
  %v3017 = vunpack.c.l.b16 %v2659
  %v3018 = vunpack.c.h.b16 %v2659
  %v3019 = vunpack.c.l.b16 %v2660
  %v3020 = vunpack.c.h.b16 %v2660
  %v3021 = vunpack.c.l.b16 %v2661
  %v3022 = vunpack.c.h.b16 %v2661
  %v3023 = vunpack.c.l.b16 %v2662
  %v3024 = vunpack.c.h.b16 %v2662
  %v3025 = vunpack.c.l.b16 %v2663
  %v3026 = vunpack.c.h.b16 %v2663
  %v3027 = vunpack.c.l.b16 %v2664
  %v3028 = vunpack.c.h.b16 %v2664
  %v3029 = vunpack.c.l.b16 %v2665
  %v3030 = vunpack.c.h.b16 %v2665
  %v3031 = vunpack.c.l.b16 %v2666
  %v3032 = vunpack.c.h.b16 %v2666
  %v3033 = vunpack.c.l.b16 %v2667
  %v3034 = vunpack.c.h.b16 %v2667
  %v3035 = vunpack.c.l.b16 %v2668
  %v3036 = vunpack.c.h.b16 %v2668
  %v3037 = vunpack.c.l.b16 %v2669
  %v3038 = vunpack.c.h.b16 %v2669
  %v3039 = vunpack.c.l.b16 %v2670
  %v3040 = vunpack.c.h.b16 %v2670
  %v3041 = vunpack.c.l.b16 %v2671
  %v3042 = vunpack.c.h.b16 %v2671
  %v3043 = vunpack.c.l.b16 %v2672
  %v3044 = vunpack.c.h.b16 %v2672
  %v3045 = vunpack.c.l.b16 %v2673
  %v3046 = vunpack.c.h.b16 %v2673
  %v3047 = vunpack.c.l.b16 %v2674
  %v3048 = vunpack.c.h.b16 %v2674
  %v3049 = vunpack.c.l.b16 %v2675
  %v3050 = vunpack.c.h.b16 %v2675
  %v3051 = vunpack.c.l.b16 %v2676
  %v3052 = vunpack.c.h.b16 %v2676
  %v3053 = vunpack.c.l.b16 %v2677
  %v3054 = vunpack.c.h.b16 %v2677
  %v3055 = vunpack.c.l.b16 %v2678
  %v3056 = vunpack.c.h.b16 %v2678
  %v3057 = vunpack.c.l.b16 %v2679
  %v3058 = vunpack.c.h.b16 %v2679
  %v3059 = vunpack.c.l.b16 %v2680
  %v3060 = vunpack.c.h.b16 %v2680
  %v3061 = vunpack.c.l.b16 %v2681
  %v3062 = vunpack.c.h.b16 %v2681
  %v3063 = vunpack.c.l.b16 %v2682
  %v3064 = vunpack.c.h.b16 %v2682
  %v3065 = vpack.c.b16 %v3005, %v3001
  %v3066 = vpack.c.b16 %v3006, %v3002
  %v3067 = vpack.c.b16 %v3007, %v3003
  %v3068 = vpack.c.b16 %v3008, %v3004
  %v3069 = vpack.c.b16 %v3013, %v3009
  %v3070 = vpack.c.b16 %v3014, %v3010
  %v3071 = vpack.c.b16 %v3015, %v3011
  %v3072 = vpack.c.b16 %v3016, %v3012
  %v3073 = vpack.c.b16 %v3021, %v3017
  %v3074 = vpack.c.b16 %v3022, %v3018
  %v3075 = vpack.c.b16 %v3023, %v3019
  %v3076 = vpack.c.b16 %v3024, %v3020
  %v3077 = vpack.c.b16 %v3029, %v3025
  %v3078 = vpack.c.b16 %v3030, %v3026
  %v3079 = vpack.c.b16 %v3031, %v3027
  %v3080 = vpack.c.b16 %v3032, %v3028
  %v3081 = vpack.c.b16 %v3037, %v3033
  %v3082 = vpack.c.b16 %v3038, %v3034
  %v3083 = vpack.c.b16 %v3039, %v3035
  %v3084 = vpack.c.b16 %v3040, %v3036
  %v3085 = vpack.c.b16 %v3045, %v3041
  %v3086 = vpack.c.b16 %v3046, %v3042
  %v3087 = vpack.c.b16 %v3047, %v3043
  %v3088 = vpack.c.b16 %v3048, %v3044
  %v3089 = vpack.c.b16 %v3053, %v3049
  %v3090 = vpack.c.b16 %v3054, %v3050
  %v3091 = vpack.c.b16 %v3055, %v3051
  %v3092 = vpack.c.b16 %v3056, %v3052
  %v3093 = vpack.c.b16 %v3061, %v3057
  %v3094 = vpack.c.b16 %v3062, %v3058
  %v3095 = vpack.c.b16 %v3063, %v3059
  %v3096 = vpack.c.b16 %v3064, %v3060
  %3129 = vmatprep.subr.bf16.mxu0 %v3094
  %3130 = vmatpush1.bf16.msra.mxu0 %v3093
  %3131 = vmatprep.subr.bf16.mxu0 %v3090
  %3132 = vmatpush1.bf16.msra.mxu0 %v3089
  %3133 = vmatprep.subr.bf16.mxu0 %v3086
  %3134 = vmatpush1.bf16.msra.mxu0 %v3085
  %3135 = vmatprep.subr.bf16.mxu0 %v3082
  %3136 = vmatpush1.bf16.msra.mxu0 %v3081
  %3137 = vmatprep.subr.bf16.mxu0 %v3078
  %3138 = vmatpush1.bf16.msra.mxu0 %v3077
  %3139 = vmatprep.subr.bf16.mxu0 %v3074
  %3140 = vmatpush1.bf16.msra.mxu0 %v3073
  %3141 = vmatprep.subr.bf16.mxu0 %v3070
  %3142 = vmatpush1.bf16.msra.mxu0 %v3069
  %3143 = vmatprep.subr.bf16.mxu0 %v3066
  %3144 = vmatpush1.bf16.msra.mxu0 %v3065
  %3145 = vmatprep.subr.bf16.mxu0 0
  %3146 = vmatpush2.bf16.msra.mxu0 0
  %3147 = vmatprep.subr.bf16.mxu0 0
  %3148 = vmatpush2.bf16.msra.mxu0 0
  %3149 = vmatprep.subr.bf16.mxu0 0
  %3150 = vmatpush2.bf16.msra.mxu0 0
  %3151 = vmatprep.subr.bf16.mxu0 0
  %3152 = vmatpush2.bf16.msra.mxu0 0
  %3153 = vmatprep.subr.bf16.mxu0 0
  %3154 = vmatpush2.bf16.msra.mxu0 0
  %3155 = vmatprep.subr.bf16.mxu0 0
  %3156 = vmatpush2.bf16.msra.mxu0 0
  %3157 = vmatprep.subr.bf16.mxu0 0
  %3158 = vmatpush2.bf16.msra.mxu0 0
  %3159 = vmatprep.subr.bf16.mxu0 0
  %3160 = vmatpush2.bf16.msra.mxu0 0
  %3161 = vmatprep.mubr.bf16.mxu0 0
  %3162 = vmatmul.mubr.bf16.gmra.mxu0 %v2650
  %v3163 = vpop.f32.mrf.mxu0
  %v3164 = vadd.f32 %v2918, %v3163
  %v3165 = vpop.f32.mrf.mxu0
  %v3166 = vadd.f32 %v2920, %v3165
  %v3167 = vpop.f32.mrf.mxu0
  %v3168 = vadd.f32 %v2922, %v3167
  %v3169 = vpop.f32.mrf.mxu0
  %v3170 = vadd.f32 %v2924, %v3169
  %3171 = vdwg.mxu0
  %3172 = vmatprep.subr.bf16.mxu0 %v3096
  %3173 = vmatpush1.bf16.msra.mxu0 %v3095
  %3174 = vmatprep.subr.bf16.mxu0 %v3092
  %3175 = vmatpush1.bf16.msra.mxu0 %v3091
  %3176 = vmatprep.subr.bf16.mxu0 %v3088
  %3177 = vmatpush1.bf16.msra.mxu0 %v3087
  %3178 = vmatprep.subr.bf16.mxu0 %v3084
  %3179 = vmatpush1.bf16.msra.mxu0 %v3083
  %3180 = vmatprep.subr.bf16.mxu0 %v3080
  %3181 = vmatpush1.bf16.msra.mxu0 %v3079
  %3182 = vmatprep.subr.bf16.mxu0 %v3076
  %3183 = vmatpush1.bf16.msra.mxu0 %v3075
  %3184 = vmatprep.subr.bf16.mxu0 %v3072
  %3185 = vmatpush1.bf16.msra.mxu0 %v3071
  %3186 = vmatprep.subr.bf16.mxu0 %v3068
  %3187 = vmatpush1.bf16.msra.mxu0 %v3067
  %3188 = vmatprep.subr.bf16.mxu0 0
  %3189 = vmatpush2.bf16.msra.mxu0 0
  %3190 = vmatprep.subr.bf16.mxu0 0
  %3191 = vmatpush2.bf16.msra.mxu0 0
  %3192 = vmatprep.subr.bf16.mxu0 0
  %3193 = vmatpush2.bf16.msra.mxu0 0
  %3194 = vmatprep.subr.bf16.mxu0 0
  %3195 = vmatpush2.bf16.msra.mxu0 0
  %3196 = vmatprep.subr.bf16.mxu0 0
  %3197 = vmatpush2.bf16.msra.mxu0 0
  %3198 = vmatprep.subr.bf16.mxu0 0
  %3199 = vmatpush2.bf16.msra.mxu0 0
  %3200 = vmatprep.subr.bf16.mxu0 0
  %3201 = vmatpush2.bf16.msra.mxu0 0
  %3202 = vmatprep.subr.bf16.mxu0 0
  %3203 = vmatpush2.bf16.msra.mxu0 0
  %3204 = vmatprep.mubr.bf16.mxu0 0
  %3205 = vmatmul.mubr.bf16.gmra.mxu0 %v2650
  %v3206 = vpop.f32.mrf.mxu0
  %v3207 = vadd.f32 %v2961, %v3206
  %v3208 = vpop.f32.mrf.mxu0
  %v3209 = vadd.f32 %v2963, %v3208
  %v3210 = vpop.f32.mrf.mxu0
  %v3211 = vadd.f32 %v2965, %v3210
  %v3212 = vpop.f32.mrf.mxu0
  %v3213 = vadd.f32 %v2967, %v3212
  %3214 = vdwg.mxu0
  %v3215 = vmul.f32 %v1210, %v2636
  %v3216 = vmul.f32 %v1213, %v2636
  %v3217 = vadd.f32 %v3215, %v2644
  %v3218 = vadd.f32 %v3216, %v2644
  %v3219 = vmax.f32 %v3217, 0.0
  %v3220 = vmax.f32 %v3218, 0.0
  %v3221 = vpack.c.bf16 %v3220, %v3219
  %s3222 = scalar_lea.vmem %s4, 512
  %v3223 = vld [vmem:[%s3222] sm:$0xff]
  %v3224 = vld [vmem:[%s3222 + $0x8] sm:$0xff]
  %v3225 = vld [vmem:[%s3222 + $0x10] sm:$0xff]
  %v3226 = vld [vmem:[%s3222 + $0x18] sm:$0xff]
  %v3227 = vld [vmem:[%s3222 + $0x20] sm:$0xff]
  %v3228 = vld [vmem:[%s3222 + $0x28] sm:$0xff]
  %v3229 = vld [vmem:[%s3222 + $0x30] sm:$0xff]
  %v3230 = vld [vmem:[%s3222 + $0x38] sm:$0xff]
  %v3231 = vld [vmem:[%s3222 + $0x40] sm:$0xff]
  %v3232 = vld [vmem:[%s3222 + $0x48] sm:$0xff]
  %v3233 = vld [vmem:[%s3222 + $0x50] sm:$0xff]
  %v3234 = vld [vmem:[%s3222 + $0x58] sm:$0xff]
  %v3235 = vld [vmem:[%s3222 + $0x60] sm:$0xff]
  %v3236 = vld [vmem:[%s3222 + $0x68] sm:$0xff]
  %v3237 = vld [vmem:[%s3222 + $0x70] sm:$0xff]
  %v3238 = vld [vmem:[%s3222 + $0x78] sm:$0xff]
  %v3239 = vld [vmem:[%s3222 + $0x80] sm:$0xff]
  %v3240 = vld [vmem:[%s3222 + $0x88] sm:$0xff]
  %v3241 = vld [vmem:[%s3222 + $0x90] sm:$0xff]
  %v3242 = vld [vmem:[%s3222 + $0x98] sm:$0xff]
  %v3243 = vld [vmem:[%s3222 + $0xa0] sm:$0xff]
  %v3244 = vld [vmem:[%s3222 + $0xa8] sm:$0xff]
  %v3245 = vld [vmem:[%s3222 + $0xb0] sm:$0xff]
  %v3246 = vld [vmem:[%s3222 + $0xb8] sm:$0xff]
  %v3247 = vld [vmem:[%s3222 + $0xc0] sm:$0xff]
  %v3248 = vld [vmem:[%s3222 + $0xc8] sm:$0xff]
  %v3249 = vld [vmem:[%s3222 + $0xd0] sm:$0xff]
  %v3250 = vld [vmem:[%s3222 + $0xd8] sm:$0xff]
  %v3251 = vld [vmem:[%s3222 + $0xe0] sm:$0xff]
  %v3252 = vld [vmem:[%s3222 + $0xe8] sm:$0xff]
  %v3253 = vld [vmem:[%s3222 + $0xf0] sm:$0xff]
  %v3254 = vld [vmem:[%s3222 + $0xf8] sm:$0xff]
  %v3287 = vunpack.c.l.b16 %v3223
  %v3288 = vunpack.c.h.b16 %v3223
  %v3289 = vunpack.c.l.b16 %v3224
  %v3290 = vunpack.c.h.b16 %v3224
  %v3291 = vunpack.c.l.b16 %v3225
  %v3292 = vunpack.c.h.b16 %v3225
  %v3293 = vunpack.c.l.b16 %v3226
  %v3294 = vunpack.c.h.b16 %v3226
  %v3295 = vunpack.c.l.b16 %v3227
  %v3296 = vunpack.c.h.b16 %v3227
  %v3297 = vunpack.c.l.b16 %v3228
  %v3298 = vunpack.c.h.b16 %v3228
  %v3299 = vunpack.c.l.b16 %v3229
  %v3300 = vunpack.c.h.b16 %v3229
  %v3301 = vunpack.c.l.b16 %v3230
  %v3302 = vunpack.c.h.b16 %v3230
  %v3303 = vunpack.c.l.b16 %v3231
  %v3304 = vunpack.c.h.b16 %v3231
  %v3305 = vunpack.c.l.b16 %v3232
  %v3306 = vunpack.c.h.b16 %v3232
  %v3307 = vunpack.c.l.b16 %v3233
  %v3308 = vunpack.c.h.b16 %v3233
  %v3309 = vunpack.c.l.b16 %v3234
  %v3310 = vunpack.c.h.b16 %v3234
  %v3311 = vunpack.c.l.b16 %v3235
  %v3312 = vunpack.c.h.b16 %v3235
  %v3313 = vunpack.c.l.b16 %v3236
  %v3314 = vunpack.c.h.b16 %v3236
  %v3315 = vunpack.c.l.b16 %v3237
  %v3316 = vunpack.c.h.b16 %v3237
  %v3317 = vunpack.c.l.b16 %v3238
  %v3318 = vunpack.c.h.b16 %v3238
  %v3319 = vunpack.c.l.b16 %v3239
  %v3320 = vunpack.c.h.b16 %v3239
  %v3321 = vunpack.c.l.b16 %v3240
  %v3322 = vunpack.c.h.b16 %v3240
  %v3323 = vunpack.c.l.b16 %v3241
  %v3324 = vunpack.c.h.b16 %v3241
  %v3325 = vunpack.c.l.b16 %v3242
  %v3326 = vunpack.c.h.b16 %v3242
  %v3327 = vunpack.c.l.b16 %v3243
  %v3328 = vunpack.c.h.b16 %v3243
  %v3329 = vunpack.c.l.b16 %v3244
  %v3330 = vunpack.c.h.b16 %v3244
  %v3331 = vunpack.c.l.b16 %v3245
  %v3332 = vunpack.c.h.b16 %v3245
  %v3333 = vunpack.c.l.b16 %v3246
  %v3334 = vunpack.c.h.b16 %v3246
  %v3335 = vunpack.c.l.b16 %v3247
  %v3336 = vunpack.c.h.b16 %v3247
  %v3337 = vunpack.c.l.b16 %v3248
  %v3338 = vunpack.c.h.b16 %v3248
  %v3339 = vunpack.c.l.b16 %v3249
  %v3340 = vunpack.c.h.b16 %v3249
  %v3341 = vunpack.c.l.b16 %v3250
  %v3342 = vunpack.c.h.b16 %v3250
  %v3343 = vunpack.c.l.b16 %v3251
  %v3344 = vunpack.c.h.b16 %v3251
  %v3345 = vunpack.c.l.b16 %v3252
  %v3346 = vunpack.c.h.b16 %v3252
  %v3347 = vunpack.c.l.b16 %v3253
  %v3348 = vunpack.c.h.b16 %v3253
  %v3349 = vunpack.c.l.b16 %v3254
  %v3350 = vunpack.c.h.b16 %v3254
  %v3351 = vpack.c.b16 %v3291, %v3287
  %v3352 = vpack.c.b16 %v3292, %v3288
  %v3353 = vpack.c.b16 %v3293, %v3289
  %v3354 = vpack.c.b16 %v3294, %v3290
  %v3355 = vpack.c.b16 %v3299, %v3295
  %v3356 = vpack.c.b16 %v3300, %v3296
  %v3357 = vpack.c.b16 %v3301, %v3297
  %v3358 = vpack.c.b16 %v3302, %v3298
  %v3359 = vpack.c.b16 %v3307, %v3303
  %v3360 = vpack.c.b16 %v3308, %v3304
  %v3361 = vpack.c.b16 %v3309, %v3305
  %v3362 = vpack.c.b16 %v3310, %v3306
  %v3363 = vpack.c.b16 %v3315, %v3311
  %v3364 = vpack.c.b16 %v3316, %v3312
  %v3365 = vpack.c.b16 %v3317, %v3313
  %v3366 = vpack.c.b16 %v3318, %v3314
  %v3367 = vpack.c.b16 %v3323, %v3319
  %v3368 = vpack.c.b16 %v3324, %v3320
  %v3369 = vpack.c.b16 %v3325, %v3321
  %v3370 = vpack.c.b16 %v3326, %v3322
  %v3371 = vpack.c.b16 %v3331, %v3327
  %v3372 = vpack.c.b16 %v3332, %v3328
  %v3373 = vpack.c.b16 %v3333, %v3329
  %v3374 = vpack.c.b16 %v3334, %v3330
  %v3375 = vpack.c.b16 %v3339, %v3335
  %v3376 = vpack.c.b16 %v3340, %v3336
  %v3377 = vpack.c.b16 %v3341, %v3337
  %v3378 = vpack.c.b16 %v3342, %v3338
  %v3379 = vpack.c.b16 %v3347, %v3343
  %v3380 = vpack.c.b16 %v3348, %v3344
  %v3381 = vpack.c.b16 %v3349, %v3345
  %v3382 = vpack.c.b16 %v3350, %v3346
  %3415 = vmatprep.subr.bf16.mxu0 %v3380
  %3416 = vmatpush1.bf16.msra.mxu0 %v3379
  %3417 = vmatprep.subr.bf16.mxu0 %v3376
  %3418 = vmatpush1.bf16.msra.mxu0 %v3375
  %3419 = vmatprep.subr.bf16.mxu0 %v3372
  %3420 = vmatpush1.bf16.msra.mxu0 %v3371
  %3421 = vmatprep.subr.bf16.mxu0 %v3368
  %3422 = vmatpush1.bf16.msra.mxu0 %v3367
  %3423 = vmatprep.subr.bf16.mxu0 %v3364
  %3424 = vmatpush1.bf16.msra.mxu0 %v3363
  %3425 = vmatprep.subr.bf16.mxu0 %v3360
  %3426 = vmatpush1.bf16.msra.mxu0 %v3359
  %3427 = vmatprep.subr.bf16.mxu0 %v3356
  %3428 = vmatpush1.bf16.msra.mxu0 %v3355
  %3429 = vmatprep.subr.bf16.mxu0 %v3352
  %3430 = vmatpush1.bf16.msra.mxu0 %v3351
  %3431 = vmatprep.subr.bf16.mxu0 0
  %3432 = vmatpush2.bf16.msra.mxu0 0
  %3433 = vmatprep.subr.bf16.mxu0 0
  %3434 = vmatpush2.bf16.msra.mxu0 0
  %3435 = vmatprep.subr.bf16.mxu0 0
  %3436 = vmatpush2.bf16.msra.mxu0 0
  %3437 = vmatprep.subr.bf16.mxu0 0
  %3438 = vmatpush2.bf16.msra.mxu0 0
  %3439 = vmatprep.subr.bf16.mxu0 0
  %3440 = vmatpush2.bf16.msra.mxu0 0
  %3441 = vmatprep.subr.bf16.mxu0 0
  %3442 = vmatpush2.bf16.msra.mxu0 0
  %3443 = vmatprep.subr.bf16.mxu0 0
  %3444 = vmatpush2.bf16.msra.mxu0 0
  %3445 = vmatprep.subr.bf16.mxu0 0
  %3446 = vmatpush2.bf16.msra.mxu0 0
  %3447 = vmatprep.mubr.bf16.mxu0 0
  %3448 = vmatmul.mubr.bf16.gmra.mxu0 %v3221
  %v3449 = vpop.f32.mrf.mxu0
  %v3450 = vadd.f32 0.0, %v3449
  %v3451 = vpop.f32.mrf.mxu0
  %v3452 = vadd.f32 0.0, %v3451
  %v3453 = vpop.f32.mrf.mxu0
  %v3454 = vadd.f32 0.0, %v3453
  %v3455 = vpop.f32.mrf.mxu0
  %v3456 = vadd.f32 0.0, %v3455
  %3457 = vdwg.mxu0
  %3458 = vmatprep.subr.bf16.mxu0 %v3382
  %3459 = vmatpush1.bf16.msra.mxu0 %v3381
  %3460 = vmatprep.subr.bf16.mxu0 %v3378
  %3461 = vmatpush1.bf16.msra.mxu0 %v3377
  %3462 = vmatprep.subr.bf16.mxu0 %v3374
  %3463 = vmatpush1.bf16.msra.mxu0 %v3373
  %3464 = vmatprep.subr.bf16.mxu0 %v3370
  %3465 = vmatpush1.bf16.msra.mxu0 %v3369
  %3466 = vmatprep.subr.bf16.mxu0 %v3366
  %3467 = vmatpush1.bf16.msra.mxu0 %v3365
  %3468 = vmatprep.subr.bf16.mxu0 %v3362
  %3469 = vmatpush1.bf16.msra.mxu0 %v3361
  %3470 = vmatprep.subr.bf16.mxu0 %v3358
  %3471 = vmatpush1.bf16.msra.mxu0 %v3357
  %3472 = vmatprep.subr.bf16.mxu0 %v3354
  %3473 = vmatpush1.bf16.msra.mxu0 %v3353
  %3474 = vmatprep.subr.bf16.mxu0 0
  %3475 = vmatpush2.bf16.msra.mxu0 0
  %3476 = vmatprep.subr.bf16.mxu0 0
  %3477 = vmatpush2.bf16.msra.mxu0 0
  %3478 = vmatprep.subr.bf16.mxu0 0
  %3479 = vmatpush2.bf16.msra.mxu0 0
  %3480 = vmatprep.subr.bf16.mxu0 0
  %3481 = vmatpush2.bf16.msra.mxu0 0
  %3482 = vmatprep.subr.bf16.mxu0 0
  %3483 = vmatpush2.bf16.msra.mxu0 0
  %3484 = vmatprep.subr.bf16.mxu0 0
  %3485 = vmatpush2.bf16.msra.mxu0 0
  %3486 = vmatprep.subr.bf16.mxu0 0
  %3487 = vmatpush2.bf16.msra.mxu0 0
  %3488 = vmatprep.subr.bf16.mxu0 0
  %3489 = vmatpush2.bf16.msra.mxu0 0
  %3490 = vmatprep.mubr.bf16.mxu0 0
  %3491 = vmatmul.mubr.bf16.gmra.mxu0 %v3221
  %v3492 = vpop.f32.mrf.mxu0
  %v3493 = vadd.f32 0.0, %v3492
  %v3494 = vpop.f32.mrf.mxu0
  %v3495 = vadd.f32 0.0, %v3494
  %v3496 = vpop.f32.mrf.mxu0
  %v3497 = vadd.f32 0.0, %v3496
  %v3498 = vpop.f32.mrf.mxu0
  %v3499 = vadd.f32 0.0, %v3498
  %3500 = vdwg.mxu0
  %v3501 = vadd.f32 %v3164, %v3450
  %v3502 = vadd.f32 %v3166, %v3452
  %v3503 = vadd.f32 %v3207, %v3493
  %v3504 = vadd.f32 %v3209, %v3495
  %v3505 = vadd.f32 %v3168, %v3454
  %v3506 = vadd.f32 %v3170, %v3456
  %v3507 = vadd.f32 %v3211, %v3497
  %v3508 = vadd.f32 %v3213, %v3499
  %v3509 = vmul.f32 %v1441, %v2636
  %v3510 = vmul.f32 %v1444, %v2636
  %v3511 = vadd.f32 %v3509, %v2644
  %v3512 = vadd.f32 %v3510, %v2644
  %v3513 = vmax.f32 %v3511, 0.0
  %v3514 = vmax.f32 %v3512, 0.0
  %v3515 = vpack.c.bf16 %v3514, %v3513
  %s3516 = scalar_lea.vmem %s4, 768
  %v3517 = vld [vmem:[%s3516] sm:$0xff]
  %v3518 = vld [vmem:[%s3516 + $0x8] sm:$0xff]
  %v3519 = vld [vmem:[%s3516 + $0x10] sm:$0xff]
  %v3520 = vld [vmem:[%s3516 + $0x18] sm:$0xff]
  %v3521 = vld [vmem:[%s3516 + $0x20] sm:$0xff]
  %v3522 = vld [vmem:[%s3516 + $0x28] sm:$0xff]
  %v3523 = vld [vmem:[%s3516 + $0x30] sm:$0xff]
  %v3524 = vld [vmem:[%s3516 + $0x38] sm:$0xff]
  %v3525 = vld [vmem:[%s3516 + $0x40] sm:$0xff]
  %v3526 = vld [vmem:[%s3516 + $0x48] sm:$0xff]
  %v3527 = vld [vmem:[%s3516 + $0x50] sm:$0xff]
  %v3528 = vld [vmem:[%s3516 + $0x58] sm:$0xff]
  %v3529 = vld [vmem:[%s3516 + $0x60] sm:$0xff]
  %v3530 = vld [vmem:[%s3516 + $0x68] sm:$0xff]
  %v3531 = vld [vmem:[%s3516 + $0x70] sm:$0xff]
  %v3532 = vld [vmem:[%s3516 + $0x78] sm:$0xff]
  %v3533 = vld [vmem:[%s3516 + $0x80] sm:$0xff]
  %v3534 = vld [vmem:[%s3516 + $0x88] sm:$0xff]
  %v3535 = vld [vmem:[%s3516 + $0x90] sm:$0xff]
  %v3536 = vld [vmem:[%s3516 + $0x98] sm:$0xff]
  %v3537 = vld [vmem:[%s3516 + $0xa0] sm:$0xff]
  %v3538 = vld [vmem:[%s3516 + $0xa8] sm:$0xff]
  %v3539 = vld [vmem:[%s3516 + $0xb0] sm:$0xff]
  %v3540 = vld [vmem:[%s3516 + $0xb8] sm:$0xff]
  %v3541 = vld [vmem:[%s3516 + $0xc0] sm:$0xff]
  %v3542 = vld [vmem:[%s3516 + $0xc8] sm:$0xff]
  %v3543 = vld [vmem:[%s3516 + $0xd0] sm:$0xff]
  %v3544 = vld [vmem:[%s3516 + $0xd8] sm:$0xff]
  %v3545 = vld [vmem:[%s3516 + $0xe0] sm:$0xff]
  %v3546 = vld [vmem:[%s3516 + $0xe8] sm:$0xff]
  %v3547 = vld [vmem:[%s3516 + $0xf0] sm:$0xff]
  %v3548 = vld [vmem:[%s3516 + $0xf8] sm:$0xff]
  %v3581 = vunpack.c.l.b16 %v3517
  %v3582 = vunpack.c.h.b16 %v3517
  %v3583 = vunpack.c.l.b16 %v3518
  %v3584 = vunpack.c.h.b16 %v3518
  %v3585 = vunpack.c.l.b16 %v3519
  %v3586 = vunpack.c.h.b16 %v3519
  %v3587 = vunpack.c.l.b16 %v3520
  %v3588 = vunpack.c.h.b16 %v3520
  %v3589 = vunpack.c.l.b16 %v3521
  %v3590 = vunpack.c.h.b16 %v3521
  %v3591 = vunpack.c.l.b16 %v3522
  %v3592 = vunpack.c.h.b16 %v3522
  %v3593 = vunpack.c.l.b16 %v3523
  %v3594 = vunpack.c.h.b16 %v3523
  %v3595 = vunpack.c.l.b16 %v3524
  %v3596 = vunpack.c.h.b16 %v3524
  %v3597 = vunpack.c.l.b16 %v3525
  %v3598 = vunpack.c.h.b16 %v3525
  %v3599 = vunpack.c.l.b16 %v3526
  %v3600 = vunpack.c.h.b16 %v3526
  %v3601 = vunpack.c.l.b16 %v3527
  %v3602 = vunpack.c.h.b16 %v3527
  %v3603 = vunpack.c.l.b16 %v3528
  %v3604 = vunpack.c.h.b16 %v3528
  %v3605 = vunpack.c.l.b16 %v3529
  %v3606 = vunpack.c.h.b16 %v3529
  %v3607 = vunpack.c.l.b16 %v3530
  %v3608 = vunpack.c.h.b16 %v3530
  %v3609 = vunpack.c.l.b16 %v3531
  %v3610 = vunpack.c.h.b16 %v3531
  %v3611 = vunpack.c.l.b16 %v3532
  %v3612 = vunpack.c.h.b16 %v3532
  %v3613 = vunpack.c.l.b16 %v3533
  %v3614 = vunpack.c.h.b16 %v3533
  %v3615 = vunpack.c.l.b16 %v3534
  %v3616 = vunpack.c.h.b16 %v3534
  %v3617 = vunpack.c.l.b16 %v3535
  %v3618 = vunpack.c.h.b16 %v3535
  %v3619 = vunpack.c.l.b16 %v3536
  %v3620 = vunpack.c.h.b16 %v3536
  %v3621 = vunpack.c.l.b16 %v3537
  %v3622 = vunpack.c.h.b16 %v3537
  %v3623 = vunpack.c.l.b16 %v3538
  %v3624 = vunpack.c.h.b16 %v3538
  %v3625 = vunpack.c.l.b16 %v3539
  %v3626 = vunpack.c.h.b16 %v3539
  %v3627 = vunpack.c.l.b16 %v3540
  %v3628 = vunpack.c.h.b16 %v3540
  %v3629 = vunpack.c.l.b16 %v3541
  %v3630 = vunpack.c.h.b16 %v3541
  %v3631 = vunpack.c.l.b16 %v3542
  %v3632 = vunpack.c.h.b16 %v3542
  %v3633 = vunpack.c.l.b16 %v3543
  %v3634 = vunpack.c.h.b16 %v3543
  %v3635 = vunpack.c.l.b16 %v3544
  %v3636 = vunpack.c.h.b16 %v3544
  %v3637 = vunpack.c.l.b16 %v3545
  %v3638 = vunpack.c.h.b16 %v3545
  %v3639 = vunpack.c.l.b16 %v3546
  %v3640 = vunpack.c.h.b16 %v3546
  %v3641 = vunpack.c.l.b16 %v3547
  %v3642 = vunpack.c.h.b16 %v3547
  %v3643 = vunpack.c.l.b16 %v3548
  %v3644 = vunpack.c.h.b16 %v3548
  %v3645 = vpack.c.b16 %v3585, %v3581
  %v3646 = vpack.c.b16 %v3586, %v3582
  %v3647 = vpack.c.b16 %v3587, %v3583
  %v3648 = vpack.c.b16 %v3588, %v3584
  %v3649 = vpack.c.b16 %v3593, %v3589
  %v3650 = vpack.c.b16 %v3594, %v3590
  %v3651 = vpack.c.b16 %v3595, %v3591
  %v3652 = vpack.c.b16 %v3596, %v3592
  %v3653 = vpack.c.b16 %v3601, %v3597
  %v3654 = vpack.c.b16 %v3602, %v3598
  %v3655 = vpack.c.b16 %v3603, %v3599
  %v3656 = vpack.c.b16 %v3604, %v3600
  %v3657 = vpack.c.b16 %v3609, %v3605
  %v3658 = vpack.c.b16 %v3610, %v3606
  %v3659 = vpack.c.b16 %v3611, %v3607
  %v3660 = vpack.c.b16 %v3612, %v3608
  %v3661 = vpack.c.b16 %v3617, %v3613
  %v3662 = vpack.c.b16 %v3618, %v3614
  %v3663 = vpack.c.b16 %v3619, %v3615
  %v3664 = vpack.c.b16 %v3620, %v3616
  %v3665 = vpack.c.b16 %v3625, %v3621
  %v3666 = vpack.c.b16 %v3626, %v3622
  %v3667 = vpack.c.b16 %v3627, %v3623
  %v3668 = vpack.c.b16 %v3628, %v3624
  %v3669 = vpack.c.b16 %v3633, %v3629
  %v3670 = vpack.c.b16 %v3634, %v3630
  %v3671 = vpack.c.b16 %v3635, %v3631
  %v3672 = vpack.c.b16 %v3636, %v3632
  %v3673 = vpack.c.b16 %v3641, %v3637
  %v3674 = vpack.c.b16 %v3642, %v3638
  %v3675 = vpack.c.b16 %v3643, %v3639
  %v3676 = vpack.c.b16 %v3644, %v3640
  %3709 = vmatprep.subr.bf16.mxu0 %v3674
  %3710 = vmatpush1.bf16.msra.mxu0 %v3673
  %3711 = vmatprep.subr.bf16.mxu0 %v3670
  %3712 = vmatpush1.bf16.msra.mxu0 %v3669
  %3713 = vmatprep.subr.bf16.mxu0 %v3666
  %3714 = vmatpush1.bf16.msra.mxu0 %v3665
  %3715 = vmatprep.subr.bf16.mxu0 %v3662
  %3716 = vmatpush1.bf16.msra.mxu0 %v3661
  %3717 = vmatprep.subr.bf16.mxu0 %v3658
  %3718 = vmatpush1.bf16.msra.mxu0 %v3657
  %3719 = vmatprep.subr.bf16.mxu0 %v3654
  %3720 = vmatpush1.bf16.msra.mxu0 %v3653
  %3721 = vmatprep.subr.bf16.mxu0 %v3650
  %3722 = vmatpush1.bf16.msra.mxu0 %v3649
  %3723 = vmatprep.subr.bf16.mxu0 %v3646
  %3724 = vmatpush1.bf16.msra.mxu0 %v3645
  %3725 = vmatprep.subr.bf16.mxu0 0
  %3726 = vmatpush2.bf16.msra.mxu0 0
  %3727 = vmatprep.subr.bf16.mxu0 0
  %3728 = vmatpush2.bf16.msra.mxu0 0
  %3729 = vmatprep.subr.bf16.mxu0 0
  %3730 = vmatpush2.bf16.msra.mxu0 0
  %3731 = vmatprep.subr.bf16.mxu0 0
  %3732 = vmatpush2.bf16.msra.mxu0 0
  %3733 = vmatprep.subr.bf16.mxu0 0
  %3734 = vmatpush2.bf16.msra.mxu0 0
  %3735 = vmatprep.subr.bf16.mxu0 0
  %3736 = vmatpush2.bf16.msra.mxu0 0
  %3737 = vmatprep.subr.bf16.mxu0 0
  %3738 = vmatpush2.bf16.msra.mxu0 0
  %3739 = vmatprep.subr.bf16.mxu0 0
  %3740 = vmatpush2.bf16.msra.mxu0 0
  %3741 = vmatprep.mubr.bf16.mxu0 0
  %3742 = vmatmul.mubr.bf16.gmra.mxu0 %v3515
  %v3743 = vpop.f32.mrf.mxu0
  %v3744 = vadd.f32 0.0, %v3743
  %v3745 = vpop.f32.mrf.mxu0
  %v3746 = vadd.f32 0.0, %v3745
  %v3747 = vpop.f32.mrf.mxu0
  %v3748 = vadd.f32 0.0, %v3747
  %v3749 = vpop.f32.mrf.mxu0
  %v3750 = vadd.f32 0.0, %v3749
  %3751 = vdwg.mxu0
  %3752 = vmatprep.subr.bf16.mxu0 %v3676
  %3753 = vmatpush1.bf16.msra.mxu0 %v3675
  %3754 = vmatprep.subr.bf16.mxu0 %v3672
  %3755 = vmatpush1.bf16.msra.mxu0 %v3671
  %3756 = vmatprep.subr.bf16.mxu0 %v3668
  %3757 = vmatpush1.bf16.msra.mxu0 %v3667
  %3758 = vmatprep.subr.bf16.mxu0 %v3664
  %3759 = vmatpush1.bf16.msra.mxu0 %v3663
  %3760 = vmatprep.subr.bf16.mxu0 %v3660
  %3761 = vmatpush1.bf16.msra.mxu0 %v3659
  %3762 = vmatprep.subr.bf16.mxu0 %v3656
  %3763 = vmatpush1.bf16.msra.mxu0 %v3655
  %3764 = vmatprep.subr.bf16.mxu0 %v3652
  %3765 = vmatpush1.bf16.msra.mxu0 %v3651
  %3766 = vmatprep.subr.bf16.mxu0 %v3648
  %3767 = vmatpush1.bf16.msra.mxu0 %v3647
  %3768 = vmatprep.subr.bf16.mxu0 0
  %3769 = vmatpush2.bf16.msra.mxu0 0
  %3770 = vmatprep.subr.bf16.mxu0 0
  %3771 = vmatpush2.bf16.msra.mxu0 0
  %3772 = vmatprep.subr.bf16.mxu0 0
  %3773 = vmatpush2.bf16.msra.mxu0 0
  %3774 = vmatprep.subr.bf16.mxu0 0
  %3775 = vmatpush2.bf16.msra.mxu0 0
  %3776 = vmatprep.subr.bf16.mxu0 0
  %3777 = vmatpush2.bf16.msra.mxu0 0
  %3778 = vmatprep.subr.bf16.mxu0 0
  %3779 = vmatpush2.bf16.msra.mxu0 0
  %3780 = vmatprep.subr.bf16.mxu0 0
  %3781 = vmatpush2.bf16.msra.mxu0 0
  %3782 = vmatprep.subr.bf16.mxu0 0
  %3783 = vmatpush2.bf16.msra.mxu0 0
  %3784 = vmatprep.mubr.bf16.mxu0 0
  %3785 = vmatmul.mubr.bf16.gmra.mxu0 %v3515
  %v3786 = vpop.f32.mrf.mxu0
  %v3787 = vadd.f32 0.0, %v3786
  %v3788 = vpop.f32.mrf.mxu0
  %v3789 = vadd.f32 0.0, %v3788
  %v3790 = vpop.f32.mrf.mxu0
  %v3791 = vadd.f32 0.0, %v3790
  %v3792 = vpop.f32.mrf.mxu0
  %v3793 = vadd.f32 0.0, %v3792
  %3794 = vdwg.mxu0
  %v3795 = vadd.f32 %v3501, %v3744
  %v3796 = vadd.f32 %v3502, %v3746
  %v3797 = vadd.f32 %v3503, %v3787
  %v3798 = vadd.f32 %v3504, %v3789
  %v3799 = vadd.f32 %v3505, %v3748
  %v3800 = vadd.f32 %v3506, %v3750
  %v3801 = vadd.f32 %v3507, %v3791
  %v3802 = vadd.f32 %v3508, %v3793
  %v3803 = vmul.f32 %v1672, %v2636
  %v3804 = vmul.f32 %v1675, %v2636
  %v3805 = vadd.f32 %v3803, %v2644
  %v3806 = vadd.f32 %v3804, %v2644
  %v3807 = vmax.f32 %v3805, 0.0
  %v3808 = vmax.f32 %v3806, 0.0
  %v3809 = vpack.c.bf16 %v3808, %v3807
  %s3810 = scalar_lea.vmem %s4, 1024
  %v3811 = vld [vmem:[%s3810] sm:$0xff]
  %v3812 = vld [vmem:[%s3810 + $0x8] sm:$0xff]
  %v3813 = vld [vmem:[%s3810 + $0x10] sm:$0xff]
  %v3814 = vld [vmem:[%s3810 + $0x18] sm:$0xff]
  %v3815 = vld [vmem:[%s3810 + $0x20] sm:$0xff]
  %v3816 = vld [vmem:[%s3810 + $0x28] sm:$0xff]
  %v3817 = vld [vmem:[%s3810 + $0x30] sm:$0xff]
  %v3818 = vld [vmem:[%s3810 + $0x38] sm:$0xff]
  %v3819 = vld [vmem:[%s3810 + $0x40] sm:$0xff]
  %v3820 = vld [vmem:[%s3810 + $0x48] sm:$0xff]
  %v3821 = vld [vmem:[%s3810 + $0x50] sm:$0xff]
  %v3822 = vld [vmem:[%s3810 + $0x58] sm:$0xff]
  %v3823 = vld [vmem:[%s3810 + $0x60] sm:$0xff]
  %v3824 = vld [vmem:[%s3810 + $0x68] sm:$0xff]
  %v3825 = vld [vmem:[%s3810 + $0x70] sm:$0xff]
  %v3826 = vld [vmem:[%s3810 + $0x78] sm:$0xff]
  %v3827 = vld [vmem:[%s3810 + $0x80] sm:$0xff]
  %v3828 = vld [vmem:[%s3810 + $0x88] sm:$0xff]
  %v3829 = vld [vmem:[%s3810 + $0x90] sm:$0xff]
  %v3830 = vld [vmem:[%s3810 + $0x98] sm:$0xff]
  %v3831 = vld [vmem:[%s3810 + $0xa0] sm:$0xff]
  %v3832 = vld [vmem:[%s3810 + $0xa8] sm:$0xff]
  %v3833 = vld [vmem:[%s3810 + $0xb0] sm:$0xff]
  %v3834 = vld [vmem:[%s3810 + $0xb8] sm:$0xff]
  %v3835 = vld [vmem:[%s3810 + $0xc0] sm:$0xff]
  %v3836 = vld [vmem:[%s3810 + $0xc8] sm:$0xff]
  %v3837 = vld [vmem:[%s3810 + $0xd0] sm:$0xff]
  %v3838 = vld [vmem:[%s3810 + $0xd8] sm:$0xff]
  %v3839 = vld [vmem:[%s3810 + $0xe0] sm:$0xff]
  %v3840 = vld [vmem:[%s3810 + $0xe8] sm:$0xff]
  %v3841 = vld [vmem:[%s3810 + $0xf0] sm:$0xff]
  %v3842 = vld [vmem:[%s3810 + $0xf8] sm:$0xff]
  %v3875 = vunpack.c.l.b16 %v3811
  %v3876 = vunpack.c.h.b16 %v3811
  %v3877 = vunpack.c.l.b16 %v3812
  %v3878 = vunpack.c.h.b16 %v3812
  %v3879 = vunpack.c.l.b16 %v3813
  %v3880 = vunpack.c.h.b16 %v3813
  %v3881 = vunpack.c.l.b16 %v3814
  %v3882 = vunpack.c.h.b16 %v3814
  %v3883 = vunpack.c.l.b16 %v3815
  %v3884 = vunpack.c.h.b16 %v3815
  %v3885 = vunpack.c.l.b16 %v3816
  %v3886 = vunpack.c.h.b16 %v3816
  %v3887 = vunpack.c.l.b16 %v3817
  %v3888 = vunpack.c.h.b16 %v3817
  %v3889 = vunpack.c.l.b16 %v3818
  %v3890 = vunpack.c.h.b16 %v3818
  %v3891 = vunpack.c.l.b16 %v3819
  %v3892 = vunpack.c.h.b16 %v3819
  %v3893 = vunpack.c.l.b16 %v3820
  %v3894 = vunpack.c.h.b16 %v3820
  %v3895 = vunpack.c.l.b16 %v3821
  %v3896 = vunpack.c.h.b16 %v3821
  %v3897 = vunpack.c.l.b16 %v3822
  %v3898 = vunpack.c.h.b16 %v3822
  %v3899 = vunpack.c.l.b16 %v3823
  %v3900 = vunpack.c.h.b16 %v3823
  %v3901 = vunpack.c.l.b16 %v3824
  %v3902 = vunpack.c.h.b16 %v3824
  %v3903 = vunpack.c.l.b16 %v3825
  %v3904 = vunpack.c.h.b16 %v3825
  %v3905 = vunpack.c.l.b16 %v3826
  %v3906 = vunpack.c.h.b16 %v3826
  %v3907 = vunpack.c.l.b16 %v3827
  %v3908 = vunpack.c.h.b16 %v3827
  %v3909 = vunpack.c.l.b16 %v3828
  %v3910 = vunpack.c.h.b16 %v3828
  %v3911 = vunpack.c.l.b16 %v3829
  %v3912 = vunpack.c.h.b16 %v3829
  %v3913 = vunpack.c.l.b16 %v3830
  %v3914 = vunpack.c.h.b16 %v3830
  %v3915 = vunpack.c.l.b16 %v3831
  %v3916 = vunpack.c.h.b16 %v3831
  %v3917 = vunpack.c.l.b16 %v3832
  %v3918 = vunpack.c.h.b16 %v3832
  %v3919 = vunpack.c.l.b16 %v3833
  %v3920 = vunpack.c.h.b16 %v3833
  %v3921 = vunpack.c.l.b16 %v3834
  %v3922 = vunpack.c.h.b16 %v3834
  %v3923 = vunpack.c.l.b16 %v3835
  %v3924 = vunpack.c.h.b16 %v3835
  %v3925 = vunpack.c.l.b16 %v3836
  %v3926 = vunpack.c.h.b16 %v3836
  %v3927 = vunpack.c.l.b16 %v3837
  %v3928 = vunpack.c.h.b16 %v3837
  %v3929 = vunpack.c.l.b16 %v3838
  %v3930 = vunpack.c.h.b16 %v3838
  %v3931 = vunpack.c.l.b16 %v3839
  %v3932 = vunpack.c.h.b16 %v3839
  %v3933 = vunpack.c.l.b16 %v3840
  %v3934 = vunpack.c.h.b16 %v3840
  %v3935 = vunpack.c.l.b16 %v3841
  %v3936 = vunpack.c.h.b16 %v3841
  %v3937 = vunpack.c.l.b16 %v3842
  %v3938 = vunpack.c.h.b16 %v3842
  %v3939 = vpack.c.b16 %v3879, %v3875
  %v3940 = vpack.c.b16 %v3880, %v3876
  %v3941 = vpack.c.b16 %v3881, %v3877
  %v3942 = vpack.c.b16 %v3882, %v3878
  %v3943 = vpack.c.b16 %v3887, %v3883
  %v3944 = vpack.c.b16 %v3888, %v3884
  %v3945 = vpack.c.b16 %v3889, %v3885
  %v3946 = vpack.c.b16 %v3890, %v3886
  %v3947 = vpack.c.b16 %v3895, %v3891
  %v3948 = vpack.c.b16 %v3896, %v3892
  %v3949 = vpack.c.b16 %v3897, %v3893
  %v3950 = vpack.c.b16 %v3898, %v3894
  %v3951 = vpack.c.b16 %v3903, %v3899
  %v3952 = vpack.c.b16 %v3904, %v3900
  %v3953 = vpack.c.b16 %v3905, %v3901
  %v3954 = vpack.c.b16 %v3906, %v3902
  %v3955 = vpack.c.b16 %v3911, %v3907
  %v3956 = vpack.c.b16 %v3912, %v3908
  %v3957 = vpack.c.b16 %v3913, %v3909
  %v3958 = vpack.c.b16 %v3914, %v3910
  %v3959 = vpack.c.b16 %v3919, %v3915
  %v3960 = vpack.c.b16 %v3920, %v3916
  %v3961 = vpack.c.b16 %v3921, %v3917
  %v3962 = vpack.c.b16 %v3922, %v3918
  %v3963 = vpack.c.b16 %v3927, %v3923
  %v3964 = vpack.c.b16 %v3928, %v3924
  %v3965 = vpack.c.b16 %v3929, %v3925
  %v3966 = vpack.c.b16 %v3930, %v3926
  %v3967 = vpack.c.b16 %v3935, %v3931
  %v3968 = vpack.c.b16 %v3936, %v3932
  %v3969 = vpack.c.b16 %v3937, %v3933
  %v3970 = vpack.c.b16 %v3938, %v3934
  %4003 = vmatprep.subr.bf16.mxu0 %v3968
  %4004 = vmatpush1.bf16.msra.mxu0 %v3967
  %4005 = vmatprep.subr.bf16.mxu0 %v3964
  %4006 = vmatpush1.bf16.msra.mxu0 %v3963
  %4007 = vmatprep.subr.bf16.mxu0 %v3960
  %4008 = vmatpush1.bf16.msra.mxu0 %v3959
  %4009 = vmatprep.subr.bf16.mxu0 %v3956
  %4010 = vmatpush1.bf16.msra.mxu0 %v3955
  %4011 = vmatprep.subr.bf16.mxu0 %v3952
  %4012 = vmatpush1.bf16.msra.mxu0 %v3951
  %4013 = vmatprep.subr.bf16.mxu0 %v3948
  %4014 = vmatpush1.bf16.msra.mxu0 %v3947
  %4015 = vmatprep.subr.bf16.mxu0 %v3944
  %4016 = vmatpush1.bf16.msra.mxu0 %v3943
  %4017 = vmatprep.subr.bf16.mxu0 %v3940
  %4018 = vmatpush1.bf16.msra.mxu0 %v3939
  %4019 = vmatprep.subr.bf16.mxu0 0
  %4020 = vmatpush2.bf16.msra.mxu0 0
  %4021 = vmatprep.subr.bf16.mxu0 0
  %4022 = vmatpush2.bf16.msra.mxu0 0
  %4023 = vmatprep.subr.bf16.mxu0 0
  %4024 = vmatpush2.bf16.msra.mxu0 0
  %4025 = vmatprep.subr.bf16.mxu0 0
  %4026 = vmatpush2.bf16.msra.mxu0 0
  %4027 = vmatprep.subr.bf16.mxu0 0
  %4028 = vmatpush2.bf16.msra.mxu0 0
  %4029 = vmatprep.subr.bf16.mxu0 0
  %4030 = vmatpush2.bf16.msra.mxu0 0
  %4031 = vmatprep.subr.bf16.mxu0 0
  %4032 = vmatpush2.bf16.msra.mxu0 0
  %4033 = vmatprep.subr.bf16.mxu0 0
  %4034 = vmatpush2.bf16.msra.mxu0 0
  %4035 = vmatprep.mubr.bf16.mxu0 0
  %4036 = vmatmul.mubr.bf16.gmra.mxu0 %v3809
  %v4037 = vpop.f32.mrf.mxu0
  %v4038 = vadd.f32 0.0, %v4037
  %v4039 = vpop.f32.mrf.mxu0
  %v4040 = vadd.f32 0.0, %v4039
  %v4041 = vpop.f32.mrf.mxu0
  %v4042 = vadd.f32 0.0, %v4041
  %v4043 = vpop.f32.mrf.mxu0
  %v4044 = vadd.f32 0.0, %v4043
  %4045 = vdwg.mxu0
  %4046 = vmatprep.subr.bf16.mxu0 %v3970
  %4047 = vmatpush1.bf16.msra.mxu0 %v3969
  %4048 = vmatprep.subr.bf16.mxu0 %v3966
  %4049 = vmatpush1.bf16.msra.mxu0 %v3965
  %4050 = vmatprep.subr.bf16.mxu0 %v3962
  %4051 = vmatpush1.bf16.msra.mxu0 %v3961
  %4052 = vmatprep.subr.bf16.mxu0 %v3958
  %4053 = vmatpush1.bf16.msra.mxu0 %v3957
  %4054 = vmatprep.subr.bf16.mxu0 %v3954
  %4055 = vmatpush1.bf16.msra.mxu0 %v3953
  %4056 = vmatprep.subr.bf16.mxu0 %v3950
  %4057 = vmatpush1.bf16.msra.mxu0 %v3949
  %4058 = vmatprep.subr.bf16.mxu0 %v3946
  %4059 = vmatpush1.bf16.msra.mxu0 %v3945
  %4060 = vmatprep.subr.bf16.mxu0 %v3942
  %4061 = vmatpush1.bf16.msra.mxu0 %v3941
  %4062 = vmatprep.subr.bf16.mxu0 0
  %4063 = vmatpush2.bf16.msra.mxu0 0
  %4064 = vmatprep.subr.bf16.mxu0 0
  %4065 = vmatpush2.bf16.msra.mxu0 0
  %4066 = vmatprep.subr.bf16.mxu0 0
  %4067 = vmatpush2.bf16.msra.mxu0 0
  %4068 = vmatprep.subr.bf16.mxu0 0
  %4069 = vmatpush2.bf16.msra.mxu0 0
  %4070 = vmatprep.subr.bf16.mxu0 0
  %4071 = vmatpush2.bf16.msra.mxu0 0
  %4072 = vmatprep.subr.bf16.mxu0 0
  %4073 = vmatpush2.bf16.msra.mxu0 0
  %4074 = vmatprep.subr.bf16.mxu0 0
  %4075 = vmatpush2.bf16.msra.mxu0 0
  %4076 = vmatprep.subr.bf16.mxu0 0
  %4077 = vmatpush2.bf16.msra.mxu0 0
  %4078 = vmatprep.mubr.bf16.mxu0 0
  %4079 = vmatmul.mubr.bf16.gmra.mxu0 %v3809
  %v4080 = vpop.f32.mrf.mxu0
  %v4081 = vadd.f32 0.0, %v4080
  %v4082 = vpop.f32.mrf.mxu0
  %v4083 = vadd.f32 0.0, %v4082
  %v4084 = vpop.f32.mrf.mxu0
  %v4085 = vadd.f32 0.0, %v4084
  %v4086 = vpop.f32.mrf.mxu0
  %v4087 = vadd.f32 0.0, %v4086
  %4088 = vdwg.mxu0
  %v4089 = vadd.f32 %v3795, %v4038
  %v4090 = vadd.f32 %v3796, %v4040
  %v4091 = vadd.f32 %v3797, %v4081
  %v4092 = vadd.f32 %v3798, %v4083
  %v4093 = vadd.f32 %v3799, %v4042
  %v4094 = vadd.f32 %v3800, %v4044
  %v4095 = vadd.f32 %v3801, %v4085
  %v4096 = vadd.f32 %v3802, %v4087
  %v4097 = vmul.f32 %v1903, %v2636
  %v4098 = vmul.f32 %v1906, %v2636
  %v4099 = vadd.f32 %v4097, %v2644
  %v4100 = vadd.f32 %v4098, %v2644
  %v4101 = vmax.f32 %v4099, 0.0
  %v4102 = vmax.f32 %v4100, 0.0
  %v4103 = vpack.c.bf16 %v4102, %v4101
  %s4104 = scalar_lea.vmem %s4, 1280
  %v4105 = vld [vmem:[%s4104] sm:$0xff]
  %v4106 = vld [vmem:[%s4104 + $0x8] sm:$0xff]
  %v4107 = vld [vmem:[%s4104 + $0x10] sm:$0xff]
  %v4108 = vld [vmem:[%s4104 + $0x18] sm:$0xff]
  %v4109 = vld [vmem:[%s4104 + $0x20] sm:$0xff]
  %v4110 = vld [vmem:[%s4104 + $0x28] sm:$0xff]
  %v4111 = vld [vmem:[%s4104 + $0x30] sm:$0xff]
  %v4112 = vld [vmem:[%s4104 + $0x38] sm:$0xff]
  %v4113 = vld [vmem:[%s4104 + $0x40] sm:$0xff]
  %v4114 = vld [vmem:[%s4104 + $0x48] sm:$0xff]
  %v4115 = vld [vmem:[%s4104 + $0x50] sm:$0xff]
  %v4116 = vld [vmem:[%s4104 + $0x58] sm:$0xff]
  %v4117 = vld [vmem:[%s4104 + $0x60] sm:$0xff]
  %v4118 = vld [vmem:[%s4104 + $0x68] sm:$0xff]
  %v4119 = vld [vmem:[%s4104 + $0x70] sm:$0xff]
  %v4120 = vld [vmem:[%s4104 + $0x78] sm:$0xff]
  %v4121 = vld [vmem:[%s4104 + $0x80] sm:$0xff]
  %v4122 = vld [vmem:[%s4104 + $0x88] sm:$0xff]
  %v4123 = vld [vmem:[%s4104 + $0x90] sm:$0xff]
  %v4124 = vld [vmem:[%s4104 + $0x98] sm:$0xff]
  %v4125 = vld [vmem:[%s4104 + $0xa0] sm:$0xff]
  %v4126 = vld [vmem:[%s4104 + $0xa8] sm:$0xff]
  %v4127 = vld [vmem:[%s4104 + $0xb0] sm:$0xff]
  %v4128 = vld [vmem:[%s4104 + $0xb8] sm:$0xff]
  %v4129 = vld [vmem:[%s4104 + $0xc0] sm:$0xff]
  %v4130 = vld [vmem:[%s4104 + $0xc8] sm:$0xff]
  %v4131 = vld [vmem:[%s4104 + $0xd0] sm:$0xff]
  %v4132 = vld [vmem:[%s4104 + $0xd8] sm:$0xff]
  %v4133 = vld [vmem:[%s4104 + $0xe0] sm:$0xff]
  %v4134 = vld [vmem:[%s4104 + $0xe8] sm:$0xff]
  %v4135 = vld [vmem:[%s4104 + $0xf0] sm:$0xff]
  %v4136 = vld [vmem:[%s4104 + $0xf8] sm:$0xff]
  %v4169 = vunpack.c.l.b16 %v4105
  %v4170 = vunpack.c.h.b16 %v4105
  %v4171 = vunpack.c.l.b16 %v4106
  %v4172 = vunpack.c.h.b16 %v4106
  %v4173 = vunpack.c.l.b16 %v4107
  %v4174 = vunpack.c.h.b16 %v4107
  %v4175 = vunpack.c.l.b16 %v4108
  %v4176 = vunpack.c.h.b16 %v4108
  %v4177 = vunpack.c.l.b16 %v4109
  %v4178 = vunpack.c.h.b16 %v4109
  %v4179 = vunpack.c.l.b16 %v4110
  %v4180 = vunpack.c.h.b16 %v4110
  %v4181 = vunpack.c.l.b16 %v4111
  %v4182 = vunpack.c.h.b16 %v4111
  %v4183 = vunpack.c.l.b16 %v4112
  %v4184 = vunpack.c.h.b16 %v4112
  %v4185 = vunpack.c.l.b16 %v4113
  %v4186 = vunpack.c.h.b16 %v4113
  %v4187 = vunpack.c.l.b16 %v4114
  %v4188 = vunpack.c.h.b16 %v4114
  %v4189 = vunpack.c.l.b16 %v4115
  %v4190 = vunpack.c.h.b16 %v4115
  %v4191 = vunpack.c.l.b16 %v4116
  %v4192 = vunpack.c.h.b16 %v4116
  %v4193 = vunpack.c.l.b16 %v4117
  %v4194 = vunpack.c.h.b16 %v4117
  %v4195 = vunpack.c.l.b16 %v4118
  %v4196 = vunpack.c.h.b16 %v4118
  %v4197 = vunpack.c.l.b16 %v4119
  %v4198 = vunpack.c.h.b16 %v4119
  %v4199 = vunpack.c.l.b16 %v4120
  %v4200 = vunpack.c.h.b16 %v4120
  %v4201 = vunpack.c.l.b16 %v4121
  %v4202 = vunpack.c.h.b16 %v4121
  %v4203 = vunpack.c.l.b16 %v4122
  %v4204 = vunpack.c.h.b16 %v4122
  %v4205 = vunpack.c.l.b16 %v4123
  %v4206 = vunpack.c.h.b16 %v4123
  %v4207 = vunpack.c.l.b16 %v4124
  %v4208 = vunpack.c.h.b16 %v4124
  %v4209 = vunpack.c.l.b16 %v4125
  %v4210 = vunpack.c.h.b16 %v4125
  %v4211 = vunpack.c.l.b16 %v4126
  %v4212 = vunpack.c.h.b16 %v4126
  %v4213 = vunpack.c.l.b16 %v4127
  %v4214 = vunpack.c.h.b16 %v4127
  %v4215 = vunpack.c.l.b16 %v4128
  %v4216 = vunpack.c.h.b16 %v4128
  %v4217 = vunpack.c.l.b16 %v4129
  %v4218 = vunpack.c.h.b16 %v4129
  %v4219 = vunpack.c.l.b16 %v4130
  %v4220 = vunpack.c.h.b16 %v4130
  %v4221 = vunpack.c.l.b16 %v4131
  %v4222 = vunpack.c.h.b16 %v4131
  %v4223 = vunpack.c.l.b16 %v4132
  %v4224 = vunpack.c.h.b16 %v4132
  %v4225 = vunpack.c.l.b16 %v4133
  %v4226 = vunpack.c.h.b16 %v4133
  %v4227 = vunpack.c.l.b16 %v4134
  %v4228 = vunpack.c.h.b16 %v4134
  %v4229 = vunpack.c.l.b16 %v4135
  %v4230 = vunpack.c.h.b16 %v4135
  %v4231 = vunpack.c.l.b16 %v4136
  %v4232 = vunpack.c.h.b16 %v4136
  %v4233 = vpack.c.b16 %v4173, %v4169
  %v4234 = vpack.c.b16 %v4174, %v4170
  %v4235 = vpack.c.b16 %v4175, %v4171
  %v4236 = vpack.c.b16 %v4176, %v4172
  %v4237 = vpack.c.b16 %v4181, %v4177
  %v4238 = vpack.c.b16 %v4182, %v4178
  %v4239 = vpack.c.b16 %v4183, %v4179
  %v4240 = vpack.c.b16 %v4184, %v4180
  %v4241 = vpack.c.b16 %v4189, %v4185
  %v4242 = vpack.c.b16 %v4190, %v4186
  %v4243 = vpack.c.b16 %v4191, %v4187
  %v4244 = vpack.c.b16 %v4192, %v4188
  %v4245 = vpack.c.b16 %v4197, %v4193
  %v4246 = vpack.c.b16 %v4198, %v4194
  %v4247 = vpack.c.b16 %v4199, %v4195
  %v4248 = vpack.c.b16 %v4200, %v4196
  %v4249 = vpack.c.b16 %v4205, %v4201
  %v4250 = vpack.c.b16 %v4206, %v4202
  %v4251 = vpack.c.b16 %v4207, %v4203
  %v4252 = vpack.c.b16 %v4208, %v4204
  %v4253 = vpack.c.b16 %v4213, %v4209
  %v4254 = vpack.c.b16 %v4214, %v4210
  %v4255 = vpack.c.b16 %v4215, %v4211
  %v4256 = vpack.c.b16 %v4216, %v4212
  %v4257 = vpack.c.b16 %v4221, %v4217
  %v4258 = vpack.c.b16 %v4222, %v4218
  %v4259 = vpack.c.b16 %v4223, %v4219
  %v4260 = vpack.c.b16 %v4224, %v4220
  %v4261 = vpack.c.b16 %v4229, %v4225
  %v4262 = vpack.c.b16 %v4230, %v4226
  %v4263 = vpack.c.b16 %v4231, %v4227
  %v4264 = vpack.c.b16 %v4232, %v4228
  %4297 = vmatprep.subr.bf16.mxu0 %v4262
  %4298 = vmatpush1.bf16.msra.mxu0 %v4261
  %4299 = vmatprep.subr.bf16.mxu0 %v4258
  %4300 = vmatpush1.bf16.msra.mxu0 %v4257
  %4301 = vmatprep.subr.bf16.mxu0 %v4254
  %4302 = vmatpush1.bf16.msra.mxu0 %v4253
  %4303 = vmatprep.subr.bf16.mxu0 %v4250
  %4304 = vmatpush1.bf16.msra.mxu0 %v4249
  %4305 = vmatprep.subr.bf16.mxu0 %v4246
  %4306 = vmatpush1.bf16.msra.mxu0 %v4245
  %4307 = vmatprep.subr.bf16.mxu0 %v4242
  %4308 = vmatpush1.bf16.msra.mxu0 %v4241
  %4309 = vmatprep.subr.bf16.mxu0 %v4238
  %4310 = vmatpush1.bf16.msra.mxu0 %v4237
  %4311 = vmatprep.subr.bf16.mxu0 %v4234
  %4312 = vmatpush1.bf16.msra.mxu0 %v4233
  %4313 = vmatprep.subr.bf16.mxu0 0
  %4314 = vmatpush2.bf16.msra.mxu0 0
  %4315 = vmatprep.subr.bf16.mxu0 0
  %4316 = vmatpush2.bf16.msra.mxu0 0
  %4317 = vmatprep.subr.bf16.mxu0 0
  %4318 = vmatpush2.bf16.msra.mxu0 0
  %4319 = vmatprep.subr.bf16.mxu0 0
  %4320 = vmatpush2.bf16.msra.mxu0 0
  %4321 = vmatprep.subr.bf16.mxu0 0
  %4322 = vmatpush2.bf16.msra.mxu0 0
  %4323 = vmatprep.subr.bf16.mxu0 0
  %4324 = vmatpush2.bf16.msra.mxu0 0
  %4325 = vmatprep.subr.bf16.mxu0 0
  %4326 = vmatpush2.bf16.msra.mxu0 0
  %4327 = vmatprep.subr.bf16.mxu0 0
  %4328 = vmatpush2.bf16.msra.mxu0 0
  %4329 = vmatprep.mubr.bf16.mxu0 0
  %4330 = vmatmul.mubr.bf16.gmra.mxu0 %v4103
  %v4331 = vpop.f32.mrf.mxu0
  %v4332 = vadd.f32 0.0, %v4331
  %v4333 = vpop.f32.mrf.mxu0
  %v4334 = vadd.f32 0.0, %v4333
  %v4335 = vpop.f32.mrf.mxu0
  %v4336 = vadd.f32 0.0, %v4335
  %v4337 = vpop.f32.mrf.mxu0
  %v4338 = vadd.f32 0.0, %v4337
  %4339 = vdwg.mxu0
  %4340 = vmatprep.subr.bf16.mxu0 %v4264
  %4341 = vmatpush1.bf16.msra.mxu0 %v4263
  %4342 = vmatprep.subr.bf16.mxu0 %v4260
  %4343 = vmatpush1.bf16.msra.mxu0 %v4259
  %4344 = vmatprep.subr.bf16.mxu0 %v4256
  %4345 = vmatpush1.bf16.msra.mxu0 %v4255
  %4346 = vmatprep.subr.bf16.mxu0 %v4252
  %4347 = vmatpush1.bf16.msra.mxu0 %v4251
  %4348 = vmatprep.subr.bf16.mxu0 %v4248
  %4349 = vmatpush1.bf16.msra.mxu0 %v4247
  %4350 = vmatprep.subr.bf16.mxu0 %v4244
  %4351 = vmatpush1.bf16.msra.mxu0 %v4243
  %4352 = vmatprep.subr.bf16.mxu0 %v4240
  %4353 = vmatpush1.bf16.msra.mxu0 %v4239
  %4354 = vmatprep.subr.bf16.mxu0 %v4236
  %4355 = vmatpush1.bf16.msra.mxu0 %v4235
  %4356 = vmatprep.subr.bf16.mxu0 0
  %4357 = vmatpush2.bf16.msra.mxu0 0
  %4358 = vmatprep.subr.bf16.mxu0 0
  %4359 = vmatpush2.bf16.msra.mxu0 0
  %4360 = vmatprep.subr.bf16.mxu0 0
  %4361 = vmatpush2.bf16.msra.mxu0 0
  %4362 = vmatprep.subr.bf16.mxu0 0
  %4363 = vmatpush2.bf16.msra.mxu0 0
  %4364 = vmatprep.subr.bf16.mxu0 0
  %4365 = vmatpush2.bf16.msra.mxu0 0
  %4366 = vmatprep.subr.bf16.mxu0 0
  %4367 = vmatpush2.bf16.msra.mxu0 0
  %4368 = vmatprep.subr.bf16.mxu0 0
  %4369 = vmatpush2.bf16.msra.mxu0 0
  %4370 = vmatprep.subr.bf16.mxu0 0
  %4371 = vmatpush2.bf16.msra.mxu0 0
  %4372 = vmatprep.mubr.bf16.mxu0 0
  %4373 = vmatmul.mubr.bf16.gmra.mxu0 %v4103
  %v4374 = vpop.f32.mrf.mxu0
  %v4375 = vadd.f32 0.0, %v4374
  %v4376 = vpop.f32.mrf.mxu0
  %v4377 = vadd.f32 0.0, %v4376
  %v4378 = vpop.f32.mrf.mxu0
  %v4379 = vadd.f32 0.0, %v4378
  %v4380 = vpop.f32.mrf.mxu0
  %v4381 = vadd.f32 0.0, %v4380
  %4382 = vdwg.mxu0
  %v4383 = vadd.f32 %v4089, %v4332
  %v4384 = vadd.f32 %v4090, %v4334
  %v4385 = vadd.f32 %v4091, %v4375
  %v4386 = vadd.f32 %v4092, %v4377
  %v4387 = vadd.f32 %v4093, %v4336
  %v4388 = vadd.f32 %v4094, %v4338
  %v4389 = vadd.f32 %v4095, %v4379
  %v4390 = vadd.f32 %v4096, %v4381
  %v4391 = vmul.f32 %v2134, %v2636
  %v4392 = vmul.f32 %v2137, %v2636
  %v4393 = vadd.f32 %v4391, %v2644
  %v4394 = vadd.f32 %v4392, %v2644
  %v4395 = vmax.f32 %v4393, 0.0
  %v4396 = vmax.f32 %v4394, 0.0
  %v4397 = vpack.c.bf16 %v4396, %v4395
  %s4398 = scalar_lea.vmem %s4, 1536
  %v4399 = vld [vmem:[%s4398] sm:$0xff]
  %v4400 = vld [vmem:[%s4398 + $0x8] sm:$0xff]
  %v4401 = vld [vmem:[%s4398 + $0x10] sm:$0xff]
  %v4402 = vld [vmem:[%s4398 + $0x18] sm:$0xff]
  %v4403 = vld [vmem:[%s4398 + $0x20] sm:$0xff]
  %v4404 = vld [vmem:[%s4398 + $0x28] sm:$0xff]
  %v4405 = vld [vmem:[%s4398 + $0x30] sm:$0xff]
  %v4406 = vld [vmem:[%s4398 + $0x38] sm:$0xff]
  %v4407 = vld [vmem:[%s4398 + $0x40] sm:$0xff]
  %v4408 = vld [vmem:[%s4398 + $0x48] sm:$0xff]
  %v4409 = vld [vmem:[%s4398 + $0x50] sm:$0xff]
  %v4410 = vld [vmem:[%s4398 + $0x58] sm:$0xff]
  %v4411 = vld [vmem:[%s4398 + $0x60] sm:$0xff]
  %v4412 = vld [vmem:[%s4398 + $0x68] sm:$0xff]
  %v4413 = vld [vmem:[%s4398 + $0x70] sm:$0xff]
  %v4414 = vld [vmem:[%s4398 + $0x78] sm:$0xff]
  %v4415 = vld [vmem:[%s4398 + $0x80] sm:$0xff]
  %v4416 = vld [vmem:[%s4398 + $0x88] sm:$0xff]
  %v4417 = vld [vmem:[%s4398 + $0x90] sm:$0xff]
  %v4418 = vld [vmem:[%s4398 + $0x98] sm:$0xff]
  %v4419 = vld [vmem:[%s4398 + $0xa0] sm:$0xff]
  %v4420 = vld [vmem:[%s4398 + $0xa8] sm:$0xff]
  %v4421 = vld [vmem:[%s4398 + $0xb0] sm:$0xff]
  %v4422 = vld [vmem:[%s4398 + $0xb8] sm:$0xff]
  %v4423 = vld [vmem:[%s4398 + $0xc0] sm:$0xff]
  %v4424 = vld [vmem:[%s4398 + $0xc8] sm:$0xff]
  %v4425 = vld [vmem:[%s4398 + $0xd0] sm:$0xff]
  %v4426 = vld [vmem:[%s4398 + $0xd8] sm:$0xff]
  %v4427 = vld [vmem:[%s4398 + $0xe0] sm:$0xff]
  %v4428 = vld [vmem:[%s4398 + $0xe8] sm:$0xff]
  %v4429 = vld [vmem:[%s4398 + $0xf0] sm:$0xff]
  %v4430 = vld [vmem:[%s4398 + $0xf8] sm:$0xff]
  %v4463 = vunpack.c.l.b16 %v4399
  %v4464 = vunpack.c.h.b16 %v4399
  %v4465 = vunpack.c.l.b16 %v4400
  %v4466 = vunpack.c.h.b16 %v4400
  %v4467 = vunpack.c.l.b16 %v4401
  %v4468 = vunpack.c.h.b16 %v4401
  %v4469 = vunpack.c.l.b16 %v4402
  %v4470 = vunpack.c.h.b16 %v4402
  %v4471 = vunpack.c.l.b16 %v4403
  %v4472 = vunpack.c.h.b16 %v4403
  %v4473 = vunpack.c.l.b16 %v4404
  %v4474 = vunpack.c.h.b16 %v4404
  %v4475 = vunpack.c.l.b16 %v4405
  %v4476 = vunpack.c.h.b16 %v4405
  %v4477 = vunpack.c.l.b16 %v4406
  %v4478 = vunpack.c.h.b16 %v4406
  %v4479 = vunpack.c.l.b16 %v4407
  %v4480 = vunpack.c.h.b16 %v4407
  %v4481 = vunpack.c.l.b16 %v4408
  %v4482 = vunpack.c.h.b16 %v4408
  %v4483 = vunpack.c.l.b16 %v4409
  %v4484 = vunpack.c.h.b16 %v4409
  %v4485 = vunpack.c.l.b16 %v4410
  %v4486 = vunpack.c.h.b16 %v4410
  %v4487 = vunpack.c.l.b16 %v4411
  %v4488 = vunpack.c.h.b16 %v4411
  %v4489 = vunpack.c.l.b16 %v4412
  %v4490 = vunpack.c.h.b16 %v4412
  %v4491 = vunpack.c.l.b16 %v4413
  %v4492 = vunpack.c.h.b16 %v4413
  %v4493 = vunpack.c.l.b16 %v4414
  %v4494 = vunpack.c.h.b16 %v4414
  %v4495 = vunpack.c.l.b16 %v4415
  %v4496 = vunpack.c.h.b16 %v4415
  %v4497 = vunpack.c.l.b16 %v4416
  %v4498 = vunpack.c.h.b16 %v4416
  %v4499 = vunpack.c.l.b16 %v4417
  %v4500 = vunpack.c.h.b16 %v4417
  %v4501 = vunpack.c.l.b16 %v4418
  %v4502 = vunpack.c.h.b16 %v4418
  %v4503 = vunpack.c.l.b16 %v4419
  %v4504 = vunpack.c.h.b16 %v4419
  %v4505 = vunpack.c.l.b16 %v4420
  %v4506 = vunpack.c.h.b16 %v4420
  %v4507 = vunpack.c.l.b16 %v4421
  %v4508 = vunpack.c.h.b16 %v4421
  %v4509 = vunpack.c.l.b16 %v4422
  %v4510 = vunpack.c.h.b16 %v4422
  %v4511 = vunpack.c.l.b16 %v4423
  %v4512 = vunpack.c.h.b16 %v4423
  %v4513 = vunpack.c.l.b16 %v4424
  %v4514 = vunpack.c.h.b16 %v4424
  %v4515 = vunpack.c.l.b16 %v4425
  %v4516 = vunpack.c.h.b16 %v4425
  %v4517 = vunpack.c.l.b16 %v4426
  %v4518 = vunpack.c.h.b16 %v4426
  %v4519 = vunpack.c.l.b16 %v4427
  %v4520 = vunpack.c.h.b16 %v4427
  %v4521 = vunpack.c.l.b16 %v4428
  %v4522 = vunpack.c.h.b16 %v4428
  %v4523 = vunpack.c.l.b16 %v4429
  %v4524 = vunpack.c.h.b16 %v4429
  %v4525 = vunpack.c.l.b16 %v4430
  %v4526 = vunpack.c.h.b16 %v4430
  %v4527 = vpack.c.b16 %v4467, %v4463
  %v4528 = vpack.c.b16 %v4468, %v4464
  %v4529 = vpack.c.b16 %v4469, %v4465
  %v4530 = vpack.c.b16 %v4470, %v4466
  %v4531 = vpack.c.b16 %v4475, %v4471
  %v4532 = vpack.c.b16 %v4476, %v4472
  %v4533 = vpack.c.b16 %v4477, %v4473
  %v4534 = vpack.c.b16 %v4478, %v4474
  %v4535 = vpack.c.b16 %v4483, %v4479
  %v4536 = vpack.c.b16 %v4484, %v4480
  %v4537 = vpack.c.b16 %v4485, %v4481
  %v4538 = vpack.c.b16 %v4486, %v4482
  %v4539 = vpack.c.b16 %v4491, %v4487
  %v4540 = vpack.c.b16 %v4492, %v4488
  %v4541 = vpack.c.b16 %v4493, %v4489
  %v4542 = vpack.c.b16 %v4494, %v4490
  %v4543 = vpack.c.b16 %v4499, %v4495
  %v4544 = vpack.c.b16 %v4500, %v4496
  %v4545 = vpack.c.b16 %v4501, %v4497
  %v4546 = vpack.c.b16 %v4502, %v4498
  %v4547 = vpack.c.b16 %v4507, %v4503
  %v4548 = vpack.c.b16 %v4508, %v4504
  %v4549 = vpack.c.b16 %v4509, %v4505
  %v4550 = vpack.c.b16 %v4510, %v4506
  %v4551 = vpack.c.b16 %v4515, %v4511
  %v4552 = vpack.c.b16 %v4516, %v4512
  %v4553 = vpack.c.b16 %v4517, %v4513
  %v4554 = vpack.c.b16 %v4518, %v4514
  %v4555 = vpack.c.b16 %v4523, %v4519
  %v4556 = vpack.c.b16 %v4524, %v4520
  %v4557 = vpack.c.b16 %v4525, %v4521
  %v4558 = vpack.c.b16 %v4526, %v4522
  %4591 = vmatprep.subr.bf16.mxu0 %v4556
  %4592 = vmatpush1.bf16.msra.mxu0 %v4555
  %4593 = vmatprep.subr.bf16.mxu0 %v4552
  %4594 = vmatpush1.bf16.msra.mxu0 %v4551
  %4595 = vmatprep.subr.bf16.mxu0 %v4548
  %4596 = vmatpush1.bf16.msra.mxu0 %v4547
  %4597 = vmatprep.subr.bf16.mxu0 %v4544
  %4598 = vmatpush1.bf16.msra.mxu0 %v4543
  %4599 = vmatprep.subr.bf16.mxu0 %v4540
  %4600 = vmatpush1.bf16.msra.mxu0 %v4539
  %4601 = vmatprep.subr.bf16.mxu0 %v4536
  %4602 = vmatpush1.bf16.msra.mxu0 %v4535
  %4603 = vmatprep.subr.bf16.mxu0 %v4532
  %4604 = vmatpush1.bf16.msra.mxu0 %v4531
  %4605 = vmatprep.subr.bf16.mxu0 %v4528
  %4606 = vmatpush1.bf16.msra.mxu0 %v4527
  %4607 = vmatprep.subr.bf16.mxu0 0
  %4608 = vmatpush2.bf16.msra.mxu0 0
  %4609 = vmatprep.subr.bf16.mxu0 0
  %4610 = vmatpush2.bf16.msra.mxu0 0
  %4611 = vmatprep.subr.bf16.mxu0 0
  %4612 = vmatpush2.bf16.msra.mxu0 0
  %4613 = vmatprep.subr.bf16.mxu0 0
  %4614 = vmatpush2.bf16.msra.mxu0 0
  %4615 = vmatprep.subr.bf16.mxu0 0
  %4616 = vmatpush2.bf16.msra.mxu0 0
  %4617 = vmatprep.subr.bf16.mxu0 0
  %4618 = vmatpush2.bf16.msra.mxu0 0
  %4619 = vmatprep.subr.bf16.mxu0 0
  %4620 = vmatpush2.bf16.msra.mxu0 0
  %4621 = vmatprep.subr.bf16.mxu0 0
  %4622 = vmatpush2.bf16.msra.mxu0 0
  %4623 = vmatprep.mubr.bf16.mxu0 0
  %4624 = vmatmul.mubr.bf16.gmra.mxu0 %v4397
  %v4625 = vpop.f32.mrf.mxu0
  %v4626 = vadd.f32 0.0, %v4625
  %v4627 = vpop.f32.mrf.mxu0
  %v4628 = vadd.f32 0.0, %v4627
  %v4629 = vpop.f32.mrf.mxu0
  %v4630 = vadd.f32 0.0, %v4629
  %v4631 = vpop.f32.mrf.mxu0
  %v4632 = vadd.f32 0.0, %v4631
  %4633 = vdwg.mxu0
  %4634 = vmatprep.subr.bf16.mxu0 %v4558
  %4635 = vmatpush1.bf16.msra.mxu0 %v4557
  %4636 = vmatprep.subr.bf16.mxu0 %v4554
  %4637 = vmatpush1.bf16.msra.mxu0 %v4553
  %4638 = vmatprep.subr.bf16.mxu0 %v4550
  %4639 = vmatpush1.bf16.msra.mxu0 %v4549
  %4640 = vmatprep.subr.bf16.mxu0 %v4546
  %4641 = vmatpush1.bf16.msra.mxu0 %v4545
  %4642 = vmatprep.subr.bf16.mxu0 %v4542
  %4643 = vmatpush1.bf16.msra.mxu0 %v4541
  %4644 = vmatprep.subr.bf16.mxu0 %v4538
  %4645 = vmatpush1.bf16.msra.mxu0 %v4537
  %4646 = vmatprep.subr.bf16.mxu0 %v4534
  %4647 = vmatpush1.bf16.msra.mxu0 %v4533
  %4648 = vmatprep.subr.bf16.mxu0 %v4530
  %4649 = vmatpush1.bf16.msra.mxu0 %v4529
  %4650 = vmatprep.subr.bf16.mxu0 0
  %4651 = vmatpush2.bf16.msra.mxu0 0
  %4652 = vmatprep.subr.bf16.mxu0 0
  %4653 = vmatpush2.bf16.msra.mxu0 0
  %4654 = vmatprep.subr.bf16.mxu0 0
  %4655 = vmatpush2.bf16.msra.mxu0 0
  %4656 = vmatprep.subr.bf16.mxu0 0
  %4657 = vmatpush2.bf16.msra.mxu0 0
  %4658 = vmatprep.subr.bf16.mxu0 0
  %4659 = vmatpush2.bf16.msra.mxu0 0
  %4660 = vmatprep.subr.bf16.mxu0 0
  %4661 = vmatpush2.bf16.msra.mxu0 0
  %4662 = vmatprep.subr.bf16.mxu0 0
  %4663 = vmatpush2.bf16.msra.mxu0 0
  %4664 = vmatprep.subr.bf16.mxu0 0
  %4665 = vmatpush2.bf16.msra.mxu0 0
  %4666 = vmatprep.mubr.bf16.mxu0 0
  %4667 = vmatmul.mubr.bf16.gmra.mxu0 %v4397
  %v4668 = vpop.f32.mrf.mxu0
  %v4669 = vadd.f32 0.0, %v4668
  %v4670 = vpop.f32.mrf.mxu0
  %v4671 = vadd.f32 0.0, %v4670
  %v4672 = vpop.f32.mrf.mxu0
  %v4673 = vadd.f32 0.0, %v4672
  %v4674 = vpop.f32.mrf.mxu0
  %v4675 = vadd.f32 0.0, %v4674
  %4676 = vdwg.mxu0
  %v4677 = vadd.f32 %v4383, %v4626
  %v4678 = vadd.f32 %v4384, %v4628
  %v4679 = vadd.f32 %v4385, %v4669
  %v4680 = vadd.f32 %v4386, %v4671
  %v4681 = vadd.f32 %v4387, %v4630
  %v4682 = vadd.f32 %v4388, %v4632
  %v4683 = vadd.f32 %v4389, %v4673
  %v4684 = vadd.f32 %v4390, %v4675
  %v4685 = vmul.f32 %v2365, %v2636
  %v4686 = vmul.f32 %v2368, %v2636
  %v4687 = vadd.f32 %v4685, %v2644
  %v4688 = vadd.f32 %v4686, %v2644
  %v4689 = vmax.f32 %v4687, 0.0
  %v4690 = vmax.f32 %v4688, 0.0
  %v4691 = vpack.c.bf16 %v4690, %v4689
  %s4692 = scalar_lea.vmem %s4, 1792
  %v4693 = vld [vmem:[%s4692] sm:$0xff]
  %v4694 = vld [vmem:[%s4692 + $0x8] sm:$0xff]
  %v4695 = vld [vmem:[%s4692 + $0x10] sm:$0xff]
  %v4696 = vld [vmem:[%s4692 + $0x18] sm:$0xff]
  %v4697 = vld [vmem:[%s4692 + $0x20] sm:$0xff]
  %v4698 = vld [vmem:[%s4692 + $0x28] sm:$0xff]
  %v4699 = vld [vmem:[%s4692 + $0x30] sm:$0xff]
  %v4700 = vld [vmem:[%s4692 + $0x38] sm:$0xff]
  %v4701 = vld [vmem:[%s4692 + $0x40] sm:$0xff]
  %v4702 = vld [vmem:[%s4692 + $0x48] sm:$0xff]
  %v4703 = vld [vmem:[%s4692 + $0x50] sm:$0xff]
  %v4704 = vld [vmem:[%s4692 + $0x58] sm:$0xff]
  %v4705 = vld [vmem:[%s4692 + $0x60] sm:$0xff]
  %v4706 = vld [vmem:[%s4692 + $0x68] sm:$0xff]
  %v4707 = vld [vmem:[%s4692 + $0x70] sm:$0xff]
  %v4708 = vld [vmem:[%s4692 + $0x78] sm:$0xff]
  %v4709 = vld [vmem:[%s4692 + $0x80] sm:$0xff]
  %v4710 = vld [vmem:[%s4692 + $0x88] sm:$0xff]
  %v4711 = vld [vmem:[%s4692 + $0x90] sm:$0xff]
  %v4712 = vld [vmem:[%s4692 + $0x98] sm:$0xff]
  %v4713 = vld [vmem:[%s4692 + $0xa0] sm:$0xff]
  %v4714 = vld [vmem:[%s4692 + $0xa8] sm:$0xff]
  %v4715 = vld [vmem:[%s4692 + $0xb0] sm:$0xff]
  %v4716 = vld [vmem:[%s4692 + $0xb8] sm:$0xff]
  %v4717 = vld [vmem:[%s4692 + $0xc0] sm:$0xff]
  %v4718 = vld [vmem:[%s4692 + $0xc8] sm:$0xff]
  %v4719 = vld [vmem:[%s4692 + $0xd0] sm:$0xff]
  %v4720 = vld [vmem:[%s4692 + $0xd8] sm:$0xff]
  %v4721 = vld [vmem:[%s4692 + $0xe0] sm:$0xff]
  %v4722 = vld [vmem:[%s4692 + $0xe8] sm:$0xff]
  %v4723 = vld [vmem:[%s4692 + $0xf0] sm:$0xff]
  %v4724 = vld [vmem:[%s4692 + $0xf8] sm:$0xff]
  %v4757 = vunpack.c.l.b16 %v4693
  %v4758 = vunpack.c.h.b16 %v4693
  %v4759 = vunpack.c.l.b16 %v4694
  %v4760 = vunpack.c.h.b16 %v4694
  %v4761 = vunpack.c.l.b16 %v4695
  %v4762 = vunpack.c.h.b16 %v4695
  %v4763 = vunpack.c.l.b16 %v4696
  %v4764 = vunpack.c.h.b16 %v4696
  %v4765 = vunpack.c.l.b16 %v4697
  %v4766 = vunpack.c.h.b16 %v4697
  %v4767 = vunpack.c.l.b16 %v4698
  %v4768 = vunpack.c.h.b16 %v4698
  %v4769 = vunpack.c.l.b16 %v4699
  %v4770 = vunpack.c.h.b16 %v4699
  %v4771 = vunpack.c.l.b16 %v4700
  %v4772 = vunpack.c.h.b16 %v4700
  %v4773 = vunpack.c.l.b16 %v4701
  %v4774 = vunpack.c.h.b16 %v4701
  %v4775 = vunpack.c.l.b16 %v4702
  %v4776 = vunpack.c.h.b16 %v4702
  %v4777 = vunpack.c.l.b16 %v4703
  %v4778 = vunpack.c.h.b16 %v4703
  %v4779 = vunpack.c.l.b16 %v4704
  %v4780 = vunpack.c.h.b16 %v4704
  %v4781 = vunpack.c.l.b16 %v4705
  %v4782 = vunpack.c.h.b16 %v4705
  %v4783 = vunpack.c.l.b16 %v4706
  %v4784 = vunpack.c.h.b16 %v4706
  %v4785 = vunpack.c.l.b16 %v4707
  %v4786 = vunpack.c.h.b16 %v4707
  %v4787 = vunpack.c.l.b16 %v4708
  %v4788 = vunpack.c.h.b16 %v4708
  %v4789 = vunpack.c.l.b16 %v4709
  %v4790 = vunpack.c.h.b16 %v4709
  %v4791 = vunpack.c.l.b16 %v4710
  %v4792 = vunpack.c.h.b16 %v4710
  %v4793 = vunpack.c.l.b16 %v4711
  %v4794 = vunpack.c.h.b16 %v4711
  %v4795 = vunpack.c.l.b16 %v4712
  %v4796 = vunpack.c.h.b16 %v4712
  %v4797 = vunpack.c.l.b16 %v4713
  %v4798 = vunpack.c.h.b16 %v4713
  %v4799 = vunpack.c.l.b16 %v4714
  %v4800 = vunpack.c.h.b16 %v4714
  %v4801 = vunpack.c.l.b16 %v4715
  %v4802 = vunpack.c.h.b16 %v4715
  %v4803 = vunpack.c.l.b16 %v4716
  %v4804 = vunpack.c.h.b16 %v4716
  %v4805 = vunpack.c.l.b16 %v4717
  %v4806 = vunpack.c.h.b16 %v4717
  %v4807 = vunpack.c.l.b16 %v4718
  %v4808 = vunpack.c.h.b16 %v4718
  %v4809 = vunpack.c.l.b16 %v4719
  %v4810 = vunpack.c.h.b16 %v4719
  %v4811 = vunpack.c.l.b16 %v4720
  %v4812 = vunpack.c.h.b16 %v4720
  %v4813 = vunpack.c.l.b16 %v4721
  %v4814 = vunpack.c.h.b16 %v4721
  %v4815 = vunpack.c.l.b16 %v4722
  %v4816 = vunpack.c.h.b16 %v4722
  %v4817 = vunpack.c.l.b16 %v4723
  %v4818 = vunpack.c.h.b16 %v4723
  %v4819 = vunpack.c.l.b16 %v4724
  %v4820 = vunpack.c.h.b16 %v4724
  %v4821 = vpack.c.b16 %v4761, %v4757
  %v4822 = vpack.c.b16 %v4762, %v4758
  %v4823 = vpack.c.b16 %v4763, %v4759
  %v4824 = vpack.c.b16 %v4764, %v4760
  %v4825 = vpack.c.b16 %v4769, %v4765
  %v4826 = vpack.c.b16 %v4770, %v4766
  %v4827 = vpack.c.b16 %v4771, %v4767
  %v4828 = vpack.c.b16 %v4772, %v4768
  %v4829 = vpack.c.b16 %v4777, %v4773
  %v4830 = vpack.c.b16 %v4778, %v4774
  %v4831 = vpack.c.b16 %v4779, %v4775
  %v4832 = vpack.c.b16 %v4780, %v4776
  %v4833 = vpack.c.b16 %v4785, %v4781
  %v4834 = vpack.c.b16 %v4786, %v4782
  %v4835 = vpack.c.b16 %v4787, %v4783
  %v4836 = vpack.c.b16 %v4788, %v4784
  %v4837 = vpack.c.b16 %v4793, %v4789
  %v4838 = vpack.c.b16 %v4794, %v4790
  %v4839 = vpack.c.b16 %v4795, %v4791
  %v4840 = vpack.c.b16 %v4796, %v4792
  %v4841 = vpack.c.b16 %v4801, %v4797
  %v4842 = vpack.c.b16 %v4802, %v4798
  %v4843 = vpack.c.b16 %v4803, %v4799
  %v4844 = vpack.c.b16 %v4804, %v4800
  %v4845 = vpack.c.b16 %v4809, %v4805
  %v4846 = vpack.c.b16 %v4810, %v4806
  %v4847 = vpack.c.b16 %v4811, %v4807
  %v4848 = vpack.c.b16 %v4812, %v4808
  %v4849 = vpack.c.b16 %v4817, %v4813
  %v4850 = vpack.c.b16 %v4818, %v4814
  %v4851 = vpack.c.b16 %v4819, %v4815
  %v4852 = vpack.c.b16 %v4820, %v4816
  %4885 = vmatprep.subr.bf16.mxu0 %v4850
  %4886 = vmatpush1.bf16.msra.mxu0 %v4849
  %4887 = vmatprep.subr.bf16.mxu0 %v4846
  %4888 = vmatpush1.bf16.msra.mxu0 %v4845
  %4889 = vmatprep.subr.bf16.mxu0 %v4842
  %4890 = vmatpush1.bf16.msra.mxu0 %v4841
  %4891 = vmatprep.subr.bf16.mxu0 %v4838
  %4892 = vmatpush1.bf16.msra.mxu0 %v4837
  %4893 = vmatprep.subr.bf16.mxu0 %v4834
  %4894 = vmatpush1.bf16.msra.mxu0 %v4833
  %4895 = vmatprep.subr.bf16.mxu0 %v4830
  %4896 = vmatpush1.bf16.msra.mxu0 %v4829
  %4897 = vmatprep.subr.bf16.mxu0 %v4826
  %4898 = vmatpush1.bf16.msra.mxu0 %v4825
  %4899 = vmatprep.subr.bf16.mxu0 %v4822
  %4900 = vmatpush1.bf16.msra.mxu0 %v4821
  %4901 = vmatprep.subr.bf16.mxu0 0
  %4902 = vmatpush2.bf16.msra.mxu0 0
  %4903 = vmatprep.subr.bf16.mxu0 0
  %4904 = vmatpush2.bf16.msra.mxu0 0
  %4905 = vmatprep.subr.bf16.mxu0 0
  %4906 = vmatpush2.bf16.msra.mxu0 0
  %4907 = vmatprep.subr.bf16.mxu0 0
  %4908 = vmatpush2.bf16.msra.mxu0 0
  %4909 = vmatprep.subr.bf16.mxu0 0
  %4910 = vmatpush2.bf16.msra.mxu0 0
  %4911 = vmatprep.subr.bf16.mxu0 0
  %4912 = vmatpush2.bf16.msra.mxu0 0
  %4913 = vmatprep.subr.bf16.mxu0 0
  %4914 = vmatpush2.bf16.msra.mxu0 0
  %4915 = vmatprep.subr.bf16.mxu0 0
  %4916 = vmatpush2.bf16.msra.mxu0 0
  %4917 = vmatprep.mubr.bf16.mxu0 0
  %4918 = vmatmul.mubr.bf16.gmra.mxu0 %v4691
  %v4919 = vpop.f32.mrf.mxu0
  %v4920 = vadd.f32 0.0, %v4919
  %v4921 = vpop.f32.mrf.mxu0
  %v4922 = vadd.f32 0.0, %v4921
  %v4923 = vpop.f32.mrf.mxu0
  %v4924 = vadd.f32 0.0, %v4923
  %v4925 = vpop.f32.mrf.mxu0
  %v4926 = vadd.f32 0.0, %v4925
  %4927 = vdwg.mxu0
  %4928 = vmatprep.subr.bf16.mxu0 %v4852
  %4929 = vmatpush1.bf16.msra.mxu0 %v4851
  %4930 = vmatprep.subr.bf16.mxu0 %v4848
  %4931 = vmatpush1.bf16.msra.mxu0 %v4847
  %4932 = vmatprep.subr.bf16.mxu0 %v4844
  %4933 = vmatpush1.bf16.msra.mxu0 %v4843
  %4934 = vmatprep.subr.bf16.mxu0 %v4840
  %4935 = vmatpush1.bf16.msra.mxu0 %v4839
  %4936 = vmatprep.subr.bf16.mxu0 %v4836
  %4937 = vmatpush1.bf16.msra.mxu0 %v4835
  %4938 = vmatprep.subr.bf16.mxu0 %v4832
  %4939 = vmatpush1.bf16.msra.mxu0 %v4831
  %4940 = vmatprep.subr.bf16.mxu0 %v4828
  %4941 = vmatpush1.bf16.msra.mxu0 %v4827
  %4942 = vmatprep.subr.bf16.mxu0 %v4824
  %4943 = vmatpush1.bf16.msra.mxu0 %v4823
  %4944 = vmatprep.subr.bf16.mxu0 0
  %4945 = vmatpush2.bf16.msra.mxu0 0
  %4946 = vmatprep.subr.bf16.mxu0 0
  %4947 = vmatpush2.bf16.msra.mxu0 0
  %4948 = vmatprep.subr.bf16.mxu0 0
  %4949 = vmatpush2.bf16.msra.mxu0 0
  %4950 = vmatprep.subr.bf16.mxu0 0
  %4951 = vmatpush2.bf16.msra.mxu0 0
  %4952 = vmatprep.subr.bf16.mxu0 0
  %4953 = vmatpush2.bf16.msra.mxu0 0
  %4954 = vmatprep.subr.bf16.mxu0 0
  %4955 = vmatpush2.bf16.msra.mxu0 0
  %4956 = vmatprep.subr.bf16.mxu0 0
  %4957 = vmatpush2.bf16.msra.mxu0 0
  %4958 = vmatprep.subr.bf16.mxu0 0
  %4959 = vmatpush2.bf16.msra.mxu0 0
  %4960 = vmatprep.mubr.bf16.mxu0 0
  %4961 = vmatmul.mubr.bf16.gmra.mxu0 %v4691
  %v4962 = vpop.f32.mrf.mxu0
  %v4963 = vadd.f32 0.0, %v4962
  %v4964 = vpop.f32.mrf.mxu0
  %v4965 = vadd.f32 0.0, %v4964
  %v4966 = vpop.f32.mrf.mxu0
  %v4967 = vadd.f32 0.0, %v4966
  %v4968 = vpop.f32.mrf.mxu0
  %v4969 = vadd.f32 0.0, %v4968
  %4970 = vdwg.mxu0
  %v4971 = vadd.f32 %v4677, %v4920
  %v4972 = vadd.f32 %v4678, %v4922
  %v4973 = vadd.f32 %v4679, %v4963
  %v4974 = vadd.f32 %v4680, %v4965
  %v4975 = vadd.f32 %v4681, %v4924
  %v4976 = vadd.f32 %v4682, %v4926
  %v4977 = vadd.f32 %v4683, %v4967
  %v4978 = vadd.f32 %v4684, %v4969
  %v4979 = vmul.f32 %v2596, %v2636
  %v4980 = vmul.f32 %v2599, %v2636
  %v4981 = vadd.f32 %v4979, %v2644
  %v4982 = vadd.f32 %v4980, %v2644
  %v4983 = vmax.f32 %v4981, 0.0
  %v4984 = vmax.f32 %v4982, 0.0
  %v4985 = vpack.c.bf16 %v4984, %v4983
  %s4986 = scalar_lea.vmem %s4, 2048
  %v4987 = vld [vmem:[%s4986] sm:$0xff]
  %v4988 = vld [vmem:[%s4986 + $0x8] sm:$0xff]
  %v4989 = vld [vmem:[%s4986 + $0x10] sm:$0xff]
  %v4990 = vld [vmem:[%s4986 + $0x18] sm:$0xff]
  %v4991 = vld [vmem:[%s4986 + $0x20] sm:$0xff]
  %v4992 = vld [vmem:[%s4986 + $0x28] sm:$0xff]
  %v4993 = vld [vmem:[%s4986 + $0x30] sm:$0xff]
  %v4994 = vld [vmem:[%s4986 + $0x38] sm:$0xff]
  %v4995 = vld [vmem:[%s4986 + $0x40] sm:$0xff]
  %v4996 = vld [vmem:[%s4986 + $0x48] sm:$0xff]
  %v4997 = vld [vmem:[%s4986 + $0x50] sm:$0xff]
  %v4998 = vld [vmem:[%s4986 + $0x58] sm:$0xff]
  %v4999 = vld [vmem:[%s4986 + $0x60] sm:$0xff]
  %v5000 = vld [vmem:[%s4986 + $0x68] sm:$0xff]
  %v5001 = vld [vmem:[%s4986 + $0x70] sm:$0xff]
  %v5002 = vld [vmem:[%s4986 + $0x78] sm:$0xff]
  %v5003 = vld [vmem:[%s4986 + $0x80] sm:$0xff]
  %v5004 = vld [vmem:[%s4986 + $0x88] sm:$0xff]
  %v5005 = vld [vmem:[%s4986 + $0x90] sm:$0xff]
  %v5006 = vld [vmem:[%s4986 + $0x98] sm:$0xff]
  %v5007 = vld [vmem:[%s4986 + $0xa0] sm:$0xff]
  %v5008 = vld [vmem:[%s4986 + $0xa8] sm:$0xff]
  %v5009 = vld [vmem:[%s4986 + $0xb0] sm:$0xff]
  %v5010 = vld [vmem:[%s4986 + $0xb8] sm:$0xff]
  %v5011 = vld [vmem:[%s4986 + $0xc0] sm:$0xff]
  %v5012 = vld [vmem:[%s4986 + $0xc8] sm:$0xff]
  %v5013 = vld [vmem:[%s4986 + $0xd0] sm:$0xff]
  %v5014 = vld [vmem:[%s4986 + $0xd8] sm:$0xff]
  %v5015 = vld [vmem:[%s4986 + $0xe0] sm:$0xff]
  %v5016 = vld [vmem:[%s4986 + $0xe8] sm:$0xff]
  %v5017 = vld [vmem:[%s4986 + $0xf0] sm:$0xff]
  %v5018 = vld [vmem:[%s4986 + $0xf8] sm:$0xff]
  %v5051 = vunpack.c.l.b16 %v4987
  %v5052 = vunpack.c.h.b16 %v4987
  %v5053 = vunpack.c.l.b16 %v4988
  %v5054 = vunpack.c.h.b16 %v4988
  %v5055 = vunpack.c.l.b16 %v4989
  %v5056 = vunpack.c.h.b16 %v4989
  %v5057 = vunpack.c.l.b16 %v4990
  %v5058 = vunpack.c.h.b16 %v4990
  %v5059 = vunpack.c.l.b16 %v4991
  %v5060 = vunpack.c.h.b16 %v4991
  %v5061 = vunpack.c.l.b16 %v4992
  %v5062 = vunpack.c.h.b16 %v4992
  %v5063 = vunpack.c.l.b16 %v4993
  %v5064 = vunpack.c.h.b16 %v4993
  %v5065 = vunpack.c.l.b16 %v4994
  %v5066 = vunpack.c.h.b16 %v4994
  %v5067 = vunpack.c.l.b16 %v4995
  %v5068 = vunpack.c.h.b16 %v4995
  %v5069 = vunpack.c.l.b16 %v4996
  %v5070 = vunpack.c.h.b16 %v4996
  %v5071 = vunpack.c.l.b16 %v4997
  %v5072 = vunpack.c.h.b16 %v4997
  %v5073 = vunpack.c.l.b16 %v4998
  %v5074 = vunpack.c.h.b16 %v4998
  %v5075 = vunpack.c.l.b16 %v4999
  %v5076 = vunpack.c.h.b16 %v4999
  %v5077 = vunpack.c.l.b16 %v5000
  %v5078 = vunpack.c.h.b16 %v5000
  %v5079 = vunpack.c.l.b16 %v5001
  %v5080 = vunpack.c.h.b16 %v5001
  %v5081 = vunpack.c.l.b16 %v5002
  %v5082 = vunpack.c.h.b16 %v5002
  %v5083 = vunpack.c.l.b16 %v5003
  %v5084 = vunpack.c.h.b16 %v5003
  %v5085 = vunpack.c.l.b16 %v5004
  %v5086 = vunpack.c.h.b16 %v5004
  %v5087 = vunpack.c.l.b16 %v5005
  %v5088 = vunpack.c.h.b16 %v5005
  %v5089 = vunpack.c.l.b16 %v5006
  %v5090 = vunpack.c.h.b16 %v5006
  %v5091 = vunpack.c.l.b16 %v5007
  %v5092 = vunpack.c.h.b16 %v5007
  %v5093 = vunpack.c.l.b16 %v5008
  %v5094 = vunpack.c.h.b16 %v5008
  %v5095 = vunpack.c.l.b16 %v5009
  %v5096 = vunpack.c.h.b16 %v5009
  %v5097 = vunpack.c.l.b16 %v5010
  %v5098 = vunpack.c.h.b16 %v5010
  %v5099 = vunpack.c.l.b16 %v5011
  %v5100 = vunpack.c.h.b16 %v5011
  %v5101 = vunpack.c.l.b16 %v5012
  %v5102 = vunpack.c.h.b16 %v5012
  %v5103 = vunpack.c.l.b16 %v5013
  %v5104 = vunpack.c.h.b16 %v5013
  %v5105 = vunpack.c.l.b16 %v5014
  %v5106 = vunpack.c.h.b16 %v5014
  %v5107 = vunpack.c.l.b16 %v5015
  %v5108 = vunpack.c.h.b16 %v5015
  %v5109 = vunpack.c.l.b16 %v5016
  %v5110 = vunpack.c.h.b16 %v5016
  %v5111 = vunpack.c.l.b16 %v5017
  %v5112 = vunpack.c.h.b16 %v5017
  %v5113 = vunpack.c.l.b16 %v5018
  %v5114 = vunpack.c.h.b16 %v5018
  %v5115 = vpack.c.b16 %v5055, %v5051
  %v5116 = vpack.c.b16 %v5056, %v5052
  %v5117 = vpack.c.b16 %v5057, %v5053
  %v5118 = vpack.c.b16 %v5058, %v5054
  %v5119 = vpack.c.b16 %v5063, %v5059
  %v5120 = vpack.c.b16 %v5064, %v5060
  %v5121 = vpack.c.b16 %v5065, %v5061
  %v5122 = vpack.c.b16 %v5066, %v5062
  %v5123 = vpack.c.b16 %v5071, %v5067
  %v5124 = vpack.c.b16 %v5072, %v5068
  %v5125 = vpack.c.b16 %v5073, %v5069
  %v5126 = vpack.c.b16 %v5074, %v5070
  %v5127 = vpack.c.b16 %v5079, %v5075
  %v5128 = vpack.c.b16 %v5080, %v5076
  %v5129 = vpack.c.b16 %v5081, %v5077
  %v5130 = vpack.c.b16 %v5082, %v5078
  %v5131 = vpack.c.b16 %v5087, %v5083
  %v5132 = vpack.c.b16 %v5088, %v5084
  %v5133 = vpack.c.b16 %v5089, %v5085
  %v5134 = vpack.c.b16 %v5090, %v5086
  %v5135 = vpack.c.b16 %v5095, %v5091
  %v5136 = vpack.c.b16 %v5096, %v5092
  %v5137 = vpack.c.b16 %v5097, %v5093
  %v5138 = vpack.c.b16 %v5098, %v5094
  %v5139 = vpack.c.b16 %v5103, %v5099
  %v5140 = vpack.c.b16 %v5104, %v5100
  %v5141 = vpack.c.b16 %v5105, %v5101
  %v5142 = vpack.c.b16 %v5106, %v5102
  %v5143 = vpack.c.b16 %v5111, %v5107
  %v5144 = vpack.c.b16 %v5112, %v5108
  %v5145 = vpack.c.b16 %v5113, %v5109
  %v5146 = vpack.c.b16 %v5114, %v5110
  %5179 = vmatprep.subr.bf16.mxu0 %v5144
  %5180 = vmatpush1.bf16.msra.mxu0 %v5143
  %5181 = vmatprep.subr.bf16.mxu0 %v5140
  %5182 = vmatpush1.bf16.msra.mxu0 %v5139
  %5183 = vmatprep.subr.bf16.mxu0 %v5136
  %5184 = vmatpush1.bf16.msra.mxu0 %v5135
  %5185 = vmatprep.subr.bf16.mxu0 %v5132
  %5186 = vmatpush1.bf16.msra.mxu0 %v5131
  %5187 = vmatprep.subr.bf16.mxu0 %v5128
  %5188 = vmatpush1.bf16.msra.mxu0 %v5127
  %5189 = vmatprep.subr.bf16.mxu0 %v5124
  %5190 = vmatpush1.bf16.msra.mxu0 %v5123
  %5191 = vmatprep.subr.bf16.mxu0 %v5120
  %5192 = vmatpush1.bf16.msra.mxu0 %v5119
  %5193 = vmatprep.subr.bf16.mxu0 %v5116
  %5194 = vmatpush1.bf16.msra.mxu0 %v5115
  %5195 = vmatprep.subr.bf16.mxu0 0
  %5196 = vmatpush2.bf16.msra.mxu0 0
  %5197 = vmatprep.subr.bf16.mxu0 0
  %5198 = vmatpush2.bf16.msra.mxu0 0
  %5199 = vmatprep.subr.bf16.mxu0 0
  %5200 = vmatpush2.bf16.msra.mxu0 0
  %5201 = vmatprep.subr.bf16.mxu0 0
  %5202 = vmatpush2.bf16.msra.mxu0 0
  %5203 = vmatprep.subr.bf16.mxu0 0
  %5204 = vmatpush2.bf16.msra.mxu0 0
  %5205 = vmatprep.subr.bf16.mxu0 0
  %5206 = vmatpush2.bf16.msra.mxu0 0
  %5207 = vmatprep.subr.bf16.mxu0 0
  %5208 = vmatpush2.bf16.msra.mxu0 0
  %5209 = vmatprep.subr.bf16.mxu0 0
  %5210 = vmatpush2.bf16.msra.mxu0 0
  %5211 = vmatprep.mubr.bf16.mxu0 0
  %5212 = vmatmul.mubr.bf16.gmra.mxu0 %v4985
  %v5213 = vpop.f32.mrf.mxu0
  %v5214 = vadd.f32 0.0, %v5213
  %v5215 = vpop.f32.mrf.mxu0
  %v5216 = vadd.f32 0.0, %v5215
  %v5217 = vpop.f32.mrf.mxu0
  %v5218 = vadd.f32 0.0, %v5217
  %v5219 = vpop.f32.mrf.mxu0
  %v5220 = vadd.f32 0.0, %v5219
  %5221 = vdwg.mxu0
  %5222 = vmatprep.subr.bf16.mxu0 %v5146
  %5223 = vmatpush1.bf16.msra.mxu0 %v5145
  %5224 = vmatprep.subr.bf16.mxu0 %v5142
  %5225 = vmatpush1.bf16.msra.mxu0 %v5141
  %5226 = vmatprep.subr.bf16.mxu0 %v5138
  %5227 = vmatpush1.bf16.msra.mxu0 %v5137
  %5228 = vmatprep.subr.bf16.mxu0 %v5134
  %5229 = vmatpush1.bf16.msra.mxu0 %v5133
  %5230 = vmatprep.subr.bf16.mxu0 %v5130
  %5231 = vmatpush1.bf16.msra.mxu0 %v5129
  %5232 = vmatprep.subr.bf16.mxu0 %v5126
  %5233 = vmatpush1.bf16.msra.mxu0 %v5125
  %5234 = vmatprep.subr.bf16.mxu0 %v5122
  %5235 = vmatpush1.bf16.msra.mxu0 %v5121
  %5236 = vmatprep.subr.bf16.mxu0 %v5118
  %5237 = vmatpush1.bf16.msra.mxu0 %v5117
  %5238 = vmatprep.subr.bf16.mxu0 0
  %5239 = vmatpush2.bf16.msra.mxu0 0
  %5240 = vmatprep.subr.bf16.mxu0 0
  %5241 = vmatpush2.bf16.msra.mxu0 0
  %5242 = vmatprep.subr.bf16.mxu0 0
  %5243 = vmatpush2.bf16.msra.mxu0 0
  %5244 = vmatprep.subr.bf16.mxu0 0
  %5245 = vmatpush2.bf16.msra.mxu0 0
  %5246 = vmatprep.subr.bf16.mxu0 0
  %5247 = vmatpush2.bf16.msra.mxu0 0
  %5248 = vmatprep.subr.bf16.mxu0 0
  %5249 = vmatpush2.bf16.msra.mxu0 0
  %5250 = vmatprep.subr.bf16.mxu0 0
  %5251 = vmatpush2.bf16.msra.mxu0 0
  %5252 = vmatprep.subr.bf16.mxu0 0
  %5253 = vmatpush2.bf16.msra.mxu0 0
  %5254 = vmatprep.mubr.bf16.mxu0 0
  %5255 = vmatmul.mubr.bf16.gmra.mxu0 %v4985
  %v5256 = vpop.f32.mrf.mxu0
  %v5257 = vadd.f32 0.0, %v5256
  %v5258 = vpop.f32.mrf.mxu0
  %v5259 = vadd.f32 0.0, %v5258
  %v5260 = vpop.f32.mrf.mxu0
  %v5261 = vadd.f32 0.0, %v5260
  %v5262 = vpop.f32.mrf.mxu0
  %v5263 = vadd.f32 0.0, %v5262
  %5264 = vdwg.mxu0
  %v5265 = vadd.f32 %v4971, %v5214
  %v5266 = vadd.f32 %v4972, %v5216
  %v5267 = vadd.f32 %v4973, %v5257
  %v5268 = vadd.f32 %v4974, %v5259
  %v5269 = vadd.f32 %v4975, %v5218
  %v5270 = vadd.f32 %v4976, %v5220
  %v5271 = vadd.f32 %v4977, %v5261
  %v5272 = vadd.f32 %v4978, %v5263
  %v5273 = vld [vmem:[%s5] sm:$0xf]
  %v5275 = vlaneseq
  %v5276 = vshrl.u32 %v5275, 7
  %v5277 = vsub.s32 0, %v5276
  %v5278 = vrot.slane %v5273, %v5277
  %v5279 = vlaneseq
  %v5280 = vshrl.u32 %v5279, 7
  %v5281 = vsub.s32 1, %v5280
  %v5282 = vrot.slane %v5273, %v5281
  %v5283 = vlaneseq
  %v5284 = vshrl.u32 %v5283, 7
  %v5285 = vsub.s32 2, %v5284
  %v5286 = vrot.slane %v5273, %v5285
  %v5287 = vlaneseq
  %v5288 = vshrl.u32 %v5287, 7
  %v5289 = vsub.s32 3, %v5288
  %v5290 = vrot.slane %v5273, %v5289
  %v5295 = vadd.f32 %v5265, %v5278
  %v5296 = vadd.f32 %v5266, %v5282
  %v5297 = vadd.f32 %v5267, %v5286
  %v5298 = vadd.f32 %v5268, %v5290
  %v5299 = vadd.f32 %v5269, %v5278
  %v5300 = vadd.f32 %v5270, %v5282
  %v5301 = vadd.f32 %v5271, %v5286
  %v5302 = vadd.f32 %v5272, %v5290
  %v5303 = vmax.f32 %v5295, 0.0
  %v5304 = vmax.f32 %v5296, 0.0
  %v5305 = vmax.f32 %v5297, 0.0
  %v5306 = vmax.f32 %v5298, 0.0
  %v5307 = vmax.f32 %v5299, 0.0
  %v5308 = vmax.f32 %v5300, 0.0
  %v5309 = vmax.f32 %v5301, 0.0
  %v5310 = vmax.f32 %v5302, 0.0
  %v5311 = vpack.c.bf16 %v5307, %v5303
  %v5312 = vpack.c.bf16 %v5308, %v5304
  %v5313 = vpack.c.bf16 %v5309, %v5305
  %v5314 = vpack.c.bf16 %v5310, %v5306
  %v5315 = vld [vmem:[%s6] sm:$0xf]
  %v5316 = vld [vmem:[%s6 + $0x4] sm:$0xf]
  %v5317 = vld [vmem:[%s6 + $0x8] sm:$0xf]
  %v5318 = vld [vmem:[%s6 + $0xc] sm:$0xf]
  %v5319 = vld [vmem:[%s6 + $0x10] sm:$0xf]
  %v5320 = vld [vmem:[%s6 + $0x14] sm:$0xf]
  %v5321 = vld [vmem:[%s6 + $0x18] sm:$0xf]
  %v5322 = vld [vmem:[%s6 + $0x1c] sm:$0xf]
  %v5323 = vld [vmem:[%s6 + $0x20] sm:$0xf]
  %v5324 = vld [vmem:[%s6 + $0x24] sm:$0xf]
  %v5325 = vld [vmem:[%s6 + $0x28] sm:$0xf]
  %v5326 = vld [vmem:[%s6 + $0x2c] sm:$0xf]
  %v5327 = vld [vmem:[%s6 + $0x30] sm:$0xf]
  %v5328 = vld [vmem:[%s6 + $0x34] sm:$0xf]
  %v5329 = vld [vmem:[%s6 + $0x38] sm:$0xf]
  %v5330 = vld [vmem:[%s6 + $0x3c] sm:$0xf]
  %v5331 = vld [vmem:[%s6 + $0x40] sm:$0xf]
  %v5332 = vld [vmem:[%s6 + $0x44] sm:$0xf]
  %v5333 = vld [vmem:[%s6 + $0x48] sm:$0xf]
  %v5334 = vld [vmem:[%s6 + $0x4c] sm:$0xf]
  %v5335 = vld [vmem:[%s6 + $0x50] sm:$0xf]
  %v5336 = vld [vmem:[%s6 + $0x54] sm:$0xf]
  %v5337 = vld [vmem:[%s6 + $0x58] sm:$0xf]
  %v5338 = vld [vmem:[%s6 + $0x5c] sm:$0xf]
  %v5339 = vld [vmem:[%s6 + $0x60] sm:$0xf]
  %v5340 = vld [vmem:[%s6 + $0x64] sm:$0xf]
  %v5341 = vld [vmem:[%s6 + $0x68] sm:$0xf]
  %v5342 = vld [vmem:[%s6 + $0x6c] sm:$0xf]
  %v5343 = vld [vmem:[%s6 + $0x70] sm:$0xf]
  %v5344 = vld [vmem:[%s6 + $0x74] sm:$0xf]
  %v5345 = vld [vmem:[%s6 + $0x78] sm:$0xf]
  %v5346 = vld [vmem:[%s6 + $0x7c] sm:$0xf]
  %v5347 = vld [vmem:[%s6 + $0x80] sm:$0xf]
  %v5348 = vld [vmem:[%s6 + $0x84] sm:$0xf]
  %v5349 = vld [vmem:[%s6 + $0x88] sm:$0xf]
  %v5350 = vld [vmem:[%s6 + $0x8c] sm:$0xf]
  %v5351 = vld [vmem:[%s6 + $0x90] sm:$0xf]
  %v5352 = vld [vmem:[%s6 + $0x94] sm:$0xf]
  %v5353 = vld [vmem:[%s6 + $0x98] sm:$0xf]
  %v5354 = vld [vmem:[%s6 + $0x9c] sm:$0xf]
  %v5355 = vld [vmem:[%s6 + $0xa0] sm:$0xf]
  %v5356 = vld [vmem:[%s6 + $0xa4] sm:$0xf]
  %v5357 = vld [vmem:[%s6 + $0xa8] sm:$0xf]
  %v5358 = vld [vmem:[%s6 + $0xac] sm:$0xf]
  %v5359 = vld [vmem:[%s6 + $0xb0] sm:$0xf]
  %v5360 = vld [vmem:[%s6 + $0xb4] sm:$0xf]
  %v5361 = vld [vmem:[%s6 + $0xb8] sm:$0xf]
  %v5362 = vld [vmem:[%s6 + $0xbc] sm:$0xf]
  %v5363 = vld [vmem:[%s6 + $0xc0] sm:$0xf]
  %v5364 = vld [vmem:[%s6 + $0xc4] sm:$0xf]
  %v5365 = vld [vmem:[%s6 + $0xc8] sm:$0xf]
  %v5366 = vld [vmem:[%s6 + $0xcc] sm:$0xf]
  %v5367 = vld [vmem:[%s6 + $0xd0] sm:$0xf]
  %v5368 = vld [vmem:[%s6 + $0xd4] sm:$0xf]
  %v5369 = vld [vmem:[%s6 + $0xd8] sm:$0xf]
  %v5370 = vld [vmem:[%s6 + $0xdc] sm:$0xf]
  %v5371 = vld [vmem:[%s6 + $0xe0] sm:$0xf]
  %v5372 = vld [vmem:[%s6 + $0xe4] sm:$0xf]
  %v5373 = vld [vmem:[%s6 + $0xe8] sm:$0xf]
  %v5374 = vld [vmem:[%s6 + $0xec] sm:$0xf]
  %v5375 = vld [vmem:[%s6 + $0xf0] sm:$0xf]
  %v5376 = vld [vmem:[%s6 + $0xf4] sm:$0xf]
  %v5377 = vld [vmem:[%s6 + $0xf8] sm:$0xf]
  %v5378 = vld [vmem:[%s6 + $0xfc] sm:$0xf]
  %v5379 = vld [vmem:[%s7] sm:$0x1]
  %v5381 = vlaneseq
  %v5382 = vshrl.u32 %v5381, 7
  %v5383 = vsub.s32 0, %v5382
  %v5384 = vrot.slane %v5379, %v5383
  %v5450 = vunpack.c.l.b16 %v5315
  %v5451 = vunpack.c.l.b16 %v5316
  %v5452 = vunpack.c.l.b16 %v5317
  %v5453 = vunpack.c.l.b16 %v5318
  %v5454 = vunpack.c.l.b16 %v5319
  %v5455 = vunpack.c.l.b16 %v5320
  %v5456 = vunpack.c.l.b16 %v5321
  %v5457 = vunpack.c.l.b16 %v5322
  %v5458 = vunpack.c.l.b16 %v5323
  %v5459 = vunpack.c.l.b16 %v5324
  %v5460 = vunpack.c.l.b16 %v5325
  %v5461 = vunpack.c.l.b16 %v5326
  %v5462 = vunpack.c.l.b16 %v5327
  %v5463 = vunpack.c.l.b16 %v5328
  %v5464 = vunpack.c.l.b16 %v5329
  %v5465 = vunpack.c.l.b16 %v5330
  %v5466 = vunpack.c.l.b16 %v5331
  %v5467 = vunpack.c.l.b16 %v5332
  %v5468 = vunpack.c.l.b16 %v5333
  %v5469 = vunpack.c.l.b16 %v5334
  %v5470 = vunpack.c.l.b16 %v5335
  %v5471 = vunpack.c.l.b16 %v5336
  %v5472 = vunpack.c.l.b16 %v5337
  %v5473 = vunpack.c.l.b16 %v5338
  %v5474 = vunpack.c.l.b16 %v5339
  %v5475 = vunpack.c.l.b16 %v5340
  %v5476 = vunpack.c.l.b16 %v5341
  %v5477 = vunpack.c.l.b16 %v5342
  %v5478 = vunpack.c.l.b16 %v5343
  %v5479 = vunpack.c.l.b16 %v5344
  %v5480 = vunpack.c.l.b16 %v5345
  %v5481 = vunpack.c.l.b16 %v5346
  %v5482 = vunpack.c.l.b16 %v5347
  %v5483 = vunpack.c.l.b16 %v5348
  %v5484 = vunpack.c.l.b16 %v5349
  %v5485 = vunpack.c.l.b16 %v5350
  %v5486 = vunpack.c.l.b16 %v5351
  %v5487 = vunpack.c.l.b16 %v5352
  %v5488 = vunpack.c.l.b16 %v5353
  %v5489 = vunpack.c.l.b16 %v5354
  %v5490 = vunpack.c.l.b16 %v5355
  %v5491 = vunpack.c.l.b16 %v5356
  %v5492 = vunpack.c.l.b16 %v5357
  %v5493 = vunpack.c.l.b16 %v5358
  %v5494 = vunpack.c.l.b16 %v5359
  %v5495 = vunpack.c.l.b16 %v5360
  %v5496 = vunpack.c.l.b16 %v5361
  %v5497 = vunpack.c.l.b16 %v5362
  %v5498 = vunpack.c.l.b16 %v5363
  %v5499 = vunpack.c.l.b16 %v5364
  %v5500 = vunpack.c.l.b16 %v5365
  %v5501 = vunpack.c.l.b16 %v5366
  %v5502 = vunpack.c.l.b16 %v5367
  %v5503 = vunpack.c.l.b16 %v5368
  %v5504 = vunpack.c.l.b16 %v5369
  %v5505 = vunpack.c.l.b16 %v5370
  %v5506 = vunpack.c.l.b16 %v5371
  %v5507 = vunpack.c.l.b16 %v5372
  %v5508 = vunpack.c.l.b16 %v5373
  %v5509 = vunpack.c.l.b16 %v5374
  %v5510 = vunpack.c.l.b16 %v5375
  %v5511 = vunpack.c.l.b16 %v5376
  %v5512 = vunpack.c.l.b16 %v5377
  %v5513 = vunpack.c.l.b16 %v5378
  %v5514 = vpack.c.b16 %v5451, %v5450
  %v5515 = vpack.c.b16 %v5453, %v5452
  %v5516 = vpack.c.b16 %v5455, %v5454
  %v5517 = vpack.c.b16 %v5457, %v5456
  %v5518 = vpack.c.b16 %v5459, %v5458
  %v5519 = vpack.c.b16 %v5461, %v5460
  %v5520 = vpack.c.b16 %v5463, %v5462
  %v5521 = vpack.c.b16 %v5465, %v5464
  %v5522 = vpack.c.b16 %v5467, %v5466
  %v5523 = vpack.c.b16 %v5469, %v5468
  %v5524 = vpack.c.b16 %v5471, %v5470
  %v5525 = vpack.c.b16 %v5473, %v5472
  %v5526 = vpack.c.b16 %v5475, %v5474
  %v5527 = vpack.c.b16 %v5477, %v5476
  %v5528 = vpack.c.b16 %v5479, %v5478
  %v5529 = vpack.c.b16 %v5481, %v5480
  %v5530 = vpack.c.b16 %v5483, %v5482
  %v5531 = vpack.c.b16 %v5485, %v5484
  %v5532 = vpack.c.b16 %v5487, %v5486
  %v5533 = vpack.c.b16 %v5489, %v5488
  %v5534 = vpack.c.b16 %v5491, %v5490
  %v5535 = vpack.c.b16 %v5493, %v5492
  %v5536 = vpack.c.b16 %v5495, %v5494
  %v5537 = vpack.c.b16 %v5497, %v5496
  %v5538 = vpack.c.b16 %v5499, %v5498
  %v5539 = vpack.c.b16 %v5501, %v5500
  %v5540 = vpack.c.b16 %v5503, %v5502
  %v5541 = vpack.c.b16 %v5505, %v5504
  %v5542 = vpack.c.b16 %v5507, %v5506
  %v5543 = vpack.c.b16 %v5509, %v5508
  %v5544 = vpack.c.b16 %v5511, %v5510
  %v5545 = vpack.c.b16 %v5513, %v5512
  %5578 = vmatprep.subr.bf16.mxu0 0
  %5579 = vmatpush1.bf16.msra.mxu0 %v5521
  %5580 = vmatprep.subr.bf16.mxu0 0
  %5581 = vmatpush1.bf16.msra.mxu0 %v5520
  %5582 = vmatprep.subr.bf16.mxu0 0
  %5583 = vmatpush1.bf16.msra.mxu0 %v5519
  %5584 = vmatprep.subr.bf16.mxu0 0
  %5585 = vmatpush1.bf16.msra.mxu0 %v5518
  %5586 = vmatprep.subr.bf16.mxu0 0
  %5587 = vmatpush1.bf16.msra.mxu0 %v5517
  %5588 = vmatprep.subr.bf16.mxu0 0
  %5589 = vmatpush1.bf16.msra.mxu0 %v5516
  %5590 = vmatprep.subr.bf16.mxu0 0
  %5591 = vmatpush1.bf16.msra.mxu0 %v5515
  %5592 = vmatprep.subr.bf16.mxu0 0
  %5593 = vmatpush1.bf16.msra.mxu0 %v5514
  %5594 = vmatprep.subr.bf16.mxu0 0
  %5595 = vmatpush2.bf16.msra.mxu0 %v5529
  %5596 = vmatprep.subr.bf16.mxu0 0
  %5597 = vmatpush2.bf16.msra.mxu0 %v5528
  %5598 = vmatprep.subr.bf16.mxu0 0
  %5599 = vmatpush2.bf16.msra.mxu0 %v5527
  %5600 = vmatprep.subr.bf16.mxu0 0
  %5601 = vmatpush2.bf16.msra.mxu0 %v5526
  %5602 = vmatprep.subr.bf16.mxu0 0
  %5603 = vmatpush2.bf16.msra.mxu0 %v5525
  %5604 = vmatprep.subr.bf16.mxu0 0
  %5605 = vmatpush2.bf16.msra.mxu0 %v5524
  %5606 = vmatprep.subr.bf16.mxu0 0
  %5607 = vmatpush2.bf16.msra.mxu0 %v5523
  %5608 = vmatprep.subr.bf16.mxu0 0
  %5609 = vmatpush2.bf16.msra.mxu0 %v5522
  %5610 = vmatprep.mubr.bf16.mxu0 %v5312
  %5611 = vmatmul.mubr.bf16.gmra.mxu0 %v5311
  %v5612 = vpop.f32.mrf.mxu0
  %v5613 = vadd.f32 %v5384, %v5612
  %v5614 = vpop.f32.mrf.mxu0
  %v5615 = vpop.f32.mrf.mxu0
  %v5616 = vadd.f32 %v5384, %v5615
  %v5617 = vpop.f32.mrf.mxu0
  %5618 = vdwg.mxu0
  %5619 = vmatprep.subr.bf16.mxu0 0
  %5620 = vmatpush1.bf16.msra.mxu0 %v5537
  %5621 = vmatprep.subr.bf16.mxu0 0
  %5622 = vmatpush1.bf16.msra.mxu0 %v5536
  %5623 = vmatprep.subr.bf16.mxu0 0
  %5624 = vmatpush1.bf16.msra.mxu0 %v5535
  %5625 = vmatprep.subr.bf16.mxu0 0
  %5626 = vmatpush1.bf16.msra.mxu0 %v5534
  %5627 = vmatprep.subr.bf16.mxu0 0
  %5628 = vmatpush1.bf16.msra.mxu0 %v5533
  %5629 = vmatprep.subr.bf16.mxu0 0
  %5630 = vmatpush1.bf16.msra.mxu0 %v5532
  %5631 = vmatprep.subr.bf16.mxu0 0
  %5632 = vmatpush1.bf16.msra.mxu0 %v5531
  %5633 = vmatprep.subr.bf16.mxu0 0
  %5634 = vmatpush1.bf16.msra.mxu0 %v5530
  %5635 = vmatprep.subr.bf16.mxu0 0
  %5636 = vmatpush2.bf16.msra.mxu0 %v5545
  %5637 = vmatprep.subr.bf16.mxu0 0
  %5638 = vmatpush2.bf16.msra.mxu0 %v5544
  %5639 = vmatprep.subr.bf16.mxu0 0
  %5640 = vmatpush2.bf16.msra.mxu0 %v5543
  %5641 = vmatprep.subr.bf16.mxu0 0
  %5642 = vmatpush2.bf16.msra.mxu0 %v5542
  %5643 = vmatprep.subr.bf16.mxu0 0
  %5644 = vmatpush2.bf16.msra.mxu0 %v5541
  %5645 = vmatprep.subr.bf16.mxu0 0
  %5646 = vmatpush2.bf16.msra.mxu0 %v5540
  %5647 = vmatprep.subr.bf16.mxu0 0
  %5648 = vmatpush2.bf16.msra.mxu0 %v5539
  %5649 = vmatprep.subr.bf16.mxu0 0
  %5650 = vmatpush2.bf16.msra.mxu0 %v5538
  %5651 = vmatprep.mubr.bf16.mxu0 %v5314
  %5652 = vmatmul.mubr.bf16.gmra.mxu0 %v5313
  %v5653 = vpop.f32.mrf.mxu0
  %v5654 = vadd.f32 %v5613, %v5653
  %v5655 = vpop.f32.mrf.mxu0
  %v5656 = vpop.f32.mrf.mxu0
  %v5657 = vadd.f32 %v5616, %v5656
  %v5658 = vpop.f32.mrf.mxu0
  %5659 = vdwg.mxu0
  %5660 = vst [vmem:[%s8] sm:$0xff] %v5654
  %5661 = vst [vmem:[%s8 + $0x8] sm:$0xff] %v5657
  // Predicated region
  $region34: #{deep_q_forward.9} parent=0 // pred_check
    _
  $region35: #{deep_q_forward.9} parent=0 // pred_check_branch
    %5663 = sbr.rel (0) target = $region37
  $region36: #{deep_q_forward.9} parent=0 // pred_region
    _
  $region37: #{deep_q_forward.9} parent=0 // pred_fallthru
    _
  // Predicated region
  $region38: #{deep_q_forward.9} parent=0 // pred_check
    _
  $region39: #{deep_q_forward.9} parent=0 // pred_check_branch
    %5665 = sbr.rel (0) target = $region41
  $region40: #{deep_q_forward.9} parent=0 // pred_region
    _
  $region41: #{deep_q_forward.9} parent=0 // pred_fallthru
    _

</llo_original>
